<compile_context>
chip_gen: v7x
topology: tpu7x:2x2x1
jax: 0.10.0
libtpu: 0.0.40
codegen_flags: <defaults>
</compile_context>

<pallas_src>
from functools import partial

import numpy as np
import jax
import jax.numpy as jnp
from jax import lax
from jax.experimental import pallas as pl
from jax.experimental.pallas import tpu as pltpu


# ----------------------------------------------------------------------------
# Pallas kernels
# ----------------------------------------------------------------------------
def _fc_dc1_kernel(z_ref, fcw_ref, fcb_ref, w1_ref, b1_ref, o_ref):
    """Fused  relu((z @ fcW^T + fcb) @ W1 + b1)  for one N-tile of W1/b1."""
    h = jnp.dot(z_ref[...], fcw_ref[...],
                preferred_element_type=jnp.float32) + fcb_ref[...]
    y = jnp.dot(h.astype(jnp.bfloat16), w1_ref[...],          # bf16 x bf16 MXU
                preferred_element_type=jnp.float32) + b1_ref[...]
    o_ref[...] = jnp.maximum(y, 0.0).astype(o_ref.dtype)


def fc_dc1_pallas(z, fc_wT, fc_b_row, w1_mat, b1_row, *, n_tile=640):
    B, L = z.shape
    H = fc_wT.shape[1]          # 1024
    N = w1_mat.shape[1]         # 5*5*128 = 3200
    assert N % n_tile == 0 and n_tile % 128 == 0, "n_tile must be lane-legal"
    return pl.pallas_call(
        _fc_dc1_kernel,
        out_shape=jax.ShapeDtypeStruct((B, N), jnp.float32),
        grid_spec=pltpu.PrefetchScalarGridSpec(
            num_scalar_prefetch=0,
            grid=(N // n_tile,),
            in_specs=[
                pl.BlockSpec((B, L), lambda j: (0, 0)),
                pl.BlockSpec((L, H), lambda j: (0, 0)),
                pl.BlockSpec((1, H), lambda j: (0, 0)),
                pl.BlockSpec((H, n_tile), lambda j: (0, j)),   # W1 N-tile (bf16)
                pl.BlockSpec((1, n_tile), lambda j: (0, j)),
            ],
            out_specs=pl.BlockSpec((B, n_tile), lambda j: (0, j)),
        ),
        compiler_params=pltpu.CompilerParams(
            dimension_semantics=("parallel",),
            vmem_limit_bytes=32 << 20),
    )(z, fc_wT, fc_b_row, w1_mat, b1_row)


def _phase_conv_relu_kernel(x_ref, w_ref, b_ref, o_ref, *, Wp, L):
    """In-kernel im2col (slab trick) + 9-tap phase GEMM + bias + ReLU.

    x_ref: (1, Hp*Wp, Ci) f32 padded, flattened NHWC activation (one batch).
    w_ref: (9, Ci, 4*Co) bf16 per-tap phase weights.
    o_ref: (1, L, 4*Co)  f32 slab output, L = (He-1)*Wp + We; slab row
           r = m*Wp + n (rows with n >= We are junk and cropped by the glue).
    """
    acc = None
    for t in range(3):
        for u in range(3):
            s = t * Wp + u
            xs = x_ref[0, s:s + L, :].astype(jnp.bfloat16)     # static slice
            y = jnp.dot(xs, w_ref[t * 3 + u],
                        preferred_element_type=jnp.float32)
            acc = y if acc is None else acc + y
    o_ref[0] = jnp.maximum(acc + b_ref[...], 0.0).astype(o_ref.dtype)


def phase_conv_relu_pallas(x_flat, w_taps, b_row, *, Wp):
    B, HpWp, Ci = x_flat.shape
    assert HpWp == Wp * Wp
    He = We = Wp - 2
    L = (He - 1) * Wp + We
    NO = w_taps.shape[2]                                       # 4*Co
    kern = partial(_phase_conv_relu_kernel, Wp=Wp, L=L)
    return pl.pallas_call(
        kern,
        out_shape=jax.ShapeDtypeStruct((B, L, NO), jnp.float32),
        grid_spec=pltpu.PrefetchScalarGridSpec(
            num_scalar_prefetch=0,
            grid=(B,),
            in_specs=[
                pl.BlockSpec((1, HpWp, Ci), lambda b: (b, 0, 0)),
                pl.BlockSpec((9, Ci, NO), lambda b: (0, 0, 0)),   # VMEM resident
                pl.BlockSpec((1, NO), lambda b: (0, 0)),
            ],
            out_specs=pl.BlockSpec((1, L, NO), lambda b: (b, 0, 0)),
        ),
        compiler_params=pltpu.CompilerParams(
            dimension_semantics=("parallel",),       # both TCs on v7x
            vmem_limit_bytes=32 << 20),
    )(x_flat, w_taps, b_row)


def _dc4_sigmoid_kernel(x_ref, w_ref, b_ref, o_ref, *, Wp, L):
    """Transposed-orientation slab GEMM for deconv4 (lane-dense output).

    x_ref: (1, Ci, Hp*Wp) f32 padded, flattened CHW activation (one batch).
    w_ref: (9, 12, Ci)    bf16 transposed per-tap phase weights.
    o_ref: (1, 12, L)     f32, columns = slab spatial positions (lane-dense).
    """
    acc = None
    for t in range(3):
        for u in range(3):
            s = t * Wp + u
            xs = x_ref[0, :, s:s + L].astype(jnp.bfloat16)     # static slice
            y = jnp.dot(w_ref[t * 3 + u], xs,
                        preferred_element_type=jnp.float32)
            acc = y if acc is None else acc + y
    o_ref[0] = jax.nn.sigmoid(acc + b_ref[...]).astype(o_ref.dtype)


def dc4_sigmoid_pallas(x_flatT, w_tapsT, b_col, *, Wp):
    B, Ci, HpWp = x_flatT.shape
    assert HpWp == Wp * Wp
    He = We = Wp - 2
    L = (He - 1) * Wp + We
    NO = w_tapsT.shape[1]                                      # 4*Co = 12
    kern = partial(_dc4_sigmoid_kernel, Wp=Wp, L=L)
    return pl.pallas_call(
        kern,
        out_shape=jax.ShapeDtypeStruct((B, NO, L), jnp.float32),
        grid_spec=pltpu.PrefetchScalarGridSpec(
            num_scalar_prefetch=0,
            grid=(B,),
            in_specs=[
                pl.BlockSpec((1, Ci, HpWp), lambda b: (b, 0, 0)),
                pl.BlockSpec((9, NO, Ci), lambda b: (0, 0, 0)),
                pl.BlockSpec((NO, 1), lambda b: (0, 0)),
            ],
            out_specs=pl.BlockSpec((1, NO, L), lambda b: (b, 0, 0)),
        ),
        compiler_params=pltpu.CompilerParams(
            dimension_semantics=("parallel",),
            vmem_limit_bytes=32 << 20),
    )(x_flatT, w_tapsT, b_col)


# ----------------------------------------------------------------------------
# Glue (zero-FLOP layout plumbing around the kernels)
# ----------------------------------------------------------------------------
# TODO(synk): the inter-layer phase interleave (6-D transpose) stays as XLA
# glue; fusing dc2->dc3->dc4 into one kernel would need it in-register.
def _pad_flat_nhwc(x, pad=2):
    """(B,H,W,C) -> ((B, Hp*Wp, C), Wp) with pad=2 each side, row-major flat."""
    B, H, W, C = x.shape
    Hp, Wp = H + 2 * pad, W + 2 * pad
    xp = jnp.pad(x, ((0, 0), (pad, pad), (pad, pad), (0, 0)))
    return xp.reshape(B, Hp * Wp, C), Wp


def _pad_flat_chw(x, pad=2):
    """(B,H,W,C) -> ((B, C, Hp*Wp), Wp): channel-major padded flat spatial."""
    B, H, W, C = x.shape
    Hp, Wp = H + 2 * pad, W + 2 * pad
    xt = jnp.transpose(x, (0, 3, 1, 2))
    xp = jnp.pad(xt, ((0, 0), (0, 0), (pad, pad), (pad, pad)))
    return xp.reshape(B, C, Hp * Wp), Wp


def _slab_to_nhwc(y, Wp, Co, Ho, Wo):
    """(B, L, 4*Co) slab phase output -> (B, Ho, Wo, Co) NHWC."""
    B = y.shape[0]
    He = We = Wp - 2
    L = (He - 1) * Wp + We
    y = jnp.pad(y, ((0, 0), (0, He * Wp - L), (0, 0)))        # -> (B, He*Wp, 4Co)
    y = y.reshape(B, He, Wp, 2, 2, Co)[:, :, :We]             # drop junk cols
    y = jnp.transpose(y, (0, 1, 3, 2, 4, 5)).reshape(B, 2 * He, 2 * We, Co)
    return y[:, :Ho, :Wo, :]


def _dc4_slab_to_nchw(y, Wp, Co):
    """(B, 12, L) transposed slab output -> (B, Co, 2*He, 2*We) NCHW."""
    B = y.shape[0]
    He = We = Wp - 2
    L = (He - 1) * Wp + We
    y = jnp.pad(y, ((0, 0), (0, 0), (0, He * Wp - L)))        # -> (B, 12, He*Wp)
    y = y.reshape(B, 2, 2, Co, He, Wp)[..., :We]              # (b,ph,pw,co,m,n)
    y = jnp.transpose(y, (0, 3, 4, 1, 5, 2))                  # (b,co,m,ph,n,pw)
    return y.reshape(B, Co, 2 * He, 2 * We)


# ----------------------------------------------------------------------------
# Parameters / one-time weight preprocessing
# ----------------------------------------------------------------------------
_DECONV_SPECS = [  # (name, Cin, Cout, K)
    ("dc1", 1024, 128, 5),
    ("dc2", 128, 64, 5),
    ("dc3", 64, 32, 6),
    ("dc4", 32, 3, 6),
]


def init_params(key, latent_dims):
    ks = jax.random.split(key, 2 + 2 * len(_DECONV_SPECS))

    def u(k, shape, fan_in):
        s = 1.0 / np.sqrt(fan_in)
        return jax.random.uniform(k, shape, jnp.float32, -s, s)

    p = {}
    p["fc_w"] = u(ks[0], (256 * 2 * 2, latent_dims), latent_dims)  # (out, in)
    p["fc_b"] = u(ks[1], (256 * 2 * 2,), latent_dims)
    for i, (name, ci, co, k) in enumerate(_DECONV_SPECS):
        fan = ci * k * k
        p[name + "_w"] = u(ks[2 + 2 * i], (ci, co, k, k), fan)  # torch layout
        p[name + "_b"] = u(ks[3 + 2 * i], (co,), fan)
    return p


def _build_phase_weight_taps(w_pt, K):
    """(Ci,Co,K,K) ConvTranspose2d weight -> (9, Ci, 4*Co) per-tap phase weights.

    Tap index = t*3 + u (3x3 im2col with pad=2), column = (ph*2 + pw)*Co + co
    with (ph, pw) the output sub-pixel phase.
    Entry = W[ci, co, ph + 2*(2-t), pw + 2*(2-u)] (0 where the index is >= K,
    which only happens for the odd phases of K=5).
    """
    w = np.asarray(w_pt)
    Ci, Co = w.shape[0], w.shape[1]
    m = np.zeros((3, 3, Ci, 2, 2, Co), np.float32)
    for t in range(3):
        for u in range(3):
            for ph in range(2):
                for pw in range(2):
                    kh = ph + 2 * (2 - t)
                    kw = pw + 2 * (2 - u)
                    if kh < K and kw < K:
                        m[t, u, :, ph, pw, :] = w[:, :, kh, kw]
    return m.reshape(9, Ci, 4 * Co)


def prepare_params(params):
    """One-time weight re-layout + bf16 cast (hoisted out of the forward pass)."""
    prep = {}
    prep["fc_wT"] = jnp.transpose(params["fc_w"], (1, 0))             # (L,1024) f32
    prep["fc_b_row"] = params["fc_b"].reshape(1, -1)                  # (1,1024) f32
    # deconv1 on a 1x1 input == GEMM with N = 5*5*128, column order (kh, kw, co)
    prep["w1_mat"] = jnp.transpose(params["dc1_w"], (0, 2, 3, 1)) \
        .reshape(1024, 5 * 5 * 128).astype(jnp.bfloat16)              # 6.4 MiB
    prep["b1_row"] = jnp.tile(params["dc1_b"], 5 * 5).reshape(1, -1)  # (1,3200) f32
    # deconv2/3: per-tap phase weights (9, Ci, 4*Co), bf16
    prep["w2_taps"] = jnp.asarray(
        _build_phase_weight_taps(params["dc2_w"], 5), jnp.bfloat16)   # (9,128,256)
    prep["b2_row"] = jnp.tile(params["dc2_b"], 4).reshape(1, -1)
    prep["w3_taps"] = jnp.asarray(
        _build_phase_weight_taps(params["dc3_w"], 6), jnp.bfloat16)   # (9,64,128)
    prep["b3_row"] = jnp.tile(params["dc3_b"], 4).reshape(1, -1)
    # deconv4: transposed per-tap weights -> lane-dense kernel output
    prep["w4_tapsT"] = jnp.asarray(
        np.transpose(_build_phase_weight_taps(params["dc4_w"], 6), (0, 2, 1)),
        jnp.bfloat16)                                                 # (9,12,32)
    prep["b4_col"] = jnp.tile(params["dc4_b"], 4).reshape(12, 1)
    return prep


# ----------------------------------------------------------------------------
# Forward pass
# ----------------------------------------------------------------------------
def decoder_forward(prep, z):
    B = z.shape[0]

    # fc + deconv1 (1x1 spatial input -> a single fused GEMM), ReLU fused.
    x = fc_dc1_pallas(z, prep["fc_wT"], prep["fc_b_row"],
                      prep["w1_mat"], prep["b1_row"])
    x = x.reshape(B, 5, 5, 128)                          # NHWC

    # deconv2 (K=5): in-kernel 9-tap slab phase GEMM, ReLU fused.
    xf, Wp = _pad_flat_nhwc(x)                           # (B, 81, 128)
    y = phase_conv_relu_pallas(xf, prep["w2_taps"], prep["b2_row"], Wp=Wp)
    x = _slab_to_nhwc(y, Wp, 64, 13, 13)                 # (B, 13, 13, 64)

    # deconv3 (K=6): same structure.
    xf, Wp = _pad_flat_nhwc(x)                           # (B, 289, 64)
    y = phase_conv_relu_pallas(xf, prep["w3_taps"], prep["b3_row"], Wp=Wp)
    x = _slab_to_nhwc(y, Wp, 32, 30, 30)                 # (B, 30, 30, 32)

    # deconv4 (K=6): transposed slab GEMM (12,32)@(32,1086) x 9 taps per batch,
    # sigmoid fused, lane-dense stores, emits NCHW via a final layout-only glue.
    xf, Wp = _pad_flat_chw(x)                            # (B, 32, 1156)
    y = dc4_sigmoid_pallas(xf, prep["w4_tapsT"], prep["b4_col"], Wp=Wp)
    return _dc4_slab_to_nchw(y, Wp, 3)                   # (B, 3, 64, 64) NCHW


# ------------------------ pure-JAX reference (for checking) -----------------
def reference_forward(params, z):
    h = jnp.dot(z, params["fc_w"].T, precision=lax.Precision.HIGHEST) + params["fc_b"]
    x = h.reshape(z.shape[0], 1, 1, 1024)
    acts = ["relu", "relu", "relu", "sigmoid"]
    for (name, ci, co, K), act in zip(_DECONV_SPECS, acts):
        w_pt = params[name + "_w"]
        w_flip = jnp.transpose(w_pt[:, :, ::-1, ::-1], (2, 3, 0, 1))
        x = lax.conv_general_dilated(
            x, w_flip, window_strides=(1, 1),
            padding=[(K - 1, K - 1), (K - 1, K - 1)],
            lhs_dilation=(2, 2),
            dimension_numbers=("NHWC", "HWIO", "NHWC"),
            precision=lax.Precision.HIGHEST) + params[name + "_b"]
        x = jnp.maximum(x, 0.0) if act == "relu" else jax.nn.sigmoid(x)
    return jnp.transpose(x, (0, 3, 1, 2))


# --------------------------------- main --------------------------------------
if __name__ == "__main__":
    latent_dims = 32
    B = 2
    key = jax.random.PRNGKey(0)
    pkey, zkey = jax.random.split(key)
    params = init_params(pkey, latent_dims)
    z = jax.random.normal(zkey, (B, latent_dims), jnp.float32)

    prep = prepare_params(params)          # weight preprocessing hoisted (once)
    fwd = jax.jit(decoder_forward)

    out = jax.block_until_ready(fwd(prep, z))
    assert out.shape == (B, 3, 64, 64), out.shape

    ref = jax.block_until_ready(reference_forward(params, z))
    err = float(jnp.max(jnp.abs(out - ref)))
    # bf16 weights/activation inputs on the deconv GEMMs (f32 accumulation):
    # tolerance relaxed accordingly vs the HIGHEST-precision f32 reference.
    assert err < 2e-2, f"mismatch vs reference: max abs err = {err}"

    print("KERNEL_OK")
</pallas_src>

<mosaic_0001>
module attributes {stable_mosaic.version = 11 : i64} {
  func.func @_fc_dc1_kernel(%arg0: i32, %arg1: memref<2x32xf32, #tpu.memory_space<vmem>>, %arg2: memref<32x1024xf32, #tpu.memory_space<vmem>>, %arg3: memref<1x1024xf32, #tpu.memory_space<vmem>>, %arg4: memref<1024x640xbf16, #tpu.memory_space<vmem>>, %arg5: memref<1x640xf32, #tpu.memory_space<vmem>>, %arg6: memref<2x640xf32, #tpu.memory_space<vmem>>) attributes {dimension_semantics = [#tpu.dimension_semantics<parallel>], iteration_bounds = array<i64: 5>, scalar_prefetch = 0 : i64, scratch_operands = 0 : i64, tpu.core_type = #tpu.core_type<tc>, window_params = [{pipeline_mode = #tpu.pipeline_mode<synchronous>, transform_indices = @transform_0, window_bounds = array<i64: 2, 32>}, {pipeline_mode = #tpu.pipeline_mode<synchronous>, transform_indices = @transform_1, window_bounds = array<i64: 32, 1024>}, {pipeline_mode = #tpu.pipeline_mode<synchronous>, transform_indices = @transform_2, window_bounds = array<i64: 1, 1024>}, {transform_indices = @transform_3, window_bounds = array<i64: 1024, 640>}, {transform_indices = @transform_4, window_bounds = array<i64: 1, 640>}, {transform_indices = @transform_5, window_bounds = array<i64: 2, 640>}]} {
    %c0 = arith.constant 0 : index
    %c0_0 = arith.constant 0 : index
    %0 = vector.load %arg1[%c0, %c0_0] : memref<2x32xf32, #tpu.memory_space<vmem>>, vector<2x32xf32>
    %c0_1 = arith.constant 0 : index
    %c0_2 = arith.constant 0 : index
    %1 = vector.load %arg2[%c0_1, %c0_2] : memref<32x1024xf32, #tpu.memory_space<vmem>>, vector<32x1024xf32>
    %cst = arith.constant dense<0.000000e+00> : vector<2x1024xf32>
    %2 = tpu.matmul %0, %1, %cst {dimension_numbers = #tpu.dot_dimension_numbers<[1], [0], [0], [1], [0, 0, 1, 1], [], []>} : vector<2x32xf32>, vector<32x1024xf32>, vector<2x1024xf32> -> vector<2x1024xf32>
    %c0_3 = arith.constant 0 : index
    %c0_4 = arith.constant 0 : index
    %3 = vector.load %arg3[%c0_3, %c0_4] : memref<1x1024xf32, #tpu.memory_space<vmem>>, vector<1x1024xf32>
    %4 = vector.broadcast %3 : vector<1x1024xf32> to vector<2x1024xf32>
    %5 = arith.addf %2, %4 : vector<2x1024xf32>
    %6 = arith.truncf %5 : vector<2x1024xf32> to vector<2x1024xbf16>
    %c0_5 = arith.constant 0 : index
    %c0_6 = arith.constant 0 : index
    %7 = vector.load %arg4[%c0_5, %c0_6] : memref<1024x640xbf16, #tpu.memory_space<vmem>>, vector<1024x640xbf16>
    %cst_7 = arith.constant dense<0.000000e+00> : vector<2x640xf32>
    %8 = tpu.matmul %6, %7, %cst_7 {dimension_numbers = #tpu.dot_dimension_numbers<[1], [0], [0], [1], [0, 0, 1, 1], [], []>} : vector<2x1024xbf16>, vector<1024x640xbf16>, vector<2x640xf32> -> vector<2x640xf32>
    %c0_8 = arith.constant 0 : index
    %c0_9 = arith.constant 0 : index
    %9 = vector.load %arg5[%c0_8, %c0_9] : memref<1x640xf32, #tpu.memory_space<vmem>>, vector<1x640xf32>
    %10 = vector.broadcast %9 : vector<1x640xf32> to vector<2x640xf32>
    %11 = arith.addf %8, %10 : vector<2x640xf32>
    %cst_10 = arith.constant 0.000000e+00 : f32
    %12 = vector.broadcast %cst_10 : f32 to vector<2x640xf32>
    %13 = arith.maximumf %11, %12 : vector<2x640xf32>
    %c0_11 = arith.constant 0 : index
    %c0_12 = arith.constant 0 : index
    %14 = vector.load %arg6[%c0_11, %c0_12] : memref<2x640xf32, #tpu.memory_space<vmem>>, vector<2x640xf32>
    tpu.vector_store %arg6[%c0_11, %c0_12], %13 {strides = array<i32>} : memref<2x640xf32, #tpu.memory_space<vmem>>, vector<2x640xf32>,
    return
  }
  func.func @transform_0(%arg0: i32) -> (i32, i32) {
    %c0_i32 = arith.constant 0 : i32
    %c0_i32_0 = arith.constant 0 : i32
    %c0_i32_1 = arith.constant 0 : i32
    return %c0_i32, %c0_i32_0 : i32, i32
  }
  func.func @transform_1(%arg0: i32) -> (i32, i32) {
    %c0_i32 = arith.constant 0 : i32
    %c0_i32_0 = arith.constant 0 : i32
    %c0_i32_1 = arith.constant 0 : i32
    return %c0_i32, %c0_i32_0 : i32, i32
  }
  func.func @transform_2(%arg0: i32) -> (i32, i32) {
    %c0_i32 = arith.constant 0 : i32
    %c0_i32_0 = arith.constant 0 : i32
    %c0_i32_1 = arith.constant 0 : i32
    return %c0_i32, %c0_i32_0 : i32, i32
  }
  func.func @transform_3(%arg0: i32) -> (i32, i32) {
    %c0_i32 = arith.constant 0 : i32
    %c0_i32_0 = arith.constant 0 : i32
    return %c0_i32, %arg0 : i32, i32
  }
  func.func @transform_4(%arg0: i32) -> (i32, i32) {
    %c0_i32 = arith.constant 0 : i32
    %c0_i32_0 = arith.constant 0 : i32
    return %c0_i32, %arg0 : i32, i32
  }
  func.func @transform_5(%arg0: i32) -> (i32, i32) {
    %c0_i32 = arith.constant 0 : i32
    %c0_i32_0 = arith.constant 0 : i32
    return %c0_i32, %arg0 : i32, i32
  }
}

module attributes {stable_mosaic.version = 11 : i64} {
  func.func @_phase_conv_relu_kernel(%arg0: i32, %arg1: memref<1x81x128xf32, #tpu.memory_space<vmem>>, %arg2: memref<9x128x256xbf16, #tpu.memory_space<vmem>>, %arg3: memref<1x256xf32, #tpu.memory_space<vmem>>, %arg4: memref<1x61x256xf32, #tpu.memory_space<vmem>>) attributes {dimension_semantics = [#tpu.dimension_semantics<parallel>], iteration_bounds = array<i64: 2>, scalar_prefetch = 0 : i64, scratch_operands = 0 : i64, tpu.core_type = #tpu.core_type<tc>, window_params = [{transform_indices = @transform_0, window_bounds = array<i64: 1, 81, 128>}, {pipeline_mode = #tpu.pipeline_mode<synchronous>, transform_indices = @transform_1, window_bounds = array<i64: 9, 128, 256>}, {pipeline_mode = #tpu.pipeline_mode<synchronous>, transform_indices = @transform_2, window_bounds = array<i64: 1, 256>}, {transform_indices = @transform_3, window_bounds = array<i64: 1, 61, 256>}]} {
    %c0 = arith.constant 0 : index
    %c0_0 = arith.constant 0 : index
    %c0_1 = arith.constant 0 : index
    %0 = vector.load %arg1[%c0, %c0_0, %c0_1] : memref<1x81x128xf32, #tpu.memory_space<vmem>>, vector<1x61x128xf32>
    %1 = vector.shape_cast %0 : vector<1x61x128xf32> to vector<61x128xf32>
    %2 = arith.truncf %1 : vector<61x128xf32> to vector<61x128xbf16>
    %c0_2 = arith.constant 0 : index
    %c0_3 = arith.constant 0 : index
    %c0_4 = arith.constant 0 : index
    %3 = vector.load %arg2[%c0_2, %c0_3, %c0_4] : memref<9x128x256xbf16, #tpu.memory_space<vmem>>, vector<1x128x256xbf16>
    %4 = vector.shape_cast %3 : vector<1x128x256xbf16> to vector<128x256xbf16>
    %cst = arith.constant dense<0.000000e+00> : vector<61x256xf32>
    %5 = tpu.matmul %2, %4, %cst {dimension_numbers = #tpu.dot_dimension_numbers<[1], [0], [0], [1], [0, 0, 1, 1], [], []>} : vector<61x128xbf16>, vector<128x256xbf16>, vector<61x256xf32> -> vector<61x256xf32>
    %c0_5 = arith.constant 0 : index
    %c1 = arith.constant 1 : index
    %c0_6 = arith.constant 0 : index
    %6 = vector.load %arg1[%c0_5, %c1, %c0_6] : memref<1x81x128xf32, #tpu.memory_space<vmem>>, vector<1x61x128xf32>
    %7 = vector.shape_cast %6 : vector<1x61x128xf32> to vector<61x128xf32>
    %8 = arith.truncf %7 : vector<61x128xf32> to vector<61x128xbf16>
    %c1_7 = arith.constant 1 : index
    %c0_8 = arith.constant 0 : index
    %c0_9 = arith.constant 0 : index
    %9 = vector.load %arg2[%c1_7, %c0_8, %c0_9] : memref<9x128x256xbf16, #tpu.memory_space<vmem>>, vector<1x128x256xbf16>
    %10 = vector.shape_cast %9 : vector<1x128x256xbf16> to vector<128x256xbf16>
    %cst_10 = arith.constant dense<0.000000e+00> : vector<61x256xf32>
    %11 = tpu.matmul %8, %10, %cst_10 {dimension_numbers = #tpu.dot_dimension_numbers<[1], [0], [0], [1], [0, 0, 1, 1], [], []>} : vector<61x128xbf16>, vector<128x256xbf16>, vector<61x256xf32> -> vector<61x256xf32>
    %12 = arith.addf %5, %11 : vector<61x256xf32>
    %c0_11 = arith.constant 0 : index
    %c2 = arith.constant 2 : index
    %c0_12 = arith.constant 0 : index
    %13 = vector.load %arg1[%c0_11, %c2, %c0_12] : memref<1x81x128xf32, #tpu.memory_space<vmem>>, vector<1x61x128xf32>
    %14 = vector.shape_cast %13 : vector<1x61x128xf32> to vector<61x128xf32>
    %15 = arith.truncf %14 : vector<61x128xf32> to vector<61x128xbf16>
    %c2_13 = arith.constant 2 : index
    %c0_14 = arith.constant 0 : index
    %c0_15 = arith.constant 0 : index
    %16 = vector.load %arg2[%c2_13, %c0_14, %c0_15] : memref<9x128x256xbf16, #tpu.memory_space<vmem>>, vector<1x128x256xbf16>
    %17 = vector.shape_cast %16 : vector<1x128x256xbf16> to vector<128x256xbf16>
    %cst_16 = arith.constant dense<0.000000e+00> : vector<61x256xf32>
    %18 = tpu.matmul %15, %17, %cst_16 {dimension_numbers = #tpu.dot_dimension_numbers<[1], [0], [0], [1], [0, 0, 1, 1], [], []>} : vector<61x128xbf16>, vector<128x256xbf16>, vector<61x256xf32> -> vector<61x256xf32>
    %19 = arith.addf %12, %18 : vector<61x256xf32>
    %c0_17 = arith.constant 0 : index
    %c9 = arith.constant 9 : index
    %c0_18 = arith.constant 0 : index
    %20 = vector.load %arg1[%c0_17, %c9, %c0_18] : memref<1x81x128xf32, #tpu.memory_space<vmem>>, vector<1x61x128xf32>
    %21 = vector.shape_cast %20 : vector<1x61x128xf32> to vector<61x128xf32>
    %22 = arith.truncf %21 : vector<61x128xf32> to vector<61x128xbf16>
    %c3 = arith.constant 3 : index
    %c0_19 = arith.constant 0 : index
    %c0_20 = arith.constant 0 : index
    %23 = vector.load %arg2[%c3, %c0_19, %c0_20] : memref<9x128x256xbf16, #tpu.memory_space<vmem>>, vector<1x128x256xbf16>
    %24 = vector.shape_cast %23 : vector<1x128x256xbf16> to vector<128x256xbf16>
    %cst_21 = arith.constant dense<0.000000e+00> : vector<61x256xf32>
    %25 = tpu.matmul %22, %24, %cst_21 {dimension_numbers = #tpu.dot_dimension_numbers<[1], [0], [0], [1], [0, 0, 1, 1], [], []>} : vector<61x128xbf16>, vector<128x256xbf16>, vector<61x256xf32> -> vector<61x256xf32>
    %26 = arith.addf %19, %25 : vector<61x256xf32>
    %c0_22 = arith.constant 0 : index
    %c10 = arith.constant 10 : index
    %c0_23 = arith.constant 0 : index
    %27 = vector.load %arg1[%c0_22, %c10, %c0_23] : memref<1x81x128xf32, #tpu.memory_space<vmem>>, vector<1x61x128xf32>
    %28 = vector.shape_cast %27 : vector<1x61x128xf32> to vector<61x128xf32>
    %29 = arith.truncf %28 : vector<61x128xf32> to vector<61x128xbf16>
    %c4 = arith.constant 4 : index
    %c0_24 = arith.constant 0 : index
    %c0_25 = arith.constant 0 : index
    %30 = vector.load %arg2[%c4, %c0_24, %c0_25] : memref<9x128x256xbf16, #tpu.memory_space<vmem>>, vector<1x128x256xbf16>
    %31 = vector.shape_cast %30 : vector<1x128x256xbf16> to vector<128x256xbf16>
    %cst_26 = arith.constant dense<0.000000e+00> : vector<61x256xf32>
    %32 = tpu.matmul %29, %31, %cst_26 {dimension_numbers = #tpu.dot_dimension_numbers<[1], [0], [0], [1], [0, 0, 1, 1], [], []>} : vector<61x128xbf16>, vector<128x256xbf16>, vector<61x256xf32> -> vector<61x256xf32>
    %33 = arith.addf %26, %32 : vector<61x256xf32>
    %c0_27 = arith.constant 0 : index
    %c11 = arith.constant 11 : index
    %c0_28 = arith.constant 0 : index
    %34 = vector.load %arg1[%c0_27, %c11, %c0_28] : memref<1x81x128xf32, #tpu.memory_space<vmem>>, vector<1x61x128xf32>
    %35 = vector.shape_cast %34 : vector<1x61x128xf32> to vector<61x128xf32>
    %36 = arith.truncf %35 : vector<61x128xf32> to vector<61x128xbf16>
    %c5 = arith.constant 5 : index
    %c0_29 = arith.constant 0 : index
    %c0_30 = arith.constant 0 : index
    %37 = vector.load %arg2[%c5, %c0_29, %c0_30] : memref<9x128x256xbf16, #tpu.memory_space<vmem>>, vector<1x128x256xbf16>
    %38 = vector.shape_cast %37 : vector<1x128x256xbf16> to vector<128x256xbf16>
    %cst_31 = arith.constant dense<0.000000e+00> : vector<61x256xf32>
    %39 = tpu.matmul %36, %38, %cst_31 {dimension_numbers = #tpu.dot_dimension_numbers<[1], [0], [0], [1], [0, 0, 1, 1], [], []>} : vector<61x128xbf16>, vector<128x256xbf16>, vector<61x256xf32> -> vector<61x256xf32>
    %40 = arith.addf %33, %39 : vector<61x256xf32>
    %c0_32 = arith.constant 0 : index
    %c18 = arith.constant 18 : index
    %c0_33 = arith.constant 0 : index
    %41 = vector.load %arg1[%c0_32, %c18, %c0_33] : memref<1x81x128xf32, #tpu.memory_space<vmem>>, vector<1x61x128xf32>
    %42 = vector.shape_cast %41 : vector<1x61x128xf32> to vector<61x128xf32>
    %43 = arith.truncf %42 : vector<61x128xf32> to vector<61x128xbf16>
    %c6 = arith.constant 6 : index
    %c0_34 = arith.constant 0 : index
    %c0_35 = arith.constant 0 : index
    %44 = vector.load %arg2[%c6, %c0_34, %c0_35] : memref<9x128x256xbf16, #tpu.memory_space<vmem>>, vector<1x128x256xbf16>
    %45 = vector.shape_cast %44 : vector<1x128x256xbf16> to vector<128x256xbf16>
    %cst_36 = arith.constant dense<0.000000e+00> : vector<61x256xf32>
    %46 = tpu.matmul %43, %45, %cst_36 {dimension_numbers = #tpu.dot_dimension_numbers<[1], [0], [0], [1], [0, 0, 1, 1], [], []>} : vector<61x128xbf16>, vector<128x256xbf16>, vector<61x256xf32> -> vector<61x256xf32>
    %47 = arith.addf %40, %46 : vector<61x256xf32>
    %c0_37 = arith.constant 0 : index
    %c19 = arith.constant 19 : index
    %c0_38 = arith.constant 0 : index
    %48 = vector.load %arg1[%c0_37, %c19, %c0_38] : memref<1x81x128xf32, #tpu.memory_space<vmem>>, vector<1x61x128xf32>
    %49 = vector.shape_cast %48 : vector<1x61x128xf32> to vector<61x128xf32>
    %50 = arith.truncf %49 : vector<61x128xf32> to vector<61x128xbf16>
    %c7 = arith.constant 7 : index
    %c0_39 = arith.constant 0 : index
    %c0_40 = arith.constant 0 : index
    %51 = vector.load %arg2[%c7, %c0_39, %c0_40] : memref<9x128x256xbf16, #tpu.memory_space<vmem>>, vector<1x128x256xbf16>
    %52 = vector.shape_cast %51 : vector<1x128x256xbf16> to vector<128x256xbf16>
    %cst_41 = arith.constant dense<0.000000e+00> : vector<61x256xf32>
    %53 = tpu.matmul %50, %52, %cst_41 {dimension_numbers = #tpu.dot_dimension_numbers<[1], [0], [0], [1], [0, 0, 1, 1], [], []>} : vector<61x128xbf16>, vector<128x256xbf16>, vector<61x256xf32> -> vector<61x256xf32>
    %54 = arith.addf %47, %53 : vector<61x256xf32>
    %c0_42 = arith.constant 0 : index
    %c20 = arith.constant 20 : index
    %c0_43 = arith.constant 0 : index
    %55 = vector.load %arg1[%c0_42, %c20, %c0_43] : memref<1x81x128xf32, #tpu.memory_space<vmem>>, vector<1x61x128xf32>
    %56 = vector.shape_cast %55 : vector<1x61x128xf32> to vector<61x128xf32>
    %57 = arith.truncf %56 : vector<61x128xf32> to vector<61x128xbf16>
    %c8 = arith.constant 8 : index
    %c0_44 = arith.constant 0 : index
    %c0_45 = arith.constant 0 : index
    %58 = vector.load %arg2[%c8, %c0_44, %c0_45] : memref<9x128x256xbf16, #tpu.memory_space<vmem>>, vector<1x128x256xbf16>
    %59 = vector.shape_cast %58 : vector<1x128x256xbf16> to vector<128x256xbf16>
    %cst_46 = arith.constant dense<0.000000e+00> : vector<61x256xf32>
    %60 = tpu.matmul %57, %59, %cst_46 {dimension_numbers = #tpu.dot_dimension_numbers<[1], [0], [0], [1], [0, 0, 1, 1], [], []>} : vector<61x128xbf16>, vector<128x256xbf16>, vector<61x256xf32> -> vector<61x256xf32>
    %61 = arith.addf %54, %60 : vector<61x256xf32>
    %c0_47 = arith.constant 0 : index
    %c0_48 = arith.constant 0 : index
    %62 = vector.load %arg3[%c0_47, %c0_48] : memref<1x256xf32, #tpu.memory_space<vmem>>, vector<1x256xf32>
    %63 = vector.broadcast %62 : vector<1x256xf32> to vector<61x256xf32>
    %64 = arith.addf %61, %63 : vector<61x256xf32>
    %cst_49 = arith.constant 0.000000e+00 : f32
    %65 = vector.broadcast %cst_49 : f32 to vector<61x256xf32>
    %66 = arith.maximumf %64, %65 : vector<61x256xf32>
    %c0_50 = arith.constant 0 : index
    %c0_51 = arith.constant 0 : index
    %c0_52 = arith.constant 0 : index
    %67 = vector.load %arg4[%c0_50, %c0_51, %c0_52] : memref<1x61x256xf32, #tpu.memory_space<vmem>>, vector<1x61x256xf32>
    %68 = vector.shape_cast %67 : vector<1x61x256xf32> to vector<61x256xf32>
    %69 = vector.shape_cast %66 : vector<61x256xf32> to vector<1x61x256xf32>
    tpu.vector_store %arg4[%c0_50, %c0_51, %c0_52], %69 {strides = array<i32>} : memref<1x61x256xf32, #tpu.memory_space<vmem>>, vector<1x61x256xf32>,
    return
  }
  func.func @transform_0(%arg0: i32) -> (i32, i32, i32) {
    %c0_i32 = arith.constant 0 : i32
    %c0_i32_0 = arith.constant 0 : i32
    %c0_i32_1 = arith.constant 0 : i32
    return %arg0, %c0_i32, %c0_i32_0 : i32, i32, i32
  }
  func.func @transform_1(%arg0: i32) -> (i32, i32, i32) {
    %c0_i32 = arith.constant 0 : i32
    %c0_i32_0 = arith.constant 0 : i32
    %c0_i32_1 = arith.constant 0 : i32
    %c0_i32_2 = arith.constant 0 : i32
    return %c0_i32, %c0_i32_0, %c0_i32_1 : i32, i32, i32
  }
  func.func @transform_2(%arg0: i32) -> (i32, i32) {
    %c0_i32 = arith.constant 0 : i32
    %c0_i32_0 = arith.constant 0 : i32
    %c0_i32_1 = arith.constant 0 : i32
    return %c0_i32, %c0_i32_0 : i32, i32
  }
  func.func @transform_3(%arg0: i32) -> (i32, i32, i32) {
    %c0_i32 = arith.constant 0 : i32
    %c0_i32_0 = arith.constant 0 : i32
    %c0_i32_1 = arith.constant 0 : i32
    return %arg0, %c0_i32, %c0_i32_0 : i32, i32, i32
  }
}

module attributes {stable_mosaic.version = 11 : i64} {
  func.func @_phase_conv_relu_kernel(%arg0: i32, %arg1: memref<1x289x64xf32, #tpu.memory_space<vmem>>, %arg2: memref<9x64x128xbf16, #tpu.memory_space<vmem>>, %arg3: memref<1x128xf32, #tpu.memory_space<vmem>>, %arg4: memref<1x253x128xf32, #tpu.memory_space<vmem>>) attributes {dimension_semantics = [#tpu.dimension_semantics<parallel>], iteration_bounds = array<i64: 2>, scalar_prefetch = 0 : i64, scratch_operands = 0 : i64, tpu.core_type = #tpu.core_type<tc>, window_params = [{transform_indices = @transform_0, window_bounds = array<i64: 1, 289, 64>}, {pipeline_mode = #tpu.pipeline_mode<synchronous>, transform_indices = @transform_1, window_bounds = array<i64: 9, 64, 128>}, {pipeline_mode = #tpu.pipeline_mode<synchronous>, transform_indices = @transform_2, window_bounds = array<i64: 1, 128>}, {transform_indices = @transform_3, window_bounds = array<i64: 1, 253, 128>}]} {
    %c0 = arith.constant 0 : index
    %c0_0 = arith.constant 0 : index
    %c0_1 = arith.constant 0 : index
    %0 = vector.load %arg1[%c0, %c0_0, %c0_1] : memref<1x289x64xf32, #tpu.memory_space<vmem>>, vector<1x253x64xf32>
    %1 = vector.shape_cast %0 : vector<1x253x64xf32> to vector<253x64xf32>
    %2 = arith.truncf %1 : vector<253x64xf32> to vector<253x64xbf16>
    %c0_2 = arith.constant 0 : index
    %c0_3 = arith.constant 0 : index
    %c0_4 = arith.constant 0 : index
    %3 = vector.load %arg2[%c0_2, %c0_3, %c0_4] : memref<9x64x128xbf16, #tpu.memory_space<vmem>>, vector<1x64x128xbf16>
    %4 = vector.shape_cast %3 : vector<1x64x128xbf16> to vector<64x128xbf16>
    %cst = arith.constant dense<0.000000e+00> : vector<253x128xf32>
    %5 = tpu.matmul %2, %4, %cst {dimension_numbers = #tpu.dot_dimension_numbers<[1], [0], [0], [1], [0, 0, 1, 1], [], []>} : vector<253x64xbf16>, vector<64x128xbf16>, vector<253x128xf32> -> vector<253x128xf32>
    %c0_5 = arith.constant 0 : index
    %c1 = arith.constant 1 : index
    %c0_6 = arith.constant 0 : index
    %6 = vector.load %arg1[%c0_5, %c1, %c0_6] : memref<1x289x64xf32, #tpu.memory_space<vmem>>, vector<1x253x64xf32>
    %7 = vector.shape_cast %6 : vector<1x253x64xf32> to vector<253x64xf32>
    %8 = arith.truncf %7 : vector<253x64xf32> to vector<253x64xbf16>
    %c1_7 = arith.constant 1 : index
    %c0_8 = arith.constant 0 : index
    %c0_9 = arith.constant 0 : index
    %9 = vector.load %arg2[%c1_7, %c0_8, %c0_9] : memref<9x64x128xbf16, #tpu.memory_space<vmem>>, vector<1x64x128xbf16>
    %10 = vector.shape_cast %9 : vector<1x64x128xbf16> to vector<64x128xbf16>
    %cst_10 = arith.constant dense<0.000000e+00> : vector<253x128xf32>
    %11 = tpu.matmul %8, %10, %cst_10 {dimension_numbers = #tpu.dot_dimension_numbers<[1], [0], [0], [1], [0, 0, 1, 1], [], []>} : vector<253x64xbf16>, vector<64x128xbf16>, vector<253x128xf32> -> vector<253x128xf32>
    %12 = arith.addf %5, %11 : vector<253x128xf32>
    %c0_11 = arith.constant 0 : index
    %c2 = arith.constant 2 : index
    %c0_12 = arith.constant 0 : index
    %13 = vector.load %arg1[%c0_11, %c2, %c0_12] : memref<1x289x64xf32, #tpu.memory_space<vmem>>, vector<1x253x64xf32>
    %14 = vector.shape_cast %13 : vector<1x253x64xf32> to vector<253x64xf32>
    %15 = arith.truncf %14 : vector<253x64xf32> to vector<253x64xbf16>
    %c2_13 = arith.constant 2 : index
    %c0_14 = arith.constant 0 : index
    %c0_15 = arith.constant 0 : index
    %16 = vector.load %arg2[%c2_13, %c0_14, %c0_15] : memref<9x64x128xbf16, #tpu.memory_space<vmem>>, vector<1x64x128xbf16>
    %17 = vector.shape_cast %16 : vector<1x64x128xbf16> to vector<64x128xbf16>
    %cst_16 = arith.constant dense<0.000000e+00> : vector<253x128xf32>
    %18 = tpu.matmul %15, %17, %cst_16 {dimension_numbers = #tpu.dot_dimension_numbers<[1], [0], [0], [1], [0, 0, 1, 1], [], []>} : vector<253x64xbf16>, vector<64x128xbf16>, vector<253x128xf32> -> vector<253x128xf32>
    %19 = arith.addf %12, %18 : vector<253x128xf32>
    %c0_17 = arith.constant 0 : index
    %c17 = arith.constant 17 : index
    %c0_18 = arith.constant 0 : index
    %20 = vector.load %arg1[%c0_17, %c17, %c0_18] : memref<1x289x64xf32, #tpu.memory_space<vmem>>, vector<1x253x64xf32>
    %21 = vector.shape_cast %20 : vector<1x253x64xf32> to vector<253x64xf32>
    %22 = arith.truncf %21 : vector<253x64xf32> to vector<253x64xbf16>
    %c3 = arith.constant 3 : index
    %c0_19 = arith.constant 0 : index
    %c0_20 = arith.constant 0 : index
    %23 = vector.load %arg2[%c3, %c0_19, %c0_20] : memref<9x64x128xbf16, #tpu.memory_space<vmem>>, vector<1x64x128xbf16>
    %24 = vector.shape_cast %23 : vector<1x64x128xbf16> to vector<64x128xbf16>
    %cst_21 = arith.constant dense<0.000000e+00> : vector<253x128xf32>
    %25 = tpu.matmul %22, %24, %cst_21 {dimension_numbers = #tpu.dot_dimension_numbers<[1], [0], [0], [1], [0, 0, 1, 1], [], []>} : vector<253x64xbf16>, vector<64x128xbf16>, vector<253x128xf32> -> vector<253x128xf32>
    %26 = arith.addf %19, %25 : vector<253x128xf32>
    %c0_22 = arith.constant 0 : index
    %c18 = arith.constant 18 : index
    %c0_23 = arith.constant 0 : index
    %27 = vector.load %arg1[%c0_22, %c18, %c0_23] : memref<1x289x64xf32, #tpu.memory_space<vmem>>, vector<1x253x64xf32>
    %28 = vector.shape_cast %27 : vector<1x253x64xf32> to vector<253x64xf32>
    %29 = arith.truncf %28 : vector<253x64xf32> to vector<253x64xbf16>
    %c4 = arith.constant 4 : index
    %c0_24 = arith.constant 0 : index
    %c0_25 = arith.constant 0 : index
    %30 = vector.load %arg2[%c4, %c0_24, %c0_25] : memref<9x64x128xbf16, #tpu.memory_space<vmem>>, vector<1x64x128xbf16>
    %31 = vector.shape_cast %30 : vector<1x64x128xbf16> to vector<64x128xbf16>
    %cst_26 = arith.constant dense<0.000000e+00> : vector<253x128xf32>
    %32 = tpu.matmul %29, %31, %cst_26 {dimension_numbers = #tpu.dot_dimension_numbers<[1], [0], [0], [1], [0, 0, 1, 1], [], []>} : vector<253x64xbf16>, vector<64x128xbf16>, vector<253x128xf32> -> vector<253x128xf32>
    %33 = arith.addf %26, %32 : vector<253x128xf32>
    %c0_27 = arith.constant 0 : index
    %c19 = arith.constant 19 : index
    %c0_28 = arith.constant 0 : index
    %34 = vector.load %arg1[%c0_27, %c19, %c0_28] : memref<1x289x64xf32, #tpu.memory_space<vmem>>, vector<1x253x64xf32>
    %35 = vector.shape_cast %34 : vector<1x253x64xf32> to vector<253x64xf32>
    %36 = arith.truncf %35 : vector<253x64xf32> to vector<253x64xbf16>
    %c5 = arith.constant 5 : index
    %c0_29 = arith.constant 0 : index
    %c0_30 = arith.constant 0 : index
    %37 = vector.load %arg2[%c5, %c0_29, %c0_30] : memref<9x64x128xbf16, #tpu.memory_space<vmem>>, vector<1x64x128xbf16>
    %38 = vector.shape_cast %37 : vector<1x64x128xbf16> to vector<64x128xbf16>
    %cst_31 = arith.constant dense<0.000000e+00> : vector<253x128xf32>
    %39 = tpu.matmul %36, %38, %cst_31 {dimension_numbers = #tpu.dot_dimension_numbers<[1], [0], [0], [1], [0, 0, 1, 1], [], []>} : vector<253x64xbf16>, vector<64x128xbf16>, vector<253x128xf32> -> vector<253x128xf32>
    %40 = arith.addf %33, %39 : vector<253x128xf32>
    %c0_32 = arith.constant 0 : index
    %c34 = arith.constant 34 : index
    %c0_33 = arith.constant 0 : index
    %41 = vector.load %arg1[%c0_32, %c34, %c0_33] : memref<1x289x64xf32, #tpu.memory_space<vmem>>, vector<1x253x64xf32>
    %42 = vector.shape_cast %41 : vector<1x253x64xf32> to vector<253x64xf32>
    %43 = arith.truncf %42 : vector<253x64xf32> to vector<253x64xbf16>
    %c6 = arith.constant 6 : index
    %c0_34 = arith.constant 0 : index
    %c0_35 = arith.constant 0 : index
    %44 = vector.load %arg2[%c6, %c0_34, %c0_35] : memref<9x64x128xbf16, #tpu.memory_space<vmem>>, vector<1x64x128xbf16>
    %45 = vector.shape_cast %44 : vector<1x64x128xbf16> to vector<64x128xbf16>
    %cst_36 = arith.constant dense<0.000000e+00> : vector<253x128xf32>
    %46 = tpu.matmul %43, %45, %cst_36 {dimension_numbers = #tpu.dot_dimension_numbers<[1], [0], [0], [1], [0, 0, 1, 1], [], []>} : vector<253x64xbf16>, vector<64x128xbf16>, vector<253x128xf32> -> vector<253x128xf32>
    %47 = arith.addf %40, %46 : vector<253x128xf32>
    %c0_37 = arith.constant 0 : index
    %c35 = arith.constant 35 : index
    %c0_38 = arith.constant 0 : index
    %48 = vector.load %arg1[%c0_37, %c35, %c0_38] : memref<1x289x64xf32, #tpu.memory_space<vmem>>, vector<1x253x64xf32>
    %49 = vector.shape_cast %48 : vector<1x253x64xf32> to vector<253x64xf32>
    %50 = arith.truncf %49 : vector<253x64xf32> to vector<253x64xbf16>
    %c7 = arith.constant 7 : index
    %c0_39 = arith.constant 0 : index
    %c0_40 = arith.constant 0 : index
    %51 = vector.load %arg2[%c7, %c0_39, %c0_40] : memref<9x64x128xbf16, #tpu.memory_space<vmem>>, vector<1x64x128xbf16>
    %52 = vector.shape_cast %51 : vector<1x64x128xbf16> to vector<64x128xbf16>
    %cst_41 = arith.constant dense<0.000000e+00> : vector<253x128xf32>
    %53 = tpu.matmul %50, %52, %cst_41 {dimension_numbers = #tpu.dot_dimension_numbers<[1], [0], [0], [1], [0, 0, 1, 1], [], []>} : vector<253x64xbf16>, vector<64x128xbf16>, vector<253x128xf32> -> vector<253x128xf32>
    %54 = arith.addf %47, %53 : vector<253x128xf32>
    %c0_42 = arith.constant 0 : index
    %c36 = arith.constant 36 : index
    %c0_43 = arith.constant 0 : index
    %55 = vector.load %arg1[%c0_42, %c36, %c0_43] : memref<1x289x64xf32, #tpu.memory_space<vmem>>, vector<1x253x64xf32>
    %56 = vector.shape_cast %55 : vector<1x253x64xf32> to vector<253x64xf32>
    %57 = arith.truncf %56 : vector<253x64xf32> to vector<253x64xbf16>
    %c8 = arith.constant 8 : index
    %c0_44 = arith.constant 0 : index
    %c0_45 = arith.constant 0 : index
    %58 = vector.load %arg2[%c8, %c0_44, %c0_45] : memref<9x64x128xbf16, #tpu.memory_space<vmem>>, vector<1x64x128xbf16>
    %59 = vector.shape_cast %58 : vector<1x64x128xbf16> to vector<64x128xbf16>
    %cst_46 = arith.constant dense<0.000000e+00> : vector<253x128xf32>
    %60 = tpu.matmul %57, %59, %cst_46 {dimension_numbers = #tpu.dot_dimension_numbers<[1], [0], [0], [1], [0, 0, 1, 1], [], []>} : vector<253x64xbf16>, vector<64x128xbf16>, vector<253x128xf32> -> vector<253x128xf32>
    %61 = arith.addf %54, %60 : vector<253x128xf32>
    %c0_47 = arith.constant 0 : index
    %c0_48 = arith.constant 0 : index
    %62 = vector.load %arg3[%c0_47, %c0_48] : memref<1x128xf32, #tpu.memory_space<vmem>>, vector<1x128xf32>
    %63 = vector.broadcast %62 : vector<1x128xf32> to vector<253x128xf32>
    %64 = arith.addf %61, %63 : vector<253x128xf32>
    %cst_49 = arith.constant 0.000000e+00 : f32
    %65 = vector.broadcast %cst_49 : f32 to vector<253x128xf32>
    %66 = arith.maximumf %64, %65 : vector<253x128xf32>
    %c0_50 = arith.constant 0 : index
    %c0_51 = arith.constant 0 : index
    %c0_52 = arith.constant 0 : index
    %67 = vector.load %arg4[%c0_50, %c0_51, %c0_52] : memref<1x253x128xf32, #tpu.memory_space<vmem>>, vector<1x253x128xf32>
    %68 = vector.shape_cast %67 : vector<1x253x128xf32> to vector<253x128xf32>
    %69 = vector.shape_cast %66 : vector<253x128xf32> to vector<1x253x128xf32>
    tpu.vector_store %arg4[%c0_50, %c0_51, %c0_52], %69 {strides = array<i32>} : memref<1x253x128xf32, #tpu.memory_space<vmem>>, vector<1x253x128xf32>,
    return
  }
  func.func @transform_0(%arg0: i32) -> (i32, i32, i32) {
    %c0_i32 = arith.constant 0 : i32
    %c0_i32_0 = arith.constant 0 : i32
    %c0_i32_1 = arith.constant 0 : i32
    return %arg0, %c0_i32, %c0_i32_0 : i32, i32, i32
  }
  func.func @transform_1(%arg0: i32) -> (i32, i32, i32) {
    %c0_i32 = arith.constant 0 : i32
    %c0_i32_0 = arith.constant 0 : i32
    %c0_i32_1 = arith.constant 0 : i32
    %c0_i32_2 = arith.constant 0 : i32
    return %c0_i32, %c0_i32_0, %c0_i32_1 : i32, i32, i32
  }
  func.func @transform_2(%arg0: i32) -> (i32, i32) {
    %c0_i32 = arith.constant 0 : i32
    %c0_i32_0 = arith.constant 0 : i32
    %c0_i32_1 = arith.constant 0 : i32
    return %c0_i32, %c0_i32_0 : i32, i32
  }
  func.func @transform_3(%arg0: i32) -> (i32, i32, i32) {
    %c0_i32 = arith.constant 0 : i32
    %c0_i32_0 = arith.constant 0 : i32
    %c0_i32_1 = arith.constant 0 : i32
    return %arg0, %c0_i32, %c0_i32_0 : i32, i32, i32
  }
}

module attributes {stable_mosaic.version = 11 : i64} {
  func.func @_dc4_sigmoid_kernel(%arg0: i32, %arg1: memref<1x32x1156xf32, #tpu.memory_space<vmem>>, %arg2: memref<9x12x32xbf16, #tpu.memory_space<vmem>>, %arg3: memref<12x1xf32, #tpu.memory_space<vmem>>, %arg4: memref<1x12x1086xf32, #tpu.memory_space<vmem>>) attributes {dimension_semantics = [#tpu.dimension_semantics<parallel>], iteration_bounds = array<i64: 2>, scalar_prefetch = 0 : i64, scratch_operands = 0 : i64, tpu.core_type = #tpu.core_type<tc>, window_params = [{transform_indices = @transform_0, window_bounds = array<i64: 1, 32, 1156>}, {pipeline_mode = #tpu.pipeline_mode<synchronous>, transform_indices = @transform_1, window_bounds = array<i64: 9, 12, 32>}, {pipeline_mode = #tpu.pipeline_mode<synchronous>, transform_indices = @transform_2, window_bounds = array<i64: 12, 1>}, {transform_indices = @transform_3, window_bounds = array<i64: 1, 12, 1086>}]} {
    %c0 = arith.constant 0 : index
    %c0_0 = arith.constant 0 : index
    %c0_1 = arith.constant 0 : index
    %0 = vector.load %arg1[%c0, %c0_0, %c0_1] : memref<1x32x1156xf32, #tpu.memory_space<vmem>>, vector<1x32x1086xf32>
    %1 = vector.shape_cast %0 : vector<1x32x1086xf32> to vector<32x1086xf32>
    %2 = arith.truncf %1 : vector<32x1086xf32> to vector<32x1086xbf16>
    %c0_2 = arith.constant 0 : index
    %c0_3 = arith.constant 0 : index
    %c0_4 = arith.constant 0 : index
    %3 = vector.load %arg2[%c0_2, %c0_3, %c0_4] : memref<9x12x32xbf16, #tpu.memory_space<vmem>>, vector<1x12x32xbf16>
    %4 = vector.shape_cast %3 : vector<1x12x32xbf16> to vector<12x32xbf16>
    %cst = arith.constant dense<0.000000e+00> : vector<12x1086xf32>
    %5 = tpu.matmul %4, %2, %cst {dimension_numbers = #tpu.dot_dimension_numbers<[1], [0], [0], [1], [0, 0, 1, 1], [], []>} : vector<12x32xbf16>, vector<32x1086xbf16>, vector<12x1086xf32> -> vector<12x1086xf32>
    %c0_5 = arith.constant 0 : index
    %c0_6 = arith.constant 0 : index
    %c1 = arith.constant 1 : index
    %6 = vector.load %arg1[%c0_5, %c0_6, %c1] : memref<1x32x1156xf32, #tpu.memory_space<vmem>>, vector<1x32x1086xf32>
    %7 = vector.shape_cast %6 : vector<1x32x1086xf32> to vector<32x1086xf32>
    %8 = arith.truncf %7 : vector<32x1086xf32> to vector<32x1086xbf16>
    %c1_7 = arith.constant 1 : index
    %c0_8 = arith.constant 0 : index
    %c0_9 = arith.constant 0 : index
    %9 = vector.load %arg2[%c1_7, %c0_8, %c0_9] : memref<9x12x32xbf16, #tpu.memory_space<vmem>>, vector<1x12x32xbf16>
    %10 = vector.shape_cast %9 : vector<1x12x32xbf16> to vector<12x32xbf16>
    %cst_10 = arith.constant dense<0.000000e+00> : vector<12x1086xf32>
    %11 = tpu.matmul %10, %8, %cst_10 {dimension_numbers = #tpu.dot_dimension_numbers<[1], [0], [0], [1], [0, 0, 1, 1], [], []>} : vector<12x32xbf16>, vector<32x1086xbf16>, vector<12x1086xf32> -> vector<12x1086xf32>
    %12 = arith.addf %5, %11 : vector<12x1086xf32>
    %c0_11 = arith.constant 0 : index
    %c0_12 = arith.constant 0 : index
    %c2 = arith.constant 2 : index
    %13 = vector.load %arg1[%c0_11, %c0_12, %c2] : memref<1x32x1156xf32, #tpu.memory_space<vmem>>, vector<1x32x1086xf32>
    %14 = vector.shape_cast %13 : vector<1x32x1086xf32> to vector<32x1086xf32>
    %15 = arith.truncf %14 : vector<32x1086xf32> to vector<32x1086xbf16>
    %c2_13 = arith.constant 2 : index
    %c0_14 = arith.constant 0 : index
    %c0_15 = arith.constant 0 : index
    %16 = vector.load %arg2[%c2_13, %c0_14, %c0_15] : memref<9x12x32xbf16, #tpu.memory_space<vmem>>, vector<1x12x32xbf16>
    %17 = vector.shape_cast %16 : vector<1x12x32xbf16> to vector<12x32xbf16>
    %cst_16 = arith.constant dense<0.000000e+00> : vector<12x1086xf32>
    %18 = tpu.matmul %17, %15, %cst_16 {dimension_numbers = #tpu.dot_dimension_numbers<[1], [0], [0], [1], [0, 0, 1, 1], [], []>} : vector<12x32xbf16>, vector<32x1086xbf16>, vector<12x1086xf32> -> vector<12x1086xf32>
    %19 = arith.addf %12, %18 : vector<12x1086xf32>
    %c0_17 = arith.constant 0 : index
    %c0_18 = arith.constant 0 : index
    %c34 = arith.constant 34 : index
    %20 = vector.load %arg1[%c0_17, %c0_18, %c34] : memref<1x32x1156xf32, #tpu.memory_space<vmem>>, vector<1x32x1086xf32>
    %21 = vector.shape_cast %20 : vector<1x32x1086xf32> to vector<32x1086xf32>
    %22 = arith.truncf %21 : vector<32x1086xf32> to vector<32x1086xbf16>
    %c3 = arith.constant 3 : index
    %c0_19 = arith.constant 0 : index
    %c0_20 = arith.constant 0 : index
    %23 = vector.load %arg2[%c3, %c0_19, %c0_20] : memref<9x12x32xbf16, #tpu.memory_space<vmem>>, vector<1x12x32xbf16>
    %24 = vector.shape_cast %23 : vector<1x12x32xbf16> to vector<12x32xbf16>
    %cst_21 = arith.constant dense<0.000000e+00> : vector<12x1086xf32>
    %25 = tpu.matmul %24, %22, %cst_21 {dimension_numbers = #tpu.dot_dimension_numbers<[1], [0], [0], [1], [0, 0, 1, 1], [], []>} : vector<12x32xbf16>, vector<32x1086xbf16>, vector<12x1086xf32> -> vector<12x1086xf32>
    %26 = arith.addf %19, %25 : vector<12x1086xf32>
    %c0_22 = arith.constant 0 : index
    %c0_23 = arith.constant 0 : index
    %c35 = arith.constant 35 : index
    %27 = vector.load %arg1[%c0_22, %c0_23, %c35] : memref<1x32x1156xf32, #tpu.memory_space<vmem>>, vector<1x32x1086xf32>
    %28 = vector.shape_cast %27 : vector<1x32x1086xf32> to vector<32x1086xf32>
    %29 = arith.truncf %28 : vector<32x1086xf32> to vector<32x1086xbf16>
    %c4 = arith.constant 4 : index
    %c0_24 = arith.constant 0 : index
    %c0_25 = arith.constant 0 : index
    %30 = vector.load %arg2[%c4, %c0_24, %c0_25] : memref<9x12x32xbf16, #tpu.memory_space<vmem>>, vector<1x12x32xbf16>
    %31 = vector.shape_cast %30 : vector<1x12x32xbf16> to vector<12x32xbf16>
    %cst_26 = arith.constant dense<0.000000e+00> : vector<12x1086xf32>
    %32 = tpu.matmul %31, %29, %cst_26 {dimension_numbers = #tpu.dot_dimension_numbers<[1], [0], [0], [1], [0, 0, 1, 1], [], []>} : vector<12x32xbf16>, vector<32x1086xbf16>, vector<12x1086xf32> -> vector<12x1086xf32>
    %33 = arith.addf %26, %32 : vector<12x1086xf32>
    %c0_27 = arith.constant 0 : index
    %c0_28 = arith.constant 0 : index
    %c36 = arith.constant 36 : index
    %34 = vector.load %arg1[%c0_27, %c0_28, %c36] : memref<1x32x1156xf32, #tpu.memory_space<vmem>>, vector<1x32x1086xf32>
    %35 = vector.shape_cast %34 : vector<1x32x1086xf32> to vector<32x1086xf32>
    %36 = arith.truncf %35 : vector<32x1086xf32> to vector<32x1086xbf16>
    %c5 = arith.constant 5 : index
    %c0_29 = arith.constant 0 : index
    %c0_30 = arith.constant 0 : index
    %37 = vector.load %arg2[%c5, %c0_29, %c0_30] : memref<9x12x32xbf16, #tpu.memory_space<vmem>>, vector<1x12x32xbf16>
    %38 = vector.shape_cast %37 : vector<1x12x32xbf16> to vector<12x32xbf16>
    %cst_31 = arith.constant dense<0.000000e+00> : vector<12x1086xf32>
    %39 = tpu.matmul %38, %36, %cst_31 {dimension_numbers = #tpu.dot_dimension_numbers<[1], [0], [0], [1], [0, 0, 1, 1], [], []>} : vector<12x32xbf16>, vector<32x1086xbf16>, vector<12x1086xf32> -> vector<12x1086xf32>
    %40 = arith.addf %33, %39 : vector<12x1086xf32>
    %c0_32 = arith.constant 0 : index
    %c0_33 = arith.constant 0 : index
    %c68 = arith.constant 68 : index
    %41 = vector.load %arg1[%c0_32, %c0_33, %c68] : memref<1x32x1156xf32, #tpu.memory_space<vmem>>, vector<1x32x1086xf32>
    %42 = vector.shape_cast %41 : vector<1x32x1086xf32> to vector<32x1086xf32>
    %43 = arith.truncf %42 : vector<32x1086xf32> to vector<32x1086xbf16>
    %c6 = arith.constant 6 : index
    %c0_34 = arith.constant 0 : index
    %c0_35 = arith.constant 0 : index
    %44 = vector.load %arg2[%c6, %c0_34, %c0_35] : memref<9x12x32xbf16, #tpu.memory_space<vmem>>, vector<1x12x32xbf16>
    %45 = vector.shape_cast %44 : vector<1x12x32xbf16> to vector<12x32xbf16>
    %cst_36 = arith.constant dense<0.000000e+00> : vector<12x1086xf32>
    %46 = tpu.matmul %45, %43, %cst_36 {dimension_numbers = #tpu.dot_dimension_numbers<[1], [0], [0], [1], [0, 0, 1, 1], [], []>} : vector<12x32xbf16>, vector<32x1086xbf16>, vector<12x1086xf32> -> vector<12x1086xf32>
    %47 = arith.addf %40, %46 : vector<12x1086xf32>
    %c0_37 = arith.constant 0 : index
    %c0_38 = arith.constant 0 : index
    %c69 = arith.constant 69 : index
    %48 = vector.load %arg1[%c0_37, %c0_38, %c69] : memref<1x32x1156xf32, #tpu.memory_space<vmem>>, vector<1x32x1086xf32>
    %49 = vector.shape_cast %48 : vector<1x32x1086xf32> to vector<32x1086xf32>
    %50 = arith.truncf %49 : vector<32x1086xf32> to vector<32x1086xbf16>
    %c7 = arith.constant 7 : index
    %c0_39 = arith.constant 0 : index
    %c0_40 = arith.constant 0 : index
    %51 = vector.load %arg2[%c7, %c0_39, %c0_40] : memref<9x12x32xbf16, #tpu.memory_space<vmem>>, vector<1x12x32xbf16>
    %52 = vector.shape_cast %51 : vector<1x12x32xbf16> to vector<12x32xbf16>
    %cst_41 = arith.constant dense<0.000000e+00> : vector<12x1086xf32>
    %53 = tpu.matmul %52, %50, %cst_41 {dimension_numbers = #tpu.dot_dimension_numbers<[1], [0], [0], [1], [0, 0, 1, 1], [], []>} : vector<12x32xbf16>, vector<32x1086xbf16>, vector<12x1086xf32> -> vector<12x1086xf32>
    %54 = arith.addf %47, %53 : vector<12x1086xf32>
    %c0_42 = arith.constant 0 : index
    %c0_43 = arith.constant 0 : index
    %c70 = arith.constant 70 : index
    %55 = vector.load %arg1[%c0_42, %c0_43, %c70] : memref<1x32x1156xf32, #tpu.memory_space<vmem>>, vector<1x32x1086xf32>
    %56 = vector.shape_cast %55 : vector<1x32x1086xf32> to vector<32x1086xf32>
    %57 = arith.truncf %56 : vector<32x1086xf32> to vector<32x1086xbf16>
    %c8 = arith.constant 8 : index
    %c0_44 = arith.constant 0 : index
    %c0_45 = arith.constant 0 : index
    %58 = vector.load %arg2[%c8, %c0_44, %c0_45] : memref<9x12x32xbf16, #tpu.memory_space<vmem>>, vector<1x12x32xbf16>
    %59 = vector.shape_cast %58 : vector<1x12x32xbf16> to vector<12x32xbf16>
    %cst_46 = arith.constant dense<0.000000e+00> : vector<12x1086xf32>
    %60 = tpu.matmul %59, %57, %cst_46 {dimension_numbers = #tpu.dot_dimension_numbers<[1], [0], [0], [1], [0, 0, 1, 1], [], []>} : vector<12x32xbf16>, vector<32x1086xbf16>, vector<12x1086xf32> -> vector<12x1086xf32>
    %61 = arith.addf %54, %60 : vector<12x1086xf32>
    %c0_47 = arith.constant 0 : index
    %c0_48 = arith.constant 0 : index
    %62 = vector.load %arg3[%c0_47, %c0_48] : memref<12x1xf32, #tpu.memory_space<vmem>>, vector<12x1xf32>
    %63 = vector.broadcast %62 : vector<12x1xf32> to vector<12x1086xf32>
    %64 = arith.addf %61, %63 : vector<12x1086xf32>
    %65 = arith.negf %64 : vector<12x1086xf32>
    %66 = math.exp %65 : vector<12x1086xf32>
    %cst_49 = arith.constant 1.000000e+00 : f32
    %67 = vector.broadcast %cst_49 : f32 to vector<12x1086xf32>
    %68 = arith.addf %67, %66 : vector<12x1086xf32>
    %69 = arith.divf %67, %68 : vector<12x1086xf32>
    %c0_50 = arith.constant 0 : index
    %c0_51 = arith.constant 0 : index
    %c0_52 = arith.constant 0 : index
    %70 = vector.load %arg4[%c0_50, %c0_51, %c0_52] : memref<1x12x1086xf32, #tpu.memory_space<vmem>>, vector<1x12x1086xf32>
    %71 = vector.shape_cast %70 : vector<1x12x1086xf32> to vector<12x1086xf32>
    %72 = vector.shape_cast %69 : vector<12x1086xf32> to vector<1x12x1086xf32>
    tpu.vector_store %arg4[%c0_50, %c0_51, %c0_52], %72 {strides = array<i32>} : memref<1x12x1086xf32, #tpu.memory_space<vmem>>, vector<1x12x1086xf32>,
    return
  }
  func.func @transform_0(%arg0: i32) -> (i32, i32, i32) {
    %c0_i32 = arith.constant 0 : i32
    %c0_i32_0 = arith.constant 0 : i32
    %c0_i32_1 = arith.constant 0 : i32
    return %arg0, %c0_i32, %c0_i32_0 : i32, i32, i32
  }
  func.func @transform_1(%arg0: i32) -> (i32, i32, i32) {
    %c0_i32 = arith.constant 0 : i32
    %c0_i32_0 = arith.constant 0 : i32
    %c0_i32_1 = arith.constant 0 : i32
    %c0_i32_2 = arith.constant 0 : i32
    return %c0_i32, %c0_i32_0, %c0_i32_1 : i32, i32, i32
  }
  func.func @transform_2(%arg0: i32) -> (i32, i32) {
    %c0_i32 = arith.constant 0 : i32
    %c0_i32_0 = arith.constant 0 : i32
    %c0_i32_1 = arith.constant 0 : i32
    return %c0_i32, %c0_i32_0 : i32, i32
  }
  func.func @transform_3(%arg0: i32) -> (i32, i32, i32) {
    %c0_i32 = arith.constant 0 : i32
    %c0_i32_0 = arith.constant 0 : i32
    %c0_i32_1 = arith.constant 0 : i32
    return %arg0, %c0_i32, %c0_i32_0 : i32, i32, i32
  }
}

</mosaic_0001>

<llo_original>
// kernel: decoder_forward.5
$region0: #{decoder_forward.5}
  #allocation0 [shape = 'u32[]', space=smem, size = 0x4, offset = 0x4, fixed_abs, tag = 'smem constant byte address 0x4 - core index']
  #allocation1 [shape = 'u32[144,128]{1,0:T(1,128)}', space=vmem, size = 0x12000, scoped, tag = 'internal scratch']
  %s0 = inlined_call_operand.vmem [shape: f32[2,81,128], index: 0, kind: input, shape index: {}]
  %s1 = inlined_call_operand.vmem [shape: bf16[9,128,256], index: 1, kind: input, shape index: {}]
  %s2 = inlined_call_operand.vmem [shape: f32[1,256], index: 2, kind: input, shape index: {}]
  %s3 = inlined_call_operand.vmem [shape: f32[2,61,256], index: 3, kind: output, shape index: {}]
  %s4 = sld [smem:[#allocation0]]
  $region45: #{decoder_forward.5} parent=0
    _
  %s6 = ssub.s32 1, %s4
  %s7 = scalar_select 0, %s6, %s4
  loop: start=0, step=1, limit=4
  $region2: #{decoder_forward.5} parent=0 // loop_pre_header
    _
  $region3: #{decoder_forward.5} parent=0 // loop_header
    %s9 = sphi 0, %s13
    %p10 = scmp.ge.s32.totalorder %s9, 4
    %s19 = sphi 0, %s21
    %s22 = sphi 0, %s19
    %s23 = sphi 0, %s22
    %s39 = sphi 0, %s23
    %s43 = sphi 0, %s43
    %s45 = sphi 0, %s43
    %s46 = sphi 0, %s45
    %s60 = sphi 0, %s46
    %s64 = sphi 0, %s64
    %s66 = sphi 0, %s64
    %s67 = sphi 0, %s66
    %s81 = sphi 0, %s67
    %s87 = sphi 0, %s89
    %s90 = sphi 0, %s87
    %s91 = sphi 0, %s90
    %s107 = sphi 0, %s91
  $region4: #{decoder_forward.5} parent=0 // loop_header_branch
    %12 = sbr.rel (%p10) target = $region8
  $region5: #{decoder_forward.5} parent=0 // loop_body
    %s14 = ssub.s32 %s9, 1
    %s15 = ssub.s32 %s9, 2
    %s16 = sadd.s32 %s9, 1
    %s17 = ssub.s32 %s9, %s16
    %p18 = scmp.eq.s32.totalorder %s17, 0
    %s20 = sadd.s32 %s19, 1
    %s21 = scalar_select %p18, %s19, %s20
    %p24 = pneg %p18
    %p25 = scmp.eq.s32.totalorder %s9, 1
    %p26 = por %p24, %p25
    %p27 = scmp.ne.s32.totalorder %s19, %s22
    %p28 = scmp.eq.s32.totalorder %s9, 0
    %p29 = por %p27, %p28
    %p30 = scmp.ne.s32.totalorder %s19, %s22
    %p31 = scmp.eq.s32.totalorder %s14, 1
    %p32 = por %p30, %p31
    %p33 = scmp.ne.s32.totalorder %s22, %s23
    %p34 = scmp.eq.s32.totalorder %s14, 0
    %p35 = por %p33, %p34
    %p36 = scmp.ne.s32.totalorder %s22, %s23
    %p37 = scmp.eq.s32.totalorder %s15, 1
    %p38 = por %p36, %p37
    %p40 = scmp.ne.s32.totalorder %s23, %s39
    %p41 = scmp.eq.s32.totalorder %s15, 0
    %p42 = por %p40, %p41
    %s44 = sadd.s32 %s43, 1
    %p47 = scmp.eq.s32.totalorder %s9, 1
    %p48 = scmp.ne.s32.totalorder %s43, %s45
    %p49 = scmp.eq.s32.totalorder %s9, 0
    %p50 = por %p48, %p49
    %p51 = scmp.ne.s32.totalorder %s43, %s45
    %p52 = scmp.eq.s32.totalorder %s14, 1
    %p53 = por %p51, %p52
    %p54 = scmp.ne.s32.totalorder %s45, %s46
    %p55 = scmp.eq.s32.totalorder %s14, 0
    %p56 = por %p54, %p55
    %p57 = scmp.ne.s32.totalorder %s45, %s46
    %p58 = scmp.eq.s32.totalorder %s15, 1
    %p59 = por %p57, %p58
    %p61 = scmp.ne.s32.totalorder %s46, %s60
    %p62 = scmp.eq.s32.totalorder %s15, 0
    %p63 = por %p61, %p62
    %s65 = sadd.s32 %s64, 1
    %p68 = scmp.eq.s32.totalorder %s9, 1
    %p69 = scmp.ne.s32.totalorder %s64, %s66
    %p70 = scmp.eq.s32.totalorder %s9, 0
    %p71 = por %p69, %p70
    %p72 = scmp.ne.s32.totalorder %s64, %s66
    %p73 = scmp.eq.s32.totalorder %s14, 1
    %p74 = por %p72, %p73
    %p75 = scmp.ne.s32.totalorder %s66, %s67
    %p76 = scmp.eq.s32.totalorder %s14, 0
    %p77 = por %p75, %p76
    %p78 = scmp.ne.s32.totalorder %s66, %s67
    %p79 = scmp.eq.s32.totalorder %s15, 1
    %p80 = por %p78, %p79
    %p82 = scmp.ne.s32.totalorder %s67, %s81
    %p83 = scmp.eq.s32.totalorder %s15, 0
    %p84 = por %p82, %p83
    %s85 = ssub.s32 %s9, %s16
    %p86 = scmp.eq.s32.totalorder %s85, 0
    %s88 = sadd.s32 %s87, 1
    %s89 = scalar_select %p86, %s87, %s88
    %p92 = pneg %p86
    %p93 = scmp.eq.s32.totalorder %s9, 1
    %p94 = por %p92, %p93
    %p95 = scmp.ne.s32.totalorder %s87, %s90
    %p96 = scmp.eq.s32.totalorder %s9, 0
    %p97 = por %p95, %p96
    %p98 = scmp.ne.s32.totalorder %s87, %s90
    %p99 = scmp.eq.s32.totalorder %s14, 1
    %p100 = por %p98, %p99
    %p101 = scmp.ne.s32.totalorder %s90, %s91
    %p102 = scmp.eq.s32.totalorder %s14, 0
    %p103 = por %p101, %p102
    %p104 = scmp.ne.s32.totalorder %s90, %s91
    %p105 = scmp.eq.s32.totalorder %s15, 1
    %p106 = por %p104, %p105
    %p108 = scmp.ne.s32.totalorder %s91, %s107
    %p109 = scmp.eq.s32.totalorder %s15, 0
    %p110 = por %p108, %p109
    %p111 = scmp.le.s32.totalorder 1, %s9
    %p112 = scmp.lt.s32.totalorder %s9, 3
    %p113 = pnand %p111, %p112
    %p114 = pneg %p113
    // Predicated region
    $region9: #{decoder_forward.5} parent=5 // pred_check
      _
    $region10: #{decoder_forward.5} parent=5 // pred_check_branch
      %116 = sbr.rel (%p113) target = $region12
    $region11: #{decoder_forward.5} parent=5 // pred_region
      %s117 = ssub.s32 %s9, 1
      // Predicated region
      $region13: #{decoder_forward.5} parent=11 // pred_check
        %p118 = pneg %p56
      $region14: #{decoder_forward.5} parent=11 // pred_check_branch
        %120 = sbr.rel (%p118) target = $region16
      $region15: #{decoder_forward.5} parent=11 // pred_region
        _
      $region16: #{decoder_forward.5} parent=11 // pred_fallthru
        _
      // Predicated region
      $region17: #{decoder_forward.5} parent=11 // pred_check
        %p121 = pneg %p77
      $region18: #{decoder_forward.5} parent=11 // pred_check_branch
        %123 = sbr.rel (%p121) target = $region20
      $region19: #{decoder_forward.5} parent=11 // pred_region
        _
      $region20: #{decoder_forward.5} parent=11 // pred_fallthru
        _
    $region12: #{decoder_forward.5} parent=5 // pred_fallthru
      _
    %p124 = scmp.lt.s32.totalorder %s9, 2
    // Predicated region
    $region21: #{decoder_forward.5} parent=5 // pred_check
      %p125 = pneg %p124
    $region22: #{decoder_forward.5} parent=5 // pred_check_branch
      %127 = sbr.rel (%p125) target = $region24
    $region23: #{decoder_forward.5} parent=5 // pred_region
      // Predicated region
      $region25: #{decoder_forward.5} parent=23 // pred_check
        %p128 = pneg %p29
      $region26: #{decoder_forward.5} parent=23 // pred_check_branch
        %130 = sbr.rel (%p128) target = $region28
      $region27: #{decoder_forward.5} parent=23 // pred_region
        %p131 = scmp.lt.s32.totalorder %s9, 1
        %s132 = scalar_select %p131, %s9, 1
        %s133 = smul.addr %s132, 11
        %s134 = smul.addr %s133, 8
        %s135 = scalar_lea.vmem %s0, %s134
      $region28: #{decoder_forward.5} parent=23 // pred_fallthru
        _
    $region24: #{decoder_forward.5} parent=5 // pred_fallthru
      _
    %p136 = scmp.le.s32.totalorder 1, %s9
    %p137 = scmp.lt.s32.totalorder %s9, 3
    %p138 = pnand %p136, %p137
    %p139 = pneg %p138
    // Predicated region
    $region29: #{decoder_forward.5} parent=5 // pred_check
      _
    $region30: #{decoder_forward.5} parent=5 // pred_check_branch
      %141 = sbr.rel (%p138) target = $region32
    $region31: #{decoder_forward.5} parent=5 // pred_region
      %s142 = ssub.s32 %s9, 1
      %p143 = scmp.lt.s32.totalorder %s14, 1
      %s144 = scalar_select %p143, %s14, 1
      %s145 = smul.addr %s144, 11
      %s146 = smul.addr %s145, 8
      %s147 = scalar_lea.vmem %s0, %s146
      %p148 = pneg %p35
      %p149 = pneg %p32
      %p150 = pneg %p56
      %p151 = pneg %p53
      %p152 = pneg %p77
      %p153 = pneg %p74
      %p154 = pneg %p103
      %p155 = pneg %p100
      %p156 = scmp.lt.s32.totalorder %s14, 1
      %s157 = scalar_select %p156, %s14, 1
      %s158 = smul.addr %s157, 16
      %s159 = smul.addr %s158, 8
      %s160 = scalar_lea.vmem %s3, %s159
      %p161 = scmp.lt.s32.totalorder %s14, 1
      %s162 = scalar_select %p161, %s14, 1
      %s163 = smul.addr %s162, 11
      %s164 = smul.addr %s163, 8
      %s165 = scalar_lea.vmem %s0, %s164
      %p166 = scmp.lt.s32.totalorder %s14, 1
      %s167 = scalar_select %p166, %s14, 1
      %s168 = smul.addr %s167, 16
      %s169 = smul.addr %s168, 8
      %s170 = scalar_lea.vmem %s3, %s169
      %v172 = vld [vmem:[%s165] sm:$0xff]
      %v173 = vld [vmem:[%s165 + $0x8] sm:$0xff]
      %v174 = vld [vmem:[%s165 + $0x10] sm:$0xff]
      %v175 = vld [vmem:[%s165 + $0x18] sm:$0xff]
      %v176 = vld [vmem:[%s165 + $0x20] sm:$0xff]
      %v177 = vld [vmem:[%s165 + $0x28] sm:$0xff]
      %v178 = vld [vmem:[%s165 + $0x30] sm:$0xff]
      %v179 = vld [vmem:[%s165 + $0x38] sm:$0x1f]
      %v180 = vpack.c.bf16 %v173, %v172
      %v181 = vpack.c.bf16 %v175, %v174
      %v182 = vpack.c.bf16 %v177, %v176
      %v183 = vpack.c.bf16 %v179, %v178
      %v184 = vld [vmem:[%s1] sm:$0xff]
      %v185 = vld [vmem:[%s1 + $0x8] sm:$0xff]
      %v186 = vld [vmem:[%s1 + $0x10] sm:$0xff]
      %v187 = vld [vmem:[%s1 + $0x18] sm:$0xff]
      %v188 = vld [vmem:[%s1 + $0x20] sm:$0xff]
      %v189 = vld [vmem:[%s1 + $0x28] sm:$0xff]
      %v190 = vld [vmem:[%s1 + $0x30] sm:$0xff]
      %v191 = vld [vmem:[%s1 + $0x38] sm:$0xff]
      %v192 = vld [vmem:[%s1 + $0x40] sm:$0xff]
      %v193 = vld [vmem:[%s1 + $0x48] sm:$0xff]
      %v194 = vld [vmem:[%s1 + $0x50] sm:$0xff]
      %v195 = vld [vmem:[%s1 + $0x58] sm:$0xff]
      %v196 = vld [vmem:[%s1 + $0x60] sm:$0xff]
      %v197 = vld [vmem:[%s1 + $0x68] sm:$0xff]
      %v198 = vld [vmem:[%s1 + $0x70] sm:$0xff]
      %v199 = vld [vmem:[%s1 + $0x78] sm:$0xff]
      %v200 = vld [vmem:[%s165 + $0x1] sm:$0xff]
      %v201 = vld [vmem:[%s165 + $0x9] sm:$0xff]
      %v202 = vld [vmem:[%s165 + $0x11] sm:$0xff]
      %v203 = vld [vmem:[%s165 + $0x19] sm:$0xff]
      %v204 = vld [vmem:[%s165 + $0x21] sm:$0xff]
      %v205 = vld [vmem:[%s165 + $0x29] sm:$0xff]
      %v206 = vld [vmem:[%s165 + $0x31] sm:$0xff]
      %v207 = vld [vmem:[%s165 + $0x39] sm:$0x1f]
      %v208 = vpack.c.bf16 %v201, %v200
      %v209 = vpack.c.bf16 %v203, %v202
      %v210 = vpack.c.bf16 %v205, %v204
      %v211 = vpack.c.bf16 %v207, %v206
      %s212 = scalar_lea.vmem %s1, 128
      %v213 = vld [vmem:[%s212] sm:$0xff]
      %v214 = vld [vmem:[%s212 + $0x8] sm:$0xff]
      %v215 = vld [vmem:[%s212 + $0x10] sm:$0xff]
      %v216 = vld [vmem:[%s212 + $0x18] sm:$0xff]
      %v217 = vld [vmem:[%s212 + $0x20] sm:$0xff]
      %v218 = vld [vmem:[%s212 + $0x28] sm:$0xff]
      %v219 = vld [vmem:[%s212 + $0x30] sm:$0xff]
      %v220 = vld [vmem:[%s212 + $0x38] sm:$0xff]
      %v221 = vld [vmem:[%s212 + $0x40] sm:$0xff]
      %v222 = vld [vmem:[%s212 + $0x48] sm:$0xff]
      %v223 = vld [vmem:[%s212 + $0x50] sm:$0xff]
      %v224 = vld [vmem:[%s212 + $0x58] sm:$0xff]
      %v225 = vld [vmem:[%s212 + $0x60] sm:$0xff]
      %v226 = vld [vmem:[%s212 + $0x68] sm:$0xff]
      %v227 = vld [vmem:[%s212 + $0x70] sm:$0xff]
      %v228 = vld [vmem:[%s212 + $0x78] sm:$0xff]
      %v245 = vunpack.c.l.b16 %v213
      %v246 = vunpack.c.h.b16 %v213
      %v247 = vunpack.c.l.b16 %v214
      %v248 = vunpack.c.h.b16 %v214
      %v249 = vunpack.c.l.b16 %v215
      %v250 = vunpack.c.h.b16 %v215
      %v251 = vunpack.c.l.b16 %v216
      %v252 = vunpack.c.h.b16 %v216
      %v253 = vunpack.c.l.b16 %v217
      %v254 = vunpack.c.h.b16 %v217
      %v255 = vunpack.c.l.b16 %v218
      %v256 = vunpack.c.h.b16 %v218
      %v257 = vunpack.c.l.b16 %v219
      %v258 = vunpack.c.h.b16 %v219
      %v259 = vunpack.c.l.b16 %v220
      %v260 = vunpack.c.h.b16 %v220
      %v261 = vunpack.c.l.b16 %v221
      %v262 = vunpack.c.h.b16 %v221
      %v263 = vunpack.c.l.b16 %v222
      %v264 = vunpack.c.h.b16 %v222
      %v265 = vunpack.c.l.b16 %v223
      %v266 = vunpack.c.h.b16 %v223
      %v267 = vunpack.c.l.b16 %v224
      %v268 = vunpack.c.h.b16 %v224
      %v269 = vunpack.c.l.b16 %v225
      %v270 = vunpack.c.h.b16 %v225
      %v271 = vunpack.c.l.b16 %v226
      %v272 = vunpack.c.h.b16 %v226
      %v273 = vunpack.c.l.b16 %v227
      %v274 = vunpack.c.h.b16 %v227
      %v275 = vunpack.c.l.b16 %v228
      %v276 = vunpack.c.h.b16 %v228
      %v277 = vpack.c.b16 %v247, %v245
      %v278 = vpack.c.b16 %v248, %v246
      %v279 = vpack.c.b16 %v251, %v249
      %v280 = vpack.c.b16 %v252, %v250
      %v281 = vpack.c.b16 %v255, %v253
      %v282 = vpack.c.b16 %v256, %v254
      %v283 = vpack.c.b16 %v259, %v257
      %v284 = vpack.c.b16 %v260, %v258
      %v285 = vpack.c.b16 %v263, %v261
      %v286 = vpack.c.b16 %v264, %v262
      %v287 = vpack.c.b16 %v267, %v265
      %v288 = vpack.c.b16 %v268, %v266
      %v289 = vpack.c.b16 %v271, %v269
      %v290 = vpack.c.b16 %v272, %v270
      %v291 = vpack.c.b16 %v275, %v273
      %v292 = vpack.c.b16 %v276, %v274
      %309 = vmatprep.subr.bf16.mxu0 %v278
      %310 = vmatpush1.bf16.msra.mxu0 %v277
      %311 = vmatprep.subr.bf16.mxu0 %v280
      %312 = vmatpush1.bf16.msra.mxu0 %v279
      %313 = vmatprep.subr.bf16.mxu0 %v282
      %314 = vmatpush1.bf16.msra.mxu0 %v281
      %315 = vmatprep.subr.bf16.mxu0 %v284
      %316 = vmatpush1.bf16.msra.mxu0 %v283
      %317 = vmatprep.subr.bf16.mxu0 %v286
      %318 = vmatpush1.bf16.msra.mxu0 %v285
      %319 = vmatprep.subr.bf16.mxu0 %v288
      %320 = vmatpush1.bf16.msra.mxu0 %v287
      %321 = vmatprep.subr.bf16.mxu0 %v290
      %322 = vmatpush1.bf16.msra.mxu0 %v289
      %323 = vmatprep.subr.bf16.mxu0 %v292
      %324 = vmatpush1.bf16.msra.mxu0 %v291
      %325 = vmatprep.subr.bf16.mxu0 0
      %326 = vmatpush1.bf16.msra.mxu0 0
      %327 = vmatprep.subr.bf16.mxu0 0
      %328 = vmatpush1.bf16.msra.mxu0 0
      %329 = vmatprep.subr.bf16.mxu0 0
      %330 = vmatpush1.bf16.msra.mxu0 0
      %331 = vmatprep.subr.bf16.mxu0 0
      %332 = vmatpush1.bf16.msra.mxu0 0
      %333 = vmatprep.subr.bf16.mxu0 0
      %334 = vmatpush1.bf16.msra.mxu0 0
      %335 = vmatprep.subr.bf16.mxu0 0
      %336 = vmatpush1.bf16.msra.mxu0 0
      %337 = vmatprep.subr.bf16.mxu0 0
      %338 = vmatpush1.bf16.msra.mxu0 0
      %339 = vmatprep.subr.bf16.mxu0 0
      %340 = vmatpush1.bf16.msra.mxu0 0
      %341 = vmatprep.mubr.bf16.mxu0 0
      %342 = vmatmul.mubr.bf16.gmra.mrb[0].mxu0 %v208
      %v343 = vpop.f32.mrb[0].mxu0
      %v344 = vadd.f32 0.0, %v343
      %v345 = vpop.f32.mrb[0].mxu0
      %v346 = vadd.f32 0.0, %v345
      %v347 = vpop.f32.mrb[0].mxu0
      %v348 = vadd.f32 0.0, %v347
      %v349 = vpop.f32.mrb[0].mxu0
      %v350 = vadd.f32 0.0, %v349
      %351 = vmatprep.mubr.bf16.mxu0 0
      %352 = vmatmul.mubr.bf16.gmra.mrb[0].mxu0 %v209
      %v353 = vpop.f32.mrb[0].mxu0
      %v354 = vadd.f32 0.0, %v353
      %v355 = vpop.f32.mrb[0].mxu0
      %v356 = vadd.f32 0.0, %v355
      %v357 = vpop.f32.mrb[0].mxu0
      %v358 = vadd.f32 0.0, %v357
      %v359 = vpop.f32.mrb[0].mxu0
      %v360 = vadd.f32 0.0, %v359
      %361 = vmatprep.mubr.bf16.mxu0 0
      %362 = vmatmul.mubr.bf16.gmra.mrb[0].mxu0 %v210
      %v363 = vpop.f32.mrb[0].mxu0
      %v364 = vadd.f32 0.0, %v363
      %v365 = vpop.f32.mrb[0].mxu0
      %v366 = vadd.f32 0.0, %v365
      %v367 = vpop.f32.mrb[0].mxu0
      %v368 = vadd.f32 0.0, %v367
      %v369 = vpop.f32.mrb[0].mxu0
      %v370 = vadd.f32 0.0, %v369
      %371 = vmatprep.mubr.bf16.mxu0 0
      %372 = vmatmul.mubr.bf16.gmra.mrb[0].mxu0 %v211
      %v373 = vpop.f32.mrb[0].mxu0
      %v374 = vadd.f32 0.0, %v373
      %v375 = vpop.f32.mrb[0].mxu0
      %v376 = vadd.f32 0.0, %v375
      %v377 = vpop.f32.mrb[0].mxu0
      %v378 = vadd.f32 0.0, %v377
      %v379 = vpop.f32.mrb[0].mxu0
      %v380 = vadd.f32 0.0, %v379
      %381 = vdwg.mxu0
      %v398 = vunpack.c.l.b16 %v184
      %v399 = vunpack.c.h.b16 %v184
      %v400 = vunpack.c.l.b16 %v185
      %v401 = vunpack.c.h.b16 %v185
      %v402 = vunpack.c.l.b16 %v186
      %v403 = vunpack.c.h.b16 %v186
      %v404 = vunpack.c.l.b16 %v187
      %v405 = vunpack.c.h.b16 %v187
      %v406 = vunpack.c.l.b16 %v188
      %v407 = vunpack.c.h.b16 %v188
      %v408 = vunpack.c.l.b16 %v189
      %v409 = vunpack.c.h.b16 %v189
      %v410 = vunpack.c.l.b16 %v190
      %v411 = vunpack.c.h.b16 %v190
      %v412 = vunpack.c.l.b16 %v191
      %v413 = vunpack.c.h.b16 %v191
      %v414 = vunpack.c.l.b16 %v192
      %v415 = vunpack.c.h.b16 %v192
      %v416 = vunpack.c.l.b16 %v193
      %v417 = vunpack.c.h.b16 %v193
      %v418 = vunpack.c.l.b16 %v194
      %v419 = vunpack.c.h.b16 %v194
      %v420 = vunpack.c.l.b16 %v195
      %v421 = vunpack.c.h.b16 %v195
      %v422 = vunpack.c.l.b16 %v196
      %v423 = vunpack.c.h.b16 %v196
      %v424 = vunpack.c.l.b16 %v197
      %v425 = vunpack.c.h.b16 %v197
      %v426 = vunpack.c.l.b16 %v198
      %v427 = vunpack.c.h.b16 %v198
      %v428 = vunpack.c.l.b16 %v199
      %v429 = vunpack.c.h.b16 %v199
      %v430 = vpack.c.b16 %v400, %v398
      %v431 = vpack.c.b16 %v401, %v399
      %v432 = vpack.c.b16 %v404, %v402
      %v433 = vpack.c.b16 %v405, %v403
      %v434 = vpack.c.b16 %v408, %v406
      %v435 = vpack.c.b16 %v409, %v407
      %v436 = vpack.c.b16 %v412, %v410
      %v437 = vpack.c.b16 %v413, %v411
      %v438 = vpack.c.b16 %v416, %v414
      %v439 = vpack.c.b16 %v417, %v415
      %v440 = vpack.c.b16 %v420, %v418
      %v441 = vpack.c.b16 %v421, %v419
      %v442 = vpack.c.b16 %v424, %v422
      %v443 = vpack.c.b16 %v425, %v423
      %v444 = vpack.c.b16 %v428, %v426
      %v445 = vpack.c.b16 %v429, %v427
      %462 = vmatprep.subr.bf16.mxu0 %v431
      %463 = vmatpush1.bf16.msra.mxu0 %v430
      %464 = vmatprep.subr.bf16.mxu0 %v433
      %465 = vmatpush1.bf16.msra.mxu0 %v432
      %466 = vmatprep.subr.bf16.mxu0 %v435
      %467 = vmatpush1.bf16.msra.mxu0 %v434
      %468 = vmatprep.subr.bf16.mxu0 %v437
      %469 = vmatpush1.bf16.msra.mxu0 %v436
      %470 = vmatprep.subr.bf16.mxu0 %v439
      %471 = vmatpush1.bf16.msra.mxu0 %v438
      %472 = vmatprep.subr.bf16.mxu0 %v441
      %473 = vmatpush1.bf16.msra.mxu0 %v440
      %474 = vmatprep.subr.bf16.mxu0 %v443
      %475 = vmatpush1.bf16.msra.mxu0 %v442
      %476 = vmatprep.subr.bf16.mxu0 %v445
      %477 = vmatpush1.bf16.msra.mxu0 %v444
      %478 = vmatprep.subr.bf16.mxu0 0
      %479 = vmatpush1.bf16.msra.mxu0 0
      %480 = vmatprep.subr.bf16.mxu0 0
      %481 = vmatpush1.bf16.msra.mxu0 0
      %482 = vmatprep.subr.bf16.mxu0 0
      %483 = vmatpush1.bf16.msra.mxu0 0
      %484 = vmatprep.subr.bf16.mxu0 0
      %485 = vmatpush1.bf16.msra.mxu0 0
      %486 = vmatprep.subr.bf16.mxu0 0
      %487 = vmatpush1.bf16.msra.mxu0 0
      %488 = vmatprep.subr.bf16.mxu0 0
      %489 = vmatpush1.bf16.msra.mxu0 0
      %490 = vmatprep.subr.bf16.mxu0 0
      %491 = vmatpush1.bf16.msra.mxu0 0
      %492 = vmatprep.subr.bf16.mxu0 0
      %493 = vmatpush1.bf16.msra.mxu0 0
      %494 = vmatprep.mubr.bf16.mxu0 0
      %495 = vmatmul.mubr.bf16.gmra.mrb[0].mxu0 %v180
      %v496 = vpop.f32.mrb[0].mxu0
      %v497 = vadd.f32 %v344, %v496
      %v498 = vpop.f32.mrb[0].mxu0
      %v499 = vadd.f32 %v346, %v498
      %v500 = vpop.f32.mrb[0].mxu0
      %v501 = vadd.f32 %v348, %v500
      %v502 = vpop.f32.mrb[0].mxu0
      %v503 = vadd.f32 %v350, %v502
      %504 = vmatprep.mubr.bf16.mxu0 0
      %505 = vmatmul.mubr.bf16.gmra.mrb[0].mxu0 %v181
      %v506 = vpop.f32.mrb[0].mxu0
      %v507 = vadd.f32 %v354, %v506
      %v508 = vpop.f32.mrb[0].mxu0
      %v509 = vadd.f32 %v356, %v508
      %v510 = vpop.f32.mrb[0].mxu0
      %v511 = vadd.f32 %v358, %v510
      %v512 = vpop.f32.mrb[0].mxu0
      %v513 = vadd.f32 %v360, %v512
      %514 = vmatprep.mubr.bf16.mxu0 0
      %515 = vmatmul.mubr.bf16.gmra.mrb[0].mxu0 %v182
      %v516 = vpop.f32.mrb[0].mxu0
      %v517 = vadd.f32 %v364, %v516
      %v518 = vpop.f32.mrb[0].mxu0
      %v519 = vadd.f32 %v366, %v518
      %v520 = vpop.f32.mrb[0].mxu0
      %v521 = vadd.f32 %v368, %v520
      %v522 = vpop.f32.mrb[0].mxu0
      %v523 = vadd.f32 %v370, %v522
      %524 = vmatprep.mubr.bf16.mxu0 0
      %525 = vmatmul.mubr.bf16.gmra.mrb[0].mxu0 %v183
      %v526 = vpop.f32.mrb[0].mxu0
      %v527 = vadd.f32 %v374, %v526
      %v528 = vpop.f32.mrb[0].mxu0
      %v529 = vadd.f32 %v376, %v528
      %v530 = vpop.f32.mrb[0].mxu0
      %v531 = vadd.f32 %v378, %v530
      %v532 = vpop.f32.mrb[0].mxu0
      %v533 = vadd.f32 %v380, %v532
      %534 = vdwg.mxu0
      %v535 = vld [vmem:[%s165 + $0x2] sm:$0xff]
      %v536 = vld [vmem:[%s165 + $0xa] sm:$0xff]
      %v537 = vld [vmem:[%s165 + $0x12] sm:$0xff]
      %v538 = vld [vmem:[%s165 + $0x1a] sm:$0xff]
      %v539 = vld [vmem:[%s165 + $0x22] sm:$0xff]
      %v540 = vld [vmem:[%s165 + $0x2a] sm:$0xff]
      %v541 = vld [vmem:[%s165 + $0x32] sm:$0xff]
      %v542 = vld [vmem:[%s165 + $0x3a] sm:$0x1f]
      %v543 = vpack.c.bf16 %v536, %v535
      %v544 = vpack.c.bf16 %v538, %v537
      %v545 = vpack.c.bf16 %v540, %v539
      %v546 = vpack.c.bf16 %v542, %v541
      %s547 = scalar_lea.vmem %s1, 256
      %v548 = vld [vmem:[%s547] sm:$0xff]
      %v549 = vld [vmem:[%s547 + $0x8] sm:$0xff]
      %v550 = vld [vmem:[%s547 + $0x10] sm:$0xff]
      %v551 = vld [vmem:[%s547 + $0x18] sm:$0xff]
      %v552 = vld [vmem:[%s547 + $0x20] sm:$0xff]
      %v553 = vld [vmem:[%s547 + $0x28] sm:$0xff]
      %v554 = vld [vmem:[%s547 + $0x30] sm:$0xff]
      %v555 = vld [vmem:[%s547 + $0x38] sm:$0xff]
      %v556 = vld [vmem:[%s547 + $0x40] sm:$0xff]
      %v557 = vld [vmem:[%s547 + $0x48] sm:$0xff]
      %v558 = vld [vmem:[%s547 + $0x50] sm:$0xff]
      %v559 = vld [vmem:[%s547 + $0x58] sm:$0xff]
      %v560 = vld [vmem:[%s547 + $0x60] sm:$0xff]
      %v561 = vld [vmem:[%s547 + $0x68] sm:$0xff]
      %v562 = vld [vmem:[%s547 + $0x70] sm:$0xff]
      %v563 = vld [vmem:[%s547 + $0x78] sm:$0xff]
      %v580 = vunpack.c.l.b16 %v548
      %v581 = vunpack.c.h.b16 %v548
      %v582 = vunpack.c.l.b16 %v549
      %v583 = vunpack.c.h.b16 %v549
      %v584 = vunpack.c.l.b16 %v550
      %v585 = vunpack.c.h.b16 %v550
      %v586 = vunpack.c.l.b16 %v551
      %v587 = vunpack.c.h.b16 %v551
      %v588 = vunpack.c.l.b16 %v552
      %v589 = vunpack.c.h.b16 %v552
      %v590 = vunpack.c.l.b16 %v553
      %v591 = vunpack.c.h.b16 %v553
      %v592 = vunpack.c.l.b16 %v554
      %v593 = vunpack.c.h.b16 %v554
      %v594 = vunpack.c.l.b16 %v555
      %v595 = vunpack.c.h.b16 %v555
      %v596 = vunpack.c.l.b16 %v556
      %v597 = vunpack.c.h.b16 %v556
      %v598 = vunpack.c.l.b16 %v557
      %v599 = vunpack.c.h.b16 %v557
      %v600 = vunpack.c.l.b16 %v558
      %v601 = vunpack.c.h.b16 %v558
      %v602 = vunpack.c.l.b16 %v559
      %v603 = vunpack.c.h.b16 %v559
      %v604 = vunpack.c.l.b16 %v560
      %v605 = vunpack.c.h.b16 %v560
      %v606 = vunpack.c.l.b16 %v561
      %v607 = vunpack.c.h.b16 %v561
      %v608 = vunpack.c.l.b16 %v562
      %v609 = vunpack.c.h.b16 %v562
      %v610 = vunpack.c.l.b16 %v563
      %v611 = vunpack.c.h.b16 %v563
      %v612 = vpack.c.b16 %v582, %v580
      %v613 = vpack.c.b16 %v583, %v581
      %v614 = vpack.c.b16 %v586, %v584
      %v615 = vpack.c.b16 %v587, %v585
      %v616 = vpack.c.b16 %v590, %v588
      %v617 = vpack.c.b16 %v591, %v589
      %v618 = vpack.c.b16 %v594, %v592
      %v619 = vpack.c.b16 %v595, %v593
      %v620 = vpack.c.b16 %v598, %v596
      %v621 = vpack.c.b16 %v599, %v597
      %v622 = vpack.c.b16 %v602, %v600
      %v623 = vpack.c.b16 %v603, %v601
      %v624 = vpack.c.b16 %v606, %v604
      %v625 = vpack.c.b16 %v607, %v605
      %v626 = vpack.c.b16 %v610, %v608
      %v627 = vpack.c.b16 %v611, %v609
      %644 = vmatprep.subr.bf16.mxu0 %v613
      %645 = vmatpush1.bf16.msra.mxu0 %v612
      %646 = vmatprep.subr.bf16.mxu0 %v615
      %647 = vmatpush1.bf16.msra.mxu0 %v614
      %648 = vmatprep.subr.bf16.mxu0 %v617
      %649 = vmatpush1.bf16.msra.mxu0 %v616
      %650 = vmatprep.subr.bf16.mxu0 %v619
      %651 = vmatpush1.bf16.msra.mxu0 %v618
      %652 = vmatprep.subr.bf16.mxu0 %v621
      %653 = vmatpush1.bf16.msra.mxu0 %v620
      %654 = vmatprep.subr.bf16.mxu0 %v623
      %655 = vmatpush1.bf16.msra.mxu0 %v622
      %656 = vmatprep.subr.bf16.mxu0 %v625
      %657 = vmatpush1.bf16.msra.mxu0 %v624
      %658 = vmatprep.subr.bf16.mxu0 %v627
      %659 = vmatpush1.bf16.msra.mxu0 %v626
      %660 = vmatprep.subr.bf16.mxu0 0
      %661 = vmatpush1.bf16.msra.mxu0 0
      %662 = vmatprep.subr.bf16.mxu0 0
      %663 = vmatpush1.bf16.msra.mxu0 0
      %664 = vmatprep.subr.bf16.mxu0 0
      %665 = vmatpush1.bf16.msra.mxu0 0
      %666 = vmatprep.subr.bf16.mxu0 0
      %667 = vmatpush1.bf16.msra.mxu0 0
      %668 = vmatprep.subr.bf16.mxu0 0
      %669 = vmatpush1.bf16.msra.mxu0 0
      %670 = vmatprep.subr.bf16.mxu0 0
      %671 = vmatpush1.bf16.msra.mxu0 0
      %672 = vmatprep.subr.bf16.mxu0 0
      %673 = vmatpush1.bf16.msra.mxu0 0
      %674 = vmatprep.subr.bf16.mxu0 0
      %675 = vmatpush1.bf16.msra.mxu0 0
      %676 = vmatprep.mubr.bf16.mxu0 0
      %677 = vmatmul.mubr.bf16.gmra.mrb[0].mxu0 %v543
      %v678 = vpop.f32.mrb[0].mxu0
      %v679 = vadd.f32 0.0, %v678
      %v680 = vpop.f32.mrb[0].mxu0
      %v681 = vadd.f32 0.0, %v680
      %v682 = vpop.f32.mrb[0].mxu0
      %v683 = vadd.f32 0.0, %v682
      %v684 = vpop.f32.mrb[0].mxu0
      %v685 = vadd.f32 0.0, %v684
      %686 = vmatprep.mubr.bf16.mxu0 0
      %687 = vmatmul.mubr.bf16.gmra.mrb[0].mxu0 %v544
      %v688 = vpop.f32.mrb[0].mxu0
      %v689 = vadd.f32 0.0, %v688
      %v690 = vpop.f32.mrb[0].mxu0
      %v691 = vadd.f32 0.0, %v690
      %v692 = vpop.f32.mrb[0].mxu0
      %v693 = vadd.f32 0.0, %v692
      %v694 = vpop.f32.mrb[0].mxu0
      %v695 = vadd.f32 0.0, %v694
      %696 = vmatprep.mubr.bf16.mxu0 0
      %697 = vmatmul.mubr.bf16.gmra.mrb[0].mxu0 %v545
      %v698 = vpop.f32.mrb[0].mxu0
      %v699 = vadd.f32 0.0, %v698
      %v700 = vpop.f32.mrb[0].mxu0
      %v701 = vadd.f32 0.0, %v700
      %v702 = vpop.f32.mrb[0].mxu0
      %v703 = vadd.f32 0.0, %v702
      %v704 = vpop.f32.mrb[0].mxu0
      %v705 = vadd.f32 0.0, %v704
      %706 = vmatprep.mubr.bf16.mxu0 0
      %707 = vmatmul.mubr.bf16.gmra.mrb[0].mxu0 %v546
      %v708 = vpop.f32.mrb[0].mxu0
      %v709 = vadd.f32 0.0, %v708
      %v710 = vpop.f32.mrb[0].mxu0
      %v711 = vadd.f32 0.0, %v710
      %v712 = vpop.f32.mrb[0].mxu0
      %v713 = vadd.f32 0.0, %v712
      %v714 = vpop.f32.mrb[0].mxu0
      %v715 = vadd.f32 0.0, %v714
      %716 = vdwg.mxu0
      %v717 = vadd.f32 %v497, %v679
      %v718 = vadd.f32 %v499, %v681
      %v719 = vadd.f32 %v501, %v683
      %v720 = vadd.f32 %v503, %v685
      %v721 = vadd.f32 %v507, %v689
      %v722 = vadd.f32 %v509, %v691
      %v723 = vadd.f32 %v511, %v693
      %v724 = vadd.f32 %v513, %v695
      %v725 = vadd.f32 %v517, %v699
      %v726 = vadd.f32 %v519, %v701
      %v727 = vadd.f32 %v521, %v703
      %v728 = vadd.f32 %v523, %v705
      %v729 = vadd.f32 %v527, %v709
      %v730 = vadd.f32 %v529, %v711
      %v731 = vadd.f32 %v531, %v713
      %v732 = vadd.f32 %v533, %v715
      %v733 = vld [vmem:[%s165 + $0x9] sm:$0xff]
      %v734 = vld [vmem:[%s165 + $0x11] sm:$0xff]
      %v735 = vld [vmem:[%s165 + $0x19] sm:$0xff]
      %v736 = vld [vmem:[%s165 + $0x21] sm:$0xff]
      %v737 = vld [vmem:[%s165 + $0x29] sm:$0xff]
      %v738 = vld [vmem:[%s165 + $0x31] sm:$0xff]
      %v739 = vld [vmem:[%s165 + $0x39] sm:$0xff]
      %v740 = vld [vmem:[%s165 + $0x41] sm:$0x1f]
      %v741 = vpack.c.bf16 %v734, %v733
      %v742 = vpack.c.bf16 %v736, %v735
      %v743 = vpack.c.bf16 %v738, %v737
      %v744 = vpack.c.bf16 %v740, %v739
      %s745 = scalar_lea.vmem %s1, 384
      %v746 = vld [vmem:[%s745] sm:$0xff]
      %v747 = vld [vmem:[%s745 + $0x8] sm:$0xff]
      %v748 = vld [vmem:[%s745 + $0x10] sm:$0xff]
      %v749 = vld [vmem:[%s745 + $0x18] sm:$0xff]
      %v750 = vld [vmem:[%s745 + $0x20] sm:$0xff]
      %v751 = vld [vmem:[%s745 + $0x28] sm:$0xff]
      %v752 = vld [vmem:[%s745 + $0x30] sm:$0xff]
      %v753 = vld [vmem:[%s745 + $0x38] sm:$0xff]
      %v754 = vld [vmem:[%s745 + $0x40] sm:$0xff]
      %v755 = vld [vmem:[%s745 + $0x48] sm:$0xff]
      %v756 = vld [vmem:[%s745 + $0x50] sm:$0xff]
      %v757 = vld [vmem:[%s745 + $0x58] sm:$0xff]
      %v758 = vld [vmem:[%s745 + $0x60] sm:$0xff]
      %v759 = vld [vmem:[%s745 + $0x68] sm:$0xff]
      %v760 = vld [vmem:[%s745 + $0x70] sm:$0xff]
      %v761 = vld [vmem:[%s745 + $0x78] sm:$0xff]
      %v778 = vunpack.c.l.b16 %v746
      %v779 = vunpack.c.h.b16 %v746
      %v780 = vunpack.c.l.b16 %v747
      %v781 = vunpack.c.h.b16 %v747
      %v782 = vunpack.c.l.b16 %v748
      %v783 = vunpack.c.h.b16 %v748
      %v784 = vunpack.c.l.b16 %v749
      %v785 = vunpack.c.h.b16 %v749
      %v786 = vunpack.c.l.b16 %v750
      %v787 = vunpack.c.h.b16 %v750
      %v788 = vunpack.c.l.b16 %v751
      %v789 = vunpack.c.h.b16 %v751
      %v790 = vunpack.c.l.b16 %v752
      %v791 = vunpack.c.h.b16 %v752
      %v792 = vunpack.c.l.b16 %v753
      %v793 = vunpack.c.h.b16 %v753
      %v794 = vunpack.c.l.b16 %v754
      %v795 = vunpack.c.h.b16 %v754
      %v796 = vunpack.c.l.b16 %v755
      %v797 = vunpack.c.h.b16 %v755
      %v798 = vunpack.c.l.b16 %v756
      %v799 = vunpack.c.h.b16 %v756
      %v800 = vunpack.c.l.b16 %v757
      %v801 = vunpack.c.h.b16 %v757
      %v802 = vunpack.c.l.b16 %v758
      %v803 = vunpack.c.h.b16 %v758
      %v804 = vunpack.c.l.b16 %v759
      %v805 = vunpack.c.h.b16 %v759
      %v806 = vunpack.c.l.b16 %v760
      %v807 = vunpack.c.h.b16 %v760
      %v808 = vunpack.c.l.b16 %v761
      %v809 = vunpack.c.h.b16 %v761
      %v810 = vpack.c.b16 %v780, %v778
      %v811 = vpack.c.b16 %v781, %v779
      %v812 = vpack.c.b16 %v784, %v782
      %v813 = vpack.c.b16 %v785, %v783
      %v814 = vpack.c.b16 %v788, %v786
      %v815 = vpack.c.b16 %v789, %v787
      %v816 = vpack.c.b16 %v792, %v790
      %v817 = vpack.c.b16 %v793, %v791
      %v818 = vpack.c.b16 %v796, %v794
      %v819 = vpack.c.b16 %v797, %v795
      %v820 = vpack.c.b16 %v800, %v798
      %v821 = vpack.c.b16 %v801, %v799
      %v822 = vpack.c.b16 %v804, %v802
      %v823 = vpack.c.b16 %v805, %v803
      %v824 = vpack.c.b16 %v808, %v806
      %v825 = vpack.c.b16 %v809, %v807
      %842 = vmatprep.subr.bf16.mxu0 %v811
      %843 = vmatpush1.bf16.msra.mxu0 %v810
      %844 = vmatprep.subr.bf16.mxu0 %v813
      %845 = vmatpush1.bf16.msra.mxu0 %v812
      %846 = vmatprep.subr.bf16.mxu0 %v815
      %847 = vmatpush1.bf16.msra.mxu0 %v814
      %848 = vmatprep.subr.bf16.mxu0 %v817
      %849 = vmatpush1.bf16.msra.mxu0 %v816
      %850 = vmatprep.subr.bf16.mxu0 %v819
      %851 = vmatpush1.bf16.msra.mxu0 %v818
      %852 = vmatprep.subr.bf16.mxu0 %v821
      %853 = vmatpush1.bf16.msra.mxu0 %v820
      %854 = vmatprep.subr.bf16.mxu0 %v823
      %855 = vmatpush1.bf16.msra.mxu0 %v822
      %856 = vmatprep.subr.bf16.mxu0 %v825
      %857 = vmatpush1.bf16.msra.mxu0 %v824
      %858 = vmatprep.subr.bf16.mxu0 0
      %859 = vmatpush1.bf16.msra.mxu0 0
      %860 = vmatprep.subr.bf16.mxu0 0
      %861 = vmatpush1.bf16.msra.mxu0 0
      %862 = vmatprep.subr.bf16.mxu0 0
      %863 = vmatpush1.bf16.msra.mxu0 0
      %864 = vmatprep.subr.bf16.mxu0 0
      %865 = vmatpush1.bf16.msra.mxu0 0
      %866 = vmatprep.subr.bf16.mxu0 0
      %867 = vmatpush1.bf16.msra.mxu0 0
      %868 = vmatprep.subr.bf16.mxu0 0
      %869 = vmatpush1.bf16.msra.mxu0 0
      %870 = vmatprep.subr.bf16.mxu0 0
      %871 = vmatpush1.bf16.msra.mxu0 0
      %872 = vmatprep.subr.bf16.mxu0 0
      %873 = vmatpush1.bf16.msra.mxu0 0
      %874 = vmatprep.mubr.bf16.mxu0 0
      %875 = vmatmul.mubr.bf16.gmra.mrb[0].mxu0 %v741
      %v876 = vpop.f32.mrb[0].mxu0
      %v877 = vadd.f32 0.0, %v876
      %v878 = vpop.f32.mrb[0].mxu0
      %v879 = vadd.f32 0.0, %v878
      %v880 = vpop.f32.mrb[0].mxu0
      %v881 = vadd.f32 0.0, %v880
      %v882 = vpop.f32.mrb[0].mxu0
      %v883 = vadd.f32 0.0, %v882
      %884 = vmatprep.mubr.bf16.mxu0 0
      %885 = vmatmul.mubr.bf16.gmra.mrb[0].mxu0 %v742
      %v886 = vpop.f32.mrb[0].mxu0
      %v887 = vadd.f32 0.0, %v886
      %v888 = vpop.f32.mrb[0].mxu0
      %v889 = vadd.f32 0.0, %v888
      %v890 = vpop.f32.mrb[0].mxu0
      %v891 = vadd.f32 0.0, %v890
      %v892 = vpop.f32.mrb[0].mxu0
      %v893 = vadd.f32 0.0, %v892
      %894 = vmatprep.mubr.bf16.mxu0 0
      %895 = vmatmul.mubr.bf16.gmra.mrb[0].mxu0 %v743
      %v896 = vpop.f32.mrb[0].mxu0
      %v897 = vadd.f32 0.0, %v896
      %v898 = vpop.f32.mrb[0].mxu0
      %v899 = vadd.f32 0.0, %v898
      %v900 = vpop.f32.mrb[0].mxu0
      %v901 = vadd.f32 0.0, %v900
      %v902 = vpop.f32.mrb[0].mxu0
      %v903 = vadd.f32 0.0, %v902
      %904 = vmatprep.mubr.bf16.mxu0 0
      %905 = vmatmul.mubr.bf16.gmra.mrb[0].mxu0 %v744
      %v906 = vpop.f32.mrb[0].mxu0
      %v907 = vadd.f32 0.0, %v906
      %v908 = vpop.f32.mrb[0].mxu0
      %v909 = vadd.f32 0.0, %v908
      %v910 = vpop.f32.mrb[0].mxu0
      %v911 = vadd.f32 0.0, %v910
      %v912 = vpop.f32.mrb[0].mxu0
      %v913 = vadd.f32 0.0, %v912
      %914 = vdwg.mxu0
      %v915 = vadd.f32 %v717, %v877
      %v916 = vadd.f32 %v718, %v879
      %v917 = vadd.f32 %v719, %v881
      %v918 = vadd.f32 %v720, %v883
      %v919 = vadd.f32 %v721, %v887
      %v920 = vadd.f32 %v722, %v889
      %v921 = vadd.f32 %v723, %v891
      %v922 = vadd.f32 %v724, %v893
      %v923 = vadd.f32 %v725, %v897
      %v924 = vadd.f32 %v726, %v899
      %v925 = vadd.f32 %v727, %v901
      %v926 = vadd.f32 %v728, %v903
      %v927 = vadd.f32 %v729, %v907
      %v928 = vadd.f32 %v730, %v909
      %v929 = vadd.f32 %v731, %v911
      %v930 = vadd.f32 %v732, %v913
      %v931 = vld [vmem:[%s165 + $0xa] sm:$0xff]
      %v932 = vld [vmem:[%s165 + $0x12] sm:$0xff]
      %v933 = vld [vmem:[%s165 + $0x1a] sm:$0xff]
      %v934 = vld [vmem:[%s165 + $0x22] sm:$0xff]
      %v935 = vld [vmem:[%s165 + $0x2a] sm:$0xff]
      %v936 = vld [vmem:[%s165 + $0x32] sm:$0xff]
      %v937 = vld [vmem:[%s165 + $0x3a] sm:$0xff]
      %v938 = vld [vmem:[%s165 + $0x42] sm:$0x1f]
      %v939 = vpack.c.bf16 %v932, %v931
      %v940 = vpack.c.bf16 %v934, %v933
      %v941 = vpack.c.bf16 %v936, %v935
      %v942 = vpack.c.bf16 %v938, %v937
      %s943 = scalar_lea.vmem %s1, 512
      %v944 = vld [vmem:[%s943] sm:$0xff]
      %v945 = vld [vmem:[%s943 + $0x8] sm:$0xff]
      %v946 = vld [vmem:[%s943 + $0x10] sm:$0xff]
      %v947 = vld [vmem:[%s943 + $0x18] sm:$0xff]
      %v948 = vld [vmem:[%s943 + $0x20] sm:$0xff]
      %v949 = vld [vmem:[%s943 + $0x28] sm:$0xff]
      %v950 = vld [vmem:[%s943 + $0x30] sm:$0xff]
      %v951 = vld [vmem:[%s943 + $0x38] sm:$0xff]
      %v952 = vld [vmem:[%s943 + $0x40] sm:$0xff]
      %v953 = vld [vmem:[%s943 + $0x48] sm:$0xff]
      %v954 = vld [vmem:[%s943 + $0x50] sm:$0xff]
      %v955 = vld [vmem:[%s943 + $0x58] sm:$0xff]
      %v956 = vld [vmem:[%s943 + $0x60] sm:$0xff]
      %v957 = vld [vmem:[%s943 + $0x68] sm:$0xff]
      %v958 = vld [vmem:[%s943 + $0x70] sm:$0xff]
      %v959 = vld [vmem:[%s943 + $0x78] sm:$0xff]
      %v976 = vunpack.c.l.b16 %v944
      %v977 = vunpack.c.h.b16 %v944
      %v978 = vunpack.c.l.b16 %v945
      %v979 = vunpack.c.h.b16 %v945
      %v980 = vunpack.c.l.b16 %v946
      %v981 = vunpack.c.h.b16 %v946
      %v982 = vunpack.c.l.b16 %v947
      %v983 = vunpack.c.h.b16 %v947
      %v984 = vunpack.c.l.b16 %v948
      %v985 = vunpack.c.h.b16 %v948
      %v986 = vunpack.c.l.b16 %v949
      %v987 = vunpack.c.h.b16 %v949
      %v988 = vunpack.c.l.b16 %v950
      %v989 = vunpack.c.h.b16 %v950
      %v990 = vunpack.c.l.b16 %v951
      %v991 = vunpack.c.h.b16 %v951
      %v992 = vunpack.c.l.b16 %v952
      %v993 = vunpack.c.h.b16 %v952
      %v994 = vunpack.c.l.b16 %v953
      %v995 = vunpack.c.h.b16 %v953
      %v996 = vunpack.c.l.b16 %v954
      %v997 = vunpack.c.h.b16 %v954
      %v998 = vunpack.c.l.b16 %v955
      %v999 = vunpack.c.h.b16 %v955
      %v1000 = vunpack.c.l.b16 %v956
      %v1001 = vunpack.c.h.b16 %v956
      %v1002 = vunpack.c.l.b16 %v957
      %v1003 = vunpack.c.h.b16 %v957
      %v1004 = vunpack.c.l.b16 %v958
      %v1005 = vunpack.c.h.b16 %v958
      %v1006 = vunpack.c.l.b16 %v959
      %v1007 = vunpack.c.h.b16 %v959
      %v1008 = vpack.c.b16 %v978, %v976
      %v1009 = vpack.c.b16 %v979, %v977
      %v1010 = vpack.c.b16 %v982, %v980
      %v1011 = vpack.c.b16 %v983, %v981
      %v1012 = vpack.c.b16 %v986, %v984
      %v1013 = vpack.c.b16 %v987, %v985
      %v1014 = vpack.c.b16 %v990, %v988
      %v1015 = vpack.c.b16 %v991, %v989
      %v1016 = vpack.c.b16 %v994, %v992
      %v1017 = vpack.c.b16 %v995, %v993
      %v1018 = vpack.c.b16 %v998, %v996
      %v1019 = vpack.c.b16 %v999, %v997
      %v1020 = vpack.c.b16 %v1002, %v1000
      %v1021 = vpack.c.b16 %v1003, %v1001
      %v1022 = vpack.c.b16 %v1006, %v1004
      %v1023 = vpack.c.b16 %v1007, %v1005
      %1040 = vmatprep.subr.bf16.mxu0 %v1009
      %1041 = vmatpush1.bf16.msra.mxu0 %v1008
      %1042 = vmatprep.subr.bf16.mxu0 %v1011
      %1043 = vmatpush1.bf16.msra.mxu0 %v1010
      %1044 = vmatprep.subr.bf16.mxu0 %v1013
      %1045 = vmatpush1.bf16.msra.mxu0 %v1012
      %1046 = vmatprep.subr.bf16.mxu0 %v1015
      %1047 = vmatpush1.bf16.msra.mxu0 %v1014
      %1048 = vmatprep.subr.bf16.mxu0 %v1017
      %1049 = vmatpush1.bf16.msra.mxu0 %v1016
      %1050 = vmatprep.subr.bf16.mxu0 %v1019
      %1051 = vmatpush1.bf16.msra.mxu0 %v1018
      %1052 = vmatprep.subr.bf16.mxu0 %v1021
      %1053 = vmatpush1.bf16.msra.mxu0 %v1020
      %1054 = vmatprep.subr.bf16.mxu0 %v1023
      %1055 = vmatpush1.bf16.msra.mxu0 %v1022
      %1056 = vmatprep.subr.bf16.mxu0 0
      %1057 = vmatpush1.bf16.msra.mxu0 0
      %1058 = vmatprep.subr.bf16.mxu0 0
      %1059 = vmatpush1.bf16.msra.mxu0 0
      %1060 = vmatprep.subr.bf16.mxu0 0
      %1061 = vmatpush1.bf16.msra.mxu0 0
      %1062 = vmatprep.subr.bf16.mxu0 0
      %1063 = vmatpush1.bf16.msra.mxu0 0
      %1064 = vmatprep.subr.bf16.mxu0 0
      %1065 = vmatpush1.bf16.msra.mxu0 0
      %1066 = vmatprep.subr.bf16.mxu0 0
      %1067 = vmatpush1.bf16.msra.mxu0 0
      %1068 = vmatprep.subr.bf16.mxu0 0
      %1069 = vmatpush1.bf16.msra.mxu0 0
      %1070 = vmatprep.subr.bf16.mxu0 0
      %1071 = vmatpush1.bf16.msra.mxu0 0
      %1072 = vmatprep.mubr.bf16.mxu0 0
      %1073 = vmatmul.mubr.bf16.gmra.mrb[0].mxu0 %v939
      %v1074 = vpop.f32.mrb[0].mxu0
      %v1075 = vadd.f32 0.0, %v1074
      %v1076 = vpop.f32.mrb[0].mxu0
      %v1077 = vadd.f32 0.0, %v1076
      %v1078 = vpop.f32.mrb[0].mxu0
      %v1079 = vadd.f32 0.0, %v1078
      %v1080 = vpop.f32.mrb[0].mxu0
      %v1081 = vadd.f32 0.0, %v1080
      %1082 = vmatprep.mubr.bf16.mxu0 0
      %1083 = vmatmul.mubr.bf16.gmra.mrb[0].mxu0 %v940
      %v1084 = vpop.f32.mrb[0].mxu0
      %v1085 = vadd.f32 0.0, %v1084
      %v1086 = vpop.f32.mrb[0].mxu0
      %v1087 = vadd.f32 0.0, %v1086
      %v1088 = vpop.f32.mrb[0].mxu0
      %v1089 = vadd.f32 0.0, %v1088
      %v1090 = vpop.f32.mrb[0].mxu0
      %v1091 = vadd.f32 0.0, %v1090
      %1092 = vmatprep.mubr.bf16.mxu0 0
      %1093 = vmatmul.mubr.bf16.gmra.mrb[0].mxu0 %v941
      %v1094 = vpop.f32.mrb[0].mxu0
      %v1095 = vadd.f32 0.0, %v1094
      %v1096 = vpop.f32.mrb[0].mxu0
      %v1097 = vadd.f32 0.0, %v1096
      %v1098 = vpop.f32.mrb[0].mxu0
      %v1099 = vadd.f32 0.0, %v1098
      %v1100 = vpop.f32.mrb[0].mxu0
      %v1101 = vadd.f32 0.0, %v1100
      %1102 = vmatprep.mubr.bf16.mxu0 0
      %1103 = vmatmul.mubr.bf16.gmra.mrb[0].mxu0 %v942
      %v1104 = vpop.f32.mrb[0].mxu0
      %v1105 = vadd.f32 0.0, %v1104
      %v1106 = vpop.f32.mrb[0].mxu0
      %v1107 = vadd.f32 0.0, %v1106
      %v1108 = vpop.f32.mrb[0].mxu0
      %v1109 = vadd.f32 0.0, %v1108
      %v1110 = vpop.f32.mrb[0].mxu0
      %v1111 = vadd.f32 0.0, %v1110
      %1112 = vdwg.mxu0
      %v1113 = vadd.f32 %v915, %v1075
      %v1114 = vadd.f32 %v916, %v1077
      %v1115 = vadd.f32 %v917, %v1079
      %v1116 = vadd.f32 %v918, %v1081
      %v1117 = vadd.f32 %v919, %v1085
      %v1118 = vadd.f32 %v920, %v1087
      %v1119 = vadd.f32 %v921, %v1089
      %v1120 = vadd.f32 %v922, %v1091
      %v1121 = vadd.f32 %v923, %v1095
      %v1122 = vadd.f32 %v924, %v1097
      %v1123 = vadd.f32 %v925, %v1099
      %v1124 = vadd.f32 %v926, %v1101
      %v1125 = vadd.f32 %v927, %v1105
      %v1126 = vadd.f32 %v928, %v1107
      %v1127 = vadd.f32 %v929, %v1109
      %v1128 = vadd.f32 %v930, %v1111
      %v1129 = vld [vmem:[%s165 + $0xb] sm:$0xff]
      %v1130 = vld [vmem:[%s165 + $0x13] sm:$0xff]
      %v1131 = vld [vmem:[%s165 + $0x1b] sm:$0xff]
      %v1132 = vld [vmem:[%s165 + $0x23] sm:$0xff]
      %v1133 = vld [vmem:[%s165 + $0x2b] sm:$0xff]
      %v1134 = vld [vmem:[%s165 + $0x33] sm:$0xff]
      %v1135 = vld [vmem:[%s165 + $0x3b] sm:$0xff]
      %v1136 = vld [vmem:[%s165 + $0x43] sm:$0x1f]
      %v1137 = vpack.c.bf16 %v1130, %v1129
      %v1138 = vpack.c.bf16 %v1132, %v1131
      %v1139 = vpack.c.bf16 %v1134, %v1133
      %v1140 = vpack.c.bf16 %v1136, %v1135
      %s1141 = scalar_lea.vmem %s1, 640
      %v1142 = vld [vmem:[%s1141] sm:$0xff]
      %v1143 = vld [vmem:[%s1141 + $0x8] sm:$0xff]
      %v1144 = vld [vmem:[%s1141 + $0x10] sm:$0xff]
      %v1145 = vld [vmem:[%s1141 + $0x18] sm:$0xff]
      %v1146 = vld [vmem:[%s1141 + $0x20] sm:$0xff]
      %v1147 = vld [vmem:[%s1141 + $0x28] sm:$0xff]
      %v1148 = vld [vmem:[%s1141 + $0x30] sm:$0xff]
      %v1149 = vld [vmem:[%s1141 + $0x38] sm:$0xff]
      %v1150 = vld [vmem:[%s1141 + $0x40] sm:$0xff]
      %v1151 = vld [vmem:[%s1141 + $0x48] sm:$0xff]
      %v1152 = vld [vmem:[%s1141 + $0x50] sm:$0xff]
      %v1153 = vld [vmem:[%s1141 + $0x58] sm:$0xff]
      %v1154 = vld [vmem:[%s1141 + $0x60] sm:$0xff]
      %v1155 = vld [vmem:[%s1141 + $0x68] sm:$0xff]
      %v1156 = vld [vmem:[%s1141 + $0x70] sm:$0xff]
      %v1157 = vld [vmem:[%s1141 + $0x78] sm:$0xff]
      %v1174 = vunpack.c.l.b16 %v1142
      %v1175 = vunpack.c.h.b16 %v1142
      %v1176 = vunpack.c.l.b16 %v1143
      %v1177 = vunpack.c.h.b16 %v1143
      %v1178 = vunpack.c.l.b16 %v1144
      %v1179 = vunpack.c.h.b16 %v1144
      %v1180 = vunpack.c.l.b16 %v1145
      %v1181 = vunpack.c.h.b16 %v1145
      %v1182 = vunpack.c.l.b16 %v1146
      %v1183 = vunpack.c.h.b16 %v1146
      %v1184 = vunpack.c.l.b16 %v1147
      %v1185 = vunpack.c.h.b16 %v1147
      %v1186 = vunpack.c.l.b16 %v1148
      %v1187 = vunpack.c.h.b16 %v1148
      %v1188 = vunpack.c.l.b16 %v1149
      %v1189 = vunpack.c.h.b16 %v1149
      %v1190 = vunpack.c.l.b16 %v1150
      %v1191 = vunpack.c.h.b16 %v1150
      %v1192 = vunpack.c.l.b16 %v1151
      %v1193 = vunpack.c.h.b16 %v1151
      %v1194 = vunpack.c.l.b16 %v1152
      %v1195 = vunpack.c.h.b16 %v1152
      %v1196 = vunpack.c.l.b16 %v1153
      %v1197 = vunpack.c.h.b16 %v1153
      %v1198 = vunpack.c.l.b16 %v1154
      %v1199 = vunpack.c.h.b16 %v1154
      %v1200 = vunpack.c.l.b16 %v1155
      %v1201 = vunpack.c.h.b16 %v1155
      %v1202 = vunpack.c.l.b16 %v1156
      %v1203 = vunpack.c.h.b16 %v1156
      %v1204 = vunpack.c.l.b16 %v1157
      %v1205 = vunpack.c.h.b16 %v1157
      %v1206 = vpack.c.b16 %v1176, %v1174
      %v1207 = vpack.c.b16 %v1177, %v1175
      %v1208 = vpack.c.b16 %v1180, %v1178
      %v1209 = vpack.c.b16 %v1181, %v1179
      %v1210 = vpack.c.b16 %v1184, %v1182
      %v1211 = vpack.c.b16 %v1185, %v1183
      %v1212 = vpack.c.b16 %v1188, %v1186
      %v1213 = vpack.c.b16 %v1189, %v1187
      %v1214 = vpack.c.b16 %v1192, %v1190
      %v1215 = vpack.c.b16 %v1193, %v1191
      %v1216 = vpack.c.b16 %v1196, %v1194
      %v1217 = vpack.c.b16 %v1197, %v1195
      %v1218 = vpack.c.b16 %v1200, %v1198
      %v1219 = vpack.c.b16 %v1201, %v1199
      %v1220 = vpack.c.b16 %v1204, %v1202
      %v1221 = vpack.c.b16 %v1205, %v1203
      %1238 = vmatprep.subr.bf16.mxu0 %v1207
      %1239 = vmatpush1.bf16.msra.mxu0 %v1206
      %1240 = vmatprep.subr.bf16.mxu0 %v1209
      %1241 = vmatpush1.bf16.msra.mxu0 %v1208
      %1242 = vmatprep.subr.bf16.mxu0 %v1211
      %1243 = vmatpush1.bf16.msra.mxu0 %v1210
      %1244 = vmatprep.subr.bf16.mxu0 %v1213
      %1245 = vmatpush1.bf16.msra.mxu0 %v1212
      %1246 = vmatprep.subr.bf16.mxu0 %v1215
      %1247 = vmatpush1.bf16.msra.mxu0 %v1214
      %1248 = vmatprep.subr.bf16.mxu0 %v1217
      %1249 = vmatpush1.bf16.msra.mxu0 %v1216
      %1250 = vmatprep.subr.bf16.mxu0 %v1219
      %1251 = vmatpush1.bf16.msra.mxu0 %v1218
      %1252 = vmatprep.subr.bf16.mxu0 %v1221
      %1253 = vmatpush1.bf16.msra.mxu0 %v1220
      %1254 = vmatprep.subr.bf16.mxu0 0
      %1255 = vmatpush1.bf16.msra.mxu0 0
      %1256 = vmatprep.subr.bf16.mxu0 0
      %1257 = vmatpush1.bf16.msra.mxu0 0
      %1258 = vmatprep.subr.bf16.mxu0 0
      %1259 = vmatpush1.bf16.msra.mxu0 0
      %1260 = vmatprep.subr.bf16.mxu0 0
      %1261 = vmatpush1.bf16.msra.mxu0 0
      %1262 = vmatprep.subr.bf16.mxu0 0
      %1263 = vmatpush1.bf16.msra.mxu0 0
      %1264 = vmatprep.subr.bf16.mxu0 0
      %1265 = vmatpush1.bf16.msra.mxu0 0
      %1266 = vmatprep.subr.bf16.mxu0 0
      %1267 = vmatpush1.bf16.msra.mxu0 0
      %1268 = vmatprep.subr.bf16.mxu0 0
      %1269 = vmatpush1.bf16.msra.mxu0 0
      %1270 = vmatprep.mubr.bf16.mxu0 0
      %1271 = vmatmul.mubr.bf16.gmra.mrb[0].mxu0 %v1137
      %v1272 = vpop.f32.mrb[0].mxu0
      %v1273 = vadd.f32 0.0, %v1272
      %v1274 = vpop.f32.mrb[0].mxu0
      %v1275 = vadd.f32 0.0, %v1274
      %v1276 = vpop.f32.mrb[0].mxu0
      %v1277 = vadd.f32 0.0, %v1276
      %v1278 = vpop.f32.mrb[0].mxu0
      %v1279 = vadd.f32 0.0, %v1278
      %1280 = vmatprep.mubr.bf16.mxu0 0
      %1281 = vmatmul.mubr.bf16.gmra.mrb[0].mxu0 %v1138
      %v1282 = vpop.f32.mrb[0].mxu0
      %v1283 = vadd.f32 0.0, %v1282
      %v1284 = vpop.f32.mrb[0].mxu0
      %v1285 = vadd.f32 0.0, %v1284
      %v1286 = vpop.f32.mrb[0].mxu0
      %v1287 = vadd.f32 0.0, %v1286
      %v1288 = vpop.f32.mrb[0].mxu0
      %v1289 = vadd.f32 0.0, %v1288
      %1290 = vmatprep.mubr.bf16.mxu0 0
      %1291 = vmatmul.mubr.bf16.gmra.mrb[0].mxu0 %v1139
      %v1292 = vpop.f32.mrb[0].mxu0
      %v1293 = vadd.f32 0.0, %v1292
      %v1294 = vpop.f32.mrb[0].mxu0
      %v1295 = vadd.f32 0.0, %v1294
      %v1296 = vpop.f32.mrb[0].mxu0
      %v1297 = vadd.f32 0.0, %v1296
      %v1298 = vpop.f32.mrb[0].mxu0
      %v1299 = vadd.f32 0.0, %v1298
      %1300 = vmatprep.mubr.bf16.mxu0 0
      %1301 = vmatmul.mubr.bf16.gmra.mrb[0].mxu0 %v1140
      %v1302 = vpop.f32.mrb[0].mxu0
      %v1303 = vadd.f32 0.0, %v1302
      %v1304 = vpop.f32.mrb[0].mxu0
      %v1305 = vadd.f32 0.0, %v1304
      %v1306 = vpop.f32.mrb[0].mxu0
      %v1307 = vadd.f32 0.0, %v1306
      %v1308 = vpop.f32.mrb[0].mxu0
      %v1309 = vadd.f32 0.0, %v1308
      %1310 = vdwg.mxu0
      %v1311 = vadd.f32 %v1113, %v1273
      %v1312 = vadd.f32 %v1114, %v1275
      %v1313 = vadd.f32 %v1115, %v1277
      %v1314 = vadd.f32 %v1116, %v1279
      %v1315 = vadd.f32 %v1117, %v1283
      %v1316 = vadd.f32 %v1118, %v1285
      %v1317 = vadd.f32 %v1119, %v1287
      %v1318 = vadd.f32 %v1120, %v1289
      %v1319 = vadd.f32 %v1121, %v1293
      %v1320 = vadd.f32 %v1122, %v1295
      %v1321 = vadd.f32 %v1123, %v1297
      %v1322 = vadd.f32 %v1124, %v1299
      %v1323 = vadd.f32 %v1125, %v1303
      %v1324 = vadd.f32 %v1126, %v1305
      %v1325 = vadd.f32 %v1127, %v1307
      %v1326 = vadd.f32 %v1128, %v1309
      %v1327 = vld [vmem:[%s165 + $0x12] sm:$0xff]
      %v1328 = vld [vmem:[%s165 + $0x1a] sm:$0xff]
      %v1329 = vld [vmem:[%s165 + $0x22] sm:$0xff]
      %v1330 = vld [vmem:[%s165 + $0x2a] sm:$0xff]
      %v1331 = vld [vmem:[%s165 + $0x32] sm:$0xff]
      %v1332 = vld [vmem:[%s165 + $0x3a] sm:$0xff]
      %v1333 = vld [vmem:[%s165 + $0x42] sm:$0xff]
      %v1334 = vld [vmem:[%s165 + $0x4a] sm:$0x1f]
      %v1335 = vpack.c.bf16 %v1328, %v1327
      %v1336 = vpack.c.bf16 %v1330, %v1329
      %v1337 = vpack.c.bf16 %v1332, %v1331
      %v1338 = vpack.c.bf16 %v1334, %v1333
      %s1339 = scalar_lea.vmem %s1, 768
      %v1340 = vld [vmem:[%s1339] sm:$0xff]
      %v1341 = vld [vmem:[%s1339 + $0x8] sm:$0xff]
      %v1342 = vld [vmem:[%s1339 + $0x10] sm:$0xff]
      %v1343 = vld [vmem:[%s1339 + $0x18] sm:$0xff]
      %v1344 = vld [vmem:[%s1339 + $0x20] sm:$0xff]
      %v1345 = vld [vmem:[%s1339 + $0x28] sm:$0xff]
      %v1346 = vld [vmem:[%s1339 + $0x30] sm:$0xff]
      %v1347 = vld [vmem:[%s1339 + $0x38] sm:$0xff]
      %v1348 = vld [vmem:[%s1339 + $0x40] sm:$0xff]
      %v1349 = vld [vmem:[%s1339 + $0x48] sm:$0xff]
      %v1350 = vld [vmem:[%s1339 + $0x50] sm:$0xff]
      %v1351 = vld [vmem:[%s1339 + $0x58] sm:$0xff]
      %v1352 = vld [vmem:[%s1339 + $0x60] sm:$0xff]
      %v1353 = vld [vmem:[%s1339 + $0x68] sm:$0xff]
      %v1354 = vld [vmem:[%s1339 + $0x70] sm:$0xff]
      %v1355 = vld [vmem:[%s1339 + $0x78] sm:$0xff]
      %v1372 = vunpack.c.l.b16 %v1340
      %v1373 = vunpack.c.h.b16 %v1340
      %v1374 = vunpack.c.l.b16 %v1341
      %v1375 = vunpack.c.h.b16 %v1341
      %v1376 = vunpack.c.l.b16 %v1342
      %v1377 = vunpack.c.h.b16 %v1342
      %v1378 = vunpack.c.l.b16 %v1343
      %v1379 = vunpack.c.h.b16 %v1343
      %v1380 = vunpack.c.l.b16 %v1344
      %v1381 = vunpack.c.h.b16 %v1344
      %v1382 = vunpack.c.l.b16 %v1345
      %v1383 = vunpack.c.h.b16 %v1345
      %v1384 = vunpack.c.l.b16 %v1346
      %v1385 = vunpack.c.h.b16 %v1346
      %v1386 = vunpack.c.l.b16 %v1347
      %v1387 = vunpack.c.h.b16 %v1347
      %v1388 = vunpack.c.l.b16 %v1348
      %v1389 = vunpack.c.h.b16 %v1348
      %v1390 = vunpack.c.l.b16 %v1349
      %v1391 = vunpack.c.h.b16 %v1349
      %v1392 = vunpack.c.l.b16 %v1350
      %v1393 = vunpack.c.h.b16 %v1350
      %v1394 = vunpack.c.l.b16 %v1351
      %v1395 = vunpack.c.h.b16 %v1351
      %v1396 = vunpack.c.l.b16 %v1352
      %v1397 = vunpack.c.h.b16 %v1352
      %v1398 = vunpack.c.l.b16 %v1353
      %v1399 = vunpack.c.h.b16 %v1353
      %v1400 = vunpack.c.l.b16 %v1354
      %v1401 = vunpack.c.h.b16 %v1354
      %v1402 = vunpack.c.l.b16 %v1355
      %v1403 = vunpack.c.h.b16 %v1355
      %v1404 = vpack.c.b16 %v1374, %v1372
      %v1405 = vpack.c.b16 %v1375, %v1373
      %v1406 = vpack.c.b16 %v1378, %v1376
      %v1407 = vpack.c.b16 %v1379, %v1377
      %v1408 = vpack.c.b16 %v1382, %v1380
      %v1409 = vpack.c.b16 %v1383, %v1381
      %v1410 = vpack.c.b16 %v1386, %v1384
      %v1411 = vpack.c.b16 %v1387, %v1385
      %v1412 = vpack.c.b16 %v1390, %v1388
      %v1413 = vpack.c.b16 %v1391, %v1389
      %v1414 = vpack.c.b16 %v1394, %v1392
      %v1415 = vpack.c.b16 %v1395, %v1393
      %v1416 = vpack.c.b16 %v1398, %v1396
      %v1417 = vpack.c.b16 %v1399, %v1397
      %v1418 = vpack.c.b16 %v1402, %v1400
      %v1419 = vpack.c.b16 %v1403, %v1401
      %1436 = vmatprep.subr.bf16.mxu0 %v1405
      %1437 = vmatpush1.bf16.msra.mxu0 %v1404
      %1438 = vmatprep.subr.bf16.mxu0 %v1407
      %1439 = vmatpush1.bf16.msra.mxu0 %v1406
      %1440 = vmatprep.subr.bf16.mxu0 %v1409
      %1441 = vmatpush1.bf16.msra.mxu0 %v1408
      %1442 = vmatprep.subr.bf16.mxu0 %v1411
      %1443 = vmatpush1.bf16.msra.mxu0 %v1410
      %1444 = vmatprep.subr.bf16.mxu0 %v1413
      %1445 = vmatpush1.bf16.msra.mxu0 %v1412
      %1446 = vmatprep.subr.bf16.mxu0 %v1415
      %1447 = vmatpush1.bf16.msra.mxu0 %v1414
      %1448 = vmatprep.subr.bf16.mxu0 %v1417
      %1449 = vmatpush1.bf16.msra.mxu0 %v1416
      %1450 = vmatprep.subr.bf16.mxu0 %v1419
      %1451 = vmatpush1.bf16.msra.mxu0 %v1418
      %1452 = vmatprep.subr.bf16.mxu0 0
      %1453 = vmatpush1.bf16.msra.mxu0 0
      %1454 = vmatprep.subr.bf16.mxu0 0
      %1455 = vmatpush1.bf16.msra.mxu0 0
      %1456 = vmatprep.subr.bf16.mxu0 0
      %1457 = vmatpush1.bf16.msra.mxu0 0
      %1458 = vmatprep.subr.bf16.mxu0 0
      %1459 = vmatpush1.bf16.msra.mxu0 0
      %1460 = vmatprep.subr.bf16.mxu0 0
      %1461 = vmatpush1.bf16.msra.mxu0 0
      %1462 = vmatprep.subr.bf16.mxu0 0
      %1463 = vmatpush1.bf16.msra.mxu0 0
      %1464 = vmatprep.subr.bf16.mxu0 0
      %1465 = vmatpush1.bf16.msra.mxu0 0
      %1466 = vmatprep.subr.bf16.mxu0 0
      %1467 = vmatpush1.bf16.msra.mxu0 0
      %1468 = vmatprep.mubr.bf16.mxu0 0
      %1469 = vmatmul.mubr.bf16.gmra.mrb[0].mxu0 %v1335
      %v1470 = vpop.f32.mrb[0].mxu0
      %v1471 = vadd.f32 0.0, %v1470
      %v1472 = vpop.f32.mrb[0].mxu0
      %v1473 = vadd.f32 0.0, %v1472
      %v1474 = vpop.f32.mrb[0].mxu0
      %v1475 = vadd.f32 0.0, %v1474
      %v1476 = vpop.f32.mrb[0].mxu0
      %v1477 = vadd.f32 0.0, %v1476
      %1478 = vmatprep.mubr.bf16.mxu0 0
      %1479 = vmatmul.mubr.bf16.gmra.mrb[0].mxu0 %v1336
      %v1480 = vpop.f32.mrb[0].mxu0
      %v1481 = vadd.f32 0.0, %v1480
      %v1482 = vpop.f32.mrb[0].mxu0
      %v1483 = vadd.f32 0.0, %v1482
      %v1484 = vpop.f32.mrb[0].mxu0
      %v1485 = vadd.f32 0.0, %v1484
      %v1486 = vpop.f32.mrb[0].mxu0
      %v1487 = vadd.f32 0.0, %v1486
      %1488 = vmatprep.mubr.bf16.mxu0 0
      %1489 = vmatmul.mubr.bf16.gmra.mrb[0].mxu0 %v1337
      %v1490 = vpop.f32.mrb[0].mxu0
      %v1491 = vadd.f32 0.0, %v1490
      %v1492 = vpop.f32.mrb[0].mxu0
      %v1493 = vadd.f32 0.0, %v1492
      %v1494 = vpop.f32.mrb[0].mxu0
      %v1495 = vadd.f32 0.0, %v1494
      %v1496 = vpop.f32.mrb[0].mxu0
      %v1497 = vadd.f32 0.0, %v1496
      %1498 = vmatprep.mubr.bf16.mxu0 0
      %1499 = vmatmul.mubr.bf16.gmra.mrb[0].mxu0 %v1338
      %v1500 = vpop.f32.mrb[0].mxu0
      %v1501 = vadd.f32 0.0, %v1500
      %v1502 = vpop.f32.mrb[0].mxu0
      %v1503 = vadd.f32 0.0, %v1502
      %v1504 = vpop.f32.mrb[0].mxu0
      %v1505 = vadd.f32 0.0, %v1504
      %v1506 = vpop.f32.mrb[0].mxu0
      %v1507 = vadd.f32 0.0, %v1506
      %1508 = vdwg.mxu0
      %v1509 = vadd.f32 %v1311, %v1471
      %v1510 = vadd.f32 %v1312, %v1473
      %v1511 = vadd.f32 %v1313, %v1475
      %v1512 = vadd.f32 %v1314, %v1477
      %v1513 = vadd.f32 %v1315, %v1481
      %v1514 = vadd.f32 %v1316, %v1483
      %v1515 = vadd.f32 %v1317, %v1485
      %v1516 = vadd.f32 %v1318, %v1487
      %v1517 = vadd.f32 %v1319, %v1491
      %v1518 = vadd.f32 %v1320, %v1493
      %v1519 = vadd.f32 %v1321, %v1495
      %v1520 = vadd.f32 %v1322, %v1497
      %v1521 = vadd.f32 %v1323, %v1501
      %v1522 = vadd.f32 %v1324, %v1503
      %v1523 = vadd.f32 %v1325, %v1505
      %v1524 = vadd.f32 %v1326, %v1507
      %v1525 = vld [vmem:[%s165 + $0x13] sm:$0xff]
      %v1526 = vld [vmem:[%s165 + $0x1b] sm:$0xff]
      %v1527 = vld [vmem:[%s165 + $0x23] sm:$0xff]
      %v1528 = vld [vmem:[%s165 + $0x2b] sm:$0xff]
      %v1529 = vld [vmem:[%s165 + $0x33] sm:$0xff]
      %v1530 = vld [vmem:[%s165 + $0x3b] sm:$0xff]
      %v1531 = vld [vmem:[%s165 + $0x43] sm:$0xff]
      %v1532 = vld [vmem:[%s165 + $0x4b] sm:$0x1f]
      %v1533 = vpack.c.bf16 %v1526, %v1525
      %v1534 = vpack.c.bf16 %v1528, %v1527
      %v1535 = vpack.c.bf16 %v1530, %v1529
      %v1536 = vpack.c.bf16 %v1532, %v1531
      %s1537 = scalar_lea.vmem %s1, 896
      %v1538 = vld [vmem:[%s1537] sm:$0xff]
      %v1539 = vld [vmem:[%s1537 + $0x8] sm:$0xff]
      %v1540 = vld [vmem:[%s1537 + $0x10] sm:$0xff]
      %v1541 = vld [vmem:[%s1537 + $0x18] sm:$0xff]
      %v1542 = vld [vmem:[%s1537 + $0x20] sm:$0xff]
      %v1543 = vld [vmem:[%s1537 + $0x28] sm:$0xff]
      %v1544 = vld [vmem:[%s1537 + $0x30] sm:$0xff]
      %v1545 = vld [vmem:[%s1537 + $0x38] sm:$0xff]
      %v1546 = vld [vmem:[%s1537 + $0x40] sm:$0xff]
      %v1547 = vld [vmem:[%s1537 + $0x48] sm:$0xff]
      %v1548 = vld [vmem:[%s1537 + $0x50] sm:$0xff]
      %v1549 = vld [vmem:[%s1537 + $0x58] sm:$0xff]
      %v1550 = vld [vmem:[%s1537 + $0x60] sm:$0xff]
      %v1551 = vld [vmem:[%s1537 + $0x68] sm:$0xff]
      %v1552 = vld [vmem:[%s1537 + $0x70] sm:$0xff]
      %v1553 = vld [vmem:[%s1537 + $0x78] sm:$0xff]
      %v1570 = vunpack.c.l.b16 %v1538
      %v1571 = vunpack.c.h.b16 %v1538
      %v1572 = vunpack.c.l.b16 %v1539
      %v1573 = vunpack.c.h.b16 %v1539
      %v1574 = vunpack.c.l.b16 %v1540
      %v1575 = vunpack.c.h.b16 %v1540
      %v1576 = vunpack.c.l.b16 %v1541
      %v1577 = vunpack.c.h.b16 %v1541
      %v1578 = vunpack.c.l.b16 %v1542
      %v1579 = vunpack.c.h.b16 %v1542
      %v1580 = vunpack.c.l.b16 %v1543
      %v1581 = vunpack.c.h.b16 %v1543
      %v1582 = vunpack.c.l.b16 %v1544
      %v1583 = vunpack.c.h.b16 %v1544
      %v1584 = vunpack.c.l.b16 %v1545
      %v1585 = vunpack.c.h.b16 %v1545
      %v1586 = vunpack.c.l.b16 %v1546
      %v1587 = vunpack.c.h.b16 %v1546
      %v1588 = vunpack.c.l.b16 %v1547
      %v1589 = vunpack.c.h.b16 %v1547
      %v1590 = vunpack.c.l.b16 %v1548
      %v1591 = vunpack.c.h.b16 %v1548
      %v1592 = vunpack.c.l.b16 %v1549
      %v1593 = vunpack.c.h.b16 %v1549
      %v1594 = vunpack.c.l.b16 %v1550
      %v1595 = vunpack.c.h.b16 %v1550
      %v1596 = vunpack.c.l.b16 %v1551
      %v1597 = vunpack.c.h.b16 %v1551
      %v1598 = vunpack.c.l.b16 %v1552
      %v1599 = vunpack.c.h.b16 %v1552
      %v1600 = vunpack.c.l.b16 %v1553
      %v1601 = vunpack.c.h.b16 %v1553
      %v1602 = vpack.c.b16 %v1572, %v1570
      %v1603 = vpack.c.b16 %v1573, %v1571
      %v1604 = vpack.c.b16 %v1576, %v1574
      %v1605 = vpack.c.b16 %v1577, %v1575
      %v1606 = vpack.c.b16 %v1580, %v1578
      %v1607 = vpack.c.b16 %v1581, %v1579
      %v1608 = vpack.c.b16 %v1584, %v1582
      %v1609 = vpack.c.b16 %v1585, %v1583
      %v1610 = vpack.c.b16 %v1588, %v1586
      %v1611 = vpack.c.b16 %v1589, %v1587
      %v1612 = vpack.c.b16 %v1592, %v1590
      %v1613 = vpack.c.b16 %v1593, %v1591
      %v1614 = vpack.c.b16 %v1596, %v1594
      %v1615 = vpack.c.b16 %v1597, %v1595
      %v1616 = vpack.c.b16 %v1600, %v1598
      %v1617 = vpack.c.b16 %v1601, %v1599
      %1634 = vmatprep.subr.bf16.mxu0 %v1603
      %1635 = vmatpush1.bf16.msra.mxu0 %v1602
      %1636 = vmatprep.subr.bf16.mxu0 %v1605
      %1637 = vmatpush1.bf16.msra.mxu0 %v1604
      %1638 = vmatprep.subr.bf16.mxu0 %v1607
      %1639 = vmatpush1.bf16.msra.mxu0 %v1606
      %1640 = vmatprep.subr.bf16.mxu0 %v1609
      %1641 = vmatpush1.bf16.msra.mxu0 %v1608
      %1642 = vmatprep.subr.bf16.mxu0 %v1611
      %1643 = vmatpush1.bf16.msra.mxu0 %v1610
      %1644 = vmatprep.subr.bf16.mxu0 %v1613
      %1645 = vmatpush1.bf16.msra.mxu0 %v1612
      %1646 = vmatprep.subr.bf16.mxu0 %v1615
      %1647 = vmatpush1.bf16.msra.mxu0 %v1614
      %1648 = vmatprep.subr.bf16.mxu0 %v1617
      %1649 = vmatpush1.bf16.msra.mxu0 %v1616
      %1650 = vmatprep.subr.bf16.mxu0 0
      %1651 = vmatpush1.bf16.msra.mxu0 0
      %1652 = vmatprep.subr.bf16.mxu0 0
      %1653 = vmatpush1.bf16.msra.mxu0 0
      %1654 = vmatprep.subr.bf16.mxu0 0
      %1655 = vmatpush1.bf16.msra.mxu0 0
      %1656 = vmatprep.subr.bf16.mxu0 0
      %1657 = vmatpush1.bf16.msra.mxu0 0
      %1658 = vmatprep.subr.bf16.mxu0 0
      %1659 = vmatpush1.bf16.msra.mxu0 0
      %1660 = vmatprep.subr.bf16.mxu0 0
      %1661 = vmatpush1.bf16.msra.mxu0 0
      %1662 = vmatprep.subr.bf16.mxu0 0
      %1663 = vmatpush1.bf16.msra.mxu0 0
      %1664 = vmatprep.subr.bf16.mxu0 0
      %1665 = vmatpush1.bf16.msra.mxu0 0
      %1666 = vmatprep.mubr.bf16.mxu0 0
      %1667 = vmatmul.mubr.bf16.gmra.mrb[0].mxu0 %v1533
      %v1668 = vpop.f32.mrb[0].mxu0
      %v1669 = vadd.f32 0.0, %v1668
      %v1670 = vpop.f32.mrb[0].mxu0
      %v1671 = vadd.f32 0.0, %v1670
      %v1672 = vpop.f32.mrb[0].mxu0
      %v1673 = vadd.f32 0.0, %v1672
      %v1674 = vpop.f32.mrb[0].mxu0
      %v1675 = vadd.f32 0.0, %v1674
      %1676 = vmatprep.mubr.bf16.mxu0 0
      %1677 = vmatmul.mubr.bf16.gmra.mrb[0].mxu0 %v1534
      %v1678 = vpop.f32.mrb[0].mxu0
      %v1679 = vadd.f32 0.0, %v1678
      %v1680 = vpop.f32.mrb[0].mxu0
      %v1681 = vadd.f32 0.0, %v1680
      %v1682 = vpop.f32.mrb[0].mxu0
      %v1683 = vadd.f32 0.0, %v1682
      %v1684 = vpop.f32.mrb[0].mxu0
      %v1685 = vadd.f32 0.0, %v1684
      %1686 = vmatprep.mubr.bf16.mxu0 0
      %1687 = vmatmul.mubr.bf16.gmra.mrb[0].mxu0 %v1535
      %v1688 = vpop.f32.mrb[0].mxu0
      %v1689 = vadd.f32 0.0, %v1688
      %v1690 = vpop.f32.mrb[0].mxu0
      %v1691 = vadd.f32 0.0, %v1690
      %v1692 = vpop.f32.mrb[0].mxu0
      %v1693 = vadd.f32 0.0, %v1692
      %v1694 = vpop.f32.mrb[0].mxu0
      %v1695 = vadd.f32 0.0, %v1694
      %1696 = vmatprep.mubr.bf16.mxu0 0
      %1697 = vmatmul.mubr.bf16.gmra.mrb[0].mxu0 %v1536
      %v1698 = vpop.f32.mrb[0].mxu0
      %v1699 = vadd.f32 0.0, %v1698
      %v1700 = vpop.f32.mrb[0].mxu0
      %v1701 = vadd.f32 0.0, %v1700
      %v1702 = vpop.f32.mrb[0].mxu0
      %v1703 = vadd.f32 0.0, %v1702
      %v1704 = vpop.f32.mrb[0].mxu0
      %v1705 = vadd.f32 0.0, %v1704
      %1706 = vdwg.mxu0
      %v1707 = vadd.f32 %v1509, %v1669
      %v1708 = vadd.f32 %v1510, %v1671
      %v1709 = vadd.f32 %v1511, %v1673
      %v1710 = vadd.f32 %v1512, %v1675
      %v1711 = vadd.f32 %v1513, %v1679
      %v1712 = vadd.f32 %v1514, %v1681
      %v1713 = vadd.f32 %v1515, %v1683
      %v1714 = vadd.f32 %v1516, %v1685
      %v1715 = vadd.f32 %v1517, %v1689
      %v1716 = vadd.f32 %v1518, %v1691
      %v1717 = vadd.f32 %v1519, %v1693
      %v1718 = vadd.f32 %v1520, %v1695
      %v1719 = vadd.f32 %v1521, %v1699
      %v1720 = vadd.f32 %v1522, %v1701
      %v1721 = vadd.f32 %v1523, %v1703
      %v1722 = vadd.f32 %v1524, %v1705
      %v1723 = vld [vmem:[%s165 + $0x14] sm:$0xff]
      %v1724 = vld [vmem:[%s165 + $0x1c] sm:$0xff]
      %v1725 = vld [vmem:[%s165 + $0x24] sm:$0xff]
      %v1726 = vld [vmem:[%s165 + $0x2c] sm:$0xff]
      %v1727 = vld [vmem:[%s165 + $0x34] sm:$0xff]
      %v1728 = vld [vmem:[%s165 + $0x3c] sm:$0xff]
      %v1729 = vld [vmem:[%s165 + $0x44] sm:$0xff]
      %v1730 = vld [vmem:[%s165 + $0x4c] sm:$0x1f]
      %v1731 = vpack.c.bf16 %v1724, %v1723
      %v1732 = vpack.c.bf16 %v1726, %v1725
      %v1733 = vpack.c.bf16 %v1728, %v1727
      %v1734 = vpack.c.bf16 %v1730, %v1729
      %s1735 = scalar_lea.vmem %s1, 1024
      %v1736 = vld [vmem:[%s1735] sm:$0xff]
      %v1737 = vld [vmem:[%s1735 + $0x8] sm:$0xff]
      %v1738 = vld [vmem:[%s1735 + $0x10] sm:$0xff]
      %v1739 = vld [vmem:[%s1735 + $0x18] sm:$0xff]
      %v1740 = vld [vmem:[%s1735 + $0x20] sm:$0xff]
      %v1741 = vld [vmem:[%s1735 + $0x28] sm:$0xff]
      %v1742 = vld [vmem:[%s1735 + $0x30] sm:$0xff]
      %v1743 = vld [vmem:[%s1735 + $0x38] sm:$0xff]
      %v1744 = vld [vmem:[%s1735 + $0x40] sm:$0xff]
      %v1745 = vld [vmem:[%s1735 + $0x48] sm:$0xff]
      %v1746 = vld [vmem:[%s1735 + $0x50] sm:$0xff]
      %v1747 = vld [vmem:[%s1735 + $0x58] sm:$0xff]
      %v1748 = vld [vmem:[%s1735 + $0x60] sm:$0xff]
      %v1749 = vld [vmem:[%s1735 + $0x68] sm:$0xff]
      %v1750 = vld [vmem:[%s1735 + $0x70] sm:$0xff]
      %v1751 = vld [vmem:[%s1735 + $0x78] sm:$0xff]
      %v1768 = vunpack.c.l.b16 %v1736
      %v1769 = vunpack.c.h.b16 %v1736
      %v1770 = vunpack.c.l.b16 %v1737
      %v1771 = vunpack.c.h.b16 %v1737
      %v1772 = vunpack.c.l.b16 %v1738
      %v1773 = vunpack.c.h.b16 %v1738
      %v1774 = vunpack.c.l.b16 %v1739
      %v1775 = vunpack.c.h.b16 %v1739
      %v1776 = vunpack.c.l.b16 %v1740
      %v1777 = vunpack.c.h.b16 %v1740
      %v1778 = vunpack.c.l.b16 %v1741
      %v1779 = vunpack.c.h.b16 %v1741
      %v1780 = vunpack.c.l.b16 %v1742
      %v1781 = vunpack.c.h.b16 %v1742
      %v1782 = vunpack.c.l.b16 %v1743
      %v1783 = vunpack.c.h.b16 %v1743
      %v1784 = vunpack.c.l.b16 %v1744
      %v1785 = vunpack.c.h.b16 %v1744
      %v1786 = vunpack.c.l.b16 %v1745
      %v1787 = vunpack.c.h.b16 %v1745
      %v1788 = vunpack.c.l.b16 %v1746
      %v1789 = vunpack.c.h.b16 %v1746
      %v1790 = vunpack.c.l.b16 %v1747
      %v1791 = vunpack.c.h.b16 %v1747
      %v1792 = vunpack.c.l.b16 %v1748
      %v1793 = vunpack.c.h.b16 %v1748
      %v1794 = vunpack.c.l.b16 %v1749
      %v1795 = vunpack.c.h.b16 %v1749
      %v1796 = vunpack.c.l.b16 %v1750
      %v1797 = vunpack.c.h.b16 %v1750
      %v1798 = vunpack.c.l.b16 %v1751
      %v1799 = vunpack.c.h.b16 %v1751
      %v1800 = vpack.c.b16 %v1770, %v1768
      %v1801 = vpack.c.b16 %v1771, %v1769
      %v1802 = vpack.c.b16 %v1774, %v1772
      %v1803 = vpack.c.b16 %v1775, %v1773
      %v1804 = vpack.c.b16 %v1778, %v1776
      %v1805 = vpack.c.b16 %v1779, %v1777
      %v1806 = vpack.c.b16 %v1782, %v1780
      %v1807 = vpack.c.b16 %v1783, %v1781
      %v1808 = vpack.c.b16 %v1786, %v1784
      %v1809 = vpack.c.b16 %v1787, %v1785
      %v1810 = vpack.c.b16 %v1790, %v1788
      %v1811 = vpack.c.b16 %v1791, %v1789
      %v1812 = vpack.c.b16 %v1794, %v1792
      %v1813 = vpack.c.b16 %v1795, %v1793
      %v1814 = vpack.c.b16 %v1798, %v1796
      %v1815 = vpack.c.b16 %v1799, %v1797
      %1832 = vmatprep.subr.bf16.mxu0 %v1801
      %1833 = vmatpush1.bf16.msra.mxu0 %v1800
      %1834 = vmatprep.subr.bf16.mxu0 %v1803
      %1835 = vmatpush1.bf16.msra.mxu0 %v1802
      %1836 = vmatprep.subr.bf16.mxu0 %v1805
      %1837 = vmatpush1.bf16.msra.mxu0 %v1804
      %1838 = vmatprep.subr.bf16.mxu0 %v1807
      %1839 = vmatpush1.bf16.msra.mxu0 %v1806
      %1840 = vmatprep.subr.bf16.mxu0 %v1809
      %1841 = vmatpush1.bf16.msra.mxu0 %v1808
      %1842 = vmatprep.subr.bf16.mxu0 %v1811
      %1843 = vmatpush1.bf16.msra.mxu0 %v1810
      %1844 = vmatprep.subr.bf16.mxu0 %v1813
      %1845 = vmatpush1.bf16.msra.mxu0 %v1812
      %1846 = vmatprep.subr.bf16.mxu0 %v1815
      %1847 = vmatpush1.bf16.msra.mxu0 %v1814
      %1848 = vmatprep.subr.bf16.mxu0 0
      %1849 = vmatpush1.bf16.msra.mxu0 0
      %1850 = vmatprep.subr.bf16.mxu0 0
      %1851 = vmatpush1.bf16.msra.mxu0 0
      %1852 = vmatprep.subr.bf16.mxu0 0
      %1853 = vmatpush1.bf16.msra.mxu0 0
      %1854 = vmatprep.subr.bf16.mxu0 0
      %1855 = vmatpush1.bf16.msra.mxu0 0
      %1856 = vmatprep.subr.bf16.mxu0 0
      %1857 = vmatpush1.bf16.msra.mxu0 0
      %1858 = vmatprep.subr.bf16.mxu0 0
      %1859 = vmatpush1.bf16.msra.mxu0 0
      %1860 = vmatprep.subr.bf16.mxu0 0
      %1861 = vmatpush1.bf16.msra.mxu0 0
      %1862 = vmatprep.subr.bf16.mxu0 0
      %1863 = vmatpush1.bf16.msra.mxu0 0
      %1864 = vmatprep.mubr.bf16.mxu0 0
      %1865 = vmatmul.mubr.bf16.gmra.mrb[0].mxu0 %v1731
      %v1866 = vpop.f32.mrb[0].mxu0
      %v1867 = vadd.f32 0.0, %v1866
      %v1868 = vpop.f32.mrb[0].mxu0
      %v1869 = vadd.f32 0.0, %v1868
      %v1870 = vpop.f32.mrb[0].mxu0
      %v1871 = vadd.f32 0.0, %v1870
      %v1872 = vpop.f32.mrb[0].mxu0
      %v1873 = vadd.f32 0.0, %v1872
      %1874 = vmatprep.mubr.bf16.mxu0 0
      %1875 = vmatmul.mubr.bf16.gmra.mrb[0].mxu0 %v1732
      %v1876 = vpop.f32.mrb[0].mxu0
      %v1877 = vadd.f32 0.0, %v1876
      %v1878 = vpop.f32.mrb[0].mxu0
      %v1879 = vadd.f32 0.0, %v1878
      %v1880 = vpop.f32.mrb[0].mxu0
      %v1881 = vadd.f32 0.0, %v1880
      %v1882 = vpop.f32.mrb[0].mxu0
      %v1883 = vadd.f32 0.0, %v1882
      %1884 = vmatprep.mubr.bf16.mxu0 0
      %1885 = vmatmul.mubr.bf16.gmra.mrb[0].mxu0 %v1733
      %v1886 = vpop.f32.mrb[0].mxu0
      %v1887 = vadd.f32 0.0, %v1886
      %v1888 = vpop.f32.mrb[0].mxu0
      %v1889 = vadd.f32 0.0, %v1888
      %v1890 = vpop.f32.mrb[0].mxu0
      %v1891 = vadd.f32 0.0, %v1890
      %v1892 = vpop.f32.mrb[0].mxu0
      %v1893 = vadd.f32 0.0, %v1892
      %1894 = vmatprep.mubr.bf16.mxu0 0
      %1895 = vmatmul.mubr.bf16.gmra.mrb[0].mxu0 %v1734
      %v1896 = vpop.f32.mrb[0].mxu0
      %v1897 = vadd.f32 0.0, %v1896
      %v1898 = vpop.f32.mrb[0].mxu0
      %v1899 = vadd.f32 0.0, %v1898
      %v1900 = vpop.f32.mrb[0].mxu0
      %v1901 = vadd.f32 0.0, %v1900
      %v1902 = vpop.f32.mrb[0].mxu0
      %v1903 = vadd.f32 0.0, %v1902
      %1904 = vdwg.mxu0
      %v1905 = vadd.f32 %v1707, %v1867
      %v1906 = vadd.f32 %v1708, %v1869
      %v1907 = vadd.f32 %v1709, %v1871
      %v1908 = vadd.f32 %v1710, %v1873
      %v1909 = vadd.f32 %v1711, %v1877
      %v1910 = vadd.f32 %v1712, %v1879
      %v1911 = vadd.f32 %v1713, %v1881
      %v1912 = vadd.f32 %v1714, %v1883
      %v1913 = vadd.f32 %v1715, %v1887
      %v1914 = vadd.f32 %v1716, %v1889
      %v1915 = vadd.f32 %v1717, %v1891
      %v1916 = vadd.f32 %v1718, %v1893
      %v1917 = vadd.f32 %v1719, %v1897
      %v1918 = vadd.f32 %v1720, %v1899
      %v1919 = vadd.f32 %v1721, %v1901
      %v1920 = vadd.f32 %v1722, %v1903
      %v1921 = vld [vmem:[%s2] sm:$0x3]
      %v1923 = vlaneseq
      %v1924 = vshrl.u32 %v1923, 7
      %v1925 = vsub.s32 0, %v1924
      %v1926 = vrot.slane %v1921, %v1925
      %v1927 = vlaneseq
      %v1928 = vshrl.u32 %v1927, 7
      %v1929 = vsub.s32 1, %v1928
      %v1930 = vrot.slane %v1921, %v1929
      %v1933 = vadd.f32 %v1905, %v1926
      %v1934 = vadd.f32 %v1906, %v1930
      %v1935 = vadd.f32 %v1907, %v1926
      %v1936 = vadd.f32 %v1908, %v1930
      %v1937 = vadd.f32 %v1909, %v1926
      %v1938 = vadd.f32 %v1910, %v1930
      %v1939 = vadd.f32 %v1911, %v1926
      %v1940 = vadd.f32 %v1912, %v1930
      %v1941 = vadd.f32 %v1913, %v1926
      %v1942 = vadd.f32 %v1914, %v1930
      %v1943 = vadd.f32 %v1915, %v1926
      %v1944 = vadd.f32 %v1916, %v1930
      %v1945 = vadd.f32 %v1917, %v1926
      %v1946 = vadd.f32 %v1918, %v1930
      %v1947 = vadd.f32 %v1919, %v1926
      %v1948 = vadd.f32 %v1920, %v1930
      %v1949 = vmax.f32 %v1933, 0.0
      %v1950 = vmax.f32 %v1934, 0.0
      %v1951 = vmax.f32 %v1935, 0.0
      %v1952 = vmax.f32 %v1936, 0.0
      %v1953 = vmax.f32 %v1937, 0.0
      %v1954 = vmax.f32 %v1938, 0.0
      %v1955 = vmax.f32 %v1939, 0.0
      %v1956 = vmax.f32 %v1940, 0.0
      %v1957 = vmax.f32 %v1941, 0.0
      %v1958 = vmax.f32 %v1942, 0.0
      %v1959 = vmax.f32 %v1943, 0.0
      %v1960 = vmax.f32 %v1944, 0.0
      %v1961 = vmax.f32 %v1945, 0.0
      %v1962 = vmax.f32 %v1946, 0.0
      %v1963 = vmax.f32 %v1947, 0.0
      %v1964 = vmax.f32 %v1948, 0.0
      %1965 = vst [vmem:[%s170] sm:$0xff] %v1949
      %1966 = vst [vmem:[%s170 + $0x8] sm:$0xff] %v1950
      %1967 = vst [vmem:[%s170 + $0x10] sm:$0xff] %v1951
      %1968 = vst [vmem:[%s170 + $0x18] sm:$0xff] %v1952
      %1969 = vst [vmem:[%s170 + $0x20] sm:$0xff] %v1953
      %1970 = vst [vmem:[%s170 + $0x28] sm:$0xff] %v1954
      %1971 = vst [vmem:[%s170 + $0x30] sm:$0xff] %v1955
      %1972 = vst [vmem:[%s170 + $0x38] sm:$0xff] %v1956
      %1973 = vst [vmem:[%s170 + $0x40] sm:$0xff] %v1957
      %1974 = vst [vmem:[%s170 + $0x48] sm:$0xff] %v1958
      %1975 = vst [vmem:[%s170 + $0x50] sm:$0xff] %v1959
      %1976 = vst [vmem:[%s170 + $0x58] sm:$0xff] %v1960
      %1977 = vst [vmem:[%s170 + $0x60] sm:$0xff] %v1961
      %1978 = vst [vmem:[%s170 + $0x68] sm:$0xff] %v1962
      %1979 = vst [vmem:[%s170 + $0x70] sm:$0x1f] %v1963
      %1980 = vst [vmem:[%s170 + $0x78] sm:$0x1f] %v1964
      %p1981 = scmp.lt.s32.totalorder %s14, 1
      %s1982 = scalar_select %p1981, %s14, 1
      %s1983 = smul.addr %s1982, 16
      %s1984 = smul.addr %s1983, 8
      %s1985 = scalar_lea.vmem %s3, %s1984
      // Predicated region
      $region33: #{decoder_forward.5} parent=31 // pred_check
        %p1986 = pneg %p100
      $region34: #{decoder_forward.5} parent=31 // pred_check_branch
        %1988 = sbr.rel (%p1986) target = $region36
      $region35: #{decoder_forward.5} parent=31 // pred_region
        _
      $region36: #{decoder_forward.5} parent=31 // pred_fallthru
        _
    $region32: #{decoder_forward.5} parent=5 // pred_fallthru
      _
    %p1989 = scmp.le.s32.totalorder 2, %s9
    // Predicated region
    $region37: #{decoder_forward.5} parent=5 // pred_check
      %p1990 = pneg %p1989
    $region38: #{decoder_forward.5} parent=5 // pred_check_branch
      %1992 = sbr.rel (%p1990) target = $region40
    $region39: #{decoder_forward.5} parent=5 // pred_region
      %s1993 = ssub.s32 %s9, 2
      // Predicated region
      $region41: #{decoder_forward.5} parent=39 // pred_check
        %p1994 = pneg %p106
      $region42: #{decoder_forward.5} parent=39 // pred_check_branch
        %1996 = sbr.rel (%p1994) target = $region44
      $region43: #{decoder_forward.5} parent=39 // pred_region
        %p1997 = scmp.lt.s32.totalorder %s15, 1
        %s1998 = scalar_select %p1997, %s15, 1
        %s1999 = smul.addr %s1998, 16
        %s2000 = smul.addr %s1999, 8
        %s2001 = scalar_lea.vmem %s3, %s2000
      $region44: #{decoder_forward.5} parent=39 // pred_fallthru
        _
    $region40: #{decoder_forward.5} parent=5 // pred_fallthru
      _
  $region6: #{decoder_forward.5} parent=0 // loop_footer
    %s13 = sadd.s32 1, %s9
  $region7: #{decoder_forward.5} parent=0 // loop_footer_branch
    %8 = sbr.rel target = $region3
  $region8: #{decoder_forward.5} parent=0 // loop_exit
    _

// kernel: decoder_forward.4
$region0: #{decoder_forward.4}
  #allocation0 [shape = 'u32[]', space=smem, size = 0x4, offset = 0x4, fixed_abs, tag = 'smem constant byte address 0x4 - core index']
  #allocation1 [shape = 'u32[144,128]{1,0:T(1,128)}', space=vmem, size = 0x12000, scoped, tag = 'internal scratch']
  %s0 = inlined_call_operand.hbm [shape: f32[2,32], index: 0, kind: input, shape index: {}]
  %s1 = inlined_call_operand.hbm [shape: f32[32,1024], index: 1, kind: input, shape index: {}]
  %s2 = inlined_call_operand.hbm [shape: f32[1,1024], index: 2, kind: input, shape index: {}]
  %s3 = inlined_call_operand.hbm [shape: bf16[1024,3200], index: 3, kind: input, shape index: {}]
  %s4 = inlined_call_operand.hbm [shape: f32[1,3200], index: 4, kind: input, shape index: {}]
  %s5 = inlined_call_operand.vmem [shape: f32[2,3200], index: 5, kind: output, shape index: {}]
  %s6 = sld [smem:[#allocation0]]
  $region73: #{decoder_forward.4} parent=0
    _
  %s8 = ssub.s32 1, %s6
  %s9 = scalar_select 0, %s8, %s6
  $region1: #{decoder_forward.4} parent=0
    #allocation2 [shape = 'u8[1024]{0}', space=vmem, size = 0x400, scoped, tag = 'input window, operand 0, single buffered']
    #allocation3 [shape = 's32[2]{0}', space=sflag, size = 0x8, scoped, tag = 'scoped memory for decoder_forward.4']
    #allocation4 [shape = 'u8[131072]{0}', space=vmem, size = 0x20000, scoped, tag = 'input window, operand 1, single buffered']
    #allocation5 [shape = 's32[1]{0}', space=sflag, size = 0x4, scoped, tag = 'scoped memory for decoder_forward.4']
    #allocation6 [shape = 'u8[4096]{0}', space=vmem, size = 0x1000, scoped, tag = 'input window, operand 2, single buffered']
    #allocation7 [shape = 'u8[2621440]{0}', space=vmem, size = 0x280000, scoped, tag = 'input window, operand 3']
    #allocation8 [shape = 's32[2]{0}', space=sflag, size = 0x8, scoped, tag = 'scoped memory for decoder_forward.4']
    #allocation9 [shape = 'u8[5120]{0}', space=vmem, size = 0x1400, scoped, tag = 'input window, operand 4']
    %10 = vsyncpa [#allocation3], 0
    %11 = vsyncpa [#allocation5], 0
    %12 = vsyncpa [#allocation8], 0
    %s13 = scalar_lea.sflag [#allocation8], 1
    %14 = vsyncpa %s13, 0
    loop: start=0, step=1, limit=7
    $region2: #{decoder_forward.4} parent=1 // loop_pre_header
      _
    $region3: #{decoder_forward.4} parent=1 // loop_header
      %s16 = sphi 0, %s20
      %p17 = scmp.ge.s32.totalorder %s16, 7
      %s24 = sphi 0, %s24
      %s26 = sphi 0, %s24
      %s27 = sphi 0, %s26
      %s41 = sphi 0, %s27
      %s45 = sphi 0, %s45
      %s47 = sphi 0, %s45
      %s48 = sphi 0, %s47
      %s62 = sphi 0, %s48
      %s66 = sphi 0, %s66
      %s68 = sphi 0, %s66
      %s69 = sphi 0, %s68
      %s83 = sphi 0, %s69
      %s89 = sphi 0, %s91
      %s92 = sphi 0, %s89
      %s93 = sphi 0, %s92
      %s109 = sphi 0, %s93
      %s115 = sphi 0, %s117
      %s118 = sphi 0, %s115
      %s119 = sphi 0, %s118
      %s135 = sphi 0, %s119
      %s141 = sphi 0, %s143
      %s144 = sphi 0, %s141
      %s145 = sphi 0, %s144
      %s161 = sphi 0, %s145
    $region4: #{decoder_forward.4} parent=1 // loop_header_branch
      %19 = sbr.rel (%p17) target = $region8
    $region5: #{decoder_forward.4} parent=1 // loop_body
      %s21 = ssub.s32 %s16, 1
      %s22 = ssub.s32 %s16, 2
      %s23 = sadd.s32 %s16, 1
      %s25 = sadd.s32 %s24, 1
      %p28 = scmp.eq.s32.totalorder %s16, 4
      %p29 = scmp.ne.s32.totalorder %s24, %s26
      %p30 = scmp.eq.s32.totalorder %s16, 0
      %p31 = por %p29, %p30
      %p32 = scmp.ne.s32.totalorder %s24, %s26
      %p33 = scmp.eq.s32.totalorder %s21, 4
      %p34 = por %p32, %p33
      %p35 = scmp.ne.s32.totalorder %s26, %s27
      %p36 = scmp.eq.s32.totalorder %s21, 0
      %p37 = por %p35, %p36
      %p38 = scmp.ne.s32.totalorder %s26, %s27
      %p39 = scmp.eq.s32.totalorder %s22, 4
      %p40 = por %p38, %p39
      %p42 = scmp.ne.s32.totalorder %s27, %s41
      %p43 = scmp.eq.s32.totalorder %s22, 0
      %p44 = por %p42, %p43
      %s46 = sadd.s32 %s45, 1
      %p49 = scmp.eq.s32.totalorder %s16, 4
      %p50 = scmp.ne.s32.totalorder %s45, %s47
      %p51 = scmp.eq.s32.totalorder %s16, 0
      %p52 = por %p50, %p51
      %p53 = scmp.ne.s32.totalorder %s45, %s47
      %p54 = scmp.eq.s32.totalorder %s21, 4
      %p55 = por %p53, %p54
      %p56 = scmp.ne.s32.totalorder %s47, %s48
      %p57 = scmp.eq.s32.totalorder %s21, 0
      %p58 = por %p56, %p57
      %p59 = scmp.ne.s32.totalorder %s47, %s48
      %p60 = scmp.eq.s32.totalorder %s22, 4
      %p61 = por %p59, %p60
      %p63 = scmp.ne.s32.totalorder %s48, %s62
      %p64 = scmp.eq.s32.totalorder %s22, 0
      %p65 = por %p63, %p64
      %s67 = sadd.s32 %s66, 1
      %p70 = scmp.eq.s32.totalorder %s16, 4
      %p71 = scmp.ne.s32.totalorder %s66, %s68
      %p72 = scmp.eq.s32.totalorder %s16, 0
      %p73 = por %p71, %p72
      %p74 = scmp.ne.s32.totalorder %s66, %s68
      %p75 = scmp.eq.s32.totalorder %s21, 4
      %p76 = por %p74, %p75
      %p77 = scmp.ne.s32.totalorder %s68, %s69
      %p78 = scmp.eq.s32.totalorder %s21, 0
      %p79 = por %p77, %p78
      %p80 = scmp.ne.s32.totalorder %s68, %s69
      %p81 = scmp.eq.s32.totalorder %s22, 4
      %p82 = por %p80, %p81
      %p84 = scmp.ne.s32.totalorder %s69, %s83
      %p85 = scmp.eq.s32.totalorder %s22, 0
      %p86 = por %p84, %p85
      %s87 = ssub.s32 %s16, %s23
      %p88 = scmp.eq.s32.totalorder %s87, 0
      %s90 = sadd.s32 %s89, 1
      %s91 = scalar_select %p88, %s89, %s90
      %p94 = pneg %p88
      %p95 = scmp.eq.s32.totalorder %s16, 4
      %p96 = por %p94, %p95
      %p97 = scmp.ne.s32.totalorder %s89, %s92
      %p98 = scmp.eq.s32.totalorder %s16, 0
      %p99 = por %p97, %p98
      %p100 = scmp.ne.s32.totalorder %s89, %s92
      %p101 = scmp.eq.s32.totalorder %s21, 4
      %p102 = por %p100, %p101
      %p103 = scmp.ne.s32.totalorder %s92, %s93
      %p104 = scmp.eq.s32.totalorder %s21, 0
      %p105 = por %p103, %p104
      %p106 = scmp.ne.s32.totalorder %s92, %s93
      %p107 = scmp.eq.s32.totalorder %s22, 4
      %p108 = por %p106, %p107
      %p110 = scmp.ne.s32.totalorder %s93, %s109
      %p111 = scmp.eq.s32.totalorder %s22, 0
      %p112 = por %p110, %p111
      %s113 = ssub.s32 %s16, %s23
      %p114 = scmp.eq.s32.totalorder %s113, 0
      %s116 = sadd.s32 %s115, 1
      %s117 = scalar_select %p114, %s115, %s116
      %p120 = pneg %p114
      %p121 = scmp.eq.s32.totalorder %s16, 4
      %p122 = por %p120, %p121
      %p123 = scmp.ne.s32.totalorder %s115, %s118
      %p124 = scmp.eq.s32.totalorder %s16, 0
      %p125 = por %p123, %p124
      %p126 = scmp.ne.s32.totalorder %s115, %s118
      %p127 = scmp.eq.s32.totalorder %s21, 4
      %p128 = por %p126, %p127
      %p129 = scmp.ne.s32.totalorder %s118, %s119
      %p130 = scmp.eq.s32.totalorder %s21, 0
      %p131 = por %p129, %p130
      %p132 = scmp.ne.s32.totalorder %s118, %s119
      %p133 = scmp.eq.s32.totalorder %s22, 4
      %p134 = por %p132, %p133
      %p136 = scmp.ne.s32.totalorder %s119, %s135
      %p137 = scmp.eq.s32.totalorder %s22, 0
      %p138 = por %p136, %p137
      %s139 = ssub.s32 %s16, %s23
      %p140 = scmp.eq.s32.totalorder %s139, 0
      %s142 = sadd.s32 %s141, 1
      %s143 = scalar_select %p140, %s141, %s142
      %p146 = pneg %p140
      %p147 = scmp.eq.s32.totalorder %s16, 4
      %p148 = por %p146, %p147
      %p149 = scmp.ne.s32.totalorder %s141, %s144
      %p150 = scmp.eq.s32.totalorder %s16, 0
      %p151 = por %p149, %p150
      %p152 = scmp.ne.s32.totalorder %s141, %s144
      %p153 = scmp.eq.s32.totalorder %s21, 4
      %p154 = por %p152, %p153
      %p155 = scmp.ne.s32.totalorder %s144, %s145
      %p156 = scmp.eq.s32.totalorder %s21, 0
      %p157 = por %p155, %p156
      %p158 = scmp.ne.s32.totalorder %s144, %s145
      %p159 = scmp.eq.s32.totalorder %s22, 4
      %p160 = por %p158, %p159
      %p162 = scmp.ne.s32.totalorder %s145, %s161
      %p163 = scmp.eq.s32.totalorder %s22, 0
      %p164 = por %p162, %p163
      %p165 = scmp.le.s32.totalorder 1, %s16
      %p166 = scmp.lt.s32.totalorder %s16, 6
      %p167 = pnand %p165, %p166
      %p168 = pneg %p167
      // Predicated region
      $region9: #{decoder_forward.4} parent=5 // pred_check
        _
      $region10: #{decoder_forward.4} parent=5 // pred_check_branch
        %170 = sbr.rel (%p167) target = $region12
      $region11: #{decoder_forward.4} parent=5 // pred_region
        %s171 = ssub.s32 %s16, 1
        // Predicated region
        $region13: #{decoder_forward.4} parent=11 // pred_check
          %p172 = pneg %p37
        $region14: #{decoder_forward.4} parent=11 // pred_check_branch
          %174 = sbr.rel (%p172) target = $region16
        $region15: #{decoder_forward.4} parent=11 // pred_region
          %s176 = ssub.s32 32, 32
          %177 = vsyncadd [#allocation3], %s176
          %s179 = sshll.u32 [#allocation2], 4
          %s180 = int_to_ptr.vmem [resolvable:$true] %s179
          %182 = dma.hbm_to_vmem [thread:$0]  %s0, 32, %s180, [#allocation3]
        $region16: #{decoder_forward.4} parent=11 // pred_fallthru
          _
        // Predicated region
        $region17: #{decoder_forward.4} parent=11 // pred_check
          %p183 = pneg %p58
        $region18: #{decoder_forward.4} parent=11 // pred_check_branch
          %185 = sbr.rel (%p183) target = $region20
        $region19: #{decoder_forward.4} parent=11 // pred_region
          %s187 = ssub.s32 4096, 4096
          %188 = vsyncadd [#allocation5], %s187
          %s189 = sshll.u32 [#allocation4], 4
          %s190 = int_to_ptr.vmem [resolvable:$true] %s189
          %195 = dma.hbm_to_vmem [thread:$0]  %s1, 4096, %s190, [#allocation5], 1024, 1024, 64
        $region20: #{decoder_forward.4} parent=11 // pred_fallthru
          _
        // Predicated region
        $region21: #{decoder_forward.4} parent=11 // pred_check
          %p196 = pneg %p79
        $region22: #{decoder_forward.4} parent=11 // pred_check_branch
          %198 = sbr.rel (%p196) target = $region24
        $region23: #{decoder_forward.4} parent=11 // pred_region
          %s200 = ssub.s32 128, 128
          %201 = vsyncadd [#allocation5], %s200
          %s203 = sshll.u32 [#allocation6], 4
          %s204 = int_to_ptr.vmem [resolvable:$true] %s203
          %206 = dma.hbm_to_vmem [thread:$0]  %s2, 128, %s204, [#allocation5]
        $region24: #{decoder_forward.4} parent=11 // pred_fallthru
          _
      $region12: #{decoder_forward.4} parent=5 // pred_fallthru
        _
      %p207 = scmp.lt.s32.totalorder %s16, 5
      // Predicated region
      $region25: #{decoder_forward.4} parent=5 // pred_check
        %p208 = pneg %p207
      $region26: #{decoder_forward.4} parent=5 // pred_check_branch
        %210 = sbr.rel (%p208) target = $region28
      $region27: #{decoder_forward.4} parent=5 // pred_region
        // Predicated region
        $region29: #{decoder_forward.4} parent=27 // pred_check
          %p211 = pneg %p99
        $region30: #{decoder_forward.4} parent=27 // pred_check_branch
          %213 = sbr.rel (%p211) target = $region32
        $region31: #{decoder_forward.4} parent=27 // pred_region
          %s214 = sand.u32 %s16, 1
          %s215 = scalar_lea.sflag [#allocation8], %s214
          %s216 = sand.u32 %s89, 1
          %s217 = smul.addr %s216, 2560
          %s218 = scalar_lea.vmem [#allocation7], %s217
          %s219 = smul.u32 5, %s16
          %s221 = ssub.s32 40960, 40960
          %222 = vsyncadd %s215, %s221
          %s223 = smul.addr %s219, 64
          %s224 = scalar_lea.hbm %s3, %s223
          %s225 = sshll.u32 %s218, 4
          %s226 = int_to_ptr.vmem [resolvable:$true] %s225
          %231 = dma.hbm_to_vmem [thread:$0]  %s224, 40960, %s226, %s215, 1600, 320, 20
        $region32: #{decoder_forward.4} parent=27 // pred_fallthru
          _
        // Predicated region
        $region33: #{decoder_forward.4} parent=27 // pred_check
          %p232 = pneg %p125
        $region34: #{decoder_forward.4} parent=27 // pred_check_branch
          %234 = sbr.rel (%p232) target = $region36
        $region35: #{decoder_forward.4} parent=27 // pred_region
          %s235 = sand.u32 %s16, 1
          %s236 = scalar_lea.sflag [#allocation8], %s235
          %s237 = sand.u32 %s115, 1
          %s238 = smul.addr %s237, 5
          %s239 = scalar_lea.vmem [#allocation9], %s238
          %s240 = smul.u32 5, %s16
          %s242 = ssub.s32 80, 80
          %243 = vsyncadd %s236, %s242
          %s244 = smul.addr %s240, 16
          %s245 = scalar_lea.hbm %s4, %s244
          %s247 = sshll.u32 %s239, 4
          %s248 = int_to_ptr.vmem [resolvable:$true] %s247
          %250 = dma.hbm_to_vmem [thread:$0]  %s245, 80, %s248, %s236
        $region36: #{decoder_forward.4} parent=27 // pred_fallthru
          _
      $region28: #{decoder_forward.4} parent=5 // pred_fallthru
        _
      %p251 = scmp.le.s32.totalorder 1, %s16
      %p252 = scmp.lt.s32.totalorder %s16, 6
      %p253 = pnand %p251, %p252
      %p254 = pneg %p253
      // Predicated region
      $region37: #{decoder_forward.4} parent=5 // pred_check
        _
      $region38: #{decoder_forward.4} parent=5 // pred_check_branch
        %256 = sbr.rel (%p253) target = $region40
      $region39: #{decoder_forward.4} parent=5 // pred_region
        %s257 = ssub.s32 %s16, 1
        // Predicated region
        $region41: #{decoder_forward.4} parent=39 // pred_check
          %p258 = pneg %p37
        $region42: #{decoder_forward.4} parent=39 // pred_check_branch
          %260 = sbr.rel (%p258) target = $region44
        $region43: #{decoder_forward.4} parent=39 // pred_region
          %261 = dma.done [#allocation3], 32
        $region44: #{decoder_forward.4} parent=39 // pred_fallthru
          _
        // Predicated region
        $region45: #{decoder_forward.4} parent=39 // pred_check
          %p262 = pneg %p58
        $region46: #{decoder_forward.4} parent=39 // pred_check_branch
          %264 = sbr.rel (%p262) target = $region48
        $region47: #{decoder_forward.4} parent=39 // pred_region
          %265 = dma.done [#allocation5], 4096
        $region48: #{decoder_forward.4} parent=39 // pred_fallthru
          _
        // Predicated region
        $region49: #{decoder_forward.4} parent=39 // pred_check
          %p266 = pneg %p79
        $region50: #{decoder_forward.4} parent=39 // pred_check_branch
          %268 = sbr.rel (%p266) target = $region52
        $region51: #{decoder_forward.4} parent=39 // pred_region
          %269 = dma.done [#allocation5], 128
        $region52: #{decoder_forward.4} parent=39 // pred_fallthru
          _
        %s270 = sand.u32 %s21, 1
        %s271 = scalar_lea.sflag [#allocation8], %s270
        %s272 = sand.u32 %s92, 1
        %s273 = smul.addr %s272, 2560
        %s274 = scalar_lea.vmem [#allocation7], %s273
        // Predicated region
        $region53: #{decoder_forward.4} parent=39 // pred_check
          %p275 = pneg %p105
        $region54: #{decoder_forward.4} parent=39 // pred_check_branch
          %277 = sbr.rel (%p275) target = $region56
        $region55: #{decoder_forward.4} parent=39 // pred_region
          %278 = dma.done %s271, 40960
        $region56: #{decoder_forward.4} parent=39 // pred_fallthru
          _
        %s279 = sand.u32 %s21, 1
        %s280 = scalar_lea.sflag [#allocation8], %s279
        %s281 = sand.u32 %s118, 1
        %s282 = smul.addr %s281, 5
        %s283 = scalar_lea.vmem [#allocation9], %s282
        // Predicated region
        $region57: #{decoder_forward.4} parent=39 // pred_check
          %p284 = pneg %p131
        $region58: #{decoder_forward.4} parent=39 // pred_check_branch
          %286 = sbr.rel (%p284) target = $region60
        $region59: #{decoder_forward.4} parent=39 // pred_region
          %287 = dma.done %s280, 80
        $region60: #{decoder_forward.4} parent=39 // pred_fallthru
          _
        %p288 = pneg %p37
        %p289 = pneg %p34
        %p290 = pneg %p58
        %p291 = pneg %p55
        %p292 = pneg %p79
        %p293 = pneg %p76
        %s294 = sand.u32 %s21, 1
        %s295 = scalar_lea.sflag [#allocation8], %s294
        %s296 = sand.u32 %s92, 1
        %s297 = smul.addr %s296, 2560
        %s298 = scalar_lea.vmem [#allocation7], %s297
        %p299 = pneg %p105
        %p300 = pneg %p102
        %s301 = sand.u32 %s21, 1
        %s302 = scalar_lea.sflag [#allocation8], %s301
        %s303 = sand.u32 %s118, 1
        %s304 = smul.addr %s303, 5
        %s305 = scalar_lea.vmem [#allocation9], %s304
        %p306 = pneg %p131
        %p307 = pneg %p128
        %p308 = pneg %p157
        %p309 = pneg %p154
        %s310 = smul.u32 5, %s21
        %p311 = scmp.lt.s32.totalorder %s310, 24
        %s312 = scalar_select %p311, %s310, 24
        %s313 = smul.addr %s312, 2
        %s314 = scalar_lea.vmem %s5, %s313
        %s315 = smul.u32 5, %s21
        %s316 = smul.u32 5, %s21
        %s317 = smul.u32 5, %s21
        %p318 = scmp.lt.s32.totalorder %s317, 24
        %s319 = scalar_select %p318, %s317, 24
        %s320 = smul.addr %s319, 2
        %s321 = scalar_lea.vmem %s5, %s320
        %s322 = smul.u32 5, %s21
        %v324 = vld [vmem:[#allocation2] sm:$0x3]
        %v325 = vld [vmem:[#allocation4] sm:$0xff]
        %v326 = vld [vmem:[#allocation4 + $0x8] sm:$0xff]
        %v327 = vld [vmem:[#allocation4 + $0x10] sm:$0xff]
        %v328 = vld [vmem:[#allocation4 + $0x18] sm:$0xff]
        %v329 = vld [vmem:[#allocation4 + $0x20] sm:$0xff]
        %v330 = vld [vmem:[#allocation4 + $0x28] sm:$0xff]
        %v331 = vld [vmem:[#allocation4 + $0x30] sm:$0xff]
        %v332 = vld [vmem:[#allocation4 + $0x38] sm:$0xff]
        %v333 = vld [vmem:[#allocation4 + $0x40] sm:$0xff]
        %v334 = vld [vmem:[#allocation4 + $0x48] sm:$0xff]
        %v335 = vld [vmem:[#allocation4 + $0x50] sm:$0xff]
        %v336 = vld [vmem:[#allocation4 + $0x58] sm:$0xff]
        %v337 = vld [vmem:[#allocation4 + $0x60] sm:$0xff]
        %v338 = vld [vmem:[#allocation4 + $0x68] sm:$0xff]
        %v339 = vld [vmem:[#allocation4 + $0x70] sm:$0xff]
        %v340 = vld [vmem:[#allocation4 + $0x78] sm:$0xff]
        %v341 = vld [vmem:[#allocation4 + $0x80] sm:$0xff]
        %v342 = vld [vmem:[#allocation4 + $0x88] sm:$0xff]
        %v343 = vld [vmem:[#allocation4 + $0x90] sm:$0xff]
        %v344 = vld [vmem:[#allocation4 + $0x98] sm:$0xff]
        %v345 = vld [vmem:[#allocation4 + $0xa0] sm:$0xff]
        %v346 = vld [vmem:[#allocation4 + $0xa8] sm:$0xff]
        %v347 = vld [vmem:[#allocation4 + $0xb0] sm:$0xff]
        %v348 = vld [vmem:[#allocation4 + $0xb8] sm:$0xff]
        %v349 = vld [vmem:[#allocation4 + $0xc0] sm:$0xff]
        %v350 = vld [vmem:[#allocation4 + $0xc8] sm:$0xff]
        %v351 = vld [vmem:[#allocation4 + $0xd0] sm:$0xff]
        %v352 = vld [vmem:[#allocation4 + $0xd8] sm:$0xff]
        %v353 = vld [vmem:[#allocation4 + $0xe0] sm:$0xff]
        %v354 = vld [vmem:[#allocation4 + $0xe8] sm:$0xff]
        %v355 = vld [vmem:[#allocation4 + $0xf0] sm:$0xff]
        %v356 = vld [vmem:[#allocation4 + $0xf8] sm:$0xff]
        %v357 = vld [vmem:[#allocation6] sm:$0xff]
        %v359 = vlaneseq
        %v360 = vshrl.u32 %v359, 7
        %v361 = vsub.s32 0, %v360
        %v362 = vrot.slane %v357, %v361
        %v363 = vlaneseq
        %v364 = vshrl.u32 %v363, 7
        %v365 = vsub.s32 1, %v364
        %v366 = vrot.slane %v357, %v365
        %v367 = vlaneseq
        %v368 = vshrl.u32 %v367, 7
        %v369 = vsub.s32 2, %v368
        %v370 = vrot.slane %v357, %v369
        %v371 = vlaneseq
        %v372 = vshrl.u32 %v371, 7
        %v373 = vsub.s32 3, %v372
        %v374 = vrot.slane %v357, %v373
        %v375 = vlaneseq
        %v376 = vshrl.u32 %v375, 7
        %v377 = vsub.s32 4, %v376
        %v378 = vrot.slane %v357, %v377
        %v379 = vlaneseq
        %v380 = vshrl.u32 %v379, 7
        %v381 = vsub.s32 5, %v380
        %v382 = vrot.slane %v357, %v381
        %v383 = vlaneseq
        %v384 = vshrl.u32 %v383, 7
        %v385 = vsub.s32 6, %v384
        %v386 = vrot.slane %v357, %v385
        %v387 = vlaneseq
        %v388 = vshrl.u32 %v387, 7
        %v389 = vsub.s32 7, %v388
        %v390 = vrot.slane %v357, %v389
        %vm399 = vcmask 261120
        %v401 = vsel %vm399, %v324, 0
        %403 = vmatprep.subr.mxu0 %v326
        %404 = vmatpush1.msra.mxu0 %v325
        %405 = vmatprep.subr.mxu0 %v334
        %406 = vmatpush1.msra.mxu0 %v333
        %407 = vmatprep.subr.mxu0 %v342
        %408 = vmatpush1.msra.mxu0 %v341
        %409 = vmatprep.subr.mxu0 %v350
        %410 = vmatpush1.msra.mxu0 %v349
        %411 = vmatprep.subr.mxu0 0.0
        %412 = vmatpush1.msra.mxu0 0.0
        %413 = vmatprep.subr.mxu0 0.0
        %414 = vmatpush1.msra.mxu0 0.0
        %415 = vmatprep.subr.mxu0 0.0
        %416 = vmatpush1.msra.mxu0 0.0
        %417 = vmatprep.subr.mxu0 0.0
        %418 = vmatpush1.msra.mxu0 0.0
        %419 = vmatprep.subr.mxu0 0.0
        %420 = vmatpush1.msra.mxu0 0.0
        %421 = vmatprep.subr.mxu0 0.0
        %422 = vmatpush1.msra.mxu0 0.0
        %423 = vmatprep.subr.mxu0 0.0
        %424 = vmatpush1.msra.mxu0 0.0
        %425 = vmatprep.subr.mxu0 0.0
        %426 = vmatpush1.msra.mxu0 0.0
        %427 = vmatprep.subr.mxu0 0.0
        %428 = vmatpush1.msra.mxu0 0.0
        %429 = vmatprep.subr.mxu0 0.0
        %430 = vmatpush1.msra.mxu0 0.0
        %431 = vmatprep.subr.mxu0 0.0
        %432 = vmatpush1.msra.mxu0 0.0
        %433 = vmatprep.subr.mxu0 0.0
        %434 = vmatpush1.msra.mxu0 0.0
        %435 = vmatprep.subr.mxu0 0.0
        %436 = vmatpush1.msra.mxu0 0.0
        %437 = vmatprep.subr.mxu0 0.0
        %438 = vmatpush1.msra.mxu0 0.0
        %439 = vmatprep.subr.mxu0 0.0
        %440 = vmatpush1.msra.mxu0 0.0
        %441 = vmatprep.subr.mxu0 0.0
        %442 = vmatpush1.msra.mxu0 0.0
        %443 = vmatprep.subr.mxu0 0.0
        %444 = vmatpush1.msra.mxu0 0.0
        %445 = vmatprep.subr.mxu0 0.0
        %446 = vmatpush1.msra.mxu0 0.0
        %447 = vmatprep.subr.mxu0 0.0
        %448 = vmatpush1.msra.mxu0 0.0
        %449 = vmatprep.subr.mxu0 0.0
        %450 = vmatpush1.msra.mxu0 0.0
        %451 = vmatprep.subr.mxu0 0.0
        %452 = vmatpush1.msra.mxu0 0.0
        %453 = vmatprep.subr.mxu0 0.0
        %454 = vmatpush1.msra.mxu0 0.0
        %455 = vmatprep.subr.mxu0 0.0
        %456 = vmatpush1.msra.mxu0 0.0
        %457 = vmatprep.subr.mxu0 0.0
        %458 = vmatpush1.msra.mxu0 0.0
        %459 = vmatprep.subr.mxu0 0.0
        %460 = vmatpush1.msra.mxu0 0.0
        %461 = vmatprep.subr.mxu0 0.0
        %462 = vmatpush1.msra.mxu0 0.0
        %463 = vmatprep.subr.mxu0 0.0
        %464 = vmatpush1.msra.mxu0 0.0
        %465 = vmatprep.subr.mxu0 0.0
        %466 = vmatpush1.msra.mxu0 0.0
        %467 = vmatprep.mubr.f32.mxu0 0.0
        %468 = vmatmul.mubr.f32.gmra.mrb[0].mxu0 %v401
        %v469 = vpop.f32.mrb[0].mxu0
        %v470 = vadd.f32 %v362, %v469
        %v471 = vpop.f32.mrb[0].mxu0
        %v472 = vadd.f32 %v366, %v471
        %473 = vdwg.mxu0
        %474 = vmatprep.subr.mxu0 %v328
        %475 = vmatpush1.msra.mxu0 %v327
        %476 = vmatprep.subr.mxu0 %v336
        %477 = vmatpush1.msra.mxu0 %v335
        %478 = vmatprep.subr.mxu0 %v344
        %479 = vmatpush1.msra.mxu0 %v343
        %480 = vmatprep.subr.mxu0 %v352
        %481 = vmatpush1.msra.mxu0 %v351
        %482 = vmatprep.subr.mxu0 0.0
        %483 = vmatpush1.msra.mxu0 0.0
        %484 = vmatprep.subr.mxu0 0.0
        %485 = vmatpush1.msra.mxu0 0.0
        %486 = vmatprep.subr.mxu0 0.0
        %487 = vmatpush1.msra.mxu0 0.0
        %488 = vmatprep.subr.mxu0 0.0
        %489 = vmatpush1.msra.mxu0 0.0
        %490 = vmatprep.subr.mxu0 0.0
        %491 = vmatpush1.msra.mxu0 0.0
        %492 = vmatprep.subr.mxu0 0.0
        %493 = vmatpush1.msra.mxu0 0.0
        %494 = vmatprep.subr.mxu0 0.0
        %495 = vmatpush1.msra.mxu0 0.0
        %496 = vmatprep.subr.mxu0 0.0
        %497 = vmatpush1.msra.mxu0 0.0
        %498 = vmatprep.subr.mxu0 0.0
        %499 = vmatpush1.msra.mxu0 0.0
        %500 = vmatprep.subr.mxu0 0.0
        %501 = vmatpush1.msra.mxu0 0.0
        %502 = vmatprep.subr.mxu0 0.0
        %503 = vmatpush1.msra.mxu0 0.0
        %504 = vmatprep.subr.mxu0 0.0
        %505 = vmatpush1.msra.mxu0 0.0
        %506 = vmatprep.subr.mxu0 0.0
        %507 = vmatpush1.msra.mxu0 0.0
        %508 = vmatprep.subr.mxu0 0.0
        %509 = vmatpush1.msra.mxu0 0.0
        %510 = vmatprep.subr.mxu0 0.0
        %511 = vmatpush1.msra.mxu0 0.0
        %512 = vmatprep.subr.mxu0 0.0
        %513 = vmatpush1.msra.mxu0 0.0
        %514 = vmatprep.subr.mxu0 0.0
        %515 = vmatpush1.msra.mxu0 0.0
        %516 = vmatprep.subr.mxu0 0.0
        %517 = vmatpush1.msra.mxu0 0.0
        %518 = vmatprep.subr.mxu0 0.0
        %519 = vmatpush1.msra.mxu0 0.0
        %520 = vmatprep.subr.mxu0 0.0
        %521 = vmatpush1.msra.mxu0 0.0
        %522 = vmatprep.subr.mxu0 0.0
        %523 = vmatpush1.msra.mxu0 0.0
        %524 = vmatprep.subr.mxu0 0.0
        %525 = vmatpush1.msra.mxu0 0.0
        %526 = vmatprep.subr.mxu0 0.0
        %527 = vmatpush1.msra.mxu0 0.0
        %528 = vmatprep.subr.mxu0 0.0
        %529 = vmatpush1.msra.mxu0 0.0
        %530 = vmatprep.subr.mxu0 0.0
        %531 = vmatpush1.msra.mxu0 0.0
        %532 = vmatprep.subr.mxu0 0.0
        %533 = vmatpush1.msra.mxu0 0.0
        %534 = vmatprep.subr.mxu0 0.0
        %535 = vmatpush1.msra.mxu0 0.0
        %536 = vmatprep.subr.mxu0 0.0
        %537 = vmatpush1.msra.mxu0 0.0
        %538 = vmatprep.mubr.f32.mxu0 0.0
        %539 = vmatmul.mubr.f32.gmra.mrb[0].mxu0 %v401
        %v540 = vpop.f32.mrb[0].mxu0
        %v541 = vadd.f32 %v370, %v540
        %v542 = vpop.f32.mrb[0].mxu0
        %v543 = vadd.f32 %v374, %v542
        %544 = vdwg.mxu0
        %545 = vmatprep.subr.mxu0 %v330
        %546 = vmatpush1.msra.mxu0 %v329
        %547 = vmatprep.subr.mxu0 %v338
        %548 = vmatpush1.msra.mxu0 %v337
        %549 = vmatprep.subr.mxu0 %v346
        %550 = vmatpush1.msra.mxu0 %v345
        %551 = vmatprep.subr.mxu0 %v354
        %552 = vmatpush1.msra.mxu0 %v353
        %553 = vmatprep.subr.mxu0 0.0
        %554 = vmatpush1.msra.mxu0 0.0
        %555 = vmatprep.subr.mxu0 0.0
        %556 = vmatpush1.msra.mxu0 0.0
        %557 = vmatprep.subr.mxu0 0.0
        %558 = vmatpush1.msra.mxu0 0.0
        %559 = vmatprep.subr.mxu0 0.0
        %560 = vmatpush1.msra.mxu0 0.0
        %561 = vmatprep.subr.mxu0 0.0
        %562 = vmatpush1.msra.mxu0 0.0
        %563 = vmatprep.subr.mxu0 0.0
        %564 = vmatpush1.msra.mxu0 0.0
        %565 = vmatprep.subr.mxu0 0.0
        %566 = vmatpush1.msra.mxu0 0.0
        %567 = vmatprep.subr.mxu0 0.0
        %568 = vmatpush1.msra.mxu0 0.0
        %569 = vmatprep.subr.mxu0 0.0
        %570 = vmatpush1.msra.mxu0 0.0
        %571 = vmatprep.subr.mxu0 0.0
        %572 = vmatpush1.msra.mxu0 0.0
        %573 = vmatprep.subr.mxu0 0.0
        %574 = vmatpush1.msra.mxu0 0.0
        %575 = vmatprep.subr.mxu0 0.0
        %576 = vmatpush1.msra.mxu0 0.0
        %577 = vmatprep.subr.mxu0 0.0
        %578 = vmatpush1.msra.mxu0 0.0
        %579 = vmatprep.subr.mxu0 0.0
        %580 = vmatpush1.msra.mxu0 0.0
        %581 = vmatprep.subr.mxu0 0.0
        %582 = vmatpush1.msra.mxu0 0.0
        %583 = vmatprep.subr.mxu0 0.0
        %584 = vmatpush1.msra.mxu0 0.0
        %585 = vmatprep.subr.mxu0 0.0
        %586 = vmatpush1.msra.mxu0 0.0
        %587 = vmatprep.subr.mxu0 0.0
        %588 = vmatpush1.msra.mxu0 0.0
        %589 = vmatprep.subr.mxu0 0.0
        %590 = vmatpush1.msra.mxu0 0.0
        %591 = vmatprep.subr.mxu0 0.0
        %592 = vmatpush1.msra.mxu0 0.0
        %593 = vmatprep.subr.mxu0 0.0
        %594 = vmatpush1.msra.mxu0 0.0
        %595 = vmatprep.subr.mxu0 0.0
        %596 = vmatpush1.msra.mxu0 0.0
        %597 = vmatprep.subr.mxu0 0.0
        %598 = vmatpush1.msra.mxu0 0.0
        %599 = vmatprep.subr.mxu0 0.0
        %600 = vmatpush1.msra.mxu0 0.0
        %601 = vmatprep.subr.mxu0 0.0
        %602 = vmatpush1.msra.mxu0 0.0
        %603 = vmatprep.subr.mxu0 0.0
        %604 = vmatpush1.msra.mxu0 0.0
        %605 = vmatprep.subr.mxu0 0.0
        %606 = vmatpush1.msra.mxu0 0.0
        %607 = vmatprep.subr.mxu0 0.0
        %608 = vmatpush1.msra.mxu0 0.0
        %609 = vmatprep.mubr.f32.mxu0 0.0
        %610 = vmatmul.mubr.f32.gmra.mrb[0].mxu0 %v401
        %v611 = vpop.f32.mrb[0].mxu0
        %v612 = vadd.f32 %v378, %v611
        %v613 = vpop.f32.mrb[0].mxu0
        %v614 = vadd.f32 %v382, %v613
        %615 = vdwg.mxu0
        %616 = vmatprep.subr.mxu0 %v332
        %617 = vmatpush1.msra.mxu0 %v331
        %618 = vmatprep.subr.mxu0 %v340
        %619 = vmatpush1.msra.mxu0 %v339
        %620 = vmatprep.subr.mxu0 %v348
        %621 = vmatpush1.msra.mxu0 %v347
        %622 = vmatprep.subr.mxu0 %v356
        %623 = vmatpush1.msra.mxu0 %v355
        %624 = vmatprep.subr.mxu0 0.0
        %625 = vmatpush1.msra.mxu0 0.0
        %626 = vmatprep.subr.mxu0 0.0
        %627 = vmatpush1.msra.mxu0 0.0
        %628 = vmatprep.subr.mxu0 0.0
        %629 = vmatpush1.msra.mxu0 0.0
        %630 = vmatprep.subr.mxu0 0.0
        %631 = vmatpush1.msra.mxu0 0.0
        %632 = vmatprep.subr.mxu0 0.0
        %633 = vmatpush1.msra.mxu0 0.0
        %634 = vmatprep.subr.mxu0 0.0
        %635 = vmatpush1.msra.mxu0 0.0
        %636 = vmatprep.subr.mxu0 0.0
        %637 = vmatpush1.msra.mxu0 0.0
        %638 = vmatprep.subr.mxu0 0.0
        %639 = vmatpush1.msra.mxu0 0.0
        %640 = vmatprep.subr.mxu0 0.0
        %641 = vmatpush1.msra.mxu0 0.0
        %642 = vmatprep.subr.mxu0 0.0
        %643 = vmatpush1.msra.mxu0 0.0
        %644 = vmatprep.subr.mxu0 0.0
        %645 = vmatpush1.msra.mxu0 0.0
        %646 = vmatprep.subr.mxu0 0.0
        %647 = vmatpush1.msra.mxu0 0.0
        %648 = vmatprep.subr.mxu0 0.0
        %649 = vmatpush1.msra.mxu0 0.0
        %650 = vmatprep.subr.mxu0 0.0
        %651 = vmatpush1.msra.mxu0 0.0
        %652 = vmatprep.subr.mxu0 0.0
        %653 = vmatpush1.msra.mxu0 0.0
        %654 = vmatprep.subr.mxu0 0.0
        %655 = vmatpush1.msra.mxu0 0.0
        %656 = vmatprep.subr.mxu0 0.0
        %657 = vmatpush1.msra.mxu0 0.0
        %658 = vmatprep.subr.mxu0 0.0
        %659 = vmatpush1.msra.mxu0 0.0
        %660 = vmatprep.subr.mxu0 0.0
        %661 = vmatpush1.msra.mxu0 0.0
        %662 = vmatprep.subr.mxu0 0.0
        %663 = vmatpush1.msra.mxu0 0.0
        %664 = vmatprep.subr.mxu0 0.0
        %665 = vmatpush1.msra.mxu0 0.0
        %666 = vmatprep.subr.mxu0 0.0
        %667 = vmatpush1.msra.mxu0 0.0
        %668 = vmatprep.subr.mxu0 0.0
        %669 = vmatpush1.msra.mxu0 0.0
        %670 = vmatprep.subr.mxu0 0.0
        %671 = vmatpush1.msra.mxu0 0.0
        %672 = vmatprep.subr.mxu0 0.0
        %673 = vmatpush1.msra.mxu0 0.0
        %674 = vmatprep.subr.mxu0 0.0
        %675 = vmatpush1.msra.mxu0 0.0
        %676 = vmatprep.subr.mxu0 0.0
        %677 = vmatpush1.msra.mxu0 0.0
        %678 = vmatprep.subr.mxu0 0.0
        %679 = vmatpush1.msra.mxu0 0.0
        %680 = vmatprep.mubr.f32.mxu0 0.0
        %681 = vmatmul.mubr.f32.gmra.mrb[0].mxu0 %v401
        %v682 = vpop.f32.mrb[0].mxu0
        %v683 = vadd.f32 %v386, %v682
        %v684 = vpop.f32.mrb[0].mxu0
        %v685 = vadd.f32 %v390, %v684
        %686 = vdwg.mxu0
        %v687 = vpack.c.bf16 %v470, %v470
        %v688 = vpack.c.bf16 %v472, %v472
        %v689 = vpack.c.bf16 %v541, %v541
        %v690 = vpack.c.bf16 %v543, %v543
        %v691 = vpack.c.bf16 %v612, %v612
        %v692 = vpack.c.bf16 %v614, %v614
        %v693 = vpack.c.bf16 %v683, %v683
        %v694 = vpack.c.bf16 %v685, %v685
        %v695 = vld [vmem:[%s274] sm:$0xff]
        %v696 = vld [vmem:[%s274 + $0x8] sm:$0xff]
        %v697 = vld [vmem:[%s274 + $0x10] sm:$0xf]
        %v698 = vld [vmem:[%s274 + $0x14] sm:$0xff]
        %v699 = vld [vmem:[%s274 + $0x1c] sm:$0xff]
        %v700 = vld [vmem:[%s274 + $0x24] sm:$0xf]
        %v701 = vld [vmem:[%s274 + $0x28] sm:$0xff]
        %v702 = vld [vmem:[%s274 + $0x30] sm:$0xff]
        %v703 = vld [vmem:[%s274 + $0x38] sm:$0xf]
        %v704 = vld [vmem:[%s274 + $0x3c] sm:$0xff]
        %v705 = vld [vmem:[%s274 + $0x44] sm:$0xff]
        %v706 = vld [vmem:[%s274 + $0x4c] sm:$0xf]
        %v707 = vld [vmem:[%s274 + $0x50] sm:$0xff]
        %v708 = vld [vmem:[%s274 + $0x58] sm:$0xff]
        %v709 = vld [vmem:[%s274 + $0x60] sm:$0xf]
        %v710 = vld [vmem:[%s274 + $0x64] sm:$0xff]
        %v711 = vld [vmem:[%s274 + $0x6c] sm:$0xff]
        %v712 = vld [vmem:[%s274 + $0x74] sm:$0xf]
        %v713 = vld [vmem:[%s274 + $0x78] sm:$0xff]
        %v714 = vld [vmem:[%s274 + $0x80] sm:$0xff]
        %v715 = vld [vmem:[%s274 + $0x88] sm:$0xf]
        %v716 = vld [vmem:[%s274 + $0x8c] sm:$0xff]
        %v717 = vld [vmem:[%s274 + $0x94] sm:$0xff]
        %v718 = vld [vmem:[%s274 + $0x9c] sm:$0xf]
        %v719 = vld [vmem:[%s274 + $0xa0] sm:$0xff]
        %v720 = vld [vmem:[%s274 + $0xa8] sm:$0xff]
        %v721 = vld [vmem:[%s274 + $0xb0] sm:$0xf]
        %v722 = vld [vmem:[%s274 + $0xb4] sm:$0xff]
        %v723 = vld [vmem:[%s274 + $0xbc] sm:$0xff]
        %v724 = vld [vmem:[%s274 + $0xc4] sm:$0xf]
        %v725 = vld [vmem:[%s274 + $0xc8] sm:$0xff]
        %v726 = vld [vmem:[%s274 + $0xd0] sm:$0xff]
        %v727 = vld [vmem:[%s274 + $0xd8] sm:$0xf]
        %v728 = vld [vmem:[%s274 + $0xdc] sm:$0xff]
        %v729 = vld [vmem:[%s274 + $0xe4] sm:$0xff]
        %v730 = vld [vmem:[%s274 + $0xec] sm:$0xf]
        %v731 = vld [vmem:[%s274 + $0xf0] sm:$0xff]
        %v732 = vld [vmem:[%s274 + $0xf8] sm:$0xff]
        %v733 = vld [vmem:[%s274 + $0x100] sm:$0xf]
        %v734 = vld [vmem:[%s274 + $0x104] sm:$0xff]
        %v735 = vld [vmem:[%s274 + $0x10c] sm:$0xff]
        %v736 = vld [vmem:[%s274 + $0x114] sm:$0xf]
        %v737 = vld [vmem:[%s274 + $0x118] sm:$0xff]
        %v738 = vld [vmem:[%s274 + $0x120] sm:$0xff]
        %v739 = vld [vmem:[%s274 + $0x128] sm:$0xf]
        %v740 = vld [vmem:[%s274 + $0x12c] sm:$0xff]
        %v741 = vld [vmem:[%s274 + $0x134] sm:$0xff]
        %v742 = vld [vmem:[%s274 + $0x13c] sm:$0xf]
        %v743 = vld [vmem:[%s274 + $0x140] sm:$0xff]
        %v744 = vld [vmem:[%s274 + $0x148] sm:$0xff]
        %v745 = vld [vmem:[%s274 + $0x150] sm:$0xf]
        %v746 = vld [vmem:[%s274 + $0x154] sm:$0xff]
        %v747 = vld [vmem:[%s274 + $0x15c] sm:$0xff]
        %v748 = vld [vmem:[%s274 + $0x164] sm:$0xf]
        %v749 = vld [vmem:[%s274 + $0x168] sm:$0xff]
        %v750 = vld [vmem:[%s274 + $0x170] sm:$0xff]
        %v751 = vld [vmem:[%s274 + $0x178] sm:$0xf]
        %v752 = vld [vmem:[%s274 + $0x17c] sm:$0xff]
        %v753 = vld [vmem:[%s274 + $0x184] sm:$0xff]
        %v754 = vld [vmem:[%s274 + $0x18c] sm:$0xf]
        %v755 = vld [vmem:[%s274 + $0x190] sm:$0xff]
        %v756 = vld [vmem:[%s274 + $0x198] sm:$0xff]
        %v757 = vld [vmem:[%s274 + $0x1a0] sm:$0xf]
        %v758 = vld [vmem:[%s274 + $0x1a4] sm:$0xff]
        %v759 = vld [vmem:[%s274 + $0x1ac] sm:$0xff]
        %v760 = vld [vmem:[%s274 + $0x1b4] sm:$0xf]
        %v761 = vld [vmem:[%s274 + $0x1b8] sm:$0xff]
        %v762 = vld [vmem:[%s274 + $0x1c0] sm:$0xff]
        %v763 = vld [vmem:[%s274 + $0x1c8] sm:$0xf]
        %v764 = vld [vmem:[%s274 + $0x1cc] sm:$0xff]
        %v765 = vld [vmem:[%s274 + $0x1d4] sm:$0xff]
        %v766 = vld [vmem:[%s274 + $0x1dc] sm:$0xf]
        %v767 = vld [vmem:[%s274 + $0x1e0] sm:$0xff]
        %v768 = vld [vmem:[%s274 + $0x1e8] sm:$0xff]
        %v769 = vld [vmem:[%s274 + $0x1f0] sm:$0xf]
        %v770 = vld [vmem:[%s274 + $0x1f4] sm:$0xff]
        %v771 = vld [vmem:[%s274 + $0x1fc] sm:$0xff]
        %v772 = vld [vmem:[%s274 + $0x204] sm:$0xf]
        %v773 = vld [vmem:[%s274 + $0x208] sm:$0xff]
        %v774 = vld [vmem:[%s274 + $0x210] sm:$0xff]
        %v775 = vld [vmem:[%s274 + $0x218] sm:$0xf]
        %v776 = vld [vmem:[%s274 + $0x21c] sm:$0xff]
        %v777 = vld [vmem:[%s274 + $0x224] sm:$0xff]
        %v778 = vld [vmem:[%s274 + $0x22c] sm:$0xf]
        %v779 = vld [vmem:[%s274 + $0x230] sm:$0xff]
        %v780 = vld [vmem:[%s274 + $0x238] sm:$0xff]
        %v781 = vld [vmem:[%s274 + $0x240] sm:$0xf]
        %v782 = vld [vmem:[%s274 + $0x244] sm:$0xff]
        %v783 = vld [vmem:[%s274 + $0x24c] sm:$0xff]
        %v784 = vld [vmem:[%s274 + $0x254] sm:$0xf]
        %v785 = vld [vmem:[%s274 + $0x258] sm:$0xff]
        %v786 = vld [vmem:[%s274 + $0x260] sm:$0xff]
        %v787 = vld [vmem:[%s274 + $0x268] sm:$0xf]
        %v788 = vld [vmem:[%s274 + $0x26c] sm:$0xff]
        %v789 = vld [vmem:[%s274 + $0x274] sm:$0xff]
        %v790 = vld [vmem:[%s274 + $0x27c] sm:$0xf]
        %v791 = vld [vmem:[%s274 + $0x280] sm:$0xff]
        %v792 = vld [vmem:[%s274 + $0x288] sm:$0xff]
        %v793 = vld [vmem:[%s274 + $0x290] sm:$0xf]
        %v794 = vld [vmem:[%s274 + $0x294] sm:$0xff]
        %v795 = vld [vmem:[%s274 + $0x29c] sm:$0xff]
        %v796 = vld [vmem:[%s274 + $0x2a4] sm:$0xf]
        %v797 = vld [vmem:[%s274 + $0x2a8] sm:$0xff]
        %v798 = vld [vmem:[%s274 + $0x2b0] sm:$0xff]
        %v799 = vld [vmem:[%s274 + $0x2b8] sm:$0xf]
        %v800 = vld [vmem:[%s274 + $0x2bc] sm:$0xff]
        %v801 = vld [vmem:[%s274 + $0x2c4] sm:$0xff]
        %v802 = vld [vmem:[%s274 + $0x2cc] sm:$0xf]
        %v803 = vld [vmem:[%s274 + $0x2d0] sm:$0xff]
        %v804 = vld [vmem:[%s274 + $0x2d8] sm:$0xff]
        %v805 = vld [vmem:[%s274 + $0x2e0] sm:$0xf]
        %v806 = vld [vmem:[%s274 + $0x2e4] sm:$0xff]
        %v807 = vld [vmem:[%s274 + $0x2ec] sm:$0xff]
        %v808 = vld [vmem:[%s274 + $0x2f4] sm:$0xf]
        %v809 = vld [vmem:[%s274 + $0x2f8] sm:$0xff]
        %v810 = vld [vmem:[%s274 + $0x300] sm:$0xff]
        %v811 = vld [vmem:[%s274 + $0x308] sm:$0xf]
        %v812 = vld [vmem:[%s274 + $0x30c] sm:$0xff]
        %v813 = vld [vmem:[%s274 + $0x314] sm:$0xff]
        %v814 = vld [vmem:[%s274 + $0x31c] sm:$0xf]
        %v815 = vld [vmem:[%s274 + $0x320] sm:$0xff]
        %v816 = vld [vmem:[%s274 + $0x328] sm:$0xff]
        %v817 = vld [vmem:[%s274 + $0x330] sm:$0xf]
        %v818 = vld [vmem:[%s274 + $0x334] sm:$0xff]
        %v819 = vld [vmem:[%s274 + $0x33c] sm:$0xff]
        %v820 = vld [vmem:[%s274 + $0x344] sm:$0xf]
        %v821 = vld [vmem:[%s274 + $0x348] sm:$0xff]
        %v822 = vld [vmem:[%s274 + $0x350] sm:$0xff]
        %v823 = vld [vmem:[%s274 + $0x358] sm:$0xf]
        %v824 = vld [vmem:[%s274 + $0x35c] sm:$0xff]
        %v825 = vld [vmem:[%s274 + $0x364] sm:$0xff]
        %v826 = vld [vmem:[%s274 + $0x36c] sm:$0xf]
        %v827 = vld [vmem:[%s274 + $0x370] sm:$0xff]
        %v828 = vld [vmem:[%s274 + $0x378] sm:$0xff]
        %v829 = vld [vmem:[%s274 + $0x380] sm:$0xf]
        %v830 = vld [vmem:[%s274 + $0x384] sm:$0xff]
        %v831 = vld [vmem:[%s274 + $0x38c] sm:$0xff]
        %v832 = vld [vmem:[%s274 + $0x394] sm:$0xf]
        %v833 = vld [vmem:[%s274 + $0x398] sm:$0xff]
        %v834 = vld [vmem:[%s274 + $0x3a0] sm:$0xff]
        %v835 = vld [vmem:[%s274 + $0x3a8] sm:$0xf]
        %v836 = vld [vmem:[%s274 + $0x3ac] sm:$0xff]
        %v837 = vld [vmem:[%s274 + $0x3b4] sm:$0xff]
        %v838 = vld [vmem:[%s274 + $0x3bc] sm:$0xf]
        %v839 = vld [vmem:[%s274 + $0x3c0] sm:$0xff]
        %v840 = vld [vmem:[%s274 + $0x3c8] sm:$0xff]
        %v841 = vld [vmem:[%s274 + $0x3d0] sm:$0xf]
        %v842 = vld [vmem:[%s274 + $0x3d4] sm:$0xff]
        %v843 = vld [vmem:[%s274 + $0x3dc] sm:$0xff]
        %v844 = vld [vmem:[%s274 + $0x3e4] sm:$0xf]
        %v845 = vld [vmem:[%s274 + $0x3e8] sm:$0xff]
        %v846 = vld [vmem:[%s274 + $0x3f0] sm:$0xff]
        %v847 = vld [vmem:[%s274 + $0x3f8] sm:$0xf]
        %v848 = vld [vmem:[%s274 + $0x3fc] sm:$0xff]
        %v849 = vld [vmem:[%s274 + $0x404] sm:$0xff]
        %v850 = vld [vmem:[%s274 + $0x40c] sm:$0xf]
        %v851 = vld [vmem:[%s274 + $0x410] sm:$0xff]
        %v852 = vld [vmem:[%s274 + $0x418] sm:$0xff]
        %v853 = vld [vmem:[%s274 + $0x420] sm:$0xf]
        %v854 = vld [vmem:[%s274 + $0x424] sm:$0xff]
        %v855 = vld [vmem:[%s274 + $0x42c] sm:$0xff]
        %v856 = vld [vmem:[%s274 + $0x434] sm:$0xf]
        %v857 = vld [vmem:[%s274 + $0x438] sm:$0xff]
        %v858 = vld [vmem:[%s274 + $0x440] sm:$0xff]
        %v859 = vld [vmem:[%s274 + $0x448] sm:$0xf]
        %v860 = vld [vmem:[%s274 + $0x44c] sm:$0xff]
        %v861 = vld [vmem:[%s274 + $0x454] sm:$0xff]
        %v862 = vld [vmem:[%s274 + $0x45c] sm:$0xf]
        %v863 = vld [vmem:[%s274 + $0x460] sm:$0xff]
        %v864 = vld [vmem:[%s274 + $0x468] sm:$0xff]
        %v865 = vld [vmem:[%s274 + $0x470] sm:$0xf]
        %v866 = vld [vmem:[%s274 + $0x474] sm:$0xff]
        %v867 = vld [vmem:[%s274 + $0x47c] sm:$0xff]
        %v868 = vld [vmem:[%s274 + $0x484] sm:$0xf]
        %v869 = vld [vmem:[%s274 + $0x488] sm:$0xff]
        %v870 = vld [vmem:[%s274 + $0x490] sm:$0xff]
        %v871 = vld [vmem:[%s274 + $0x498] sm:$0xf]
        %v872 = vld [vmem:[%s274 + $0x49c] sm:$0xff]
        %v873 = vld [vmem:[%s274 + $0x4a4] sm:$0xff]
        %v874 = vld [vmem:[%s274 + $0x4ac] sm:$0xf]
        %v875 = vld [vmem:[%s274 + $0x4b0] sm:$0xff]
        %v876 = vld [vmem:[%s274 + $0x4b8] sm:$0xff]
        %v877 = vld [vmem:[%s274 + $0x4c0] sm:$0xf]
        %v878 = vld [vmem:[%s274 + $0x4c4] sm:$0xff]
        %v879 = vld [vmem:[%s274 + $0x4cc] sm:$0xff]
        %v880 = vld [vmem:[%s274 + $0x4d4] sm:$0xf]
        %v881 = vld [vmem:[%s274 + $0x4d8] sm:$0xff]
        %v882 = vld [vmem:[%s274 + $0x4e0] sm:$0xff]
        %v883 = vld [vmem:[%s274 + $0x4e8] sm:$0xf]
        %v884 = vld [vmem:[%s274 + $0x4ec] sm:$0xff]
        %v885 = vld [vmem:[%s274 + $0x4f4] sm:$0xff]
        %v886 = vld [vmem:[%s274 + $0x4fc] sm:$0xf]
        %v887 = vld [vmem:[%s274 + $0x500] sm:$0xff]
        %v888 = vld [vmem:[%s274 + $0x508] sm:$0xff]
        %v889 = vld [vmem:[%s274 + $0x510] sm:$0xf]
        %v890 = vld [vmem:[%s274 + $0x514] sm:$0xff]
        %v891 = vld [vmem:[%s274 + $0x51c] sm:$0xff]
        %v892 = vld [vmem:[%s274 + $0x524] sm:$0xf]
        %v893 = vld [vmem:[%s274 + $0x528] sm:$0xff]
        %v894 = vld [vmem:[%s274 + $0x530] sm:$0xff]
        %v895 = vld [vmem:[%s274 + $0x538] sm:$0xf]
        %v896 = vld [vmem:[%s274 + $0x53c] sm:$0xff]
        %v897 = vld [vmem:[%s274 + $0x544] sm:$0xff]
        %v898 = vld [vmem:[%s274 + $0x54c] sm:$0xf]
        %v899 = vld [vmem:[%s274 + $0x550] sm:$0xff]
        %v900 = vld [vmem:[%s274 + $0x558] sm:$0xff]
        %v901 = vld [vmem:[%s274 + $0x560] sm:$0xf]
        %v902 = vld [vmem:[%s274 + $0x564] sm:$0xff]
        %v903 = vld [vmem:[%s274 + $0x56c] sm:$0xff]
        %v904 = vld [vmem:[%s274 + $0x574] sm:$0xf]
        %v905 = vld [vmem:[%s274 + $0x578] sm:$0xff]
        %v906 = vld [vmem:[%s274 + $0x580] sm:$0xff]
        %v907 = vld [vmem:[%s274 + $0x588] sm:$0xf]
        %v908 = vld [vmem:[%s274 + $0x58c] sm:$0xff]
        %v909 = vld [vmem:[%s274 + $0x594] sm:$0xff]
        %v910 = vld [vmem:[%s274 + $0x59c] sm:$0xf]
        %v911 = vld [vmem:[%s274 + $0x5a0] sm:$0xff]
        %v912 = vld [vmem:[%s274 + $0x5a8] sm:$0xff]
        %v913 = vld [vmem:[%s274 + $0x5b0] sm:$0xf]
        %v914 = vld [vmem:[%s274 + $0x5b4] sm:$0xff]
        %v915 = vld [vmem:[%s274 + $0x5bc] sm:$0xff]
        %v916 = vld [vmem:[%s274 + $0x5c4] sm:$0xf]
        %v917 = vld [vmem:[%s274 + $0x5c8] sm:$0xff]
        %v918 = vld [vmem:[%s274 + $0x5d0] sm:$0xff]
        %v919 = vld [vmem:[%s274 + $0x5d8] sm:$0xf]
        %v920 = vld [vmem:[%s274 + $0x5dc] sm:$0xff]
        %v921 = vld [vmem:[%s274 + $0x5e4] sm:$0xff]
        %v922 = vld [vmem:[%s274 + $0x5ec] sm:$0xf]
        %v923 = vld [vmem:[%s274 + $0x5f0] sm:$0xff]
        %v924 = vld [vmem:[%s274 + $0x5f8] sm:$0xff]
        %v925 = vld [vmem:[%s274 + $0x600] sm:$0xf]
        %v926 = vld [vmem:[%s274 + $0x604] sm:$0xff]
        %v927 = vld [vmem:[%s274 + $0x60c] sm:$0xff]
        %v928 = vld [vmem:[%s274 + $0x614] sm:$0xf]
        %v929 = vld [vmem:[%s274 + $0x618] sm:$0xff]
        %v930 = vld [vmem:[%s274 + $0x620] sm:$0xff]
        %v931 = vld [vmem:[%s274 + $0x628] sm:$0xf]
        %v932 = vld [vmem:[%s274 + $0x62c] sm:$0xff]
        %v933 = vld [vmem:[%s274 + $0x634] sm:$0xff]
        %v934 = vld [vmem:[%s274 + $0x63c] sm:$0xf]
        %v935 = vld [vmem:[%s274 + $0x640] sm:$0xff]
        %v936 = vld [vmem:[%s274 + $0x648] sm:$0xff]
        %v937 = vld [vmem:[%s274 + $0x650] sm:$0xf]
        %v938 = vld [vmem:[%s274 + $0x654] sm:$0xff]
        %v939 = vld [vmem:[%s274 + $0x65c] sm:$0xff]
        %v940 = vld [vmem:[%s274 + $0x664] sm:$0xf]
        %v941 = vld [vmem:[%s274 + $0x668] sm:$0xff]
        %v942 = vld [vmem:[%s274 + $0x670] sm:$0xff]
        %v943 = vld [vmem:[%s274 + $0x678] sm:$0xf]
        %v944 = vld [vmem:[%s274 + $0x67c] sm:$0xff]
        %v945 = vld [vmem:[%s274 + $0x684] sm:$0xff]
        %v946 = vld [vmem:[%s274 + $0x68c] sm:$0xf]
        %v947 = vld [vmem:[%s274 + $0x690] sm:$0xff]
        %v948 = vld [vmem:[%s274 + $0x698] sm:$0xff]
        %v949 = vld [vmem:[%s274 + $0x6a0] sm:$0xf]
        %v950 = vld [vmem:[%s274 + $0x6a4] sm:$0xff]
        %v951 = vld [vmem:[%s274 + $0x6ac] sm:$0xff]
        %v952 = vld [vmem:[%s274 + $0x6b4] sm:$0xf]
        %v953 = vld [vmem:[%s274 + $0x6b8] sm:$0xff]
        %v954 = vld [vmem:[%s274 + $0x6c0] sm:$0xff]
        %v955 = vld [vmem:[%s274 + $0x6c8] sm:$0xf]
        %v956 = vld [vmem:[%s274 + $0x6cc] sm:$0xff]
        %v957 = vld [vmem:[%s274 + $0x6d4] sm:$0xff]
        %v958 = vld [vmem:[%s274 + $0x6dc] sm:$0xf]
        %v959 = vld [vmem:[%s274 + $0x6e0] sm:$0xff]
        %v960 = vld [vmem:[%s274 + $0x6e8] sm:$0xff]
        %v961 = vld [vmem:[%s274 + $0x6f0] sm:$0xf]
        %v962 = vld [vmem:[%s274 + $0x6f4] sm:$0xff]
        %v963 = vld [vmem:[%s274 + $0x6fc] sm:$0xff]
        %v964 = vld [vmem:[%s274 + $0x704] sm:$0xf]
        %v965 = vld [vmem:[%s274 + $0x708] sm:$0xff]
        %v966 = vld [vmem:[%s274 + $0x710] sm:$0xff]
        %v967 = vld [vmem:[%s274 + $0x718] sm:$0xf]
        %v968 = vld [vmem:[%s274 + $0x71c] sm:$0xff]
        %v969 = vld [vmem:[%s274 + $0x724] sm:$0xff]
        %v970 = vld [vmem:[%s274 + $0x72c] sm:$0xf]
        %v971 = vld [vmem:[%s274 + $0x730] sm:$0xff]
        %v972 = vld [vmem:[%s274 + $0x738] sm:$0xff]
        %v973 = vld [vmem:[%s274 + $0x740] sm:$0xf]
        %v974 = vld [vmem:[%s274 + $0x744] sm:$0xff]
        %v975 = vld [vmem:[%s274 + $0x74c] sm:$0xff]
        %v976 = vld [vmem:[%s274 + $0x754] sm:$0xf]
        %v977 = vld [vmem:[%s274 + $0x758] sm:$0xff]
        %v978 = vld [vmem:[%s274 + $0x760] sm:$0xff]
        %v979 = vld [vmem:[%s274 + $0x768] sm:$0xf]
        %v980 = vld [vmem:[%s274 + $0x76c] sm:$0xff]
        %v981 = vld [vmem:[%s274 + $0x774] sm:$0xff]
        %v982 = vld [vmem:[%s274 + $0x77c] sm:$0xf]
        %v983 = vld [vmem:[%s274 + $0x780] sm:$0xff]
        %v984 = vld [vmem:[%s274 + $0x788] sm:$0xff]
        %v985 = vld [vmem:[%s274 + $0x790] sm:$0xf]
        %v986 = vld [vmem:[%s274 + $0x794] sm:$0xff]
        %v987 = vld [vmem:[%s274 + $0x79c] sm:$0xff]
        %v988 = vld [vmem:[%s274 + $0x7a4] sm:$0xf]
        %v989 = vld [vmem:[%s274 + $0x7a8] sm:$0xff]
        %v990 = vld [vmem:[%s274 + $0x7b0] sm:$0xff]
        %v991 = vld [vmem:[%s274 + $0x7b8] sm:$0xf]
        %v992 = vld [vmem:[%s274 + $0x7bc] sm:$0xff]
        %v993 = vld [vmem:[%s274 + $0x7c4] sm:$0xff]
        %v994 = vld [vmem:[%s274 + $0x7cc] sm:$0xf]
        %v995 = vld [vmem:[%s274 + $0x7d0] sm:$0xff]
        %v996 = vld [vmem:[%s274 + $0x7d8] sm:$0xff]
        %v997 = vld [vmem:[%s274 + $0x7e0] sm:$0xf]
        %v998 = vld [vmem:[%s274 + $0x7e4] sm:$0xff]
        %v999 = vld [vmem:[%s274 + $0x7ec] sm:$0xff]
        %v1000 = vld [vmem:[%s274 + $0x7f4] sm:$0xf]
        %v1001 = vld [vmem:[%s274 + $0x7f8] sm:$0xff]
        %v1002 = vld [vmem:[%s274 + $0x800] sm:$0xff]
        %v1003 = vld [vmem:[%s274 + $0x808] sm:$0xf]
        %v1004 = vld [vmem:[%s274 + $0x80c] sm:$0xff]
        %v1005 = vld [vmem:[%s274 + $0x814] sm:$0xff]
        %v1006 = vld [vmem:[%s274 + $0x81c] sm:$0xf]
        %v1007 = vld [vmem:[%s274 + $0x820] sm:$0xff]
        %v1008 = vld [vmem:[%s274 + $0x828] sm:$0xff]
        %v1009 = vld [vmem:[%s274 + $0x830] sm:$0xf]
        %v1010 = vld [vmem:[%s274 + $0x834] sm:$0xff]
        %v1011 = vld [vmem:[%s274 + $0x83c] sm:$0xff]
        %v1012 = vld [vmem:[%s274 + $0x844] sm:$0xf]
        %v1013 = vld [vmem:[%s274 + $0x848] sm:$0xff]
        %v1014 = vld [vmem:[%s274 + $0x850] sm:$0xff]
        %v1015 = vld [vmem:[%s274 + $0x858] sm:$0xf]
        %v1016 = vld [vmem:[%s274 + $0x85c] sm:$0xff]
        %v1017 = vld [vmem:[%s274 + $0x864] sm:$0xff]
        %v1018 = vld [vmem:[%s274 + $0x86c] sm:$0xf]
        %v1019 = vld [vmem:[%s274 + $0x870] sm:$0xff]
        %v1020 = vld [vmem:[%s274 + $0x878] sm:$0xff]
        %v1021 = vld [vmem:[%s274 + $0x880] sm:$0xf]
        %v1022 = vld [vmem:[%s274 + $0x884] sm:$0xff]
        %v1023 = vld [vmem:[%s274 + $0x88c] sm:$0xff]
        %v1024 = vld [vmem:[%s274 + $0x894] sm:$0xf]
        %v1025 = vld [vmem:[%s274 + $0x898] sm:$0xff]
        %v1026 = vld [vmem:[%s274 + $0x8a0] sm:$0xff]
        %v1027 = vld [vmem:[%s274 + $0x8a8] sm:$0xf]
        %v1028 = vld [vmem:[%s274 + $0x8ac] sm:$0xff]
        %v1029 = vld [vmem:[%s274 + $0x8b4] sm:$0xff]
        %v1030 = vld [vmem:[%s274 + $0x8bc] sm:$0xf]
        %v1031 = vld [vmem:[%s274 + $0x8c0] sm:$0xff]
        %v1032 = vld [vmem:[%s274 + $0x8c8] sm:$0xff]
        %v1033 = vld [vmem:[%s274 + $0x8d0] sm:$0xf]
        %v1034 = vld [vmem:[%s274 + $0x8d4] sm:$0xff]
        %v1035 = vld [vmem:[%s274 + $0x8dc] sm:$0xff]
        %v1036 = vld [vmem:[%s274 + $0x8e4] sm:$0xf]
        %v1037 = vld [vmem:[%s274 + $0x8e8] sm:$0xff]
        %v1038 = vld [vmem:[%s274 + $0x8f0] sm:$0xff]
        %v1039 = vld [vmem:[%s274 + $0x8f8] sm:$0xf]
        %v1040 = vld [vmem:[%s274 + $0x8fc] sm:$0xff]
        %v1041 = vld [vmem:[%s274 + $0x904] sm:$0xff]
        %v1042 = vld [vmem:[%s274 + $0x90c] sm:$0xf]
        %v1043 = vld [vmem:[%s274 + $0x910] sm:$0xff]
        %v1044 = vld [vmem:[%s274 + $0x918] sm:$0xff]
        %v1045 = vld [vmem:[%s274 + $0x920] sm:$0xf]
        %v1046 = vld [vmem:[%s274 + $0x924] sm:$0xff]
        %v1047 = vld [vmem:[%s274 + $0x92c] sm:$0xff]
        %v1048 = vld [vmem:[%s274 + $0x934] sm:$0xf]
        %v1049 = vld [vmem:[%s274 + $0x938] sm:$0xff]
        %v1050 = vld [vmem:[%s274 + $0x940] sm:$0xff]
        %v1051 = vld [vmem:[%s274 + $0x948] sm:$0xf]
        %v1052 = vld [vmem:[%s274 + $0x94c] sm:$0xff]
        %v1053 = vld [vmem:[%s274 + $0x954] sm:$0xff]
        %v1054 = vld [vmem:[%s274 + $0x95c] sm:$0xf]
        %v1055 = vld [vmem:[%s274 + $0x960] sm:$0xff]
        %v1056 = vld [vmem:[%s274 + $0x968] sm:$0xff]
        %v1057 = vld [vmem:[%s274 + $0x970] sm:$0xf]
        %v1058 = vld [vmem:[%s274 + $0x974] sm:$0xff]
        %v1059 = vld [vmem:[%s274 + $0x97c] sm:$0xff]
        %v1060 = vld [vmem:[%s274 + $0x984] sm:$0xf]
        %v1061 = vld [vmem:[%s274 + $0x988] sm:$0xff]
        %v1062 = vld [vmem:[%s274 + $0x990] sm:$0xff]
        %v1063 = vld [vmem:[%s274 + $0x998] sm:$0xf]
        %v1064 = vld [vmem:[%s274 + $0x99c] sm:$0xff]
        %v1065 = vld [vmem:[%s274 + $0x9a4] sm:$0xff]
        %v1066 = vld [vmem:[%s274 + $0x9ac] sm:$0xf]
        %v1067 = vld [vmem:[%s274 + $0x9b0] sm:$0xff]
        %v1068 = vld [vmem:[%s274 + $0x9b8] sm:$0xff]
        %v1069 = vld [vmem:[%s274 + $0x9c0] sm:$0xf]
        %v1070 = vld [vmem:[%s274 + $0x9c4] sm:$0xff]
        %v1071 = vld [vmem:[%s274 + $0x9cc] sm:$0xff]
        %v1072 = vld [vmem:[%s274 + $0x9d4] sm:$0xf]
        %v1073 = vld [vmem:[%s274 + $0x9d8] sm:$0xff]
        %v1074 = vld [vmem:[%s274 + $0x9e0] sm:$0xff]
        %v1075 = vld [vmem:[%s274 + $0x9e8] sm:$0xf]
        %v1076 = vld [vmem:[%s274 + $0x9ec] sm:$0xff]
        %v1077 = vld [vmem:[%s274 + $0x9f4] sm:$0xff]
        %v1078 = vld [vmem:[%s274 + $0x9fc] sm:$0xf]
        %v1079 = vld [vmem:[%s283] sm:$0x1f]
        %v1081 = vlaneseq
        %v1082 = vshrl.u32 %v1081, 7
        %v1083 = vsub.s32 0, %v1082
        %v1084 = vrot.slane %v1079, %v1083
        %v1085 = vlaneseq
        %v1086 = vshrl.u32 %v1085, 7
        %v1087 = vsub.s32 1, %v1086
        %v1088 = vrot.slane %v1079, %v1087
        %v1089 = vlaneseq
        %v1090 = vshrl.u32 %v1089, 7
        %v1091 = vsub.s32 2, %v1090
        %v1092 = vrot.slane %v1079, %v1091
        %v1093 = vlaneseq
        %v1094 = vshrl.u32 %v1093, 7
        %v1095 = vsub.s32 3, %v1094
        %v1096 = vrot.slane %v1079, %v1095
        %v1097 = vlaneseq
        %v1098 = vshrl.u32 %v1097, 7
        %v1099 = vsub.s32 4, %v1098
        %v1100 = vrot.slane %v1079, %v1099
        %v1490 = vunpack.c.l.b16 %v695
        %v1491 = vunpack.c.h.b16 %v695
        %v1492 = vunpack.c.l.b16 %v696
        %v1493 = vunpack.c.h.b16 %v696
        %v1494 = vunpack.c.l.b16 %v697
        %v1495 = vunpack.c.l.b16 %v698
        %v1496 = vunpack.c.h.b16 %v698
        %v1497 = vunpack.c.l.b16 %v699
        %v1498 = vunpack.c.h.b16 %v699
        %v1499 = vunpack.c.l.b16 %v700
        %v1500 = vunpack.c.l.b16 %v701
        %v1501 = vunpack.c.h.b16 %v701
        %v1502 = vunpack.c.l.b16 %v702
        %v1503 = vunpack.c.h.b16 %v702
        %v1504 = vunpack.c.l.b16 %v703
        %v1505 = vunpack.c.l.b16 %v704
        %v1506 = vunpack.c.h.b16 %v704
        %v1507 = vunpack.c.l.b16 %v705
        %v1508 = vunpack.c.h.b16 %v705
        %v1509 = vunpack.c.l.b16 %v706
        %v1510 = vunpack.c.l.b16 %v707
        %v1511 = vunpack.c.h.b16 %v707
        %v1512 = vunpack.c.l.b16 %v708
        %v1513 = vunpack.c.h.b16 %v708
        %v1514 = vunpack.c.l.b16 %v709
        %v1515 = vunpack.c.l.b16 %v710
        %v1516 = vunpack.c.h.b16 %v710
        %v1517 = vunpack.c.l.b16 %v711
        %v1518 = vunpack.c.h.b16 %v711
        %v1519 = vunpack.c.l.b16 %v712
        %v1520 = vunpack.c.l.b16 %v713
        %v1521 = vunpack.c.h.b16 %v713
        %v1522 = vunpack.c.l.b16 %v714
        %v1523 = vunpack.c.h.b16 %v714
        %v1524 = vunpack.c.l.b16 %v715
        %v1525 = vunpack.c.l.b16 %v716
        %v1526 = vunpack.c.h.b16 %v716
        %v1527 = vunpack.c.l.b16 %v717
        %v1528 = vunpack.c.h.b16 %v717
        %v1529 = vunpack.c.l.b16 %v718
        %v1530 = vunpack.c.l.b16 %v719
        %v1531 = vunpack.c.h.b16 %v719
        %v1532 = vunpack.c.l.b16 %v720
        %v1533 = vunpack.c.h.b16 %v720
        %v1534 = vunpack.c.l.b16 %v721
        %v1535 = vunpack.c.l.b16 %v722
        %v1536 = vunpack.c.h.b16 %v722
        %v1537 = vunpack.c.l.b16 %v723
        %v1538 = vunpack.c.h.b16 %v723
        %v1539 = vunpack.c.l.b16 %v724
        %v1540 = vunpack.c.l.b16 %v725
        %v1541 = vunpack.c.h.b16 %v725
        %v1542 = vunpack.c.l.b16 %v726
        %v1543 = vunpack.c.h.b16 %v726
        %v1544 = vunpack.c.l.b16 %v727
        %v1545 = vunpack.c.l.b16 %v728
        %v1546 = vunpack.c.h.b16 %v728
        %v1547 = vunpack.c.l.b16 %v729
        %v1548 = vunpack.c.h.b16 %v729
        %v1549 = vunpack.c.l.b16 %v730
        %v1550 = vunpack.c.l.b16 %v731
        %v1551 = vunpack.c.h.b16 %v731
        %v1552 = vunpack.c.l.b16 %v732
        %v1553 = vunpack.c.h.b16 %v732
        %v1554 = vunpack.c.l.b16 %v733
        %v1555 = vunpack.c.l.b16 %v734
        %v1556 = vunpack.c.h.b16 %v734
        %v1557 = vunpack.c.l.b16 %v735
        %v1558 = vunpack.c.h.b16 %v735
        %v1559 = vunpack.c.l.b16 %v736
        %v1560 = vunpack.c.l.b16 %v737
        %v1561 = vunpack.c.h.b16 %v737
        %v1562 = vunpack.c.l.b16 %v738
        %v1563 = vunpack.c.h.b16 %v738
        %v1564 = vunpack.c.l.b16 %v739
        %v1565 = vunpack.c.l.b16 %v740
        %v1566 = vunpack.c.h.b16 %v740
        %v1567 = vunpack.c.l.b16 %v741
        %v1568 = vunpack.c.h.b16 %v741
        %v1569 = vunpack.c.l.b16 %v742
        %v1570 = vunpack.c.l.b16 %v743
        %v1571 = vunpack.c.h.b16 %v743
        %v1572 = vunpack.c.l.b16 %v744
        %v1573 = vunpack.c.h.b16 %v744
        %v1574 = vunpack.c.l.b16 %v745
        %v1575 = vunpack.c.l.b16 %v746
        %v1576 = vunpack.c.h.b16 %v746
        %v1577 = vunpack.c.l.b16 %v747
        %v1578 = vunpack.c.h.b16 %v747
        %v1579 = vunpack.c.l.b16 %v748
        %v1580 = vunpack.c.l.b16 %v749
        %v1581 = vunpack.c.h.b16 %v749
        %v1582 = vunpack.c.l.b16 %v750
        %v1583 = vunpack.c.h.b16 %v750
        %v1584 = vunpack.c.l.b16 %v751
        %v1585 = vunpack.c.l.b16 %v752
        %v1586 = vunpack.c.h.b16 %v752
        %v1587 = vunpack.c.l.b16 %v753
        %v1588 = vunpack.c.h.b16 %v753
        %v1589 = vunpack.c.l.b16 %v754
        %v1590 = vunpack.c.l.b16 %v755
        %v1591 = vunpack.c.h.b16 %v755
        %v1592 = vunpack.c.l.b16 %v756
        %v1593 = vunpack.c.h.b16 %v756
        %v1594 = vunpack.c.l.b16 %v757
        %v1595 = vunpack.c.l.b16 %v758
        %v1596 = vunpack.c.h.b16 %v758
        %v1597 = vunpack.c.l.b16 %v759
        %v1598 = vunpack.c.h.b16 %v759
        %v1599 = vunpack.c.l.b16 %v760
        %v1600 = vunpack.c.l.b16 %v761
        %v1601 = vunpack.c.h.b16 %v761
        %v1602 = vunpack.c.l.b16 %v762
        %v1603 = vunpack.c.h.b16 %v762
        %v1604 = vunpack.c.l.b16 %v763
        %v1605 = vunpack.c.l.b16 %v764
        %v1606 = vunpack.c.h.b16 %v764
        %v1607 = vunpack.c.l.b16 %v765
        %v1608 = vunpack.c.h.b16 %v765
        %v1609 = vunpack.c.l.b16 %v766
        %v1610 = vunpack.c.l.b16 %v767
        %v1611 = vunpack.c.h.b16 %v767
        %v1612 = vunpack.c.l.b16 %v768
        %v1613 = vunpack.c.h.b16 %v768
        %v1614 = vunpack.c.l.b16 %v769
        %v1615 = vunpack.c.l.b16 %v770
        %v1616 = vunpack.c.h.b16 %v770
        %v1617 = vunpack.c.l.b16 %v771
        %v1618 = vunpack.c.h.b16 %v771
        %v1619 = vunpack.c.l.b16 %v772
        %v1620 = vunpack.c.l.b16 %v773
        %v1621 = vunpack.c.h.b16 %v773
        %v1622 = vunpack.c.l.b16 %v774
        %v1623 = vunpack.c.h.b16 %v774
        %v1624 = vunpack.c.l.b16 %v775
        %v1625 = vunpack.c.l.b16 %v776
        %v1626 = vunpack.c.h.b16 %v776
        %v1627 = vunpack.c.l.b16 %v777
        %v1628 = vunpack.c.h.b16 %v777
        %v1629 = vunpack.c.l.b16 %v778
        %v1630 = vunpack.c.l.b16 %v779
        %v1631 = vunpack.c.h.b16 %v779
        %v1632 = vunpack.c.l.b16 %v780
        %v1633 = vunpack.c.h.b16 %v780
        %v1634 = vunpack.c.l.b16 %v781
        %v1635 = vunpack.c.l.b16 %v782
        %v1636 = vunpack.c.h.b16 %v782
        %v1637 = vunpack.c.l.b16 %v783
        %v1638 = vunpack.c.h.b16 %v783
        %v1639 = vunpack.c.l.b16 %v784
        %v1640 = vunpack.c.l.b16 %v785
        %v1641 = vunpack.c.h.b16 %v785
        %v1642 = vunpack.c.l.b16 %v786
        %v1643 = vunpack.c.h.b16 %v786
        %v1644 = vunpack.c.l.b16 %v787
        %v1645 = vunpack.c.l.b16 %v788
        %v1646 = vunpack.c.h.b16 %v788
        %v1647 = vunpack.c.l.b16 %v789
        %v1648 = vunpack.c.h.b16 %v789
        %v1649 = vunpack.c.l.b16 %v790
        %v1650 = vunpack.c.l.b16 %v791
        %v1651 = vunpack.c.h.b16 %v791
        %v1652 = vunpack.c.l.b16 %v792
        %v1653 = vunpack.c.h.b16 %v792
        %v1654 = vunpack.c.l.b16 %v793
        %v1655 = vunpack.c.l.b16 %v794
        %v1656 = vunpack.c.h.b16 %v794
        %v1657 = vunpack.c.l.b16 %v795
        %v1658 = vunpack.c.h.b16 %v795
        %v1659 = vunpack.c.l.b16 %v796
        %v1660 = vunpack.c.l.b16 %v797
        %v1661 = vunpack.c.h.b16 %v797
        %v1662 = vunpack.c.l.b16 %v798
        %v1663 = vunpack.c.h.b16 %v798
        %v1664 = vunpack.c.l.b16 %v799
        %v1665 = vunpack.c.l.b16 %v800
        %v1666 = vunpack.c.h.b16 %v800
        %v1667 = vunpack.c.l.b16 %v801
        %v1668 = vunpack.c.h.b16 %v801
        %v1669 = vunpack.c.l.b16 %v802
        %v1670 = vunpack.c.l.b16 %v803
        %v1671 = vunpack.c.h.b16 %v803
        %v1672 = vunpack.c.l.b16 %v804
        %v1673 = vunpack.c.h.b16 %v804
        %v1674 = vunpack.c.l.b16 %v805
        %v1675 = vunpack.c.l.b16 %v806
        %v1676 = vunpack.c.h.b16 %v806
        %v1677 = vunpack.c.l.b16 %v807
        %v1678 = vunpack.c.h.b16 %v807
        %v1679 = vunpack.c.l.b16 %v808
        %v1680 = vunpack.c.l.b16 %v809
        %v1681 = vunpack.c.h.b16 %v809
        %v1682 = vunpack.c.l.b16 %v810
        %v1683 = vunpack.c.h.b16 %v810
        %v1684 = vunpack.c.l.b16 %v811
        %v1685 = vunpack.c.l.b16 %v812
        %v1686 = vunpack.c.h.b16 %v812
        %v1687 = vunpack.c.l.b16 %v813
        %v1688 = vunpack.c.h.b16 %v813
        %v1689 = vunpack.c.l.b16 %v814
        %v1690 = vunpack.c.l.b16 %v815
        %v1691 = vunpack.c.h.b16 %v815
        %v1692 = vunpack.c.l.b16 %v816
        %v1693 = vunpack.c.h.b16 %v816
        %v1694 = vunpack.c.l.b16 %v817
        %v1695 = vunpack.c.l.b16 %v818
        %v1696 = vunpack.c.h.b16 %v818
        %v1697 = vunpack.c.l.b16 %v819
        %v1698 = vunpack.c.h.b16 %v819
        %v1699 = vunpack.c.l.b16 %v820
        %v1700 = vunpack.c.l.b16 %v821
        %v1701 = vunpack.c.h.b16 %v821
        %v1702 = vunpack.c.l.b16 %v822
        %v1703 = vunpack.c.h.b16 %v822
        %v1704 = vunpack.c.l.b16 %v823
        %v1705 = vunpack.c.l.b16 %v824
        %v1706 = vunpack.c.h.b16 %v824
        %v1707 = vunpack.c.l.b16 %v825
        %v1708 = vunpack.c.h.b16 %v825
        %v1709 = vunpack.c.l.b16 %v826
        %v1710 = vunpack.c.l.b16 %v827
        %v1711 = vunpack.c.h.b16 %v827
        %v1712 = vunpack.c.l.b16 %v828
        %v1713 = vunpack.c.h.b16 %v828
        %v1714 = vunpack.c.l.b16 %v829
        %v1715 = vunpack.c.l.b16 %v830
        %v1716 = vunpack.c.h.b16 %v830
        %v1717 = vunpack.c.l.b16 %v831
        %v1718 = vunpack.c.h.b16 %v831
        %v1719 = vunpack.c.l.b16 %v832
        %v1720 = vunpack.c.l.b16 %v833
        %v1721 = vunpack.c.h.b16 %v833
        %v1722 = vunpack.c.l.b16 %v834
        %v1723 = vunpack.c.h.b16 %v834
        %v1724 = vunpack.c.l.b16 %v835
        %v1725 = vunpack.c.l.b16 %v836
        %v1726 = vunpack.c.h.b16 %v836
        %v1727 = vunpack.c.l.b16 %v837
        %v1728 = vunpack.c.h.b16 %v837
        %v1729 = vunpack.c.l.b16 %v838
        %v1730 = vunpack.c.l.b16 %v839
        %v1731 = vunpack.c.h.b16 %v839
        %v1732 = vunpack.c.l.b16 %v840
        %v1733 = vunpack.c.h.b16 %v840
        %v1734 = vunpack.c.l.b16 %v841
        %v1735 = vunpack.c.l.b16 %v842
        %v1736 = vunpack.c.h.b16 %v842
        %v1737 = vunpack.c.l.b16 %v843
        %v1738 = vunpack.c.h.b16 %v843
        %v1739 = vunpack.c.l.b16 %v844
        %v1740 = vunpack.c.l.b16 %v845
        %v1741 = vunpack.c.h.b16 %v845
        %v1742 = vunpack.c.l.b16 %v846
        %v1743 = vunpack.c.h.b16 %v846
        %v1744 = vunpack.c.l.b16 %v847
        %v1745 = vunpack.c.l.b16 %v848
        %v1746 = vunpack.c.h.b16 %v848
        %v1747 = vunpack.c.l.b16 %v849
        %v1748 = vunpack.c.h.b16 %v849
        %v1749 = vunpack.c.l.b16 %v850
        %v1750 = vunpack.c.l.b16 %v851
        %v1751 = vunpack.c.h.b16 %v851
        %v1752 = vunpack.c.l.b16 %v852
        %v1753 = vunpack.c.h.b16 %v852
        %v1754 = vunpack.c.l.b16 %v853
        %v1755 = vunpack.c.l.b16 %v854
        %v1756 = vunpack.c.h.b16 %v854
        %v1757 = vunpack.c.l.b16 %v855
        %v1758 = vunpack.c.h.b16 %v855
        %v1759 = vunpack.c.l.b16 %v856
        %v1760 = vunpack.c.l.b16 %v857
        %v1761 = vunpack.c.h.b16 %v857
        %v1762 = vunpack.c.l.b16 %v858
        %v1763 = vunpack.c.h.b16 %v858
        %v1764 = vunpack.c.l.b16 %v859
        %v1765 = vunpack.c.l.b16 %v860
        %v1766 = vunpack.c.h.b16 %v860
        %v1767 = vunpack.c.l.b16 %v861
        %v1768 = vunpack.c.h.b16 %v861
        %v1769 = vunpack.c.l.b16 %v862
        %v1770 = vunpack.c.l.b16 %v863
        %v1771 = vunpack.c.h.b16 %v863
        %v1772 = vunpack.c.l.b16 %v864
        %v1773 = vunpack.c.h.b16 %v864
        %v1774 = vunpack.c.l.b16 %v865
        %v1775 = vunpack.c.l.b16 %v866
        %v1776 = vunpack.c.h.b16 %v866
        %v1777 = vunpack.c.l.b16 %v867
        %v1778 = vunpack.c.h.b16 %v867
        %v1779 = vunpack.c.l.b16 %v868
        %v1780 = vunpack.c.l.b16 %v869
        %v1781 = vunpack.c.h.b16 %v869
        %v1782 = vunpack.c.l.b16 %v870
        %v1783 = vunpack.c.h.b16 %v870
        %v1784 = vunpack.c.l.b16 %v871
        %v1785 = vunpack.c.l.b16 %v872
        %v1786 = vunpack.c.h.b16 %v872
        %v1787 = vunpack.c.l.b16 %v873
        %v1788 = vunpack.c.h.b16 %v873
        %v1789 = vunpack.c.l.b16 %v874
        %v1790 = vunpack.c.l.b16 %v875
        %v1791 = vunpack.c.h.b16 %v875
        %v1792 = vunpack.c.l.b16 %v876
        %v1793 = vunpack.c.h.b16 %v876
        %v1794 = vunpack.c.l.b16 %v877
        %v1795 = vunpack.c.l.b16 %v878
        %v1796 = vunpack.c.h.b16 %v878
        %v1797 = vunpack.c.l.b16 %v879
        %v1798 = vunpack.c.h.b16 %v879
        %v1799 = vunpack.c.l.b16 %v880
        %v1800 = vunpack.c.l.b16 %v881
        %v1801 = vunpack.c.h.b16 %v881
        %v1802 = vunpack.c.l.b16 %v882
        %v1803 = vunpack.c.h.b16 %v882
        %v1804 = vunpack.c.l.b16 %v883
        %v1805 = vunpack.c.l.b16 %v884
        %v1806 = vunpack.c.h.b16 %v884
        %v1807 = vunpack.c.l.b16 %v885
        %v1808 = vunpack.c.h.b16 %v885
        %v1809 = vunpack.c.l.b16 %v886
        %v1810 = vunpack.c.l.b16 %v887
        %v1811 = vunpack.c.h.b16 %v887
        %v1812 = vunpack.c.l.b16 %v888
        %v1813 = vunpack.c.h.b16 %v888
        %v1814 = vunpack.c.l.b16 %v889
        %v1815 = vunpack.c.l.b16 %v890
        %v1816 = vunpack.c.h.b16 %v890
        %v1817 = vunpack.c.l.b16 %v891
        %v1818 = vunpack.c.h.b16 %v891
        %v1819 = vunpack.c.l.b16 %v892
        %v1820 = vunpack.c.l.b16 %v893
        %v1821 = vunpack.c.h.b16 %v893
        %v1822 = vunpack.c.l.b16 %v894
        %v1823 = vunpack.c.h.b16 %v894
        %v1824 = vunpack.c.l.b16 %v895
        %v1825 = vunpack.c.l.b16 %v896
        %v1826 = vunpack.c.h.b16 %v896
        %v1827 = vunpack.c.l.b16 %v897
        %v1828 = vunpack.c.h.b16 %v897
        %v1829 = vunpack.c.l.b16 %v898
        %v1830 = vunpack.c.l.b16 %v899
        %v1831 = vunpack.c.h.b16 %v899
        %v1832 = vunpack.c.l.b16 %v900
        %v1833 = vunpack.c.h.b16 %v900
        %v1834 = vunpack.c.l.b16 %v901
        %v1835 = vunpack.c.l.b16 %v902
        %v1836 = vunpack.c.h.b16 %v902
        %v1837 = vunpack.c.l.b16 %v903
        %v1838 = vunpack.c.h.b16 %v903
        %v1839 = vunpack.c.l.b16 %v904
        %v1840 = vunpack.c.l.b16 %v905
        %v1841 = vunpack.c.h.b16 %v905
        %v1842 = vunpack.c.l.b16 %v906
        %v1843 = vunpack.c.h.b16 %v906
        %v1844 = vunpack.c.l.b16 %v907
        %v1845 = vunpack.c.l.b16 %v908
        %v1846 = vunpack.c.h.b16 %v908
        %v1847 = vunpack.c.l.b16 %v909
        %v1848 = vunpack.c.h.b16 %v909
        %v1849 = vunpack.c.l.b16 %v910
        %v1850 = vunpack.c.l.b16 %v911
        %v1851 = vunpack.c.h.b16 %v911
        %v1852 = vunpack.c.l.b16 %v912
        %v1853 = vunpack.c.h.b16 %v912
        %v1854 = vunpack.c.l.b16 %v913
        %v1855 = vunpack.c.l.b16 %v914
        %v1856 = vunpack.c.h.b16 %v914
        %v1857 = vunpack.c.l.b16 %v915
        %v1858 = vunpack.c.h.b16 %v915
        %v1859 = vunpack.c.l.b16 %v916
        %v1860 = vunpack.c.l.b16 %v917
        %v1861 = vunpack.c.h.b16 %v917
        %v1862 = vunpack.c.l.b16 %v918
        %v1863 = vunpack.c.h.b16 %v918
        %v1864 = vunpack.c.l.b16 %v919
        %v1865 = vunpack.c.l.b16 %v920
        %v1866 = vunpack.c.h.b16 %v920
        %v1867 = vunpack.c.l.b16 %v921
        %v1868 = vunpack.c.h.b16 %v921
        %v1869 = vunpack.c.l.b16 %v922
        %v1870 = vunpack.c.l.b16 %v923
        %v1871 = vunpack.c.h.b16 %v923
        %v1872 = vunpack.c.l.b16 %v924
        %v1873 = vunpack.c.h.b16 %v924
        %v1874 = vunpack.c.l.b16 %v925
        %v1875 = vunpack.c.l.b16 %v926
        %v1876 = vunpack.c.h.b16 %v926
        %v1877 = vunpack.c.l.b16 %v927
        %v1878 = vunpack.c.h.b16 %v927
        %v1879 = vunpack.c.l.b16 %v928
        %v1880 = vunpack.c.l.b16 %v929
        %v1881 = vunpack.c.h.b16 %v929
        %v1882 = vunpack.c.l.b16 %v930
        %v1883 = vunpack.c.h.b16 %v930
        %v1884 = vunpack.c.l.b16 %v931
        %v1885 = vunpack.c.l.b16 %v932
        %v1886 = vunpack.c.h.b16 %v932
        %v1887 = vunpack.c.l.b16 %v933
        %v1888 = vunpack.c.h.b16 %v933
        %v1889 = vunpack.c.l.b16 %v934
        %v1890 = vunpack.c.l.b16 %v935
        %v1891 = vunpack.c.h.b16 %v935
        %v1892 = vunpack.c.l.b16 %v936
        %v1893 = vunpack.c.h.b16 %v936
        %v1894 = vunpack.c.l.b16 %v937
        %v1895 = vunpack.c.l.b16 %v938
        %v1896 = vunpack.c.h.b16 %v938
        %v1897 = vunpack.c.l.b16 %v939
        %v1898 = vunpack.c.h.b16 %v939
        %v1899 = vunpack.c.l.b16 %v940
        %v1900 = vunpack.c.l.b16 %v941
        %v1901 = vunpack.c.h.b16 %v941
        %v1902 = vunpack.c.l.b16 %v942
        %v1903 = vunpack.c.h.b16 %v942
        %v1904 = vunpack.c.l.b16 %v943
        %v1905 = vunpack.c.l.b16 %v944
        %v1906 = vunpack.c.h.b16 %v944
        %v1907 = vunpack.c.l.b16 %v945
        %v1908 = vunpack.c.h.b16 %v945
        %v1909 = vunpack.c.l.b16 %v946
        %v1910 = vunpack.c.l.b16 %v947
        %v1911 = vunpack.c.h.b16 %v947
        %v1912 = vunpack.c.l.b16 %v948
        %v1913 = vunpack.c.h.b16 %v948
        %v1914 = vunpack.c.l.b16 %v949
        %v1915 = vunpack.c.l.b16 %v950
        %v1916 = vunpack.c.h.b16 %v950
        %v1917 = vunpack.c.l.b16 %v951
        %v1918 = vunpack.c.h.b16 %v951
        %v1919 = vunpack.c.l.b16 %v952
        %v1920 = vunpack.c.l.b16 %v953
        %v1921 = vunpack.c.h.b16 %v953
        %v1922 = vunpack.c.l.b16 %v954
        %v1923 = vunpack.c.h.b16 %v954
        %v1924 = vunpack.c.l.b16 %v955
        %v1925 = vunpack.c.l.b16 %v956
        %v1926 = vunpack.c.h.b16 %v956
        %v1927 = vunpack.c.l.b16 %v957
        %v1928 = vunpack.c.h.b16 %v957
        %v1929 = vunpack.c.l.b16 %v958
        %v1930 = vunpack.c.l.b16 %v959
        %v1931 = vunpack.c.h.b16 %v959
        %v1932 = vunpack.c.l.b16 %v960
        %v1933 = vunpack.c.h.b16 %v960
        %v1934 = vunpack.c.l.b16 %v961
        %v1935 = vunpack.c.l.b16 %v962
        %v1936 = vunpack.c.h.b16 %v962
        %v1937 = vunpack.c.l.b16 %v963
        %v1938 = vunpack.c.h.b16 %v963
        %v1939 = vunpack.c.l.b16 %v964
        %v1940 = vunpack.c.l.b16 %v965
        %v1941 = vunpack.c.h.b16 %v965
        %v1942 = vunpack.c.l.b16 %v966
        %v1943 = vunpack.c.h.b16 %v966
        %v1944 = vunpack.c.l.b16 %v967
        %v1945 = vunpack.c.l.b16 %v968
        %v1946 = vunpack.c.h.b16 %v968
        %v1947 = vunpack.c.l.b16 %v969
        %v1948 = vunpack.c.h.b16 %v969
        %v1949 = vunpack.c.l.b16 %v970
        %v1950 = vunpack.c.l.b16 %v971
        %v1951 = vunpack.c.h.b16 %v971
        %v1952 = vunpack.c.l.b16 %v972
        %v1953 = vunpack.c.h.b16 %v972
        %v1954 = vunpack.c.l.b16 %v973
        %v1955 = vunpack.c.l.b16 %v974
        %v1956 = vunpack.c.h.b16 %v974
        %v1957 = vunpack.c.l.b16 %v975
        %v1958 = vunpack.c.h.b16 %v975
        %v1959 = vunpack.c.l.b16 %v976
        %v1960 = vunpack.c.l.b16 %v977
        %v1961 = vunpack.c.h.b16 %v977
        %v1962 = vunpack.c.l.b16 %v978
        %v1963 = vunpack.c.h.b16 %v978
        %v1964 = vunpack.c.l.b16 %v979
        %v1965 = vunpack.c.l.b16 %v980
        %v1966 = vunpack.c.h.b16 %v980
        %v1967 = vunpack.c.l.b16 %v981
        %v1968 = vunpack.c.h.b16 %v981
        %v1969 = vunpack.c.l.b16 %v982
        %v1970 = vunpack.c.l.b16 %v983
        %v1971 = vunpack.c.h.b16 %v983
        %v1972 = vunpack.c.l.b16 %v984
        %v1973 = vunpack.c.h.b16 %v984
        %v1974 = vunpack.c.l.b16 %v985
        %v1975 = vunpack.c.l.b16 %v986
        %v1976 = vunpack.c.h.b16 %v986
        %v1977 = vunpack.c.l.b16 %v987
        %v1978 = vunpack.c.h.b16 %v987
        %v1979 = vunpack.c.l.b16 %v988
        %v1980 = vunpack.c.l.b16 %v989
        %v1981 = vunpack.c.h.b16 %v989
        %v1982 = vunpack.c.l.b16 %v990
        %v1983 = vunpack.c.h.b16 %v990
        %v1984 = vunpack.c.l.b16 %v991
        %v1985 = vunpack.c.l.b16 %v992
        %v1986 = vunpack.c.h.b16 %v992
        %v1987 = vunpack.c.l.b16 %v993
        %v1988 = vunpack.c.h.b16 %v993
        %v1989 = vunpack.c.l.b16 %v994
        %v1990 = vunpack.c.l.b16 %v995
        %v1991 = vunpack.c.h.b16 %v995
        %v1992 = vunpack.c.l.b16 %v996
        %v1993 = vunpack.c.h.b16 %v996
        %v1994 = vunpack.c.l.b16 %v997
        %v1995 = vunpack.c.l.b16 %v998
        %v1996 = vunpack.c.h.b16 %v998
        %v1997 = vunpack.c.l.b16 %v999
        %v1998 = vunpack.c.h.b16 %v999
        %v1999 = vunpack.c.l.b16 %v1000
        %v2000 = vunpack.c.l.b16 %v1001
        %v2001 = vunpack.c.h.b16 %v1001
        %v2002 = vunpack.c.l.b16 %v1002
        %v2003 = vunpack.c.h.b16 %v1002
        %v2004 = vunpack.c.l.b16 %v1003
        %v2005 = vunpack.c.l.b16 %v1004
        %v2006 = vunpack.c.h.b16 %v1004
        %v2007 = vunpack.c.l.b16 %v1005
        %v2008 = vunpack.c.h.b16 %v1005
        %v2009 = vunpack.c.l.b16 %v1006
        %v2010 = vunpack.c.l.b16 %v1007
        %v2011 = vunpack.c.h.b16 %v1007
        %v2012 = vunpack.c.l.b16 %v1008
        %v2013 = vunpack.c.h.b16 %v1008
        %v2014 = vunpack.c.l.b16 %v1009
        %v2015 = vunpack.c.l.b16 %v1010
        %v2016 = vunpack.c.h.b16 %v1010
        %v2017 = vunpack.c.l.b16 %v1011
        %v2018 = vunpack.c.h.b16 %v1011
        %v2019 = vunpack.c.l.b16 %v1012
        %v2020 = vunpack.c.l.b16 %v1013
        %v2021 = vunpack.c.h.b16 %v1013
        %v2022 = vunpack.c.l.b16 %v1014
        %v2023 = vunpack.c.h.b16 %v1014
        %v2024 = vunpack.c.l.b16 %v1015
        %v2025 = vunpack.c.l.b16 %v1016
        %v2026 = vunpack.c.h.b16 %v1016
        %v2027 = vunpack.c.l.b16 %v1017
        %v2028 = vunpack.c.h.b16 %v1017
        %v2029 = vunpack.c.l.b16 %v1018
        %v2030 = vunpack.c.l.b16 %v1019
        %v2031 = vunpack.c.h.b16 %v1019
        %v2032 = vunpack.c.l.b16 %v1020
        %v2033 = vunpack.c.h.b16 %v1020
        %v2034 = vunpack.c.l.b16 %v1021
        %v2035 = vunpack.c.l.b16 %v1022
        %v2036 = vunpack.c.h.b16 %v1022
        %v2037 = vunpack.c.l.b16 %v1023
        %v2038 = vunpack.c.h.b16 %v1023
        %v2039 = vunpack.c.l.b16 %v1024
        %v2040 = vunpack.c.l.b16 %v1025
        %v2041 = vunpack.c.h.b16 %v1025
        %v2042 = vunpack.c.l.b16 %v1026
        %v2043 = vunpack.c.h.b16 %v1026
        %v2044 = vunpack.c.l.b16 %v1027
        %v2045 = vunpack.c.l.b16 %v1028
        %v2046 = vunpack.c.h.b16 %v1028
        %v2047 = vunpack.c.l.b16 %v1029
        %v2048 = vunpack.c.h.b16 %v1029
        %v2049 = vunpack.c.l.b16 %v1030
        %v2050 = vunpack.c.l.b16 %v1031
        %v2051 = vunpack.c.h.b16 %v1031
        %v2052 = vunpack.c.l.b16 %v1032
        %v2053 = vunpack.c.h.b16 %v1032
        %v2054 = vunpack.c.l.b16 %v1033
        %v2055 = vunpack.c.l.b16 %v1034
        %v2056 = vunpack.c.h.b16 %v1034
        %v2057 = vunpack.c.l.b16 %v1035
        %v2058 = vunpack.c.h.b16 %v1035
        %v2059 = vunpack.c.l.b16 %v1036
        %v2060 = vunpack.c.l.b16 %v1037
        %v2061 = vunpack.c.h.b16 %v1037
        %v2062 = vunpack.c.l.b16 %v1038
        %v2063 = vunpack.c.h.b16 %v1038
        %v2064 = vunpack.c.l.b16 %v1039
        %v2065 = vunpack.c.l.b16 %v1040
        %v2066 = vunpack.c.h.b16 %v1040
        %v2067 = vunpack.c.l.b16 %v1041
        %v2068 = vunpack.c.h.b16 %v1041
        %v2069 = vunpack.c.l.b16 %v1042
        %v2070 = vunpack.c.l.b16 %v1043
        %v2071 = vunpack.c.h.b16 %v1043
        %v2072 = vunpack.c.l.b16 %v1044
        %v2073 = vunpack.c.h.b16 %v1044
        %v2074 = vunpack.c.l.b16 %v1045
        %v2075 = vunpack.c.l.b16 %v1046
        %v2076 = vunpack.c.h.b16 %v1046
        %v2077 = vunpack.c.l.b16 %v1047
        %v2078 = vunpack.c.h.b16 %v1047
        %v2079 = vunpack.c.l.b16 %v1048
        %v2080 = vunpack.c.l.b16 %v1049
        %v2081 = vunpack.c.h.b16 %v1049
        %v2082 = vunpack.c.l.b16 %v1050
        %v2083 = vunpack.c.h.b16 %v1050
        %v2084 = vunpack.c.l.b16 %v1051
        %v2085 = vunpack.c.l.b16 %v1052
        %v2086 = vunpack.c.h.b16 %v1052
        %v2087 = vunpack.c.l.b16 %v1053
        %v2088 = vunpack.c.h.b16 %v1053
        %v2089 = vunpack.c.l.b16 %v1054
        %v2090 = vunpack.c.l.b16 %v1055
        %v2091 = vunpack.c.h.b16 %v1055
        %v2092 = vunpack.c.l.b16 %v1056
        %v2093 = vunpack.c.h.b16 %v1056
        %v2094 = vunpack.c.l.b16 %v1057
        %v2095 = vunpack.c.l.b16 %v1058
        %v2096 = vunpack.c.h.b16 %v1058
        %v2097 = vunpack.c.l.b16 %v1059
        %v2098 = vunpack.c.h.b16 %v1059
        %v2099 = vunpack.c.l.b16 %v1060
        %v2100 = vunpack.c.l.b16 %v1061
        %v2101 = vunpack.c.h.b16 %v1061
        %v2102 = vunpack.c.l.b16 %v1062
        %v2103 = vunpack.c.h.b16 %v1062
        %v2104 = vunpack.c.l.b16 %v1063
        %v2105 = vunpack.c.l.b16 %v1064
        %v2106 = vunpack.c.h.b16 %v1064
        %v2107 = vunpack.c.l.b16 %v1065
        %v2108 = vunpack.c.h.b16 %v1065
        %v2109 = vunpack.c.l.b16 %v1066
        %v2110 = vunpack.c.l.b16 %v1067
        %v2111 = vunpack.c.h.b16 %v1067
        %v2112 = vunpack.c.l.b16 %v1068
        %v2113 = vunpack.c.h.b16 %v1068
        %v2114 = vunpack.c.l.b16 %v1069
        %v2115 = vunpack.c.l.b16 %v1070
        %v2116 = vunpack.c.h.b16 %v1070
        %v2117 = vunpack.c.l.b16 %v1071
        %v2118 = vunpack.c.h.b16 %v1071
        %v2119 = vunpack.c.l.b16 %v1072
        %v2120 = vunpack.c.l.b16 %v1073
        %v2121 = vunpack.c.h.b16 %v1073
        %v2122 = vunpack.c.l.b16 %v1074
        %v2123 = vunpack.c.h.b16 %v1074
        %v2124 = vunpack.c.l.b16 %v1075
        %v2125 = vunpack.c.l.b16 %v1076
        %v2126 = vunpack.c.h.b16 %v1076
        %v2127 = vunpack.c.l.b16 %v1077
        %v2128 = vunpack.c.h.b16 %v1077
        %v2129 = vunpack.c.l.b16 %v1078
        %v2130 = vpack.c.b16 %v1495, %v1490
        %v2131 = vpack.c.b16 %v1496, %v1491
        %v2132 = vpack.c.b16 %v1497, %v1492
        %v2133 = vpack.c.b16 %v1498, %v1493
        %v2134 = vpack.c.b16 %v1499, %v1494
        %v2135 = vpack.c.b16 %v1505, %v1500
        %v2136 = vpack.c.b16 %v1506, %v1501
        %v2137 = vpack.c.b16 %v1507, %v1502
        %v2138 = vpack.c.b16 %v1508, %v1503
        %v2139 = vpack.c.b16 %v1509, %v1504
        %v2140 = vpack.c.b16 %v1515, %v1510
        %v2141 = vpack.c.b16 %v1516, %v1511
        %v2142 = vpack.c.b16 %v1517, %v1512
        %v2143 = vpack.c.b16 %v1518, %v1513
        %v2144 = vpack.c.b16 %v1519, %v1514
        %v2145 = vpack.c.b16 %v1525, %v1520
        %v2146 = vpack.c.b16 %v1526, %v1521
        %v2147 = vpack.c.b16 %v1527, %v1522
        %v2148 = vpack.c.b16 %v1528, %v1523
        %v2149 = vpack.c.b16 %v1529, %v1524
        %v2150 = vpack.c.b16 %v1535, %v1530
        %v2151 = vpack.c.b16 %v1536, %v1531
        %v2152 = vpack.c.b16 %v1537, %v1532
        %v2153 = vpack.c.b16 %v1538, %v1533
        %v2154 = vpack.c.b16 %v1539, %v1534
        %v2155 = vpack.c.b16 %v1545, %v1540
        %v2156 = vpack.c.b16 %v1546, %v1541
        %v2157 = vpack.c.b16 %v1547, %v1542
        %v2158 = vpack.c.b16 %v1548, %v1543
        %v2159 = vpack.c.b16 %v1549, %v1544
        %v2160 = vpack.c.b16 %v1555, %v1550
        %v2161 = vpack.c.b16 %v1556, %v1551
        %v2162 = vpack.c.b16 %v1557, %v1552
        %v2163 = vpack.c.b16 %v1558, %v1553
        %v2164 = vpack.c.b16 %v1559, %v1554
        %v2165 = vpack.c.b16 %v1565, %v1560
        %v2166 = vpack.c.b16 %v1566, %v1561
        %v2167 = vpack.c.b16 %v1567, %v1562
        %v2168 = vpack.c.b16 %v1568, %v1563
        %v2169 = vpack.c.b16 %v1569, %v1564
        %v2170 = vpack.c.b16 %v1575, %v1570
        %v2171 = vpack.c.b16 %v1576, %v1571
        %v2172 = vpack.c.b16 %v1577, %v1572
        %v2173 = vpack.c.b16 %v1578, %v1573
        %v2174 = vpack.c.b16 %v1579, %v1574
        %v2175 = vpack.c.b16 %v1585, %v1580
        %v2176 = vpack.c.b16 %v1586, %v1581
        %v2177 = vpack.c.b16 %v1587, %v1582
        %v2178 = vpack.c.b16 %v1588, %v1583
        %v2179 = vpack.c.b16 %v1589, %v1584
        %v2180 = vpack.c.b16 %v1595, %v1590
        %v2181 = vpack.c.b16 %v1596, %v1591
        %v2182 = vpack.c.b16 %v1597, %v1592
        %v2183 = vpack.c.b16 %v1598, %v1593
        %v2184 = vpack.c.b16 %v1599, %v1594
        %v2185 = vpack.c.b16 %v1605, %v1600
        %v2186 = vpack.c.b16 %v1606, %v1601
        %v2187 = vpack.c.b16 %v1607, %v1602
        %v2188 = vpack.c.b16 %v1608, %v1603
        %v2189 = vpack.c.b16 %v1609, %v1604
        %v2190 = vpack.c.b16 %v1615, %v1610
        %v2191 = vpack.c.b16 %v1616, %v1611
        %v2192 = vpack.c.b16 %v1617, %v1612
        %v2193 = vpack.c.b16 %v1618, %v1613
        %v2194 = vpack.c.b16 %v1619, %v1614
        %v2195 = vpack.c.b16 %v1625, %v1620
        %v2196 = vpack.c.b16 %v1626, %v1621
        %v2197 = vpack.c.b16 %v1627, %v1622
        %v2198 = vpack.c.b16 %v1628, %v1623
        %v2199 = vpack.c.b16 %v1629, %v1624
        %v2200 = vpack.c.b16 %v1635, %v1630
        %v2201 = vpack.c.b16 %v1636, %v1631
        %v2202 = vpack.c.b16 %v1637, %v1632
        %v2203 = vpack.c.b16 %v1638, %v1633
        %v2204 = vpack.c.b16 %v1639, %v1634
        %v2205 = vpack.c.b16 %v1645, %v1640
        %v2206 = vpack.c.b16 %v1646, %v1641
        %v2207 = vpack.c.b16 %v1647, %v1642
        %v2208 = vpack.c.b16 %v1648, %v1643
        %v2209 = vpack.c.b16 %v1649, %v1644
        %v2210 = vpack.c.b16 %v1655, %v1650
        %v2211 = vpack.c.b16 %v1656, %v1651
        %v2212 = vpack.c.b16 %v1657, %v1652
        %v2213 = vpack.c.b16 %v1658, %v1653
        %v2214 = vpack.c.b16 %v1659, %v1654
        %v2215 = vpack.c.b16 %v1665, %v1660
        %v2216 = vpack.c.b16 %v1666, %v1661
        %v2217 = vpack.c.b16 %v1667, %v1662
        %v2218 = vpack.c.b16 %v1668, %v1663
        %v2219 = vpack.c.b16 %v1669, %v1664
        %v2220 = vpack.c.b16 %v1675, %v1670
        %v2221 = vpack.c.b16 %v1676, %v1671
        %v2222 = vpack.c.b16 %v1677, %v1672
        %v2223 = vpack.c.b16 %v1678, %v1673
        %v2224 = vpack.c.b16 %v1679, %v1674
        %v2225 = vpack.c.b16 %v1685, %v1680
        %v2226 = vpack.c.b16 %v1686, %v1681
        %v2227 = vpack.c.b16 %v1687, %v1682
        %v2228 = vpack.c.b16 %v1688, %v1683
        %v2229 = vpack.c.b16 %v1689, %v1684
        %v2230 = vpack.c.b16 %v1695, %v1690
        %v2231 = vpack.c.b16 %v1696, %v1691
        %v2232 = vpack.c.b16 %v1697, %v1692
        %v2233 = vpack.c.b16 %v1698, %v1693
        %v2234 = vpack.c.b16 %v1699, %v1694
        %v2235 = vpack.c.b16 %v1705, %v1700
        %v2236 = vpack.c.b16 %v1706, %v1701
        %v2237 = vpack.c.b16 %v1707, %v1702
        %v2238 = vpack.c.b16 %v1708, %v1703
        %v2239 = vpack.c.b16 %v1709, %v1704
        %v2240 = vpack.c.b16 %v1715, %v1710
        %v2241 = vpack.c.b16 %v1716, %v1711
        %v2242 = vpack.c.b16 %v1717, %v1712
        %v2243 = vpack.c.b16 %v1718, %v1713
        %v2244 = vpack.c.b16 %v1719, %v1714
        %v2245 = vpack.c.b16 %v1725, %v1720
        %v2246 = vpack.c.b16 %v1726, %v1721
        %v2247 = vpack.c.b16 %v1727, %v1722
        %v2248 = vpack.c.b16 %v1728, %v1723
        %v2249 = vpack.c.b16 %v1729, %v1724
        %v2250 = vpack.c.b16 %v1735, %v1730
        %v2251 = vpack.c.b16 %v1736, %v1731
        %v2252 = vpack.c.b16 %v1737, %v1732
        %v2253 = vpack.c.b16 %v1738, %v1733
        %v2254 = vpack.c.b16 %v1739, %v1734
        %v2255 = vpack.c.b16 %v1745, %v1740
        %v2256 = vpack.c.b16 %v1746, %v1741
        %v2257 = vpack.c.b16 %v1747, %v1742
        %v2258 = vpack.c.b16 %v1748, %v1743
        %v2259 = vpack.c.b16 %v1749, %v1744
        %v2260 = vpack.c.b16 %v1755, %v1750
        %v2261 = vpack.c.b16 %v1756, %v1751
        %v2262 = vpack.c.b16 %v1757, %v1752
        %v2263 = vpack.c.b16 %v1758, %v1753
        %v2264 = vpack.c.b16 %v1759, %v1754
        %v2265 = vpack.c.b16 %v1765, %v1760
        %v2266 = vpack.c.b16 %v1766, %v1761
        %v2267 = vpack.c.b16 %v1767, %v1762
        %v2268 = vpack.c.b16 %v1768, %v1763
        %v2269 = vpack.c.b16 %v1769, %v1764
        %v2270 = vpack.c.b16 %v1775, %v1770
        %v2271 = vpack.c.b16 %v1776, %v1771
        %v2272 = vpack.c.b16 %v1777, %v1772
        %v2273 = vpack.c.b16 %v1778, %v1773
        %v2274 = vpack.c.b16 %v1779, %v1774
        %v2275 = vpack.c.b16 %v1785, %v1780
        %v2276 = vpack.c.b16 %v1786, %v1781
        %v2277 = vpack.c.b16 %v1787, %v1782
        %v2278 = vpack.c.b16 %v1788, %v1783
        %v2279 = vpack.c.b16 %v1789, %v1784
        %v2280 = vpack.c.b16 %v1795, %v1790
        %v2281 = vpack.c.b16 %v1796, %v1791
        %v2282 = vpack.c.b16 %v1797, %v1792
        %v2283 = vpack.c.b16 %v1798, %v1793
        %v2284 = vpack.c.b16 %v1799, %v1794
        %v2285 = vpack.c.b16 %v1805, %v1800
        %v2286 = vpack.c.b16 %v1806, %v1801
        %v2287 = vpack.c.b16 %v1807, %v1802
        %v2288 = vpack.c.b16 %v1808, %v1803
        %v2289 = vpack.c.b16 %v1809, %v1804
        %v2290 = vpack.c.b16 %v1815, %v1810
        %v2291 = vpack.c.b16 %v1816, %v1811
        %v2292 = vpack.c.b16 %v1817, %v1812
        %v2293 = vpack.c.b16 %v1818, %v1813
        %v2294 = vpack.c.b16 %v1819, %v1814
        %v2295 = vpack.c.b16 %v1825, %v1820
        %v2296 = vpack.c.b16 %v1826, %v1821
        %v2297 = vpack.c.b16 %v1827, %v1822
        %v2298 = vpack.c.b16 %v1828, %v1823
        %v2299 = vpack.c.b16 %v1829, %v1824
        %v2300 = vpack.c.b16 %v1835, %v1830
        %v2301 = vpack.c.b16 %v1836, %v1831
        %v2302 = vpack.c.b16 %v1837, %v1832
        %v2303 = vpack.c.b16 %v1838, %v1833
        %v2304 = vpack.c.b16 %v1839, %v1834
        %v2305 = vpack.c.b16 %v1845, %v1840
        %v2306 = vpack.c.b16 %v1846, %v1841
        %v2307 = vpack.c.b16 %v1847, %v1842
        %v2308 = vpack.c.b16 %v1848, %v1843
        %v2309 = vpack.c.b16 %v1849, %v1844
        %v2310 = vpack.c.b16 %v1855, %v1850
        %v2311 = vpack.c.b16 %v1856, %v1851
        %v2312 = vpack.c.b16 %v1857, %v1852
        %v2313 = vpack.c.b16 %v1858, %v1853
        %v2314 = vpack.c.b16 %v1859, %v1854
        %v2315 = vpack.c.b16 %v1865, %v1860
        %v2316 = vpack.c.b16 %v1866, %v1861
        %v2317 = vpack.c.b16 %v1867, %v1862
        %v2318 = vpack.c.b16 %v1868, %v1863
        %v2319 = vpack.c.b16 %v1869, %v1864
        %v2320 = vpack.c.b16 %v1875, %v1870
        %v2321 = vpack.c.b16 %v1876, %v1871
        %v2322 = vpack.c.b16 %v1877, %v1872
        %v2323 = vpack.c.b16 %v1878, %v1873
        %v2324 = vpack.c.b16 %v1879, %v1874
        %v2325 = vpack.c.b16 %v1885, %v1880
        %v2326 = vpack.c.b16 %v1886, %v1881
        %v2327 = vpack.c.b16 %v1887, %v1882
        %v2328 = vpack.c.b16 %v1888, %v1883
        %v2329 = vpack.c.b16 %v1889, %v1884
        %v2330 = vpack.c.b16 %v1895, %v1890
        %v2331 = vpack.c.b16 %v1896, %v1891
        %v2332 = vpack.c.b16 %v1897, %v1892
        %v2333 = vpack.c.b16 %v1898, %v1893
        %v2334 = vpack.c.b16 %v1899, %v1894
        %v2335 = vpack.c.b16 %v1905, %v1900
        %v2336 = vpack.c.b16 %v1906, %v1901
        %v2337 = vpack.c.b16 %v1907, %v1902
        %v2338 = vpack.c.b16 %v1908, %v1903
        %v2339 = vpack.c.b16 %v1909, %v1904
        %v2340 = vpack.c.b16 %v1915, %v1910
        %v2341 = vpack.c.b16 %v1916, %v1911
        %v2342 = vpack.c.b16 %v1917, %v1912
        %v2343 = vpack.c.b16 %v1918, %v1913
        %v2344 = vpack.c.b16 %v1919, %v1914
        %v2345 = vpack.c.b16 %v1925, %v1920
        %v2346 = vpack.c.b16 %v1926, %v1921
        %v2347 = vpack.c.b16 %v1927, %v1922
        %v2348 = vpack.c.b16 %v1928, %v1923
        %v2349 = vpack.c.b16 %v1929, %v1924
        %v2350 = vpack.c.b16 %v1935, %v1930
        %v2351 = vpack.c.b16 %v1936, %v1931
        %v2352 = vpack.c.b16 %v1937, %v1932
        %v2353 = vpack.c.b16 %v1938, %v1933
        %v2354 = vpack.c.b16 %v1939, %v1934
        %v2355 = vpack.c.b16 %v1945, %v1940
        %v2356 = vpack.c.b16 %v1946, %v1941
        %v2357 = vpack.c.b16 %v1947, %v1942
        %v2358 = vpack.c.b16 %v1948, %v1943
        %v2359 = vpack.c.b16 %v1949, %v1944
        %v2360 = vpack.c.b16 %v1955, %v1950
        %v2361 = vpack.c.b16 %v1956, %v1951
        %v2362 = vpack.c.b16 %v1957, %v1952
        %v2363 = vpack.c.b16 %v1958, %v1953
        %v2364 = vpack.c.b16 %v1959, %v1954
        %v2365 = vpack.c.b16 %v1965, %v1960
        %v2366 = vpack.c.b16 %v1966, %v1961
        %v2367 = vpack.c.b16 %v1967, %v1962
        %v2368 = vpack.c.b16 %v1968, %v1963
        %v2369 = vpack.c.b16 %v1969, %v1964
        %v2370 = vpack.c.b16 %v1975, %v1970
        %v2371 = vpack.c.b16 %v1976, %v1971
        %v2372 = vpack.c.b16 %v1977, %v1972
        %v2373 = vpack.c.b16 %v1978, %v1973
        %v2374 = vpack.c.b16 %v1979, %v1974
        %v2375 = vpack.c.b16 %v1985, %v1980
        %v2376 = vpack.c.b16 %v1986, %v1981
        %v2377 = vpack.c.b16 %v1987, %v1982
        %v2378 = vpack.c.b16 %v1988, %v1983
        %v2379 = vpack.c.b16 %v1989, %v1984
        %v2380 = vpack.c.b16 %v1995, %v1990
        %v2381 = vpack.c.b16 %v1996, %v1991
        %v2382 = vpack.c.b16 %v1997, %v1992
        %v2383 = vpack.c.b16 %v1998, %v1993
        %v2384 = vpack.c.b16 %v1999, %v1994
        %v2385 = vpack.c.b16 %v2005, %v2000
        %v2386 = vpack.c.b16 %v2006, %v2001
        %v2387 = vpack.c.b16 %v2007, %v2002
        %v2388 = vpack.c.b16 %v2008, %v2003
        %v2389 = vpack.c.b16 %v2009, %v2004
        %v2390 = vpack.c.b16 %v2015, %v2010
        %v2391 = vpack.c.b16 %v2016, %v2011
        %v2392 = vpack.c.b16 %v2017, %v2012
        %v2393 = vpack.c.b16 %v2018, %v2013
        %v2394 = vpack.c.b16 %v2019, %v2014
        %v2395 = vpack.c.b16 %v2025, %v2020
        %v2396 = vpack.c.b16 %v2026, %v2021
        %v2397 = vpack.c.b16 %v2027, %v2022
        %v2398 = vpack.c.b16 %v2028, %v2023
        %v2399 = vpack.c.b16 %v2029, %v2024
        %v2400 = vpack.c.b16 %v2035, %v2030
        %v2401 = vpack.c.b16 %v2036, %v2031
        %v2402 = vpack.c.b16 %v2037, %v2032
        %v2403 = vpack.c.b16 %v2038, %v2033
        %v2404 = vpack.c.b16 %v2039, %v2034
        %v2405 = vpack.c.b16 %v2045, %v2040
        %v2406 = vpack.c.b16 %v2046, %v2041
        %v2407 = vpack.c.b16 %v2047, %v2042
        %v2408 = vpack.c.b16 %v2048, %v2043
        %v2409 = vpack.c.b16 %v2049, %v2044
        %v2410 = vpack.c.b16 %v2055, %v2050
        %v2411 = vpack.c.b16 %v2056, %v2051
        %v2412 = vpack.c.b16 %v2057, %v2052
        %v2413 = vpack.c.b16 %v2058, %v2053
        %v2414 = vpack.c.b16 %v2059, %v2054
        %v2415 = vpack.c.b16 %v2065, %v2060
        %v2416 = vpack.c.b16 %v2066, %v2061
        %v2417 = vpack.c.b16 %v2067, %v2062
        %v2418 = vpack.c.b16 %v2068, %v2063
        %v2419 = vpack.c.b16 %v2069, %v2064
        %v2420 = vpack.c.b16 %v2075, %v2070
        %v2421 = vpack.c.b16 %v2076, %v2071
        %v2422 = vpack.c.b16 %v2077, %v2072
        %v2423 = vpack.c.b16 %v2078, %v2073
        %v2424 = vpack.c.b16 %v2079, %v2074
        %v2425 = vpack.c.b16 %v2085, %v2080
        %v2426 = vpack.c.b16 %v2086, %v2081
        %v2427 = vpack.c.b16 %v2087, %v2082
        %v2428 = vpack.c.b16 %v2088, %v2083
        %v2429 = vpack.c.b16 %v2089, %v2084
        %v2430 = vpack.c.b16 %v2095, %v2090
        %v2431 = vpack.c.b16 %v2096, %v2091
        %v2432 = vpack.c.b16 %v2097, %v2092
        %v2433 = vpack.c.b16 %v2098, %v2093
        %v2434 = vpack.c.b16 %v2099, %v2094
        %v2435 = vpack.c.b16 %v2105, %v2100
        %v2436 = vpack.c.b16 %v2106, %v2101
        %v2437 = vpack.c.b16 %v2107, %v2102
        %v2438 = vpack.c.b16 %v2108, %v2103
        %v2439 = vpack.c.b16 %v2109, %v2104
        %v2440 = vpack.c.b16 %v2115, %v2110
        %v2441 = vpack.c.b16 %v2116, %v2111
        %v2442 = vpack.c.b16 %v2117, %v2112
        %v2443 = vpack.c.b16 %v2118, %v2113
        %v2444 = vpack.c.b16 %v2119, %v2114
        %v2445 = vpack.c.b16 %v2125, %v2120
        %v2446 = vpack.c.b16 %v2126, %v2121
        %v2447 = vpack.c.b16 %v2127, %v2122
        %v2448 = vpack.c.b16 %v2128, %v2123
        %v2449 = vpack.c.b16 %v2129, %v2124
        %2770 = vmatprep.subr.bf16.mxu0 %v2131
        %2771 = vmatpush1.bf16.msra.mxu0 %v2130
        %2772 = vmatprep.subr.bf16.mxu0 %v2136
        %2773 = vmatpush1.bf16.msra.mxu0 %v2135
        %2774 = vmatprep.subr.bf16.mxu0 %v2141
        %2775 = vmatpush1.bf16.msra.mxu0 %v2140
        %2776 = vmatprep.subr.bf16.mxu0 %v2146
        %2777 = vmatpush1.bf16.msra.mxu0 %v2145
        %2778 = vmatprep.subr.bf16.mxu0 %v2151
        %2779 = vmatpush1.bf16.msra.mxu0 %v2150
        %2780 = vmatprep.subr.bf16.mxu0 %v2156
        %2781 = vmatpush1.bf16.msra.mxu0 %v2155
        %2782 = vmatprep.subr.bf16.mxu0 %v2161
        %2783 = vmatpush1.bf16.msra.mxu0 %v2160
        %2784 = vmatprep.subr.bf16.mxu0 %v2166
        %2785 = vmatpush1.bf16.msra.mxu0 %v2165
        %2786 = vmatprep.subr.bf16.mxu0 %v2171
        %2787 = vmatpush1.bf16.msra.mxu0 %v2170
        %2788 = vmatprep.subr.bf16.mxu0 %v2176
        %2789 = vmatpush1.bf16.msra.mxu0 %v2175
        %2790 = vmatprep.subr.bf16.mxu0 %v2181
        %2791 = vmatpush1.bf16.msra.mxu0 %v2180
        %2792 = vmatprep.subr.bf16.mxu0 %v2186
        %2793 = vmatpush1.bf16.msra.mxu0 %v2185
        %2794 = vmatprep.subr.bf16.mxu0 %v2191
        %2795 = vmatpush1.bf16.msra.mxu0 %v2190
        %2796 = vmatprep.subr.bf16.mxu0 %v2196
        %2797 = vmatpush1.bf16.msra.mxu0 %v2195
        %2798 = vmatprep.subr.bf16.mxu0 %v2201
        %2799 = vmatpush1.bf16.msra.mxu0 %v2200
        %2800 = vmatprep.subr.bf16.mxu0 %v2206
        %2801 = vmatpush1.bf16.msra.mxu0 %v2205
        %2802 = vmatprep.mubr.bf16.mxu0 %v688
        %2803 = vmatmul.mubr.bf16.gmra.mrb[0].mxu0 %v687
        %v2804 = vpop.f32.mrb[0].mxu0
        %v2805 = vadd.f32 %v1084, %v2804
        %v2806 = vpop.f32.mrb[0].mxu0
        %v2807 = vadd.f32 %v1088, %v2806
        %v2808 = vpop.f32.mrb[0].mxu0
        %v2809 = vpop.f32.mrb[0].mxu0
        %2810 = vdwg.mxu0
        %2811 = vmatprep.subr.bf16.mxu0 %v2211
        %2812 = vmatpush1.bf16.msra.mxu0 %v2210
        %2813 = vmatprep.subr.bf16.mxu0 %v2216
        %2814 = vmatpush1.bf16.msra.mxu0 %v2215
        %2815 = vmatprep.subr.bf16.mxu0 %v2221
        %2816 = vmatpush1.bf16.msra.mxu0 %v2220
        %2817 = vmatprep.subr.bf16.mxu0 %v2226
        %2818 = vmatpush1.bf16.msra.mxu0 %v2225
        %2819 = vmatprep.subr.bf16.mxu0 %v2231
        %2820 = vmatpush1.bf16.msra.mxu0 %v2230
        %2821 = vmatprep.subr.bf16.mxu0 %v2236
        %2822 = vmatpush1.bf16.msra.mxu0 %v2235
        %2823 = vmatprep.subr.bf16.mxu0 %v2241
        %2824 = vmatpush1.bf16.msra.mxu0 %v2240
        %2825 = vmatprep.subr.bf16.mxu0 %v2246
        %2826 = vmatpush1.bf16.msra.mxu0 %v2245
        %2827 = vmatprep.subr.bf16.mxu0 %v2251
        %2828 = vmatpush1.bf16.msra.mxu0 %v2250
        %2829 = vmatprep.subr.bf16.mxu0 %v2256
        %2830 = vmatpush1.bf16.msra.mxu0 %v2255
        %2831 = vmatprep.subr.bf16.mxu0 %v2261
        %2832 = vmatpush1.bf16.msra.mxu0 %v2260
        %2833 = vmatprep.subr.bf16.mxu0 %v2266
        %2834 = vmatpush1.bf16.msra.mxu0 %v2265
        %2835 = vmatprep.subr.bf16.mxu0 %v2271
        %2836 = vmatpush1.bf16.msra.mxu0 %v2270
        %2837 = vmatprep.subr.bf16.mxu0 %v2276
        %2838 = vmatpush1.bf16.msra.mxu0 %v2275
        %2839 = vmatprep.subr.bf16.mxu0 %v2281
        %2840 = vmatpush1.bf16.msra.mxu0 %v2280
        %2841 = vmatprep.subr.bf16.mxu0 %v2286
        %2842 = vmatpush1.bf16.msra.mxu0 %v2285
        %2843 = vmatprep.mubr.bf16.mxu0 %v690
        %2844 = vmatmul.mubr.bf16.gmra.mrb[0].mxu0 %v689
        %v2845 = vpop.f32.mrb[0].mxu0
        %v2846 = vadd.f32 %v2805, %v2845
        %v2847 = vpop.f32.mrb[0].mxu0
        %v2848 = vadd.f32 %v2807, %v2847
        %v2849 = vpop.f32.mrb[0].mxu0
        %v2850 = vpop.f32.mrb[0].mxu0
        %2851 = vdwg.mxu0
        %2852 = vmatprep.subr.bf16.mxu0 %v2291
        %2853 = vmatpush1.bf16.msra.mxu0 %v2290
        %2854 = vmatprep.subr.bf16.mxu0 %v2296
        %2855 = vmatpush1.bf16.msra.mxu0 %v2295
        %2856 = vmatprep.subr.bf16.mxu0 %v2301
        %2857 = vmatpush1.bf16.msra.mxu0 %v2300
        %2858 = vmatprep.subr.bf16.mxu0 %v2306
        %2859 = vmatpush1.bf16.msra.mxu0 %v2305
        %2860 = vmatprep.subr.bf16.mxu0 %v2311
        %2861 = vmatpush1.bf16.msra.mxu0 %v2310
        %2862 = vmatprep.subr.bf16.mxu0 %v2316
        %2863 = vmatpush1.bf16.msra.mxu0 %v2315
        %2864 = vmatprep.subr.bf16.mxu0 %v2321
        %2865 = vmatpush1.bf16.msra.mxu0 %v2320
        %2866 = vmatprep.subr.bf16.mxu0 %v2326
        %2867 = vmatpush1.bf16.msra.mxu0 %v2325
        %2868 = vmatprep.subr.bf16.mxu0 %v2331
        %2869 = vmatpush1.bf16.msra.mxu0 %v2330
        %2870 = vmatprep.subr.bf16.mxu0 %v2336
        %2871 = vmatpush1.bf16.msra.mxu0 %v2335
        %2872 = vmatprep.subr.bf16.mxu0 %v2341
        %2873 = vmatpush1.bf16.msra.mxu0 %v2340
        %2874 = vmatprep.subr.bf16.mxu0 %v2346
        %2875 = vmatpush1.bf16.msra.mxu0 %v2345
        %2876 = vmatprep.subr.bf16.mxu0 %v2351
        %2877 = vmatpush1.bf16.msra.mxu0 %v2350
        %2878 = vmatprep.subr.bf16.mxu0 %v2356
        %2879 = vmatpush1.bf16.msra.mxu0 %v2355
        %2880 = vmatprep.subr.bf16.mxu0 %v2361
        %2881 = vmatpush1.bf16.msra.mxu0 %v2360
        %2882 = vmatprep.subr.bf16.mxu0 %v2366
        %2883 = vmatpush1.bf16.msra.mxu0 %v2365
        %2884 = vmatprep.mubr.bf16.mxu0 %v692
        %2885 = vmatmul.mubr.bf16.gmra.mrb[0].mxu0 %v691
        %v2886 = vpop.f32.mrb[0].mxu0
        %v2887 = vadd.f32 %v2846, %v2886
        %v2888 = vpop.f32.mrb[0].mxu0
        %v2889 = vadd.f32 %v2848, %v2888
        %v2890 = vpop.f32.mrb[0].mxu0
        %v2891 = vpop.f32.mrb[0].mxu0
        %2892 = vdwg.mxu0
        %2893 = vmatprep.subr.bf16.mxu0 %v2371
        %2894 = vmatpush1.bf16.msra.mxu0 %v2370
        %2895 = vmatprep.subr.bf16.mxu0 %v2376
        %2896 = vmatpush1.bf16.msra.mxu0 %v2375
        %2897 = vmatprep.subr.bf16.mxu0 %v2381
        %2898 = vmatpush1.bf16.msra.mxu0 %v2380
        %2899 = vmatprep.subr.bf16.mxu0 %v2386
        %2900 = vmatpush1.bf16.msra.mxu0 %v2385
        %2901 = vmatprep.subr.bf16.mxu0 %v2391
        %2902 = vmatpush1.bf16.msra.mxu0 %v2390
        %2903 = vmatprep.subr.bf16.mxu0 %v2396
        %2904 = vmatpush1.bf16.msra.mxu0 %v2395
        %2905 = vmatprep.subr.bf16.mxu0 %v2401
        %2906 = vmatpush1.bf16.msra.mxu0 %v2400
        %2907 = vmatprep.subr.bf16.mxu0 %v2406
        %2908 = vmatpush1.bf16.msra.mxu0 %v2405
        %2909 = vmatprep.subr.bf16.mxu0 %v2411
        %2910 = vmatpush1.bf16.msra.mxu0 %v2410
        %2911 = vmatprep.subr.bf16.mxu0 %v2416
        %2912 = vmatpush1.bf16.msra.mxu0 %v2415
        %2913 = vmatprep.subr.bf16.mxu0 %v2421
        %2914 = vmatpush1.bf16.msra.mxu0 %v2420
        %2915 = vmatprep.subr.bf16.mxu0 %v2426
        %2916 = vmatpush1.bf16.msra.mxu0 %v2425
        %2917 = vmatprep.subr.bf16.mxu0 %v2431
        %2918 = vmatpush1.bf16.msra.mxu0 %v2430
        %2919 = vmatprep.subr.bf16.mxu0 %v2436
        %2920 = vmatpush1.bf16.msra.mxu0 %v2435
        %2921 = vmatprep.subr.bf16.mxu0 %v2441
        %2922 = vmatpush1.bf16.msra.mxu0 %v2440
        %2923 = vmatprep.subr.bf16.mxu0 %v2446
        %2924 = vmatpush1.bf16.msra.mxu0 %v2445
        %2925 = vmatprep.mubr.bf16.mxu0 %v694
        %2926 = vmatmul.mubr.bf16.gmra.mrb[0].mxu0 %v693
        %v2927 = vpop.f32.mrb[0].mxu0
        %v2928 = vadd.f32 %v2887, %v2927
        %v2929 = vpop.f32.mrb[0].mxu0
        %v2930 = vadd.f32 %v2889, %v2929
        %v2931 = vpop.f32.mrb[0].mxu0
        %v2932 = vpop.f32.mrb[0].mxu0
        %2933 = vdwg.mxu0
        %2934 = vmatprep.subr.bf16.mxu0 %v2133
        %2935 = vmatpush1.bf16.msra.mxu0 %v2132
        %2936 = vmatprep.subr.bf16.mxu0 %v2138
        %2937 = vmatpush1.bf16.msra.mxu0 %v2137
        %2938 = vmatprep.subr.bf16.mxu0 %v2143
        %2939 = vmatpush1.bf16.msra.mxu0 %v2142
        %2940 = vmatprep.subr.bf16.mxu0 %v2148
        %2941 = vmatpush1.bf16.msra.mxu0 %v2147
        %2942 = vmatprep.subr.bf16.mxu0 %v2153
        %2943 = vmatpush1.bf16.msra.mxu0 %v2152
        %2944 = vmatprep.subr.bf16.mxu0 %v2158
        %2945 = vmatpush1.bf16.msra.mxu0 %v2157
        %2946 = vmatprep.subr.bf16.mxu0 %v2163
        %2947 = vmatpush1.bf16.msra.mxu0 %v2162
        %2948 = vmatprep.subr.bf16.mxu0 %v2168
        %2949 = vmatpush1.bf16.msra.mxu0 %v2167
        %2950 = vmatprep.subr.bf16.mxu0 %v2173
        %2951 = vmatpush1.bf16.msra.mxu0 %v2172
        %2952 = vmatprep.subr.bf16.mxu0 %v2178
        %2953 = vmatpush1.bf16.msra.mxu0 %v2177
        %2954 = vmatprep.subr.bf16.mxu0 %v2183
        %2955 = vmatpush1.bf16.msra.mxu0 %v2182
        %2956 = vmatprep.subr.bf16.mxu0 %v2188
        %2957 = vmatpush1.bf16.msra.mxu0 %v2187
        %2958 = vmatprep.subr.bf16.mxu0 %v2193
        %2959 = vmatpush1.bf16.msra.mxu0 %v2192
        %2960 = vmatprep.subr.bf16.mxu0 %v2198
        %2961 = vmatpush1.bf16.msra.mxu0 %v2197
        %2962 = vmatprep.subr.bf16.mxu0 %v2203
        %2963 = vmatpush1.bf16.msra.mxu0 %v2202
        %2964 = vmatprep.subr.bf16.mxu0 %v2208
        %2965 = vmatpush1.bf16.msra.mxu0 %v2207
        %2966 = vmatprep.mubr.bf16.mxu0 %v688
        %2967 = vmatmul.mubr.bf16.gmra.mrb[0].mxu0 %v687
        %v2968 = vpop.f32.mrb[0].mxu0
        %v2969 = vadd.f32 %v1092, %v2968
        %v2970 = vpop.f32.mrb[0].mxu0
        %v2971 = vadd.f32 %v1096, %v2970
        %v2972 = vpop.f32.mrb[0].mxu0
        %v2973 = vpop.f32.mrb[0].mxu0
        %2974 = vdwg.mxu0
        %2975 = vmatprep.subr.bf16.mxu0 %v2213
        %2976 = vmatpush1.bf16.msra.mxu0 %v2212
        %2977 = vmatprep.subr.bf16.mxu0 %v2218
        %2978 = vmatpush1.bf16.msra.mxu0 %v2217
        %2979 = vmatprep.subr.bf16.mxu0 %v2223
        %2980 = vmatpush1.bf16.msra.mxu0 %v2222
        %2981 = vmatprep.subr.bf16.mxu0 %v2228
        %2982 = vmatpush1.bf16.msra.mxu0 %v2227
        %2983 = vmatprep.subr.bf16.mxu0 %v2233
        %2984 = vmatpush1.bf16.msra.mxu0 %v2232
        %2985 = vmatprep.subr.bf16.mxu0 %v2238
        %2986 = vmatpush1.bf16.msra.mxu0 %v2237
        %2987 = vmatprep.subr.bf16.mxu0 %v2243
        %2988 = vmatpush1.bf16.msra.mxu0 %v2242
        %2989 = vmatprep.subr.bf16.mxu0 %v2248
        %2990 = vmatpush1.bf16.msra.mxu0 %v2247
        %2991 = vmatprep.subr.bf16.mxu0 %v2253
        %2992 = vmatpush1.bf16.msra.mxu0 %v2252
        %2993 = vmatprep.subr.bf16.mxu0 %v2258
        %2994 = vmatpush1.bf16.msra.mxu0 %v2257
        %2995 = vmatprep.subr.bf16.mxu0 %v2263
        %2996 = vmatpush1.bf16.msra.mxu0 %v2262
        %2997 = vmatprep.subr.bf16.mxu0 %v2268
        %2998 = vmatpush1.bf16.msra.mxu0 %v2267
        %2999 = vmatprep.subr.bf16.mxu0 %v2273
        %3000 = vmatpush1.bf16.msra.mxu0 %v2272
        %3001 = vmatprep.subr.bf16.mxu0 %v2278
        %3002 = vmatpush1.bf16.msra.mxu0 %v2277
        %3003 = vmatprep.subr.bf16.mxu0 %v2283
        %3004 = vmatpush1.bf16.msra.mxu0 %v2282
        %3005 = vmatprep.subr.bf16.mxu0 %v2288
        %3006 = vmatpush1.bf16.msra.mxu0 %v2287
        %3007 = vmatprep.mubr.bf16.mxu0 %v690
        %3008 = vmatmul.mubr.bf16.gmra.mrb[0].mxu0 %v689
        %v3009 = vpop.f32.mrb[0].mxu0
        %v3010 = vadd.f32 %v2969, %v3009
        %v3011 = vpop.f32.mrb[0].mxu0
        %v3012 = vadd.f32 %v2971, %v3011
        %v3013 = vpop.f32.mrb[0].mxu0
        %v3014 = vpop.f32.mrb[0].mxu0
        %3015 = vdwg.mxu0
        %3016 = vmatprep.subr.bf16.mxu0 %v2293
        %3017 = vmatpush1.bf16.msra.mxu0 %v2292
        %3018 = vmatprep.subr.bf16.mxu0 %v2298
        %3019 = vmatpush1.bf16.msra.mxu0 %v2297
        %3020 = vmatprep.subr.bf16.mxu0 %v2303
        %3021 = vmatpush1.bf16.msra.mxu0 %v2302
        %3022 = vmatprep.subr.bf16.mxu0 %v2308
        %3023 = vmatpush1.bf16.msra.mxu0 %v2307
        %3024 = vmatprep.subr.bf16.mxu0 %v2313
        %3025 = vmatpush1.bf16.msra.mxu0 %v2312
        %3026 = vmatprep.subr.bf16.mxu0 %v2318
        %3027 = vmatpush1.bf16.msra.mxu0 %v2317
        %3028 = vmatprep.subr.bf16.mxu0 %v2323
        %3029 = vmatpush1.bf16.msra.mxu0 %v2322
        %3030 = vmatprep.subr.bf16.mxu0 %v2328
        %3031 = vmatpush1.bf16.msra.mxu0 %v2327
        %3032 = vmatprep.subr.bf16.mxu0 %v2333
        %3033 = vmatpush1.bf16.msra.mxu0 %v2332
        %3034 = vmatprep.subr.bf16.mxu0 %v2338
        %3035 = vmatpush1.bf16.msra.mxu0 %v2337
        %3036 = vmatprep.subr.bf16.mxu0 %v2343
        %3037 = vmatpush1.bf16.msra.mxu0 %v2342
        %3038 = vmatprep.subr.bf16.mxu0 %v2348
        %3039 = vmatpush1.bf16.msra.mxu0 %v2347
        %3040 = vmatprep.subr.bf16.mxu0 %v2353
        %3041 = vmatpush1.bf16.msra.mxu0 %v2352
        %3042 = vmatprep.subr.bf16.mxu0 %v2358
        %3043 = vmatpush1.bf16.msra.mxu0 %v2357
        %3044 = vmatprep.subr.bf16.mxu0 %v2363
        %3045 = vmatpush1.bf16.msra.mxu0 %v2362
        %3046 = vmatprep.subr.bf16.mxu0 %v2368
        %3047 = vmatpush1.bf16.msra.mxu0 %v2367
        %3048 = vmatprep.mubr.bf16.mxu0 %v692
        %3049 = vmatmul.mubr.bf16.gmra.mrb[0].mxu0 %v691
        %v3050 = vpop.f32.mrb[0].mxu0
        %v3051 = vadd.f32 %v3010, %v3050
        %v3052 = vpop.f32.mrb[0].mxu0
        %v3053 = vadd.f32 %v3012, %v3052
        %v3054 = vpop.f32.mrb[0].mxu0
        %v3055 = vpop.f32.mrb[0].mxu0
        %3056 = vdwg.mxu0
        %3057 = vmatprep.subr.bf16.mxu0 %v2373
        %3058 = vmatpush1.bf16.msra.mxu0 %v2372
        %3059 = vmatprep.subr.bf16.mxu0 %v2378
        %3060 = vmatpush1.bf16.msra.mxu0 %v2377
        %3061 = vmatprep.subr.bf16.mxu0 %v2383
        %3062 = vmatpush1.bf16.msra.mxu0 %v2382
        %3063 = vmatprep.subr.bf16.mxu0 %v2388
        %3064 = vmatpush1.bf16.msra.mxu0 %v2387
        %3065 = vmatprep.subr.bf16.mxu0 %v2393
        %3066 = vmatpush1.bf16.msra.mxu0 %v2392
        %3067 = vmatprep.subr.bf16.mxu0 %v2398
        %3068 = vmatpush1.bf16.msra.mxu0 %v2397
        %3069 = vmatprep.subr.bf16.mxu0 %v2403
        %3070 = vmatpush1.bf16.msra.mxu0 %v2402
        %3071 = vmatprep.subr.bf16.mxu0 %v2408
        %3072 = vmatpush1.bf16.msra.mxu0 %v2407
        %3073 = vmatprep.subr.bf16.mxu0 %v2413
        %3074 = vmatpush1.bf16.msra.mxu0 %v2412
        %3075 = vmatprep.subr.bf16.mxu0 %v2418
        %3076 = vmatpush1.bf16.msra.mxu0 %v2417
        %3077 = vmatprep.subr.bf16.mxu0 %v2423
        %3078 = vmatpush1.bf16.msra.mxu0 %v2422
        %3079 = vmatprep.subr.bf16.mxu0 %v2428
        %3080 = vmatpush1.bf16.msra.mxu0 %v2427
        %3081 = vmatprep.subr.bf16.mxu0 %v2433
        %3082 = vmatpush1.bf16.msra.mxu0 %v2432
        %3083 = vmatprep.subr.bf16.mxu0 %v2438
        %3084 = vmatpush1.bf16.msra.mxu0 %v2437
        %3085 = vmatprep.subr.bf16.mxu0 %v2443
        %3086 = vmatpush1.bf16.msra.mxu0 %v2442
        %3087 = vmatprep.subr.bf16.mxu0 %v2448
        %3088 = vmatpush1.bf16.msra.mxu0 %v2447
        %3089 = vmatprep.mubr.bf16.mxu0 %v694
        %3090 = vmatmul.mubr.bf16.gmra.mrb[0].mxu0 %v693
        %v3091 = vpop.f32.mrb[0].mxu0
        %v3092 = vadd.f32 %v3051, %v3091
        %v3093 = vpop.f32.mrb[0].mxu0
        %v3094 = vadd.f32 %v3053, %v3093
        %v3095 = vpop.f32.mrb[0].mxu0
        %v3096 = vpop.f32.mrb[0].mxu0
        %3097 = vdwg.mxu0
        %3098 = vmatprep.subr.bf16.mxu0 0
        %3099 = vmatpush1.bf16.msra.mxu0 %v2134
        %3100 = vmatprep.subr.bf16.mxu0 0
        %3101 = vmatpush1.bf16.msra.mxu0 %v2139
        %3102 = vmatprep.subr.bf16.mxu0 0
        %3103 = vmatpush1.bf16.msra.mxu0 %v2144
        %3104 = vmatprep.subr.bf16.mxu0 0
        %3105 = vmatpush1.bf16.msra.mxu0 %v2149
        %3106 = vmatprep.subr.bf16.mxu0 0
        %3107 = vmatpush1.bf16.msra.mxu0 %v2154
        %3108 = vmatprep.subr.bf16.mxu0 0
        %3109 = vmatpush1.bf16.msra.mxu0 %v2159
        %3110 = vmatprep.subr.bf16.mxu0 0
        %3111 = vmatpush1.bf16.msra.mxu0 %v2164
        %3112 = vmatprep.subr.bf16.mxu0 0
        %3113 = vmatpush1.bf16.msra.mxu0 %v2169
        %3114 = vmatprep.subr.bf16.mxu0 0
        %3115 = vmatpush1.bf16.msra.mxu0 %v2174
        %3116 = vmatprep.subr.bf16.mxu0 0
        %3117 = vmatpush1.bf16.msra.mxu0 %v2179
        %3118 = vmatprep.subr.bf16.mxu0 0
        %3119 = vmatpush1.bf16.msra.mxu0 %v2184
        %3120 = vmatprep.subr.bf16.mxu0 0
        %3121 = vmatpush1.bf16.msra.mxu0 %v2189
        %3122 = vmatprep.subr.bf16.mxu0 0
        %3123 = vmatpush1.bf16.msra.mxu0 %v2194
        %3124 = vmatprep.subr.bf16.mxu0 0
        %3125 = vmatpush1.bf16.msra.mxu0 %v2199
        %3126 = vmatprep.subr.bf16.mxu0 0
        %3127 = vmatpush1.bf16.msra.mxu0 %v2204
        %3128 = vmatprep.subr.bf16.mxu0 0
        %3129 = vmatpush1.bf16.msra.mxu0 %v2209
        %3130 = vmatprep.mubr.bf16.mxu0 %v688
        %3131 = vmatmul.mubr.bf16.gmra.mrb[0].mxu0 %v687
        %v3132 = vpop.f32.mrb[0].mxu0
        %v3133 = vadd.f32 %v1100, %v3132
        %v3134 = vpop.f32.mrb[0].mxu0
        %v3135 = vpop.f32.mrb[0].mxu0
        %v3136 = vpop.f32.mrb[0].mxu0
        %3137 = vdwg.mxu0
        %3138 = vmatprep.subr.bf16.mxu0 0
        %3139 = vmatpush1.bf16.msra.mxu0 %v2214
        %3140 = vmatprep.subr.bf16.mxu0 0
        %3141 = vmatpush1.bf16.msra.mxu0 %v2219
        %3142 = vmatprep.subr.bf16.mxu0 0
        %3143 = vmatpush1.bf16.msra.mxu0 %v2224
        %3144 = vmatprep.subr.bf16.mxu0 0
        %3145 = vmatpush1.bf16.msra.mxu0 %v2229
        %3146 = vmatprep.subr.bf16.mxu0 0
        %3147 = vmatpush1.bf16.msra.mxu0 %v2234
        %3148 = vmatprep.subr.bf16.mxu0 0
        %3149 = vmatpush1.bf16.msra.mxu0 %v2239
        %3150 = vmatprep.subr.bf16.mxu0 0
        %3151 = vmatpush1.bf16.msra.mxu0 %v2244
        %3152 = vmatprep.subr.bf16.mxu0 0
        %3153 = vmatpush1.bf16.msra.mxu0 %v2249
        %3154 = vmatprep.subr.bf16.mxu0 0
        %3155 = vmatpush1.bf16.msra.mxu0 %v2254
        %3156 = vmatprep.subr.bf16.mxu0 0
        %3157 = vmatpush1.bf16.msra.mxu0 %v2259
        %3158 = vmatprep.subr.bf16.mxu0 0
        %3159 = vmatpush1.bf16.msra.mxu0 %v2264
        %3160 = vmatprep.subr.bf16.mxu0 0
        %3161 = vmatpush1.bf16.msra.mxu0 %v2269
        %3162 = vmatprep.subr.bf16.mxu0 0
        %3163 = vmatpush1.bf16.msra.mxu0 %v2274
        %3164 = vmatprep.subr.bf16.mxu0 0
        %3165 = vmatpush1.bf16.msra.mxu0 %v2279
        %3166 = vmatprep.subr.bf16.mxu0 0
        %3167 = vmatpush1.bf16.msra.mxu0 %v2284
        %3168 = vmatprep.subr.bf16.mxu0 0
        %3169 = vmatpush1.bf16.msra.mxu0 %v2289
        %3170 = vmatprep.mubr.bf16.mxu0 %v690
        %3171 = vmatmul.mubr.bf16.gmra.mrb[0].mxu0 %v689
        %v3172 = vpop.f32.mrb[0].mxu0
        %v3173 = vadd.f32 %v3133, %v3172
        %v3174 = vpop.f32.mrb[0].mxu0
        %v3175 = vpop.f32.mrb[0].mxu0
        %v3176 = vpop.f32.mrb[0].mxu0
        %3177 = vdwg.mxu0
        %3178 = vmatprep.subr.bf16.mxu0 0
        %3179 = vmatpush1.bf16.msra.mxu0 %v2294
        %3180 = vmatprep.subr.bf16.mxu0 0
        %3181 = vmatpush1.bf16.msra.mxu0 %v2299
        %3182 = vmatprep.subr.bf16.mxu0 0
        %3183 = vmatpush1.bf16.msra.mxu0 %v2304
        %3184 = vmatprep.subr.bf16.mxu0 0
        %3185 = vmatpush1.bf16.msra.mxu0 %v2309
        %3186 = vmatprep.subr.bf16.mxu0 0
        %3187 = vmatpush1.bf16.msra.mxu0 %v2314
        %3188 = vmatprep.subr.bf16.mxu0 0
        %3189 = vmatpush1.bf16.msra.mxu0 %v2319
        %3190 = vmatprep.subr.bf16.mxu0 0
        %3191 = vmatpush1.bf16.msra.mxu0 %v2324
        %3192 = vmatprep.subr.bf16.mxu0 0
        %3193 = vmatpush1.bf16.msra.mxu0 %v2329
        %3194 = vmatprep.subr.bf16.mxu0 0
        %3195 = vmatpush1.bf16.msra.mxu0 %v2334
        %3196 = vmatprep.subr.bf16.mxu0 0
        %3197 = vmatpush1.bf16.msra.mxu0 %v2339
        %3198 = vmatprep.subr.bf16.mxu0 0
        %3199 = vmatpush1.bf16.msra.mxu0 %v2344
        %3200 = vmatprep.subr.bf16.mxu0 0
        %3201 = vmatpush1.bf16.msra.mxu0 %v2349
        %3202 = vmatprep.subr.bf16.mxu0 0
        %3203 = vmatpush1.bf16.msra.mxu0 %v2354
        %3204 = vmatprep.subr.bf16.mxu0 0
        %3205 = vmatpush1.bf16.msra.mxu0 %v2359
        %3206 = vmatprep.subr.bf16.mxu0 0
        %3207 = vmatpush1.bf16.msra.mxu0 %v2364
        %3208 = vmatprep.subr.bf16.mxu0 0
        %3209 = vmatpush1.bf16.msra.mxu0 %v2369
        %3210 = vmatprep.mubr.bf16.mxu0 %v692
        %3211 = vmatmul.mubr.bf16.gmra.mrb[0].mxu0 %v691
        %v3212 = vpop.f32.mrb[0].mxu0
        %v3213 = vadd.f32 %v3173, %v3212
        %v3214 = vpop.f32.mrb[0].mxu0
        %v3215 = vpop.f32.mrb[0].mxu0
        %v3216 = vpop.f32.mrb[0].mxu0
        %3217 = vdwg.mxu0
        %3218 = vmatprep.subr.bf16.mxu0 0
        %3219 = vmatpush1.bf16.msra.mxu0 %v2374
        %3220 = vmatprep.subr.bf16.mxu0 0
        %3221 = vmatpush1.bf16.msra.mxu0 %v2379
        %3222 = vmatprep.subr.bf16.mxu0 0
        %3223 = vmatpush1.bf16.msra.mxu0 %v2384
        %3224 = vmatprep.subr.bf16.mxu0 0
        %3225 = vmatpush1.bf16.msra.mxu0 %v2389
        %3226 = vmatprep.subr.bf16.mxu0 0
        %3227 = vmatpush1.bf16.msra.mxu0 %v2394
        %3228 = vmatprep.subr.bf16.mxu0 0
        %3229 = vmatpush1.bf16.msra.mxu0 %v2399
        %3230 = vmatprep.subr.bf16.mxu0 0
        %3231 = vmatpush1.bf16.msra.mxu0 %v2404
        %3232 = vmatprep.subr.bf16.mxu0 0
        %3233 = vmatpush1.bf16.msra.mxu0 %v2409
        %3234 = vmatprep.subr.bf16.mxu0 0
        %3235 = vmatpush1.bf16.msra.mxu0 %v2414
        %3236 = vmatprep.subr.bf16.mxu0 0
        %3237 = vmatpush1.bf16.msra.mxu0 %v2419
        %3238 = vmatprep.subr.bf16.mxu0 0
        %3239 = vmatpush1.bf16.msra.mxu0 %v2424
        %3240 = vmatprep.subr.bf16.mxu0 0
        %3241 = vmatpush1.bf16.msra.mxu0 %v2429
        %3242 = vmatprep.subr.bf16.mxu0 0
        %3243 = vmatpush1.bf16.msra.mxu0 %v2434
        %3244 = vmatprep.subr.bf16.mxu0 0
        %3245 = vmatpush1.bf16.msra.mxu0 %v2439
        %3246 = vmatprep.subr.bf16.mxu0 0
        %3247 = vmatpush1.bf16.msra.mxu0 %v2444
        %3248 = vmatprep.subr.bf16.mxu0 0
        %3249 = vmatpush1.bf16.msra.mxu0 %v2449
        %3250 = vmatprep.mubr.bf16.mxu0 %v694
        %3251 = vmatmul.mubr.bf16.gmra.mrb[0].mxu0 %v693
        %v3252 = vpop.f32.mrb[0].mxu0
        %v3253 = vadd.f32 %v3213, %v3252
        %v3254 = vpop.f32.mrb[0].mxu0
        %v3255 = vpop.f32.mrb[0].mxu0
        %v3256 = vpop.f32.mrb[0].mxu0
        %3257 = vdwg.mxu0
        %v3258 = vmax.f32 %v2928, 0.0
        %v3259 = vmax.f32 %v2930, 0.0
        %v3260 = vmax.f32 %v3092, 0.0
        %v3261 = vmax.f32 %v3094, 0.0
        %v3262 = vmax.f32 %v3253, 0.0
        %v3268 = vcombine.low %v3258, %v3259
        %v3269 = vcombine.low %v3260, %v3261
        %v3271 = vunpack.c.l.s4 1983009808
        %v3272 = vunpack.c.0.s8 %v3271
        %v3273 = vlaneseq
        %v3274 = vshrl.u32 %v3273, 7
        %v3275 = vsub.s32 %v3272, %v3274
        %v3276 = vrot.slane %v3268, %v3275
        %v3278 = vunpack.c.l.s4 1983009808
        %v3279 = vunpack.c.0.s8 %v3278
        %v3280 = vlaneseq
        %v3281 = vshrl.u32 %v3280, 7
        %v3282 = vsub.s32 %v3279, %v3281
        %v3283 = vrot.slane %v3269, %v3282
        %v3284 = vcombine.low %v3276, %v3283
        %v3286 = vunpack.c.l.s4 1983009808
        %v3287 = vunpack.c.0.s8 %v3286
        %v3288 = vlaneseq
        %v3289 = vshrl.u32 %v3288, 7
        %v3290 = vsub.s32 %v3287, %v3289
        %v3291 = vrot.slane %v3262, %v3290
        %3294 = vst [vmem:[%s321] sm:$0xff] %v3284
        %3295 = vst [vmem:[%s321 + $0x8] sm:$0x3] %v3291
        %s3296 = smul.u32 5, %s21
        %p3297 = scmp.lt.s32.totalorder %s3296, 24
        %s3298 = scalar_select %p3297, %s3296, 24
        %s3299 = smul.addr %s3298, 2
        %s3300 = scalar_lea.vmem %s5, %s3299
        // Predicated region
        $region61: #{decoder_forward.4} parent=39 // pred_check
          %p3301 = pneg %p154
        $region62: #{decoder_forward.4} parent=39 // pred_check_branch
          %3303 = sbr.rel (%p3301) target = $region64
        $region63: #{decoder_forward.4} parent=39 // pred_region
          %s3304 = smul.u32 5, %s21
        $region64: #{decoder_forward.4} parent=39 // pred_fallthru
          _
      $region40: #{decoder_forward.4} parent=5 // pred_fallthru
        _
      %p3305 = scmp.le.s32.totalorder 2, %s16
      // Predicated region
      $region65: #{decoder_forward.4} parent=5 // pred_check
        %p3306 = pneg %p3305
      $region66: #{decoder_forward.4} parent=5 // pred_check_branch
        %3308 = sbr.rel (%p3306) target = $region68
      $region67: #{decoder_forward.4} parent=5 // pred_region
        %s3309 = ssub.s32 %s16, 2
        // Predicated region
        $region69: #{decoder_forward.4} parent=67 // pred_check
          %p3310 = pneg %p160
        $region70: #{decoder_forward.4} parent=67 // pred_check_branch
          %3312 = sbr.rel (%p3310) target = $region72
        $region71: #{decoder_forward.4} parent=67 // pred_region
          %s3313 = smul.u32 5, %s22
          %p3314 = scmp.lt.s32.totalorder %s3313, 24
          %s3315 = scalar_select %p3314, %s3313, 24
          %s3316 = smul.addr %s3315, 2
          %s3317 = scalar_lea.vmem %s5, %s3316
        $region72: #{decoder_forward.4} parent=67 // pred_fallthru
          _
      $region68: #{decoder_forward.4} parent=5 // pred_fallthru
        _
    $region6: #{decoder_forward.4} parent=1 // loop_footer
      %s20 = sadd.s32 1, %s16
    $region7: #{decoder_forward.4} parent=1 // loop_footer_branch
      %15 = sbr.rel target = $region3
    $region8: #{decoder_forward.4} parent=1 // loop_exit
      _
    %3318 = vsyncpa [#allocation3], 1
    %s3319 = scalar_lea.sflag [#allocation3], 1
    %3320 = vsyncpa %s3319, 1
    %3321 = vsyncpa [#allocation5], 1
    %3322 = vsyncpa [#allocation8], 1
    %s3323 = scalar_lea.sflag [#allocation8], 1
    %3324 = vsyncpa %s3323, 1

// kernel: decoder_forward.6
$region0: #{decoder_forward.6}
  #allocation0 [shape = 'u32[]', space=smem, size = 0x4, offset = 0x4, fixed_abs, tag = 'smem constant byte address 0x4 - core index']
  #allocation1 [shape = 'u32[144,128]{1,0:T(1,128)}', space=vmem, size = 0x12000, scoped, tag = 'internal scratch']
  %s0 = inlined_call_operand.vmem [shape: f32[2,289,64], index: 0, kind: input, shape index: {}]
  %s1 = inlined_call_operand.vmem [shape: bf16[9,64,128], index: 1, kind: input, shape index: {}]
  %s2 = inlined_call_operand.vmem [shape: f32[1,128], index: 2, kind: input, shape index: {}]
  %s3 = inlined_call_operand.vmem [shape: f32[2,253,128], index: 3, kind: output, shape index: {}]
  %s4 = sld [smem:[#allocation0]]
  $region45: #{decoder_forward.6} parent=0
    _
  %s6 = ssub.s32 1, %s4
  %s7 = scalar_select 0, %s6, %s4
  loop: start=0, step=1, limit=4
  $region2: #{decoder_forward.6} parent=0 // loop_pre_header
    _
  $region3: #{decoder_forward.6} parent=0 // loop_header
    %s9 = sphi 0, %s13
    %p10 = scmp.ge.s32.totalorder %s9, 4
    %s19 = sphi 0, %s21
    %s22 = sphi 0, %s19
    %s23 = sphi 0, %s22
    %s39 = sphi 0, %s23
    %s43 = sphi 0, %s43
    %s45 = sphi 0, %s43
    %s46 = sphi 0, %s45
    %s60 = sphi 0, %s46
    %s64 = sphi 0, %s64
    %s66 = sphi 0, %s64
    %s67 = sphi 0, %s66
    %s81 = sphi 0, %s67
    %s87 = sphi 0, %s89
    %s90 = sphi 0, %s87
    %s91 = sphi 0, %s90
    %s107 = sphi 0, %s91
  $region4: #{decoder_forward.6} parent=0 // loop_header_branch
    %12 = sbr.rel (%p10) target = $region8
  $region5: #{decoder_forward.6} parent=0 // loop_body
    %s14 = ssub.s32 %s9, 1
    %s15 = ssub.s32 %s9, 2
    %s16 = sadd.s32 %s9, 1
    %s17 = ssub.s32 %s9, %s16
    %p18 = scmp.eq.s32.totalorder %s17, 0
    %s20 = sadd.s32 %s19, 1
    %s21 = scalar_select %p18, %s19, %s20
    %p24 = pneg %p18
    %p25 = scmp.eq.s32.totalorder %s9, 1
    %p26 = por %p24, %p25
    %p27 = scmp.ne.s32.totalorder %s19, %s22
    %p28 = scmp.eq.s32.totalorder %s9, 0
    %p29 = por %p27, %p28
    %p30 = scmp.ne.s32.totalorder %s19, %s22
    %p31 = scmp.eq.s32.totalorder %s14, 1
    %p32 = por %p30, %p31
    %p33 = scmp.ne.s32.totalorder %s22, %s23
    %p34 = scmp.eq.s32.totalorder %s14, 0
    %p35 = por %p33, %p34
    %p36 = scmp.ne.s32.totalorder %s22, %s23
    %p37 = scmp.eq.s32.totalorder %s15, 1
    %p38 = por %p36, %p37
    %p40 = scmp.ne.s32.totalorder %s23, %s39
    %p41 = scmp.eq.s32.totalorder %s15, 0
    %p42 = por %p40, %p41
    %s44 = sadd.s32 %s43, 1
    %p47 = scmp.eq.s32.totalorder %s9, 1
    %p48 = scmp.ne.s32.totalorder %s43, %s45
    %p49 = scmp.eq.s32.totalorder %s9, 0
    %p50 = por %p48, %p49
    %p51 = scmp.ne.s32.totalorder %s43, %s45
    %p52 = scmp.eq.s32.totalorder %s14, 1
    %p53 = por %p51, %p52
    %p54 = scmp.ne.s32.totalorder %s45, %s46
    %p55 = scmp.eq.s32.totalorder %s14, 0
    %p56 = por %p54, %p55
    %p57 = scmp.ne.s32.totalorder %s45, %s46
    %p58 = scmp.eq.s32.totalorder %s15, 1
    %p59 = por %p57, %p58
    %p61 = scmp.ne.s32.totalorder %s46, %s60
    %p62 = scmp.eq.s32.totalorder %s15, 0
    %p63 = por %p61, %p62
    %s65 = sadd.s32 %s64, 1
    %p68 = scmp.eq.s32.totalorder %s9, 1
    %p69 = scmp.ne.s32.totalorder %s64, %s66
    %p70 = scmp.eq.s32.totalorder %s9, 0
    %p71 = por %p69, %p70
    %p72 = scmp.ne.s32.totalorder %s64, %s66
    %p73 = scmp.eq.s32.totalorder %s14, 1
    %p74 = por %p72, %p73
    %p75 = scmp.ne.s32.totalorder %s66, %s67
    %p76 = scmp.eq.s32.totalorder %s14, 0
    %p77 = por %p75, %p76
    %p78 = scmp.ne.s32.totalorder %s66, %s67
    %p79 = scmp.eq.s32.totalorder %s15, 1
    %p80 = por %p78, %p79
    %p82 = scmp.ne.s32.totalorder %s67, %s81
    %p83 = scmp.eq.s32.totalorder %s15, 0
    %p84 = por %p82, %p83
    %s85 = ssub.s32 %s9, %s16
    %p86 = scmp.eq.s32.totalorder %s85, 0
    %s88 = sadd.s32 %s87, 1
    %s89 = scalar_select %p86, %s87, %s88
    %p92 = pneg %p86
    %p93 = scmp.eq.s32.totalorder %s9, 1
    %p94 = por %p92, %p93
    %p95 = scmp.ne.s32.totalorder %s87, %s90
    %p96 = scmp.eq.s32.totalorder %s9, 0
    %p97 = por %p95, %p96
    %p98 = scmp.ne.s32.totalorder %s87, %s90
    %p99 = scmp.eq.s32.totalorder %s14, 1
    %p100 = por %p98, %p99
    %p101 = scmp.ne.s32.totalorder %s90, %s91
    %p102 = scmp.eq.s32.totalorder %s14, 0
    %p103 = por %p101, %p102
    %p104 = scmp.ne.s32.totalorder %s90, %s91
    %p105 = scmp.eq.s32.totalorder %s15, 1
    %p106 = por %p104, %p105
    %p108 = scmp.ne.s32.totalorder %s91, %s107
    %p109 = scmp.eq.s32.totalorder %s15, 0
    %p110 = por %p108, %p109
    %p111 = scmp.le.s32.totalorder 1, %s9
    %p112 = scmp.lt.s32.totalorder %s9, 3
    %p113 = pnand %p111, %p112
    %p114 = pneg %p113
    // Predicated region
    $region9: #{decoder_forward.6} parent=5 // pred_check
      _
    $region10: #{decoder_forward.6} parent=5 // pred_check_branch
      %116 = sbr.rel (%p113) target = $region12
    $region11: #{decoder_forward.6} parent=5 // pred_region
      %s117 = ssub.s32 %s9, 1
      // Predicated region
      $region13: #{decoder_forward.6} parent=11 // pred_check
        %p118 = pneg %p56
      $region14: #{decoder_forward.6} parent=11 // pred_check_branch
        %120 = sbr.rel (%p118) target = $region16
      $region15: #{decoder_forward.6} parent=11 // pred_region
        _
      $region16: #{decoder_forward.6} parent=11 // pred_fallthru
        _
      // Predicated region
      $region17: #{decoder_forward.6} parent=11 // pred_check
        %p121 = pneg %p77
      $region18: #{decoder_forward.6} parent=11 // pred_check_branch
        %123 = sbr.rel (%p121) target = $region20
      $region19: #{decoder_forward.6} parent=11 // pred_region
        _
      $region20: #{decoder_forward.6} parent=11 // pred_fallthru
        _
    $region12: #{decoder_forward.6} parent=5 // pred_fallthru
      _
    %p124 = scmp.lt.s32.totalorder %s9, 2
    // Predicated region
    $region21: #{decoder_forward.6} parent=5 // pred_check
      %p125 = pneg %p124
    $region22: #{decoder_forward.6} parent=5 // pred_check_branch
      %127 = sbr.rel (%p125) target = $region24
    $region23: #{decoder_forward.6} parent=5 // pred_region
      // Predicated region
      $region25: #{decoder_forward.6} parent=23 // pred_check
        %p128 = pneg %p29
      $region26: #{decoder_forward.6} parent=23 // pred_check_branch
        %130 = sbr.rel (%p128) target = $region28
      $region27: #{decoder_forward.6} parent=23 // pred_region
        %p131 = scmp.lt.s32.totalorder %s9, 1
        %s132 = scalar_select %p131, %s9, 1
        %s133 = smul.addr %s132, 37
        %s134 = smul.addr %s133, 8
        %s135 = scalar_lea.vmem %s0, %s134
      $region28: #{decoder_forward.6} parent=23 // pred_fallthru
        _
    $region24: #{decoder_forward.6} parent=5 // pred_fallthru
      _
    %p136 = scmp.le.s32.totalorder 1, %s9
    %p137 = scmp.lt.s32.totalorder %s9, 3
    %p138 = pnand %p136, %p137
    %p139 = pneg %p138
    // Predicated region
    $region29: #{decoder_forward.6} parent=5 // pred_check
      _
    $region30: #{decoder_forward.6} parent=5 // pred_check_branch
      %141 = sbr.rel (%p138) target = $region32
    $region31: #{decoder_forward.6} parent=5 // pred_region
      %s142 = ssub.s32 %s9, 1
      %p143 = scmp.lt.s32.totalorder %s14, 1
      %s144 = scalar_select %p143, %s14, 1
      %s145 = smul.addr %s144, 37
      %s146 = smul.addr %s145, 8
      %s147 = scalar_lea.vmem %s0, %s146
      %p148 = pneg %p35
      %p149 = pneg %p32
      %p150 = pneg %p56
      %p151 = pneg %p53
      %p152 = pneg %p77
      %p153 = pneg %p74
      %p154 = pneg %p103
      %p155 = pneg %p100
      %p156 = scmp.lt.s32.totalorder %s14, 1
      %s157 = scalar_select %p156, %s14, 1
      %s158 = smul.addr %s157, 32
      %s159 = smul.addr %s158, 8
      %s160 = scalar_lea.vmem %s3, %s159
      %p161 = scmp.lt.s32.totalorder %s14, 1
      %s162 = scalar_select %p161, %s14, 1
      %s163 = smul.addr %s162, 37
      %s164 = smul.addr %s163, 8
      %s165 = scalar_lea.vmem %s0, %s164
      %p166 = scmp.lt.s32.totalorder %s14, 1
      %s167 = scalar_select %p166, %s14, 1
      %s168 = smul.addr %s167, 32
      %s169 = smul.addr %s168, 8
      %s170 = scalar_lea.vmem %s3, %s169
      %v172 = vld [vmem:[%s165] sm:$0xff]
      %v173 = vld [vmem:[%s165 + $0x8] sm:$0xff]
      %v174 = vld [vmem:[%s165 + $0x10] sm:$0xff]
      %v175 = vld [vmem:[%s165 + $0x18] sm:$0xff]
      %v176 = vld [vmem:[%s165 + $0x20] sm:$0xff]
      %v177 = vld [vmem:[%s165 + $0x28] sm:$0xff]
      %v178 = vld [vmem:[%s165 + $0x30] sm:$0xff]
      %v179 = vld [vmem:[%s165 + $0x38] sm:$0xff]
      %v180 = vld [vmem:[%s165 + $0x40] sm:$0xff]
      %v181 = vld [vmem:[%s165 + $0x48] sm:$0xff]
      %v182 = vld [vmem:[%s165 + $0x50] sm:$0xff]
      %v183 = vld [vmem:[%s165 + $0x58] sm:$0xff]
      %v184 = vld [vmem:[%s165 + $0x60] sm:$0xff]
      %v185 = vld [vmem:[%s165 + $0x68] sm:$0xff]
      %v186 = vld [vmem:[%s165 + $0x70] sm:$0xff]
      %v187 = vld [vmem:[%s165 + $0x78] sm:$0xff]
      %v188 = vld [vmem:[%s165 + $0x80] sm:$0xff]
      %v189 = vld [vmem:[%s165 + $0x88] sm:$0xff]
      %v190 = vld [vmem:[%s165 + $0x90] sm:$0xff]
      %v191 = vld [vmem:[%s165 + $0x98] sm:$0xff]
      %v192 = vld [vmem:[%s165 + $0xa0] sm:$0xff]
      %v193 = vld [vmem:[%s165 + $0xa8] sm:$0xff]
      %v194 = vld [vmem:[%s165 + $0xb0] sm:$0xff]
      %v195 = vld [vmem:[%s165 + $0xb8] sm:$0xff]
      %v196 = vld [vmem:[%s165 + $0xc0] sm:$0xff]
      %v197 = vld [vmem:[%s165 + $0xc8] sm:$0xff]
      %v198 = vld [vmem:[%s165 + $0xd0] sm:$0xff]
      %v199 = vld [vmem:[%s165 + $0xd8] sm:$0xff]
      %v200 = vld [vmem:[%s165 + $0xe0] sm:$0xff]
      %v201 = vld [vmem:[%s165 + $0xe8] sm:$0xff]
      %v202 = vld [vmem:[%s165 + $0xf0] sm:$0xff]
      %v203 = vld [vmem:[%s165 + $0xf8] sm:$0x1f]
      %v204 = vpack.c.bf16 %v173, %v172
      %v205 = vpack.c.bf16 %v175, %v174
      %v206 = vpack.c.bf16 %v177, %v176
      %v207 = vpack.c.bf16 %v179, %v178
      %v208 = vpack.c.bf16 %v181, %v180
      %v209 = vpack.c.bf16 %v183, %v182
      %v210 = vpack.c.bf16 %v185, %v184
      %v211 = vpack.c.bf16 %v187, %v186
      %v212 = vpack.c.bf16 %v189, %v188
      %v213 = vpack.c.bf16 %v191, %v190
      %v214 = vpack.c.bf16 %v193, %v192
      %v215 = vpack.c.bf16 %v195, %v194
      %v216 = vpack.c.bf16 %v197, %v196
      %v217 = vpack.c.bf16 %v199, %v198
      %v218 = vpack.c.bf16 %v201, %v200
      %v219 = vpack.c.bf16 %v203, %v202
      %v220 = vld [vmem:[%s1] sm:$0xf]
      %v221 = vld [vmem:[%s1 + $0x4] sm:$0xf]
      %v222 = vld [vmem:[%s1 + $0x8] sm:$0xf]
      %v223 = vld [vmem:[%s1 + $0xc] sm:$0xf]
      %v224 = vld [vmem:[%s1 + $0x10] sm:$0xf]
      %v225 = vld [vmem:[%s1 + $0x14] sm:$0xf]
      %v226 = vld [vmem:[%s1 + $0x18] sm:$0xf]
      %v227 = vld [vmem:[%s1 + $0x1c] sm:$0xf]
      %v228 = vld [vmem:[%s165 + $0x1] sm:$0xff]
      %v229 = vld [vmem:[%s165 + $0x9] sm:$0xff]
      %v230 = vld [vmem:[%s165 + $0x11] sm:$0xff]
      %v231 = vld [vmem:[%s165 + $0x19] sm:$0xff]
      %v232 = vld [vmem:[%s165 + $0x21] sm:$0xff]
      %v233 = vld [vmem:[%s165 + $0x29] sm:$0xff]
      %v234 = vld [vmem:[%s165 + $0x31] sm:$0xff]
      %v235 = vld [vmem:[%s165 + $0x39] sm:$0xff]
      %v236 = vld [vmem:[%s165 + $0x41] sm:$0xff]
      %v237 = vld [vmem:[%s165 + $0x49] sm:$0xff]
      %v238 = vld [vmem:[%s165 + $0x51] sm:$0xff]
      %v239 = vld [vmem:[%s165 + $0x59] sm:$0xff]
      %v240 = vld [vmem:[%s165 + $0x61] sm:$0xff]
      %v241 = vld [vmem:[%s165 + $0x69] sm:$0xff]
      %v242 = vld [vmem:[%s165 + $0x71] sm:$0xff]
      %v243 = vld [vmem:[%s165 + $0x79] sm:$0xff]
      %v244 = vld [vmem:[%s165 + $0x81] sm:$0xff]
      %v245 = vld [vmem:[%s165 + $0x89] sm:$0xff]
      %v246 = vld [vmem:[%s165 + $0x91] sm:$0xff]
      %v247 = vld [vmem:[%s165 + $0x99] sm:$0xff]
      %v248 = vld [vmem:[%s165 + $0xa1] sm:$0xff]
      %v249 = vld [vmem:[%s165 + $0xa9] sm:$0xff]
      %v250 = vld [vmem:[%s165 + $0xb1] sm:$0xff]
      %v251 = vld [vmem:[%s165 + $0xb9] sm:$0xff]
      %v252 = vld [vmem:[%s165 + $0xc1] sm:$0xff]
      %v253 = vld [vmem:[%s165 + $0xc9] sm:$0xff]
      %v254 = vld [vmem:[%s165 + $0xd1] sm:$0xff]
      %v255 = vld [vmem:[%s165 + $0xd9] sm:$0xff]
      %v256 = vld [vmem:[%s165 + $0xe1] sm:$0xff]
      %v257 = vld [vmem:[%s165 + $0xe9] sm:$0xff]
      %v258 = vld [vmem:[%s165 + $0xf1] sm:$0xff]
      %v259 = vld [vmem:[%s165 + $0xf9] sm:$0x1f]
      %v260 = vpack.c.bf16 %v229, %v228
      %v261 = vpack.c.bf16 %v231, %v230
      %v262 = vpack.c.bf16 %v233, %v232
      %v263 = vpack.c.bf16 %v235, %v234
      %v264 = vpack.c.bf16 %v237, %v236
      %v265 = vpack.c.bf16 %v239, %v238
      %v266 = vpack.c.bf16 %v241, %v240
      %v267 = vpack.c.bf16 %v243, %v242
      %v268 = vpack.c.bf16 %v245, %v244
      %v269 = vpack.c.bf16 %v247, %v246
      %v270 = vpack.c.bf16 %v249, %v248
      %v271 = vpack.c.bf16 %v251, %v250
      %v272 = vpack.c.bf16 %v253, %v252
      %v273 = vpack.c.bf16 %v255, %v254
      %v274 = vpack.c.bf16 %v257, %v256
      %v275 = vpack.c.bf16 %v259, %v258
      %s276 = scalar_lea.vmem %s1, 32
      %v277 = vld [vmem:[%s276] sm:$0xf]
      %v278 = vld [vmem:[%s276 + $0x4] sm:$0xf]
      %v279 = vld [vmem:[%s276 + $0x8] sm:$0xf]
      %v280 = vld [vmem:[%s276 + $0xc] sm:$0xf]
      %v281 = vld [vmem:[%s276 + $0x10] sm:$0xf]
      %v282 = vld [vmem:[%s276 + $0x14] sm:$0xf]
      %v283 = vld [vmem:[%s276 + $0x18] sm:$0xf]
      %v284 = vld [vmem:[%s276 + $0x1c] sm:$0xf]
      %v293 = vunpack.c.l.b16 %v277
      %v294 = vunpack.c.l.b16 %v278
      %v295 = vunpack.c.l.b16 %v279
      %v296 = vunpack.c.l.b16 %v280
      %v297 = vunpack.c.l.b16 %v281
      %v298 = vunpack.c.l.b16 %v282
      %v299 = vunpack.c.l.b16 %v283
      %v300 = vunpack.c.l.b16 %v284
      %v301 = vpack.c.b16 %v294, %v293
      %v302 = vpack.c.b16 %v296, %v295
      %v303 = vpack.c.b16 %v298, %v297
      %v304 = vpack.c.b16 %v300, %v299
      %vm309 = vcmask 523264
      %v311 = vsel %vm309, %v260, 0
      %v314 = vsel %vm309, %v261, 0
      %v317 = vsel %vm309, %v262, 0
      %v320 = vsel %vm309, %v263, 0
      %v323 = vsel %vm309, %v264, 0
      %v326 = vsel %vm309, %v265, 0
      %v329 = vsel %vm309, %v266, 0
      %v332 = vsel %vm309, %v267, 0
      %v335 = vsel %vm309, %v268, 0
      %v338 = vsel %vm309, %v269, 0
      %v341 = vsel %vm309, %v270, 0
      %v344 = vsel %vm309, %v271, 0
      %v347 = vsel %vm309, %v272, 0
      %v350 = vsel %vm309, %v273, 0
      %v353 = vsel %vm309, %v274, 0
      %v356 = vsel %vm309, %v275, 0
      %358 = vmatprep.subr.bf16.mxu0 0
      %359 = vmatpush1.bf16.msra.mxu0 %v301
      %360 = vmatprep.subr.bf16.mxu0 0
      %361 = vmatpush1.bf16.msra.mxu0 %v302
      %362 = vmatprep.subr.bf16.mxu0 0
      %363 = vmatpush1.bf16.msra.mxu0 %v303
      %364 = vmatprep.subr.bf16.mxu0 0
      %365 = vmatpush1.bf16.msra.mxu0 %v304
      %366 = vmatprep.subr.bf16.mxu0 0
      %367 = vmatpush1.bf16.msra.mxu0 0
      %368 = vmatprep.subr.bf16.mxu0 0
      %369 = vmatpush1.bf16.msra.mxu0 0
      %370 = vmatprep.subr.bf16.mxu0 0
      %371 = vmatpush1.bf16.msra.mxu0 0
      %372 = vmatprep.subr.bf16.mxu0 0
      %373 = vmatpush1.bf16.msra.mxu0 0
      %374 = vmatprep.subr.bf16.mxu0 0
      %375 = vmatpush1.bf16.msra.mxu0 0
      %376 = vmatprep.subr.bf16.mxu0 0
      %377 = vmatpush1.bf16.msra.mxu0 0
      %378 = vmatprep.subr.bf16.mxu0 0
      %379 = vmatpush1.bf16.msra.mxu0 0
      %380 = vmatprep.subr.bf16.mxu0 0
      %381 = vmatpush1.bf16.msra.mxu0 0
      %382 = vmatprep.subr.bf16.mxu0 0
      %383 = vmatpush1.bf16.msra.mxu0 0
      %384 = vmatprep.subr.bf16.mxu0 0
      %385 = vmatpush1.bf16.msra.mxu0 0
      %386 = vmatprep.subr.bf16.mxu0 0
      %387 = vmatpush1.bf16.msra.mxu0 0
      %388 = vmatprep.subr.bf16.mxu0 0
      %389 = vmatpush1.bf16.msra.mxu0 0
      %390 = vmatprep.mubr.bf16.mxu0 0
      %391 = vmatmul.mubr.bf16.gmra.mrb[0].mxu0 %v311
      %v392 = vpop.f32.mrb[0].mxu0
      %v393 = vadd.f32 0.0, %v392
      %v394 = vpop.f32.mrb[0].mxu0
      %v395 = vpop.f32.mrb[0].mxu0
      %v396 = vadd.f32 0.0, %v395
      %v397 = vpop.f32.mrb[0].mxu0
      %398 = vmatprep.mubr.bf16.mxu0 0
      %399 = vmatmul.mubr.bf16.gmra.mrb[0].mxu0 %v314
      %v400 = vpop.f32.mrb[0].mxu0
      %v401 = vadd.f32 0.0, %v400
      %v402 = vpop.f32.mrb[0].mxu0
      %v403 = vpop.f32.mrb[0].mxu0
      %v404 = vadd.f32 0.0, %v403
      %v405 = vpop.f32.mrb[0].mxu0
      %406 = vmatprep.mubr.bf16.mxu0 0
      %407 = vmatmul.mubr.bf16.gmra.mrb[0].mxu0 %v317
      %v408 = vpop.f32.mrb[0].mxu0
      %v409 = vadd.f32 0.0, %v408
      %v410 = vpop.f32.mrb[0].mxu0
      %v411 = vpop.f32.mrb[0].mxu0
      %v412 = vadd.f32 0.0, %v411
      %v413 = vpop.f32.mrb[0].mxu0
      %414 = vmatprep.mubr.bf16.mxu0 0
      %415 = vmatmul.mubr.bf16.gmra.mrb[0].mxu0 %v320
      %v416 = vpop.f32.mrb[0].mxu0
      %v417 = vadd.f32 0.0, %v416
      %v418 = vpop.f32.mrb[0].mxu0
      %v419 = vpop.f32.mrb[0].mxu0
      %v420 = vadd.f32 0.0, %v419
      %v421 = vpop.f32.mrb[0].mxu0
      %422 = vmatprep.mubr.bf16.mxu0 0
      %423 = vmatmul.mubr.bf16.gmra.mrb[0].mxu0 %v323
      %v424 = vpop.f32.mrb[0].mxu0
      %v425 = vadd.f32 0.0, %v424
      %v426 = vpop.f32.mrb[0].mxu0
      %v427 = vpop.f32.mrb[0].mxu0
      %v428 = vadd.f32 0.0, %v427
      %v429 = vpop.f32.mrb[0].mxu0
      %430 = vmatprep.mubr.bf16.mxu0 0
      %431 = vmatmul.mubr.bf16.gmra.mrb[0].mxu0 %v326
      %v432 = vpop.f32.mrb[0].mxu0
      %v433 = vadd.f32 0.0, %v432
      %v434 = vpop.f32.mrb[0].mxu0
      %v435 = vpop.f32.mrb[0].mxu0
      %v436 = vadd.f32 0.0, %v435
      %v437 = vpop.f32.mrb[0].mxu0
      %438 = vmatprep.mubr.bf16.mxu0 0
      %439 = vmatmul.mubr.bf16.gmra.mrb[0].mxu0 %v329
      %v440 = vpop.f32.mrb[0].mxu0
      %v441 = vadd.f32 0.0, %v440
      %v442 = vpop.f32.mrb[0].mxu0
      %v443 = vpop.f32.mrb[0].mxu0
      %v444 = vadd.f32 0.0, %v443
      %v445 = vpop.f32.mrb[0].mxu0
      %446 = vmatprep.mubr.bf16.mxu0 0
      %447 = vmatmul.mubr.bf16.gmra.mrb[0].mxu0 %v332
      %v448 = vpop.f32.mrb[0].mxu0
      %v449 = vadd.f32 0.0, %v448
      %v450 = vpop.f32.mrb[0].mxu0
      %v451 = vpop.f32.mrb[0].mxu0
      %v452 = vadd.f32 0.0, %v451
      %v453 = vpop.f32.mrb[0].mxu0
      %454 = vmatprep.mubr.bf16.mxu0 0
      %455 = vmatmul.mubr.bf16.gmra.mrb[0].mxu0 %v335
      %v456 = vpop.f32.mrb[0].mxu0
      %v457 = vadd.f32 0.0, %v456
      %v458 = vpop.f32.mrb[0].mxu0
      %v459 = vpop.f32.mrb[0].mxu0
      %v460 = vadd.f32 0.0, %v459
      %v461 = vpop.f32.mrb[0].mxu0
      %462 = vmatprep.mubr.bf16.mxu0 0
      %463 = vmatmul.mubr.bf16.gmra.mrb[0].mxu0 %v338
      %v464 = vpop.f32.mrb[0].mxu0
      %v465 = vadd.f32 0.0, %v464
      %v466 = vpop.f32.mrb[0].mxu0
      %v467 = vpop.f32.mrb[0].mxu0
      %v468 = vadd.f32 0.0, %v467
      %v469 = vpop.f32.mrb[0].mxu0
      %470 = vmatprep.mubr.bf16.mxu0 0
      %471 = vmatmul.mubr.bf16.gmra.mrb[0].mxu0 %v341
      %v472 = vpop.f32.mrb[0].mxu0
      %v473 = vadd.f32 0.0, %v472
      %v474 = vpop.f32.mrb[0].mxu0
      %v475 = vpop.f32.mrb[0].mxu0
      %v476 = vadd.f32 0.0, %v475
      %v477 = vpop.f32.mrb[0].mxu0
      %478 = vmatprep.mubr.bf16.mxu0 0
      %479 = vmatmul.mubr.bf16.gmra.mrb[0].mxu0 %v344
      %v480 = vpop.f32.mrb[0].mxu0
      %v481 = vadd.f32 0.0, %v480
      %v482 = vpop.f32.mrb[0].mxu0
      %v483 = vpop.f32.mrb[0].mxu0
      %v484 = vadd.f32 0.0, %v483
      %v485 = vpop.f32.mrb[0].mxu0
      %486 = vmatprep.mubr.bf16.mxu0 0
      %487 = vmatmul.mubr.bf16.gmra.mrb[0].mxu0 %v347
      %v488 = vpop.f32.mrb[0].mxu0
      %v489 = vadd.f32 0.0, %v488
      %v490 = vpop.f32.mrb[0].mxu0
      %v491 = vpop.f32.mrb[0].mxu0
      %v492 = vadd.f32 0.0, %v491
      %v493 = vpop.f32.mrb[0].mxu0
      %494 = vmatprep.mubr.bf16.mxu0 0
      %495 = vmatmul.mubr.bf16.gmra.mrb[0].mxu0 %v350
      %v496 = vpop.f32.mrb[0].mxu0
      %v497 = vadd.f32 0.0, %v496
      %v498 = vpop.f32.mrb[0].mxu0
      %v499 = vpop.f32.mrb[0].mxu0
      %v500 = vadd.f32 0.0, %v499
      %v501 = vpop.f32.mrb[0].mxu0
      %502 = vmatprep.mubr.bf16.mxu0 0
      %503 = vmatmul.mubr.bf16.gmra.mrb[0].mxu0 %v353
      %v504 = vpop.f32.mrb[0].mxu0
      %v505 = vadd.f32 0.0, %v504
      %v506 = vpop.f32.mrb[0].mxu0
      %v507 = vpop.f32.mrb[0].mxu0
      %v508 = vadd.f32 0.0, %v507
      %v509 = vpop.f32.mrb[0].mxu0
      %510 = vmatprep.mubr.bf16.mxu0 0
      %511 = vmatmul.mubr.bf16.gmra.mrb[0].mxu0 %v356
      %v512 = vpop.f32.mrb[0].mxu0
      %v513 = vadd.f32 0.0, %v512
      %v514 = vpop.f32.mrb[0].mxu0
      %v515 = vpop.f32.mrb[0].mxu0
      %v516 = vadd.f32 0.0, %v515
      %v517 = vpop.f32.mrb[0].mxu0
      %518 = vdwg.mxu0
      %v527 = vunpack.c.l.b16 %v220
      %v528 = vunpack.c.l.b16 %v221
      %v529 = vunpack.c.l.b16 %v222
      %v530 = vunpack.c.l.b16 %v223
      %v531 = vunpack.c.l.b16 %v224
      %v532 = vunpack.c.l.b16 %v225
      %v533 = vunpack.c.l.b16 %v226
      %v534 = vunpack.c.l.b16 %v227
      %v535 = vpack.c.b16 %v528, %v527
      %v536 = vpack.c.b16 %v530, %v529
      %v537 = vpack.c.b16 %v532, %v531
      %v538 = vpack.c.b16 %v534, %v533
      %v544 = vsel %vm309, %v204, 0
      %v547 = vsel %vm309, %v205, 0
      %v550 = vsel %vm309, %v206, 0
      %v553 = vsel %vm309, %v207, 0
      %v556 = vsel %vm309, %v208, 0
      %v559 = vsel %vm309, %v209, 0
      %v562 = vsel %vm309, %v210, 0
      %v565 = vsel %vm309, %v211, 0
      %v568 = vsel %vm309, %v212, 0
      %v571 = vsel %vm309, %v213, 0
      %v574 = vsel %vm309, %v214, 0
      %v577 = vsel %vm309, %v215, 0
      %v580 = vsel %vm309, %v216, 0
      %v583 = vsel %vm309, %v217, 0
      %v586 = vsel %vm309, %v218, 0
      %v589 = vsel %vm309, %v219, 0
      %591 = vmatprep.subr.bf16.mxu0 0
      %592 = vmatpush1.bf16.msra.mxu0 %v535
      %593 = vmatprep.subr.bf16.mxu0 0
      %594 = vmatpush1.bf16.msra.mxu0 %v536
      %595 = vmatprep.subr.bf16.mxu0 0
      %596 = vmatpush1.bf16.msra.mxu0 %v537
      %597 = vmatprep.subr.bf16.mxu0 0
      %598 = vmatpush1.bf16.msra.mxu0 %v538
      %599 = vmatprep.subr.bf16.mxu0 0
      %600 = vmatpush1.bf16.msra.mxu0 0
      %601 = vmatprep.subr.bf16.mxu0 0
      %602 = vmatpush1.bf16.msra.mxu0 0
      %603 = vmatprep.subr.bf16.mxu0 0
      %604 = vmatpush1.bf16.msra.mxu0 0
      %605 = vmatprep.subr.bf16.mxu0 0
      %606 = vmatpush1.bf16.msra.mxu0 0
      %607 = vmatprep.subr.bf16.mxu0 0
      %608 = vmatpush1.bf16.msra.mxu0 0
      %609 = vmatprep.subr.bf16.mxu0 0
      %610 = vmatpush1.bf16.msra.mxu0 0
      %611 = vmatprep.subr.bf16.mxu0 0
      %612 = vmatpush1.bf16.msra.mxu0 0
      %613 = vmatprep.subr.bf16.mxu0 0
      %614 = vmatpush1.bf16.msra.mxu0 0
      %615 = vmatprep.subr.bf16.mxu0 0
      %616 = vmatpush1.bf16.msra.mxu0 0
      %617 = vmatprep.subr.bf16.mxu0 0
      %618 = vmatpush1.bf16.msra.mxu0 0
      %619 = vmatprep.subr.bf16.mxu0 0
      %620 = vmatpush1.bf16.msra.mxu0 0
      %621 = vmatprep.subr.bf16.mxu0 0
      %622 = vmatpush1.bf16.msra.mxu0 0
      %623 = vmatprep.mubr.bf16.mxu0 0
      %624 = vmatmul.mubr.bf16.gmra.mrb[0].mxu0 %v544
      %v625 = vpop.f32.mrb[0].mxu0
      %v626 = vadd.f32 %v393, %v625
      %v627 = vpop.f32.mrb[0].mxu0
      %v628 = vpop.f32.mrb[0].mxu0
      %v629 = vadd.f32 %v396, %v628
      %v630 = vpop.f32.mrb[0].mxu0
      %631 = vmatprep.mubr.bf16.mxu0 0
      %632 = vmatmul.mubr.bf16.gmra.mrb[0].mxu0 %v547
      %v633 = vpop.f32.mrb[0].mxu0
      %v634 = vadd.f32 %v401, %v633
      %v635 = vpop.f32.mrb[0].mxu0
      %v636 = vpop.f32.mrb[0].mxu0
      %v637 = vadd.f32 %v404, %v636
      %v638 = vpop.f32.mrb[0].mxu0
      %639 = vmatprep.mubr.bf16.mxu0 0
      %640 = vmatmul.mubr.bf16.gmra.mrb[0].mxu0 %v550
      %v641 = vpop.f32.mrb[0].mxu0
      %v642 = vadd.f32 %v409, %v641
      %v643 = vpop.f32.mrb[0].mxu0
      %v644 = vpop.f32.mrb[0].mxu0
      %v645 = vadd.f32 %v412, %v644
      %v646 = vpop.f32.mrb[0].mxu0
      %647 = vmatprep.mubr.bf16.mxu0 0
      %648 = vmatmul.mubr.bf16.gmra.mrb[0].mxu0 %v553
      %v649 = vpop.f32.mrb[0].mxu0
      %v650 = vadd.f32 %v417, %v649
      %v651 = vpop.f32.mrb[0].mxu0
      %v652 = vpop.f32.mrb[0].mxu0
      %v653 = vadd.f32 %v420, %v652
      %v654 = vpop.f32.mrb[0].mxu0
      %655 = vmatprep.mubr.bf16.mxu0 0
      %656 = vmatmul.mubr.bf16.gmra.mrb[0].mxu0 %v556
      %v657 = vpop.f32.mrb[0].mxu0
      %v658 = vadd.f32 %v425, %v657
      %v659 = vpop.f32.mrb[0].mxu0
      %v660 = vpop.f32.mrb[0].mxu0
      %v661 = vadd.f32 %v428, %v660
      %v662 = vpop.f32.mrb[0].mxu0
      %663 = vmatprep.mubr.bf16.mxu0 0
      %664 = vmatmul.mubr.bf16.gmra.mrb[0].mxu0 %v559
      %v665 = vpop.f32.mrb[0].mxu0
      %v666 = vadd.f32 %v433, %v665
      %v667 = vpop.f32.mrb[0].mxu0
      %v668 = vpop.f32.mrb[0].mxu0
      %v669 = vadd.f32 %v436, %v668
      %v670 = vpop.f32.mrb[0].mxu0
      %671 = vmatprep.mubr.bf16.mxu0 0
      %672 = vmatmul.mubr.bf16.gmra.mrb[0].mxu0 %v562
      %v673 = vpop.f32.mrb[0].mxu0
      %v674 = vadd.f32 %v441, %v673
      %v675 = vpop.f32.mrb[0].mxu0
      %v676 = vpop.f32.mrb[0].mxu0
      %v677 = vadd.f32 %v444, %v676
      %v678 = vpop.f32.mrb[0].mxu0
      %679 = vmatprep.mubr.bf16.mxu0 0
      %680 = vmatmul.mubr.bf16.gmra.mrb[0].mxu0 %v565
      %v681 = vpop.f32.mrb[0].mxu0
      %v682 = vadd.f32 %v449, %v681
      %v683 = vpop.f32.mrb[0].mxu0
      %v684 = vpop.f32.mrb[0].mxu0
      %v685 = vadd.f32 %v452, %v684
      %v686 = vpop.f32.mrb[0].mxu0
      %687 = vmatprep.mubr.bf16.mxu0 0
      %688 = vmatmul.mubr.bf16.gmra.mrb[0].mxu0 %v568
      %v689 = vpop.f32.mrb[0].mxu0
      %v690 = vadd.f32 %v457, %v689
      %v691 = vpop.f32.mrb[0].mxu0
      %v692 = vpop.f32.mrb[0].mxu0
      %v693 = vadd.f32 %v460, %v692
      %v694 = vpop.f32.mrb[0].mxu0
      %695 = vmatprep.mubr.bf16.mxu0 0
      %696 = vmatmul.mubr.bf16.gmra.mrb[0].mxu0 %v571
      %v697 = vpop.f32.mrb[0].mxu0
      %v698 = vadd.f32 %v465, %v697
      %v699 = vpop.f32.mrb[0].mxu0
      %v700 = vpop.f32.mrb[0].mxu0
      %v701 = vadd.f32 %v468, %v700
      %v702 = vpop.f32.mrb[0].mxu0
      %703 = vmatprep.mubr.bf16.mxu0 0
      %704 = vmatmul.mubr.bf16.gmra.mrb[0].mxu0 %v574
      %v705 = vpop.f32.mrb[0].mxu0
      %v706 = vadd.f32 %v473, %v705
      %v707 = vpop.f32.mrb[0].mxu0
      %v708 = vpop.f32.mrb[0].mxu0
      %v709 = vadd.f32 %v476, %v708
      %v710 = vpop.f32.mrb[0].mxu0
      %711 = vmatprep.mubr.bf16.mxu0 0
      %712 = vmatmul.mubr.bf16.gmra.mrb[0].mxu0 %v577
      %v713 = vpop.f32.mrb[0].mxu0
      %v714 = vadd.f32 %v481, %v713
      %v715 = vpop.f32.mrb[0].mxu0
      %v716 = vpop.f32.mrb[0].mxu0
      %v717 = vadd.f32 %v484, %v716
      %v718 = vpop.f32.mrb[0].mxu0
      %719 = vmatprep.mubr.bf16.mxu0 0
      %720 = vmatmul.mubr.bf16.gmra.mrb[0].mxu0 %v580
      %v721 = vpop.f32.mrb[0].mxu0
      %v722 = vadd.f32 %v489, %v721
      %v723 = vpop.f32.mrb[0].mxu0
      %v724 = vpop.f32.mrb[0].mxu0
      %v725 = vadd.f32 %v492, %v724
      %v726 = vpop.f32.mrb[0].mxu0
      %727 = vmatprep.mubr.bf16.mxu0 0
      %728 = vmatmul.mubr.bf16.gmra.mrb[0].mxu0 %v583
      %v729 = vpop.f32.mrb[0].mxu0
      %v730 = vadd.f32 %v497, %v729
      %v731 = vpop.f32.mrb[0].mxu0
      %v732 = vpop.f32.mrb[0].mxu0
      %v733 = vadd.f32 %v500, %v732
      %v734 = vpop.f32.mrb[0].mxu0
      %735 = vmatprep.mubr.bf16.mxu0 0
      %736 = vmatmul.mubr.bf16.gmra.mrb[0].mxu0 %v586
      %v737 = vpop.f32.mrb[0].mxu0
      %v738 = vadd.f32 %v505, %v737
      %v739 = vpop.f32.mrb[0].mxu0
      %v740 = vpop.f32.mrb[0].mxu0
      %v741 = vadd.f32 %v508, %v740
      %v742 = vpop.f32.mrb[0].mxu0
      %743 = vmatprep.mubr.bf16.mxu0 0
      %744 = vmatmul.mubr.bf16.gmra.mrb[0].mxu0 %v589
      %v745 = vpop.f32.mrb[0].mxu0
      %v746 = vadd.f32 %v513, %v745
      %v747 = vpop.f32.mrb[0].mxu0
      %v748 = vpop.f32.mrb[0].mxu0
      %v749 = vadd.f32 %v516, %v748
      %v750 = vpop.f32.mrb[0].mxu0
      %751 = vdwg.mxu0
      %v752 = vld [vmem:[%s165 + $0x2] sm:$0xff]
      %v753 = vld [vmem:[%s165 + $0xa] sm:$0xff]
      %v754 = vld [vmem:[%s165 + $0x12] sm:$0xff]
      %v755 = vld [vmem:[%s165 + $0x1a] sm:$0xff]
      %v756 = vld [vmem:[%s165 + $0x22] sm:$0xff]
      %v757 = vld [vmem:[%s165 + $0x2a] sm:$0xff]
      %v758 = vld [vmem:[%s165 + $0x32] sm:$0xff]
      %v759 = vld [vmem:[%s165 + $0x3a] sm:$0xff]
      %v760 = vld [vmem:[%s165 + $0x42] sm:$0xff]
      %v761 = vld [vmem:[%s165 + $0x4a] sm:$0xff]
      %v762 = vld [vmem:[%s165 + $0x52] sm:$0xff]
      %v763 = vld [vmem:[%s165 + $0x5a] sm:$0xff]
      %v764 = vld [vmem:[%s165 + $0x62] sm:$0xff]
      %v765 = vld [vmem:[%s165 + $0x6a] sm:$0xff]
      %v766 = vld [vmem:[%s165 + $0x72] sm:$0xff]
      %v767 = vld [vmem:[%s165 + $0x7a] sm:$0xff]
      %v768 = vld [vmem:[%s165 + $0x82] sm:$0xff]
      %v769 = vld [vmem:[%s165 + $0x8a] sm:$0xff]
      %v770 = vld [vmem:[%s165 + $0x92] sm:$0xff]
      %v771 = vld [vmem:[%s165 + $0x9a] sm:$0xff]
      %v772 = vld [vmem:[%s165 + $0xa2] sm:$0xff]
      %v773 = vld [vmem:[%s165 + $0xaa] sm:$0xff]
      %v774 = vld [vmem:[%s165 + $0xb2] sm:$0xff]
      %v775 = vld [vmem:[%s165 + $0xba] sm:$0xff]
      %v776 = vld [vmem:[%s165 + $0xc2] sm:$0xff]
      %v777 = vld [vmem:[%s165 + $0xca] sm:$0xff]
      %v778 = vld [vmem:[%s165 + $0xd2] sm:$0xff]
      %v779 = vld [vmem:[%s165 + $0xda] sm:$0xff]
      %v780 = vld [vmem:[%s165 + $0xe2] sm:$0xff]
      %v781 = vld [vmem:[%s165 + $0xea] sm:$0xff]
      %v782 = vld [vmem:[%s165 + $0xf2] sm:$0xff]
      %v783 = vld [vmem:[%s165 + $0xfa] sm:$0x1f]
      %v784 = vpack.c.bf16 %v753, %v752
      %v785 = vpack.c.bf16 %v755, %v754
      %v786 = vpack.c.bf16 %v757, %v756
      %v787 = vpack.c.bf16 %v759, %v758
      %v788 = vpack.c.bf16 %v761, %v760
      %v789 = vpack.c.bf16 %v763, %v762
      %v790 = vpack.c.bf16 %v765, %v764
      %v791 = vpack.c.bf16 %v767, %v766
      %v792 = vpack.c.bf16 %v769, %v768
      %v793 = vpack.c.bf16 %v771, %v770
      %v794 = vpack.c.bf16 %v773, %v772
      %v795 = vpack.c.bf16 %v775, %v774
      %v796 = vpack.c.bf16 %v777, %v776
      %v797 = vpack.c.bf16 %v779, %v778
      %v798 = vpack.c.bf16 %v781, %v780
      %v799 = vpack.c.bf16 %v783, %v782
      %s800 = scalar_lea.vmem %s1, 64
      %v801 = vld [vmem:[%s800] sm:$0xf]
      %v802 = vld [vmem:[%s800 + $0x4] sm:$0xf]
      %v803 = vld [vmem:[%s800 + $0x8] sm:$0xf]
      %v804 = vld [vmem:[%s800 + $0xc] sm:$0xf]
      %v805 = vld [vmem:[%s800 + $0x10] sm:$0xf]
      %v806 = vld [vmem:[%s800 + $0x14] sm:$0xf]
      %v807 = vld [vmem:[%s800 + $0x18] sm:$0xf]
      %v808 = vld [vmem:[%s800 + $0x1c] sm:$0xf]
      %v817 = vunpack.c.l.b16 %v801
      %v818 = vunpack.c.l.b16 %v802
      %v819 = vunpack.c.l.b16 %v803
      %v820 = vunpack.c.l.b16 %v804
      %v821 = vunpack.c.l.b16 %v805
      %v822 = vunpack.c.l.b16 %v806
      %v823 = vunpack.c.l.b16 %v807
      %v824 = vunpack.c.l.b16 %v808
      %v825 = vpack.c.b16 %v818, %v817
      %v826 = vpack.c.b16 %v820, %v819
      %v827 = vpack.c.b16 %v822, %v821
      %v828 = vpack.c.b16 %v824, %v823
      %v834 = vsel %vm309, %v784, 0
      %v837 = vsel %vm309, %v785, 0
      %v840 = vsel %vm309, %v786, 0
      %v843 = vsel %vm309, %v787, 0
      %v846 = vsel %vm309, %v788, 0
      %v849 = vsel %vm309, %v789, 0
      %v852 = vsel %vm309, %v790, 0
      %v855 = vsel %vm309, %v791, 0
      %v858 = vsel %vm309, %v792, 0
      %v861 = vsel %vm309, %v793, 0
      %v864 = vsel %vm309, %v794, 0
      %v867 = vsel %vm309, %v795, 0
      %v870 = vsel %vm309, %v796, 0
      %v873 = vsel %vm309, %v797, 0
      %v876 = vsel %vm309, %v798, 0
      %v879 = vsel %vm309, %v799, 0
      %881 = vmatprep.subr.bf16.mxu0 0
      %882 = vmatpush1.bf16.msra.mxu0 %v825
      %883 = vmatprep.subr.bf16.mxu0 0
      %884 = vmatpush1.bf16.msra.mxu0 %v826
      %885 = vmatprep.subr.bf16.mxu0 0
      %886 = vmatpush1.bf16.msra.mxu0 %v827
      %887 = vmatprep.subr.bf16.mxu0 0
      %888 = vmatpush1.bf16.msra.mxu0 %v828
      %889 = vmatprep.subr.bf16.mxu0 0
      %890 = vmatpush1.bf16.msra.mxu0 0
      %891 = vmatprep.subr.bf16.mxu0 0
      %892 = vmatpush1.bf16.msra.mxu0 0
      %893 = vmatprep.subr.bf16.mxu0 0
      %894 = vmatpush1.bf16.msra.mxu0 0
      %895 = vmatprep.subr.bf16.mxu0 0
      %896 = vmatpush1.bf16.msra.mxu0 0
      %897 = vmatprep.subr.bf16.mxu0 0
      %898 = vmatpush1.bf16.msra.mxu0 0
      %899 = vmatprep.subr.bf16.mxu0 0
      %900 = vmatpush1.bf16.msra.mxu0 0
      %901 = vmatprep.subr.bf16.mxu0 0
      %902 = vmatpush1.bf16.msra.mxu0 0
      %903 = vmatprep.subr.bf16.mxu0 0
      %904 = vmatpush1.bf16.msra.mxu0 0
      %905 = vmatprep.subr.bf16.mxu0 0
      %906 = vmatpush1.bf16.msra.mxu0 0
      %907 = vmatprep.subr.bf16.mxu0 0
      %908 = vmatpush1.bf16.msra.mxu0 0
      %909 = vmatprep.subr.bf16.mxu0 0
      %910 = vmatpush1.bf16.msra.mxu0 0
      %911 = vmatprep.subr.bf16.mxu0 0
      %912 = vmatpush1.bf16.msra.mxu0 0
      %913 = vmatprep.mubr.bf16.mxu0 0
      %914 = vmatmul.mubr.bf16.gmra.mrb[0].mxu0 %v834
      %v915 = vpop.f32.mrb[0].mxu0
      %v916 = vadd.f32 0.0, %v915
      %v917 = vpop.f32.mrb[0].mxu0
      %v918 = vpop.f32.mrb[0].mxu0
      %v919 = vadd.f32 0.0, %v918
      %v920 = vpop.f32.mrb[0].mxu0
      %921 = vmatprep.mubr.bf16.mxu0 0
      %922 = vmatmul.mubr.bf16.gmra.mrb[0].mxu0 %v837
      %v923 = vpop.f32.mrb[0].mxu0
      %v924 = vadd.f32 0.0, %v923
      %v925 = vpop.f32.mrb[0].mxu0
      %v926 = vpop.f32.mrb[0].mxu0
      %v927 = vadd.f32 0.0, %v926
      %v928 = vpop.f32.mrb[0].mxu0
      %929 = vmatprep.mubr.bf16.mxu0 0
      %930 = vmatmul.mubr.bf16.gmra.mrb[0].mxu0 %v840
      %v931 = vpop.f32.mrb[0].mxu0
      %v932 = vadd.f32 0.0, %v931
      %v933 = vpop.f32.mrb[0].mxu0
      %v934 = vpop.f32.mrb[0].mxu0
      %v935 = vadd.f32 0.0, %v934
      %v936 = vpop.f32.mrb[0].mxu0
      %937 = vmatprep.mubr.bf16.mxu0 0
      %938 = vmatmul.mubr.bf16.gmra.mrb[0].mxu0 %v843
      %v939 = vpop.f32.mrb[0].mxu0
      %v940 = vadd.f32 0.0, %v939
      %v941 = vpop.f32.mrb[0].mxu0
      %v942 = vpop.f32.mrb[0].mxu0
      %v943 = vadd.f32 0.0, %v942
      %v944 = vpop.f32.mrb[0].mxu0
      %945 = vmatprep.mubr.bf16.mxu0 0
      %946 = vmatmul.mubr.bf16.gmra.mrb[0].mxu0 %v846
      %v947 = vpop.f32.mrb[0].mxu0
      %v948 = vadd.f32 0.0, %v947
      %v949 = vpop.f32.mrb[0].mxu0
      %v950 = vpop.f32.mrb[0].mxu0
      %v951 = vadd.f32 0.0, %v950
      %v952 = vpop.f32.mrb[0].mxu0
      %953 = vmatprep.mubr.bf16.mxu0 0
      %954 = vmatmul.mubr.bf16.gmra.mrb[0].mxu0 %v849
      %v955 = vpop.f32.mrb[0].mxu0
      %v956 = vadd.f32 0.0, %v955
      %v957 = vpop.f32.mrb[0].mxu0
      %v958 = vpop.f32.mrb[0].mxu0
      %v959 = vadd.f32 0.0, %v958
      %v960 = vpop.f32.mrb[0].mxu0
      %961 = vmatprep.mubr.bf16.mxu0 0
      %962 = vmatmul.mubr.bf16.gmra.mrb[0].mxu0 %v852
      %v963 = vpop.f32.mrb[0].mxu0
      %v964 = vadd.f32 0.0, %v963
      %v965 = vpop.f32.mrb[0].mxu0
      %v966 = vpop.f32.mrb[0].mxu0
      %v967 = vadd.f32 0.0, %v966
      %v968 = vpop.f32.mrb[0].mxu0
      %969 = vmatprep.mubr.bf16.mxu0 0
      %970 = vmatmul.mubr.bf16.gmra.mrb[0].mxu0 %v855
      %v971 = vpop.f32.mrb[0].mxu0
      %v972 = vadd.f32 0.0, %v971
      %v973 = vpop.f32.mrb[0].mxu0
      %v974 = vpop.f32.mrb[0].mxu0
      %v975 = vadd.f32 0.0, %v974
      %v976 = vpop.f32.mrb[0].mxu0
      %977 = vmatprep.mubr.bf16.mxu0 0
      %978 = vmatmul.mubr.bf16.gmra.mrb[0].mxu0 %v858
      %v979 = vpop.f32.mrb[0].mxu0
      %v980 = vadd.f32 0.0, %v979
      %v981 = vpop.f32.mrb[0].mxu0
      %v982 = vpop.f32.mrb[0].mxu0
      %v983 = vadd.f32 0.0, %v982
      %v984 = vpop.f32.mrb[0].mxu0
      %985 = vmatprep.mubr.bf16.mxu0 0
      %986 = vmatmul.mubr.bf16.gmra.mrb[0].mxu0 %v861
      %v987 = vpop.f32.mrb[0].mxu0
      %v988 = vadd.f32 0.0, %v987
      %v989 = vpop.f32.mrb[0].mxu0
      %v990 = vpop.f32.mrb[0].mxu0
      %v991 = vadd.f32 0.0, %v990
      %v992 = vpop.f32.mrb[0].mxu0
      %993 = vmatprep.mubr.bf16.mxu0 0
      %994 = vmatmul.mubr.bf16.gmra.mrb[0].mxu0 %v864
      %v995 = vpop.f32.mrb[0].mxu0
      %v996 = vadd.f32 0.0, %v995
      %v997 = vpop.f32.mrb[0].mxu0
      %v998 = vpop.f32.mrb[0].mxu0
      %v999 = vadd.f32 0.0, %v998
      %v1000 = vpop.f32.mrb[0].mxu0
      %1001 = vmatprep.mubr.bf16.mxu0 0
      %1002 = vmatmul.mubr.bf16.gmra.mrb[0].mxu0 %v867
      %v1003 = vpop.f32.mrb[0].mxu0
      %v1004 = vadd.f32 0.0, %v1003
      %v1005 = vpop.f32.mrb[0].mxu0
      %v1006 = vpop.f32.mrb[0].mxu0
      %v1007 = vadd.f32 0.0, %v1006
      %v1008 = vpop.f32.mrb[0].mxu0
      %1009 = vmatprep.mubr.bf16.mxu0 0
      %1010 = vmatmul.mubr.bf16.gmra.mrb[0].mxu0 %v870
      %v1011 = vpop.f32.mrb[0].mxu0
      %v1012 = vadd.f32 0.0, %v1011
      %v1013 = vpop.f32.mrb[0].mxu0
      %v1014 = vpop.f32.mrb[0].mxu0
      %v1015 = vadd.f32 0.0, %v1014
      %v1016 = vpop.f32.mrb[0].mxu0
      %1017 = vmatprep.mubr.bf16.mxu0 0
      %1018 = vmatmul.mubr.bf16.gmra.mrb[0].mxu0 %v873
      %v1019 = vpop.f32.mrb[0].mxu0
      %v1020 = vadd.f32 0.0, %v1019
      %v1021 = vpop.f32.mrb[0].mxu0
      %v1022 = vpop.f32.mrb[0].mxu0
      %v1023 = vadd.f32 0.0, %v1022
      %v1024 = vpop.f32.mrb[0].mxu0
      %1025 = vmatprep.mubr.bf16.mxu0 0
      %1026 = vmatmul.mubr.bf16.gmra.mrb[0].mxu0 %v876
      %v1027 = vpop.f32.mrb[0].mxu0
      %v1028 = vadd.f32 0.0, %v1027
      %v1029 = vpop.f32.mrb[0].mxu0
      %v1030 = vpop.f32.mrb[0].mxu0
      %v1031 = vadd.f32 0.0, %v1030
      %v1032 = vpop.f32.mrb[0].mxu0
      %1033 = vmatprep.mubr.bf16.mxu0 0
      %1034 = vmatmul.mubr.bf16.gmra.mrb[0].mxu0 %v879
      %v1035 = vpop.f32.mrb[0].mxu0
      %v1036 = vadd.f32 0.0, %v1035
      %v1037 = vpop.f32.mrb[0].mxu0
      %v1038 = vpop.f32.mrb[0].mxu0
      %v1039 = vadd.f32 0.0, %v1038
      %v1040 = vpop.f32.mrb[0].mxu0
      %1041 = vdwg.mxu0
      %v1042 = vadd.f32 %v626, %v916
      %v1043 = vadd.f32 %v629, %v919
      %v1044 = vadd.f32 %v634, %v924
      %v1045 = vadd.f32 %v637, %v927
      %v1046 = vadd.f32 %v642, %v932
      %v1047 = vadd.f32 %v645, %v935
      %v1048 = vadd.f32 %v650, %v940
      %v1049 = vadd.f32 %v653, %v943
      %v1050 = vadd.f32 %v658, %v948
      %v1051 = vadd.f32 %v661, %v951
      %v1052 = vadd.f32 %v666, %v956
      %v1053 = vadd.f32 %v669, %v959
      %v1054 = vadd.f32 %v674, %v964
      %v1055 = vadd.f32 %v677, %v967
      %v1056 = vadd.f32 %v682, %v972
      %v1057 = vadd.f32 %v685, %v975
      %v1058 = vadd.f32 %v690, %v980
      %v1059 = vadd.f32 %v693, %v983
      %v1060 = vadd.f32 %v698, %v988
      %v1061 = vadd.f32 %v701, %v991
      %v1062 = vadd.f32 %v706, %v996
      %v1063 = vadd.f32 %v709, %v999
      %v1064 = vadd.f32 %v714, %v1004
      %v1065 = vadd.f32 %v717, %v1007
      %v1066 = vadd.f32 %v722, %v1012
      %v1067 = vadd.f32 %v725, %v1015
      %v1068 = vadd.f32 %v730, %v1020
      %v1069 = vadd.f32 %v733, %v1023
      %v1070 = vadd.f32 %v738, %v1028
      %v1071 = vadd.f32 %v741, %v1031
      %v1072 = vadd.f32 %v746, %v1036
      %v1073 = vadd.f32 %v749, %v1039
      %v1074 = vld [vmem:[%s165 + $0x11] sm:$0xff]
      %v1075 = vld [vmem:[%s165 + $0x19] sm:$0xff]
      %v1076 = vld [vmem:[%s165 + $0x21] sm:$0xff]
      %v1077 = vld [vmem:[%s165 + $0x29] sm:$0xff]
      %v1078 = vld [vmem:[%s165 + $0x31] sm:$0xff]
      %v1079 = vld [vmem:[%s165 + $0x39] sm:$0xff]
      %v1080 = vld [vmem:[%s165 + $0x41] sm:$0xff]
      %v1081 = vld [vmem:[%s165 + $0x49] sm:$0xff]
      %v1082 = vld [vmem:[%s165 + $0x51] sm:$0xff]
      %v1083 = vld [vmem:[%s165 + $0x59] sm:$0xff]
      %v1084 = vld [vmem:[%s165 + $0x61] sm:$0xff]
      %v1085 = vld [vmem:[%s165 + $0x69] sm:$0xff]
      %v1086 = vld [vmem:[%s165 + $0x71] sm:$0xff]
      %v1087 = vld [vmem:[%s165 + $0x79] sm:$0xff]
      %v1088 = vld [vmem:[%s165 + $0x81] sm:$0xff]
      %v1089 = vld [vmem:[%s165 + $0x89] sm:$0xff]
      %v1090 = vld [vmem:[%s165 + $0x91] sm:$0xff]
      %v1091 = vld [vmem:[%s165 + $0x99] sm:$0xff]
      %v1092 = vld [vmem:[%s165 + $0xa1] sm:$0xff]
      %v1093 = vld [vmem:[%s165 + $0xa9] sm:$0xff]
      %v1094 = vld [vmem:[%s165 + $0xb1] sm:$0xff]
      %v1095 = vld [vmem:[%s165 + $0xb9] sm:$0xff]
      %v1096 = vld [vmem:[%s165 + $0xc1] sm:$0xff]
      %v1097 = vld [vmem:[%s165 + $0xc9] sm:$0xff]
      %v1098 = vld [vmem:[%s165 + $0xd1] sm:$0xff]
      %v1099 = vld [vmem:[%s165 + $0xd9] sm:$0xff]
      %v1100 = vld [vmem:[%s165 + $0xe1] sm:$0xff]
      %v1101 = vld [vmem:[%s165 + $0xe9] sm:$0xff]
      %v1102 = vld [vmem:[%s165 + $0xf1] sm:$0xff]
      %v1103 = vld [vmem:[%s165 + $0xf9] sm:$0xff]
      %v1104 = vld [vmem:[%s165 + $0x101] sm:$0xff]
      %v1105 = vld [vmem:[%s165 + $0x109] sm:$0x1f]
      %v1106 = vpack.c.bf16 %v1075, %v1074
      %v1107 = vpack.c.bf16 %v1077, %v1076
      %v1108 = vpack.c.bf16 %v1079, %v1078
      %v1109 = vpack.c.bf16 %v1081, %v1080
      %v1110 = vpack.c.bf16 %v1083, %v1082
      %v1111 = vpack.c.bf16 %v1085, %v1084
      %v1112 = vpack.c.bf16 %v1087, %v1086
      %v1113 = vpack.c.bf16 %v1089, %v1088
      %v1114 = vpack.c.bf16 %v1091, %v1090
      %v1115 = vpack.c.bf16 %v1093, %v1092
      %v1116 = vpack.c.bf16 %v1095, %v1094
      %v1117 = vpack.c.bf16 %v1097, %v1096
      %v1118 = vpack.c.bf16 %v1099, %v1098
      %v1119 = vpack.c.bf16 %v1101, %v1100
      %v1120 = vpack.c.bf16 %v1103, %v1102
      %v1121 = vpack.c.bf16 %v1105, %v1104
      %s1122 = scalar_lea.vmem %s1, 96
      %v1123 = vld [vmem:[%s1122] sm:$0xf]
      %v1124 = vld [vmem:[%s1122 + $0x4] sm:$0xf]
      %v1125 = vld [vmem:[%s1122 + $0x8] sm:$0xf]
      %v1126 = vld [vmem:[%s1122 + $0xc] sm:$0xf]
      %v1127 = vld [vmem:[%s1122 + $0x10] sm:$0xf]
      %v1128 = vld [vmem:[%s1122 + $0x14] sm:$0xf]
      %v1129 = vld [vmem:[%s1122 + $0x18] sm:$0xf]
      %v1130 = vld [vmem:[%s1122 + $0x1c] sm:$0xf]
      %v1139 = vunpack.c.l.b16 %v1123
      %v1140 = vunpack.c.l.b16 %v1124
      %v1141 = vunpack.c.l.b16 %v1125
      %v1142 = vunpack.c.l.b16 %v1126
      %v1143 = vunpack.c.l.b16 %v1127
      %v1144 = vunpack.c.l.b16 %v1128
      %v1145 = vunpack.c.l.b16 %v1129
      %v1146 = vunpack.c.l.b16 %v1130
      %v1147 = vpack.c.b16 %v1140, %v1139
      %v1148 = vpack.c.b16 %v1142, %v1141
      %v1149 = vpack.c.b16 %v1144, %v1143
      %v1150 = vpack.c.b16 %v1146, %v1145
      %v1156 = vsel %vm309, %v1106, 0
      %v1159 = vsel %vm309, %v1107, 0
      %v1162 = vsel %vm309, %v1108, 0
      %v1165 = vsel %vm309, %v1109, 0
      %v1168 = vsel %vm309, %v1110, 0
      %v1171 = vsel %vm309, %v1111, 0
      %v1174 = vsel %vm309, %v1112, 0
      %v1177 = vsel %vm309, %v1113, 0
      %v1180 = vsel %vm309, %v1114, 0
      %v1183 = vsel %vm309, %v1115, 0
      %v1186 = vsel %vm309, %v1116, 0
      %v1189 = vsel %vm309, %v1117, 0
      %v1192 = vsel %vm309, %v1118, 0
      %v1195 = vsel %vm309, %v1119, 0
      %v1198 = vsel %vm309, %v1120, 0
      %v1201 = vsel %vm309, %v1121, 0
      %1203 = vmatprep.subr.bf16.mxu0 0
      %1204 = vmatpush1.bf16.msra.mxu0 %v1147
      %1205 = vmatprep.subr.bf16.mxu0 0
      %1206 = vmatpush1.bf16.msra.mxu0 %v1148
      %1207 = vmatprep.subr.bf16.mxu0 0
      %1208 = vmatpush1.bf16.msra.mxu0 %v1149
      %1209 = vmatprep.subr.bf16.mxu0 0
      %1210 = vmatpush1.bf16.msra.mxu0 %v1150
      %1211 = vmatprep.subr.bf16.mxu0 0
      %1212 = vmatpush1.bf16.msra.mxu0 0
      %1213 = vmatprep.subr.bf16.mxu0 0
      %1214 = vmatpush1.bf16.msra.mxu0 0
      %1215 = vmatprep.subr.bf16.mxu0 0
      %1216 = vmatpush1.bf16.msra.mxu0 0
      %1217 = vmatprep.subr.bf16.mxu0 0
      %1218 = vmatpush1.bf16.msra.mxu0 0
      %1219 = vmatprep.subr.bf16.mxu0 0
      %1220 = vmatpush1.bf16.msra.mxu0 0
      %1221 = vmatprep.subr.bf16.mxu0 0
      %1222 = vmatpush1.bf16.msra.mxu0 0
      %1223 = vmatprep.subr.bf16.mxu0 0
      %1224 = vmatpush1.bf16.msra.mxu0 0
      %1225 = vmatprep.subr.bf16.mxu0 0
      %1226 = vmatpush1.bf16.msra.mxu0 0
      %1227 = vmatprep.subr.bf16.mxu0 0
      %1228 = vmatpush1.bf16.msra.mxu0 0
      %1229 = vmatprep.subr.bf16.mxu0 0
      %1230 = vmatpush1.bf16.msra.mxu0 0
      %1231 = vmatprep.subr.bf16.mxu0 0
      %1232 = vmatpush1.bf16.msra.mxu0 0
      %1233 = vmatprep.subr.bf16.mxu0 0
      %1234 = vmatpush1.bf16.msra.mxu0 0
      %1235 = vmatprep.mubr.bf16.mxu0 0
      %1236 = vmatmul.mubr.bf16.gmra.mrb[0].mxu0 %v1156
      %v1237 = vpop.f32.mrb[0].mxu0
      %v1238 = vadd.f32 0.0, %v1237
      %v1239 = vpop.f32.mrb[0].mxu0
      %v1240 = vpop.f32.mrb[0].mxu0
      %v1241 = vadd.f32 0.0, %v1240
      %v1242 = vpop.f32.mrb[0].mxu0
      %1243 = vmatprep.mubr.bf16.mxu0 0
      %1244 = vmatmul.mubr.bf16.gmra.mrb[0].mxu0 %v1159
      %v1245 = vpop.f32.mrb[0].mxu0
      %v1246 = vadd.f32 0.0, %v1245
      %v1247 = vpop.f32.mrb[0].mxu0
      %v1248 = vpop.f32.mrb[0].mxu0
      %v1249 = vadd.f32 0.0, %v1248
      %v1250 = vpop.f32.mrb[0].mxu0
      %1251 = vmatprep.mubr.bf16.mxu0 0
      %1252 = vmatmul.mubr.bf16.gmra.mrb[0].mxu0 %v1162
      %v1253 = vpop.f32.mrb[0].mxu0
      %v1254 = vadd.f32 0.0, %v1253
      %v1255 = vpop.f32.mrb[0].mxu0
      %v1256 = vpop.f32.mrb[0].mxu0
      %v1257 = vadd.f32 0.0, %v1256
      %v1258 = vpop.f32.mrb[0].mxu0
      %1259 = vmatprep.mubr.bf16.mxu0 0
      %1260 = vmatmul.mubr.bf16.gmra.mrb[0].mxu0 %v1165
      %v1261 = vpop.f32.mrb[0].mxu0
      %v1262 = vadd.f32 0.0, %v1261
      %v1263 = vpop.f32.mrb[0].mxu0
      %v1264 = vpop.f32.mrb[0].mxu0
      %v1265 = vadd.f32 0.0, %v1264
      %v1266 = vpop.f32.mrb[0].mxu0
      %1267 = vmatprep.mubr.bf16.mxu0 0
      %1268 = vmatmul.mubr.bf16.gmra.mrb[0].mxu0 %v1168
      %v1269 = vpop.f32.mrb[0].mxu0
      %v1270 = vadd.f32 0.0, %v1269
      %v1271 = vpop.f32.mrb[0].mxu0
      %v1272 = vpop.f32.mrb[0].mxu0
      %v1273 = vadd.f32 0.0, %v1272
      %v1274 = vpop.f32.mrb[0].mxu0
      %1275 = vmatprep.mubr.bf16.mxu0 0
      %1276 = vmatmul.mubr.bf16.gmra.mrb[0].mxu0 %v1171
      %v1277 = vpop.f32.mrb[0].mxu0
      %v1278 = vadd.f32 0.0, %v1277
      %v1279 = vpop.f32.mrb[0].mxu0
      %v1280 = vpop.f32.mrb[0].mxu0
      %v1281 = vadd.f32 0.0, %v1280
      %v1282 = vpop.f32.mrb[0].mxu0
      %1283 = vmatprep.mubr.bf16.mxu0 0
      %1284 = vmatmul.mubr.bf16.gmra.mrb[0].mxu0 %v1174
      %v1285 = vpop.f32.mrb[0].mxu0
      %v1286 = vadd.f32 0.0, %v1285
      %v1287 = vpop.f32.mrb[0].mxu0
      %v1288 = vpop.f32.mrb[0].mxu0
      %v1289 = vadd.f32 0.0, %v1288
      %v1290 = vpop.f32.mrb[0].mxu0
      %1291 = vmatprep.mubr.bf16.mxu0 0
      %1292 = vmatmul.mubr.bf16.gmra.mrb[0].mxu0 %v1177
      %v1293 = vpop.f32.mrb[0].mxu0
      %v1294 = vadd.f32 0.0, %v1293
      %v1295 = vpop.f32.mrb[0].mxu0
      %v1296 = vpop.f32.mrb[0].mxu0
      %v1297 = vadd.f32 0.0, %v1296
      %v1298 = vpop.f32.mrb[0].mxu0
      %1299 = vmatprep.mubr.bf16.mxu0 0
      %1300 = vmatmul.mubr.bf16.gmra.mrb[0].mxu0 %v1180
      %v1301 = vpop.f32.mrb[0].mxu0
      %v1302 = vadd.f32 0.0, %v1301
      %v1303 = vpop.f32.mrb[0].mxu0
      %v1304 = vpop.f32.mrb[0].mxu0
      %v1305 = vadd.f32 0.0, %v1304
      %v1306 = vpop.f32.mrb[0].mxu0
      %1307 = vmatprep.mubr.bf16.mxu0 0
      %1308 = vmatmul.mubr.bf16.gmra.mrb[0].mxu0 %v1183
      %v1309 = vpop.f32.mrb[0].mxu0
      %v1310 = vadd.f32 0.0, %v1309
      %v1311 = vpop.f32.mrb[0].mxu0
      %v1312 = vpop.f32.mrb[0].mxu0
      %v1313 = vadd.f32 0.0, %v1312
      %v1314 = vpop.f32.mrb[0].mxu0
      %1315 = vmatprep.mubr.bf16.mxu0 0
      %1316 = vmatmul.mubr.bf16.gmra.mrb[0].mxu0 %v1186
      %v1317 = vpop.f32.mrb[0].mxu0
      %v1318 = vadd.f32 0.0, %v1317
      %v1319 = vpop.f32.mrb[0].mxu0
      %v1320 = vpop.f32.mrb[0].mxu0
      %v1321 = vadd.f32 0.0, %v1320
      %v1322 = vpop.f32.mrb[0].mxu0
      %1323 = vmatprep.mubr.bf16.mxu0 0
      %1324 = vmatmul.mubr.bf16.gmra.mrb[0].mxu0 %v1189
      %v1325 = vpop.f32.mrb[0].mxu0
      %v1326 = vadd.f32 0.0, %v1325
      %v1327 = vpop.f32.mrb[0].mxu0
      %v1328 = vpop.f32.mrb[0].mxu0
      %v1329 = vadd.f32 0.0, %v1328
      %v1330 = vpop.f32.mrb[0].mxu0
      %1331 = vmatprep.mubr.bf16.mxu0 0
      %1332 = vmatmul.mubr.bf16.gmra.mrb[0].mxu0 %v1192
      %v1333 = vpop.f32.mrb[0].mxu0
      %v1334 = vadd.f32 0.0, %v1333
      %v1335 = vpop.f32.mrb[0].mxu0
      %v1336 = vpop.f32.mrb[0].mxu0
      %v1337 = vadd.f32 0.0, %v1336
      %v1338 = vpop.f32.mrb[0].mxu0
      %1339 = vmatprep.mubr.bf16.mxu0 0
      %1340 = vmatmul.mubr.bf16.gmra.mrb[0].mxu0 %v1195
      %v1341 = vpop.f32.mrb[0].mxu0
      %v1342 = vadd.f32 0.0, %v1341
      %v1343 = vpop.f32.mrb[0].mxu0
      %v1344 = vpop.f32.mrb[0].mxu0
      %v1345 = vadd.f32 0.0, %v1344
      %v1346 = vpop.f32.mrb[0].mxu0
      %1347 = vmatprep.mubr.bf16.mxu0 0
      %1348 = vmatmul.mubr.bf16.gmra.mrb[0].mxu0 %v1198
      %v1349 = vpop.f32.mrb[0].mxu0
      %v1350 = vadd.f32 0.0, %v1349
      %v1351 = vpop.f32.mrb[0].mxu0
      %v1352 = vpop.f32.mrb[0].mxu0
      %v1353 = vadd.f32 0.0, %v1352
      %v1354 = vpop.f32.mrb[0].mxu0
      %1355 = vmatprep.mubr.bf16.mxu0 0
      %1356 = vmatmul.mubr.bf16.gmra.mrb[0].mxu0 %v1201
      %v1357 = vpop.f32.mrb[0].mxu0
      %v1358 = vadd.f32 0.0, %v1357
      %v1359 = vpop.f32.mrb[0].mxu0
      %v1360 = vpop.f32.mrb[0].mxu0
      %v1361 = vadd.f32 0.0, %v1360
      %v1362 = vpop.f32.mrb[0].mxu0
      %1363 = vdwg.mxu0
      %v1364 = vadd.f32 %v1042, %v1238
      %v1365 = vadd.f32 %v1043, %v1241
      %v1366 = vadd.f32 %v1044, %v1246
      %v1367 = vadd.f32 %v1045, %v1249
      %v1368 = vadd.f32 %v1046, %v1254
      %v1369 = vadd.f32 %v1047, %v1257
      %v1370 = vadd.f32 %v1048, %v1262
      %v1371 = vadd.f32 %v1049, %v1265
      %v1372 = vadd.f32 %v1050, %v1270
      %v1373 = vadd.f32 %v1051, %v1273
      %v1374 = vadd.f32 %v1052, %v1278
      %v1375 = vadd.f32 %v1053, %v1281
      %v1376 = vadd.f32 %v1054, %v1286
      %v1377 = vadd.f32 %v1055, %v1289
      %v1378 = vadd.f32 %v1056, %v1294
      %v1379 = vadd.f32 %v1057, %v1297
      %v1380 = vadd.f32 %v1058, %v1302
      %v1381 = vadd.f32 %v1059, %v1305
      %v1382 = vadd.f32 %v1060, %v1310
      %v1383 = vadd.f32 %v1061, %v1313
      %v1384 = vadd.f32 %v1062, %v1318
      %v1385 = vadd.f32 %v1063, %v1321
      %v1386 = vadd.f32 %v1064, %v1326
      %v1387 = vadd.f32 %v1065, %v1329
      %v1388 = vadd.f32 %v1066, %v1334
      %v1389 = vadd.f32 %v1067, %v1337
      %v1390 = vadd.f32 %v1068, %v1342
      %v1391 = vadd.f32 %v1069, %v1345
      %v1392 = vadd.f32 %v1070, %v1350
      %v1393 = vadd.f32 %v1071, %v1353
      %v1394 = vadd.f32 %v1072, %v1358
      %v1395 = vadd.f32 %v1073, %v1361
      %v1396 = vld [vmem:[%s165 + $0x12] sm:$0xff]
      %v1397 = vld [vmem:[%s165 + $0x1a] sm:$0xff]
      %v1398 = vld [vmem:[%s165 + $0x22] sm:$0xff]
      %v1399 = vld [vmem:[%s165 + $0x2a] sm:$0xff]
      %v1400 = vld [vmem:[%s165 + $0x32] sm:$0xff]
      %v1401 = vld [vmem:[%s165 + $0x3a] sm:$0xff]
      %v1402 = vld [vmem:[%s165 + $0x42] sm:$0xff]
      %v1403 = vld [vmem:[%s165 + $0x4a] sm:$0xff]
      %v1404 = vld [vmem:[%s165 + $0x52] sm:$0xff]
      %v1405 = vld [vmem:[%s165 + $0x5a] sm:$0xff]
      %v1406 = vld [vmem:[%s165 + $0x62] sm:$0xff]
      %v1407 = vld [vmem:[%s165 + $0x6a] sm:$0xff]
      %v1408 = vld [vmem:[%s165 + $0x72] sm:$0xff]
      %v1409 = vld [vmem:[%s165 + $0x7a] sm:$0xff]
      %v1410 = vld [vmem:[%s165 + $0x82] sm:$0xff]
      %v1411 = vld [vmem:[%s165 + $0x8a] sm:$0xff]
      %v1412 = vld [vmem:[%s165 + $0x92] sm:$0xff]
      %v1413 = vld [vmem:[%s165 + $0x9a] sm:$0xff]
      %v1414 = vld [vmem:[%s165 + $0xa2] sm:$0xff]
      %v1415 = vld [vmem:[%s165 + $0xaa] sm:$0xff]
      %v1416 = vld [vmem:[%s165 + $0xb2] sm:$0xff]
      %v1417 = vld [vmem:[%s165 + $0xba] sm:$0xff]
      %v1418 = vld [vmem:[%s165 + $0xc2] sm:$0xff]
      %v1419 = vld [vmem:[%s165 + $0xca] sm:$0xff]
      %v1420 = vld [vmem:[%s165 + $0xd2] sm:$0xff]
      %v1421 = vld [vmem:[%s165 + $0xda] sm:$0xff]
      %v1422 = vld [vmem:[%s165 + $0xe2] sm:$0xff]
      %v1423 = vld [vmem:[%s165 + $0xea] sm:$0xff]
      %v1424 = vld [vmem:[%s165 + $0xf2] sm:$0xff]
      %v1425 = vld [vmem:[%s165 + $0xfa] sm:$0xff]
      %v1426 = vld [vmem:[%s165 + $0x102] sm:$0xff]
      %v1427 = vld [vmem:[%s165 + $0x10a] sm:$0x1f]
      %v1428 = vpack.c.bf16 %v1397, %v1396
      %v1429 = vpack.c.bf16 %v1399, %v1398
      %v1430 = vpack.c.bf16 %v1401, %v1400
      %v1431 = vpack.c.bf16 %v1403, %v1402
      %v1432 = vpack.c.bf16 %v1405, %v1404
      %v1433 = vpack.c.bf16 %v1407, %v1406
      %v1434 = vpack.c.bf16 %v1409, %v1408
      %v1435 = vpack.c.bf16 %v1411, %v1410
      %v1436 = vpack.c.bf16 %v1413, %v1412
      %v1437 = vpack.c.bf16 %v1415, %v1414
      %v1438 = vpack.c.bf16 %v1417, %v1416
      %v1439 = vpack.c.bf16 %v1419, %v1418
      %v1440 = vpack.c.bf16 %v1421, %v1420
      %v1441 = vpack.c.bf16 %v1423, %v1422
      %v1442 = vpack.c.bf16 %v1425, %v1424
      %v1443 = vpack.c.bf16 %v1427, %v1426
      %s1444 = scalar_lea.vmem %s1, 128
      %v1445 = vld [vmem:[%s1444] sm:$0xf]
      %v1446 = vld [vmem:[%s1444 + $0x4] sm:$0xf]
      %v1447 = vld [vmem:[%s1444 + $0x8] sm:$0xf]
      %v1448 = vld [vmem:[%s1444 + $0xc] sm:$0xf]
      %v1449 = vld [vmem:[%s1444 + $0x10] sm:$0xf]
      %v1450 = vld [vmem:[%s1444 + $0x14] sm:$0xf]
      %v1451 = vld [vmem:[%s1444 + $0x18] sm:$0xf]
      %v1452 = vld [vmem:[%s1444 + $0x1c] sm:$0xf]
      %v1461 = vunpack.c.l.b16 %v1445
      %v1462 = vunpack.c.l.b16 %v1446
      %v1463 = vunpack.c.l.b16 %v1447
      %v1464 = vunpack.c.l.b16 %v1448
      %v1465 = vunpack.c.l.b16 %v1449
      %v1466 = vunpack.c.l.b16 %v1450
      %v1467 = vunpack.c.l.b16 %v1451
      %v1468 = vunpack.c.l.b16 %v1452
      %v1469 = vpack.c.b16 %v1462, %v1461
      %v1470 = vpack.c.b16 %v1464, %v1463
      %v1471 = vpack.c.b16 %v1466, %v1465
      %v1472 = vpack.c.b16 %v1468, %v1467
      %v1478 = vsel %vm309, %v1428, 0
      %v1481 = vsel %vm309, %v1429, 0
      %v1484 = vsel %vm309, %v1430, 0
      %v1487 = vsel %vm309, %v1431, 0
      %v1490 = vsel %vm309, %v1432, 0
      %v1493 = vsel %vm309, %v1433, 0
      %v1496 = vsel %vm309, %v1434, 0
      %v1499 = vsel %vm309, %v1435, 0
      %v1502 = vsel %vm309, %v1436, 0
      %v1505 = vsel %vm309, %v1437, 0
      %v1508 = vsel %vm309, %v1438, 0
      %v1511 = vsel %vm309, %v1439, 0
      %v1514 = vsel %vm309, %v1440, 0
      %v1517 = vsel %vm309, %v1441, 0
      %v1520 = vsel %vm309, %v1442, 0
      %v1523 = vsel %vm309, %v1443, 0
      %1525 = vmatprep.subr.bf16.mxu0 0
      %1526 = vmatpush1.bf16.msra.mxu0 %v1469
      %1527 = vmatprep.subr.bf16.mxu0 0
      %1528 = vmatpush1.bf16.msra.mxu0 %v1470
      %1529 = vmatprep.subr.bf16.mxu0 0
      %1530 = vmatpush1.bf16.msra.mxu0 %v1471
      %1531 = vmatprep.subr.bf16.mxu0 0
      %1532 = vmatpush1.bf16.msra.mxu0 %v1472
      %1533 = vmatprep.subr.bf16.mxu0 0
      %1534 = vmatpush1.bf16.msra.mxu0 0
      %1535 = vmatprep.subr.bf16.mxu0 0
      %1536 = vmatpush1.bf16.msra.mxu0 0
      %1537 = vmatprep.subr.bf16.mxu0 0
      %1538 = vmatpush1.bf16.msra.mxu0 0
      %1539 = vmatprep.subr.bf16.mxu0 0
      %1540 = vmatpush1.bf16.msra.mxu0 0
      %1541 = vmatprep.subr.bf16.mxu0 0
      %1542 = vmatpush1.bf16.msra.mxu0 0
      %1543 = vmatprep.subr.bf16.mxu0 0
      %1544 = vmatpush1.bf16.msra.mxu0 0
      %1545 = vmatprep.subr.bf16.mxu0 0
      %1546 = vmatpush1.bf16.msra.mxu0 0
      %1547 = vmatprep.subr.bf16.mxu0 0
      %1548 = vmatpush1.bf16.msra.mxu0 0
      %1549 = vmatprep.subr.bf16.mxu0 0
      %1550 = vmatpush1.bf16.msra.mxu0 0
      %1551 = vmatprep.subr.bf16.mxu0 0
      %1552 = vmatpush1.bf16.msra.mxu0 0
      %1553 = vmatprep.subr.bf16.mxu0 0
      %1554 = vmatpush1.bf16.msra.mxu0 0
      %1555 = vmatprep.subr.bf16.mxu0 0
      %1556 = vmatpush1.bf16.msra.mxu0 0
      %1557 = vmatprep.mubr.bf16.mxu0 0
      %1558 = vmatmul.mubr.bf16.gmra.mrb[0].mxu0 %v1478
      %v1559 = vpop.f32.mrb[0].mxu0
      %v1560 = vadd.f32 0.0, %v1559
      %v1561 = vpop.f32.mrb[0].mxu0
      %v1562 = vpop.f32.mrb[0].mxu0
      %v1563 = vadd.f32 0.0, %v1562
      %v1564 = vpop.f32.mrb[0].mxu0
      %1565 = vmatprep.mubr.bf16.mxu0 0
      %1566 = vmatmul.mubr.bf16.gmra.mrb[0].mxu0 %v1481
      %v1567 = vpop.f32.mrb[0].mxu0
      %v1568 = vadd.f32 0.0, %v1567
      %v1569 = vpop.f32.mrb[0].mxu0
      %v1570 = vpop.f32.mrb[0].mxu0
      %v1571 = vadd.f32 0.0, %v1570
      %v1572 = vpop.f32.mrb[0].mxu0
      %1573 = vmatprep.mubr.bf16.mxu0 0
      %1574 = vmatmul.mubr.bf16.gmra.mrb[0].mxu0 %v1484
      %v1575 = vpop.f32.mrb[0].mxu0
      %v1576 = vadd.f32 0.0, %v1575
      %v1577 = vpop.f32.mrb[0].mxu0
      %v1578 = vpop.f32.mrb[0].mxu0
      %v1579 = vadd.f32 0.0, %v1578
      %v1580 = vpop.f32.mrb[0].mxu0
      %1581 = vmatprep.mubr.bf16.mxu0 0
      %1582 = vmatmul.mubr.bf16.gmra.mrb[0].mxu0 %v1487
      %v1583 = vpop.f32.mrb[0].mxu0
      %v1584 = vadd.f32 0.0, %v1583
      %v1585 = vpop.f32.mrb[0].mxu0
      %v1586 = vpop.f32.mrb[0].mxu0
      %v1587 = vadd.f32 0.0, %v1586
      %v1588 = vpop.f32.mrb[0].mxu0
      %1589 = vmatprep.mubr.bf16.mxu0 0
      %1590 = vmatmul.mubr.bf16.gmra.mrb[0].mxu0 %v1490
      %v1591 = vpop.f32.mrb[0].mxu0
      %v1592 = vadd.f32 0.0, %v1591
      %v1593 = vpop.f32.mrb[0].mxu0
      %v1594 = vpop.f32.mrb[0].mxu0
      %v1595 = vadd.f32 0.0, %v1594
      %v1596 = vpop.f32.mrb[0].mxu0
      %1597 = vmatprep.mubr.bf16.mxu0 0
      %1598 = vmatmul.mubr.bf16.gmra.mrb[0].mxu0 %v1493
      %v1599 = vpop.f32.mrb[0].mxu0
      %v1600 = vadd.f32 0.0, %v1599
      %v1601 = vpop.f32.mrb[0].mxu0
      %v1602 = vpop.f32.mrb[0].mxu0
      %v1603 = vadd.f32 0.0, %v1602
      %v1604 = vpop.f32.mrb[0].mxu0
      %1605 = vmatprep.mubr.bf16.mxu0 0
      %1606 = vmatmul.mubr.bf16.gmra.mrb[0].mxu0 %v1496
      %v1607 = vpop.f32.mrb[0].mxu0
      %v1608 = vadd.f32 0.0, %v1607
      %v1609 = vpop.f32.mrb[0].mxu0
      %v1610 = vpop.f32.mrb[0].mxu0
      %v1611 = vadd.f32 0.0, %v1610
      %v1612 = vpop.f32.mrb[0].mxu0
      %1613 = vmatprep.mubr.bf16.mxu0 0
      %1614 = vmatmul.mubr.bf16.gmra.mrb[0].mxu0 %v1499
      %v1615 = vpop.f32.mrb[0].mxu0
      %v1616 = vadd.f32 0.0, %v1615
      %v1617 = vpop.f32.mrb[0].mxu0
      %v1618 = vpop.f32.mrb[0].mxu0
      %v1619 = vadd.f32 0.0, %v1618
      %v1620 = vpop.f32.mrb[0].mxu0
      %1621 = vmatprep.mubr.bf16.mxu0 0
      %1622 = vmatmul.mubr.bf16.gmra.mrb[0].mxu0 %v1502
      %v1623 = vpop.f32.mrb[0].mxu0
      %v1624 = vadd.f32 0.0, %v1623
      %v1625 = vpop.f32.mrb[0].mxu0
      %v1626 = vpop.f32.mrb[0].mxu0
      %v1627 = vadd.f32 0.0, %v1626
      %v1628 = vpop.f32.mrb[0].mxu0
      %1629 = vmatprep.mubr.bf16.mxu0 0
      %1630 = vmatmul.mubr.bf16.gmra.mrb[0].mxu0 %v1505
      %v1631 = vpop.f32.mrb[0].mxu0
      %v1632 = vadd.f32 0.0, %v1631
      %v1633 = vpop.f32.mrb[0].mxu0
      %v1634 = vpop.f32.mrb[0].mxu0
      %v1635 = vadd.f32 0.0, %v1634
      %v1636 = vpop.f32.mrb[0].mxu0
      %1637 = vmatprep.mubr.bf16.mxu0 0
      %1638 = vmatmul.mubr.bf16.gmra.mrb[0].mxu0 %v1508
      %v1639 = vpop.f32.mrb[0].mxu0
      %v1640 = vadd.f32 0.0, %v1639
      %v1641 = vpop.f32.mrb[0].mxu0
      %v1642 = vpop.f32.mrb[0].mxu0
      %v1643 = vadd.f32 0.0, %v1642
      %v1644 = vpop.f32.mrb[0].mxu0
      %1645 = vmatprep.mubr.bf16.mxu0 0
      %1646 = vmatmul.mubr.bf16.gmra.mrb[0].mxu0 %v1511
      %v1647 = vpop.f32.mrb[0].mxu0
      %v1648 = vadd.f32 0.0, %v1647
      %v1649 = vpop.f32.mrb[0].mxu0
      %v1650 = vpop.f32.mrb[0].mxu0
      %v1651 = vadd.f32 0.0, %v1650
      %v1652 = vpop.f32.mrb[0].mxu0
      %1653 = vmatprep.mubr.bf16.mxu0 0
      %1654 = vmatmul.mubr.bf16.gmra.mrb[0].mxu0 %v1514
      %v1655 = vpop.f32.mrb[0].mxu0
      %v1656 = vadd.f32 0.0, %v1655
      %v1657 = vpop.f32.mrb[0].mxu0
      %v1658 = vpop.f32.mrb[0].mxu0
      %v1659 = vadd.f32 0.0, %v1658
      %v1660 = vpop.f32.mrb[0].mxu0
      %1661 = vmatprep.mubr.bf16.mxu0 0
      %1662 = vmatmul.mubr.bf16.gmra.mrb[0].mxu0 %v1517
      %v1663 = vpop.f32.mrb[0].mxu0
      %v1664 = vadd.f32 0.0, %v1663
      %v1665 = vpop.f32.mrb[0].mxu0
      %v1666 = vpop.f32.mrb[0].mxu0
      %v1667 = vadd.f32 0.0, %v1666
      %v1668 = vpop.f32.mrb[0].mxu0
      %1669 = vmatprep.mubr.bf16.mxu0 0
      %1670 = vmatmul.mubr.bf16.gmra.mrb[0].mxu0 %v1520
      %v1671 = vpop.f32.mrb[0].mxu0
      %v1672 = vadd.f32 0.0, %v1671
      %v1673 = vpop.f32.mrb[0].mxu0
      %v1674 = vpop.f32.mrb[0].mxu0
      %v1675 = vadd.f32 0.0, %v1674
      %v1676 = vpop.f32.mrb[0].mxu0
      %1677 = vmatprep.mubr.bf16.mxu0 0
      %1678 = vmatmul.mubr.bf16.gmra.mrb[0].mxu0 %v1523
      %v1679 = vpop.f32.mrb[0].mxu0
      %v1680 = vadd.f32 0.0, %v1679
      %v1681 = vpop.f32.mrb[0].mxu0
      %v1682 = vpop.f32.mrb[0].mxu0
      %v1683 = vadd.f32 0.0, %v1682
      %v1684 = vpop.f32.mrb[0].mxu0
      %1685 = vdwg.mxu0
      %v1686 = vadd.f32 %v1364, %v1560
      %v1687 = vadd.f32 %v1365, %v1563
      %v1688 = vadd.f32 %v1366, %v1568
      %v1689 = vadd.f32 %v1367, %v1571
      %v1690 = vadd.f32 %v1368, %v1576
      %v1691 = vadd.f32 %v1369, %v1579
      %v1692 = vadd.f32 %v1370, %v1584
      %v1693 = vadd.f32 %v1371, %v1587
      %v1694 = vadd.f32 %v1372, %v1592
      %v1695 = vadd.f32 %v1373, %v1595
      %v1696 = vadd.f32 %v1374, %v1600
      %v1697 = vadd.f32 %v1375, %v1603
      %v1698 = vadd.f32 %v1376, %v1608
      %v1699 = vadd.f32 %v1377, %v1611
      %v1700 = vadd.f32 %v1378, %v1616
      %v1701 = vadd.f32 %v1379, %v1619
      %v1702 = vadd.f32 %v1380, %v1624
      %v1703 = vadd.f32 %v1381, %v1627
      %v1704 = vadd.f32 %v1382, %v1632
      %v1705 = vadd.f32 %v1383, %v1635
      %v1706 = vadd.f32 %v1384, %v1640
      %v1707 = vadd.f32 %v1385, %v1643
      %v1708 = vadd.f32 %v1386, %v1648
      %v1709 = vadd.f32 %v1387, %v1651
      %v1710 = vadd.f32 %v1388, %v1656
      %v1711 = vadd.f32 %v1389, %v1659
      %v1712 = vadd.f32 %v1390, %v1664
      %v1713 = vadd.f32 %v1391, %v1667
      %v1714 = vadd.f32 %v1392, %v1672
      %v1715 = vadd.f32 %v1393, %v1675
      %v1716 = vadd.f32 %v1394, %v1680
      %v1717 = vadd.f32 %v1395, %v1683
      %v1718 = vld [vmem:[%s165 + $0x13] sm:$0xff]
      %v1719 = vld [vmem:[%s165 + $0x1b] sm:$0xff]
      %v1720 = vld [vmem:[%s165 + $0x23] sm:$0xff]
      %v1721 = vld [vmem:[%s165 + $0x2b] sm:$0xff]
      %v1722 = vld [vmem:[%s165 + $0x33] sm:$0xff]
      %v1723 = vld [vmem:[%s165 + $0x3b] sm:$0xff]
      %v1724 = vld [vmem:[%s165 + $0x43] sm:$0xff]
      %v1725 = vld [vmem:[%s165 + $0x4b] sm:$0xff]
      %v1726 = vld [vmem:[%s165 + $0x53] sm:$0xff]
      %v1727 = vld [vmem:[%s165 + $0x5b] sm:$0xff]
      %v1728 = vld [vmem:[%s165 + $0x63] sm:$0xff]
      %v1729 = vld [vmem:[%s165 + $0x6b] sm:$0xff]
      %v1730 = vld [vmem:[%s165 + $0x73] sm:$0xff]
      %v1731 = vld [vmem:[%s165 + $0x7b] sm:$0xff]
      %v1732 = vld [vmem:[%s165 + $0x83] sm:$0xff]
      %v1733 = vld [vmem:[%s165 + $0x8b] sm:$0xff]
      %v1734 = vld [vmem:[%s165 + $0x93] sm:$0xff]
      %v1735 = vld [vmem:[%s165 + $0x9b] sm:$0xff]
      %v1736 = vld [vmem:[%s165 + $0xa3] sm:$0xff]
      %v1737 = vld [vmem:[%s165 + $0xab] sm:$0xff]
      %v1738 = vld [vmem:[%s165 + $0xb3] sm:$0xff]
      %v1739 = vld [vmem:[%s165 + $0xbb] sm:$0xff]
      %v1740 = vld [vmem:[%s165 + $0xc3] sm:$0xff]
      %v1741 = vld [vmem:[%s165 + $0xcb] sm:$0xff]
      %v1742 = vld [vmem:[%s165 + $0xd3] sm:$0xff]
      %v1743 = vld [vmem:[%s165 + $0xdb] sm:$0xff]
      %v1744 = vld [vmem:[%s165 + $0xe3] sm:$0xff]
      %v1745 = vld [vmem:[%s165 + $0xeb] sm:$0xff]
      %v1746 = vld [vmem:[%s165 + $0xf3] sm:$0xff]
      %v1747 = vld [vmem:[%s165 + $0xfb] sm:$0xff]
      %v1748 = vld [vmem:[%s165 + $0x103] sm:$0xff]
      %v1749 = vld [vmem:[%s165 + $0x10b] sm:$0x1f]
      %v1750 = vpack.c.bf16 %v1719, %v1718
      %v1751 = vpack.c.bf16 %v1721, %v1720
      %v1752 = vpack.c.bf16 %v1723, %v1722
      %v1753 = vpack.c.bf16 %v1725, %v1724
      %v1754 = vpack.c.bf16 %v1727, %v1726
      %v1755 = vpack.c.bf16 %v1729, %v1728
      %v1756 = vpack.c.bf16 %v1731, %v1730
      %v1757 = vpack.c.bf16 %v1733, %v1732
      %v1758 = vpack.c.bf16 %v1735, %v1734
      %v1759 = vpack.c.bf16 %v1737, %v1736
      %v1760 = vpack.c.bf16 %v1739, %v1738
      %v1761 = vpack.c.bf16 %v1741, %v1740
      %v1762 = vpack.c.bf16 %v1743, %v1742
      %v1763 = vpack.c.bf16 %v1745, %v1744
      %v1764 = vpack.c.bf16 %v1747, %v1746
      %v1765 = vpack.c.bf16 %v1749, %v1748
      %s1766 = scalar_lea.vmem %s1, 160
      %v1767 = vld [vmem:[%s1766] sm:$0xf]
      %v1768 = vld [vmem:[%s1766 + $0x4] sm:$0xf]
      %v1769 = vld [vmem:[%s1766 + $0x8] sm:$0xf]
      %v1770 = vld [vmem:[%s1766 + $0xc] sm:$0xf]
      %v1771 = vld [vmem:[%s1766 + $0x10] sm:$0xf]
      %v1772 = vld [vmem:[%s1766 + $0x14] sm:$0xf]
      %v1773 = vld [vmem:[%s1766 + $0x18] sm:$0xf]
      %v1774 = vld [vmem:[%s1766 + $0x1c] sm:$0xf]
      %v1783 = vunpack.c.l.b16 %v1767
      %v1784 = vunpack.c.l.b16 %v1768
      %v1785 = vunpack.c.l.b16 %v1769
      %v1786 = vunpack.c.l.b16 %v1770
      %v1787 = vunpack.c.l.b16 %v1771
      %v1788 = vunpack.c.l.b16 %v1772
      %v1789 = vunpack.c.l.b16 %v1773
      %v1790 = vunpack.c.l.b16 %v1774
      %v1791 = vpack.c.b16 %v1784, %v1783
      %v1792 = vpack.c.b16 %v1786, %v1785
      %v1793 = vpack.c.b16 %v1788, %v1787
      %v1794 = vpack.c.b16 %v1790, %v1789
      %v1800 = vsel %vm309, %v1750, 0
      %v1803 = vsel %vm309, %v1751, 0
      %v1806 = vsel %vm309, %v1752, 0
      %v1809 = vsel %vm309, %v1753, 0
      %v1812 = vsel %vm309, %v1754, 0
      %v1815 = vsel %vm309, %v1755, 0
      %v1818 = vsel %vm309, %v1756, 0
      %v1821 = vsel %vm309, %v1757, 0
      %v1824 = vsel %vm309, %v1758, 0
      %v1827 = vsel %vm309, %v1759, 0
      %v1830 = vsel %vm309, %v1760, 0
      %v1833 = vsel %vm309, %v1761, 0
      %v1836 = vsel %vm309, %v1762, 0
      %v1839 = vsel %vm309, %v1763, 0
      %v1842 = vsel %vm309, %v1764, 0
      %v1845 = vsel %vm309, %v1765, 0
      %1847 = vmatprep.subr.bf16.mxu0 0
      %1848 = vmatpush1.bf16.msra.mxu0 %v1791
      %1849 = vmatprep.subr.bf16.mxu0 0
      %1850 = vmatpush1.bf16.msra.mxu0 %v1792
      %1851 = vmatprep.subr.bf16.mxu0 0
      %1852 = vmatpush1.bf16.msra.mxu0 %v1793
      %1853 = vmatprep.subr.bf16.mxu0 0
      %1854 = vmatpush1.bf16.msra.mxu0 %v1794
      %1855 = vmatprep.subr.bf16.mxu0 0
      %1856 = vmatpush1.bf16.msra.mxu0 0
      %1857 = vmatprep.subr.bf16.mxu0 0
      %1858 = vmatpush1.bf16.msra.mxu0 0
      %1859 = vmatprep.subr.bf16.mxu0 0
      %1860 = vmatpush1.bf16.msra.mxu0 0
      %1861 = vmatprep.subr.bf16.mxu0 0
      %1862 = vmatpush1.bf16.msra.mxu0 0
      %1863 = vmatprep.subr.bf16.mxu0 0
      %1864 = vmatpush1.bf16.msra.mxu0 0
      %1865 = vmatprep.subr.bf16.mxu0 0
      %1866 = vmatpush1.bf16.msra.mxu0 0
      %1867 = vmatprep.subr.bf16.mxu0 0
      %1868 = vmatpush1.bf16.msra.mxu0 0
      %1869 = vmatprep.subr.bf16.mxu0 0
      %1870 = vmatpush1.bf16.msra.mxu0 0
      %1871 = vmatprep.subr.bf16.mxu0 0
      %1872 = vmatpush1.bf16.msra.mxu0 0
      %1873 = vmatprep.subr.bf16.mxu0 0
      %1874 = vmatpush1.bf16.msra.mxu0 0
      %1875 = vmatprep.subr.bf16.mxu0 0
      %1876 = vmatpush1.bf16.msra.mxu0 0
      %1877 = vmatprep.subr.bf16.mxu0 0
      %1878 = vmatpush1.bf16.msra.mxu0 0
      %1879 = vmatprep.mubr.bf16.mxu0 0
      %1880 = vmatmul.mubr.bf16.gmra.mrb[0].mxu0 %v1800
      %v1881 = vpop.f32.mrb[0].mxu0
      %v1882 = vadd.f32 0.0, %v1881
      %v1883 = vpop.f32.mrb[0].mxu0
      %v1884 = vpop.f32.mrb[0].mxu0
      %v1885 = vadd.f32 0.0, %v1884
      %v1886 = vpop.f32.mrb[0].mxu0
      %1887 = vmatprep.mubr.bf16.mxu0 0
      %1888 = vmatmul.mubr.bf16.gmra.mrb[0].mxu0 %v1803
      %v1889 = vpop.f32.mrb[0].mxu0
      %v1890 = vadd.f32 0.0, %v1889
      %v1891 = vpop.f32.mrb[0].mxu0
      %v1892 = vpop.f32.mrb[0].mxu0
      %v1893 = vadd.f32 0.0, %v1892
      %v1894 = vpop.f32.mrb[0].mxu0
      %1895 = vmatprep.mubr.bf16.mxu0 0
      %1896 = vmatmul.mubr.bf16.gmra.mrb[0].mxu0 %v1806
      %v1897 = vpop.f32.mrb[0].mxu0
      %v1898 = vadd.f32 0.0, %v1897
      %v1899 = vpop.f32.mrb[0].mxu0
      %v1900 = vpop.f32.mrb[0].mxu0
      %v1901 = vadd.f32 0.0, %v1900
      %v1902 = vpop.f32.mrb[0].mxu0
      %1903 = vmatprep.mubr.bf16.mxu0 0
      %1904 = vmatmul.mubr.bf16.gmra.mrb[0].mxu0 %v1809
      %v1905 = vpop.f32.mrb[0].mxu0
      %v1906 = vadd.f32 0.0, %v1905
      %v1907 = vpop.f32.mrb[0].mxu0
      %v1908 = vpop.f32.mrb[0].mxu0
      %v1909 = vadd.f32 0.0, %v1908
      %v1910 = vpop.f32.mrb[0].mxu0
      %1911 = vmatprep.mubr.bf16.mxu0 0
      %1912 = vmatmul.mubr.bf16.gmra.mrb[0].mxu0 %v1812
      %v1913 = vpop.f32.mrb[0].mxu0
      %v1914 = vadd.f32 0.0, %v1913
      %v1915 = vpop.f32.mrb[0].mxu0
      %v1916 = vpop.f32.mrb[0].mxu0
      %v1917 = vadd.f32 0.0, %v1916
      %v1918 = vpop.f32.mrb[0].mxu0
      %1919 = vmatprep.mubr.bf16.mxu0 0
      %1920 = vmatmul.mubr.bf16.gmra.mrb[0].mxu0 %v1815
      %v1921 = vpop.f32.mrb[0].mxu0
      %v1922 = vadd.f32 0.0, %v1921
      %v1923 = vpop.f32.mrb[0].mxu0
      %v1924 = vpop.f32.mrb[0].mxu0
      %v1925 = vadd.f32 0.0, %v1924
      %v1926 = vpop.f32.mrb[0].mxu0
      %1927 = vmatprep.mubr.bf16.mxu0 0
      %1928 = vmatmul.mubr.bf16.gmra.mrb[0].mxu0 %v1818
      %v1929 = vpop.f32.mrb[0].mxu0
      %v1930 = vadd.f32 0.0, %v1929
      %v1931 = vpop.f32.mrb[0].mxu0
      %v1932 = vpop.f32.mrb[0].mxu0
      %v1933 = vadd.f32 0.0, %v1932
      %v1934 = vpop.f32.mrb[0].mxu0
      %1935 = vmatprep.mubr.bf16.mxu0 0
      %1936 = vmatmul.mubr.bf16.gmra.mrb[0].mxu0 %v1821
      %v1937 = vpop.f32.mrb[0].mxu0
      %v1938 = vadd.f32 0.0, %v1937
      %v1939 = vpop.f32.mrb[0].mxu0
      %v1940 = vpop.f32.mrb[0].mxu0
      %v1941 = vadd.f32 0.0, %v1940
      %v1942 = vpop.f32.mrb[0].mxu0
      %1943 = vmatprep.mubr.bf16.mxu0 0
      %1944 = vmatmul.mubr.bf16.gmra.mrb[0].mxu0 %v1824
      %v1945 = vpop.f32.mrb[0].mxu0
      %v1946 = vadd.f32 0.0, %v1945
      %v1947 = vpop.f32.mrb[0].mxu0
      %v1948 = vpop.f32.mrb[0].mxu0
      %v1949 = vadd.f32 0.0, %v1948
      %v1950 = vpop.f32.mrb[0].mxu0
      %1951 = vmatprep.mubr.bf16.mxu0 0
      %1952 = vmatmul.mubr.bf16.gmra.mrb[0].mxu0 %v1827
      %v1953 = vpop.f32.mrb[0].mxu0
      %v1954 = vadd.f32 0.0, %v1953
      %v1955 = vpop.f32.mrb[0].mxu0
      %v1956 = vpop.f32.mrb[0].mxu0
      %v1957 = vadd.f32 0.0, %v1956
      %v1958 = vpop.f32.mrb[0].mxu0
      %1959 = vmatprep.mubr.bf16.mxu0 0
      %1960 = vmatmul.mubr.bf16.gmra.mrb[0].mxu0 %v1830
      %v1961 = vpop.f32.mrb[0].mxu0
      %v1962 = vadd.f32 0.0, %v1961
      %v1963 = vpop.f32.mrb[0].mxu0
      %v1964 = vpop.f32.mrb[0].mxu0
      %v1965 = vadd.f32 0.0, %v1964
      %v1966 = vpop.f32.mrb[0].mxu0
      %1967 = vmatprep.mubr.bf16.mxu0 0
      %1968 = vmatmul.mubr.bf16.gmra.mrb[0].mxu0 %v1833
      %v1969 = vpop.f32.mrb[0].mxu0
      %v1970 = vadd.f32 0.0, %v1969
      %v1971 = vpop.f32.mrb[0].mxu0
      %v1972 = vpop.f32.mrb[0].mxu0
      %v1973 = vadd.f32 0.0, %v1972
      %v1974 = vpop.f32.mrb[0].mxu0
      %1975 = vmatprep.mubr.bf16.mxu0 0
      %1976 = vmatmul.mubr.bf16.gmra.mrb[0].mxu0 %v1836
      %v1977 = vpop.f32.mrb[0].mxu0
      %v1978 = vadd.f32 0.0, %v1977
      %v1979 = vpop.f32.mrb[0].mxu0
      %v1980 = vpop.f32.mrb[0].mxu0
      %v1981 = vadd.f32 0.0, %v1980
      %v1982 = vpop.f32.mrb[0].mxu0
      %1983 = vmatprep.mubr.bf16.mxu0 0
      %1984 = vmatmul.mubr.bf16.gmra.mrb[0].mxu0 %v1839
      %v1985 = vpop.f32.mrb[0].mxu0
      %v1986 = vadd.f32 0.0, %v1985
      %v1987 = vpop.f32.mrb[0].mxu0
      %v1988 = vpop.f32.mrb[0].mxu0
      %v1989 = vadd.f32 0.0, %v1988
      %v1990 = vpop.f32.mrb[0].mxu0
      %1991 = vmatprep.mubr.bf16.mxu0 0
      %1992 = vmatmul.mubr.bf16.gmra.mrb[0].mxu0 %v1842
      %v1993 = vpop.f32.mrb[0].mxu0
      %v1994 = vadd.f32 0.0, %v1993
      %v1995 = vpop.f32.mrb[0].mxu0
      %v1996 = vpop.f32.mrb[0].mxu0
      %v1997 = vadd.f32 0.0, %v1996
      %v1998 = vpop.f32.mrb[0].mxu0
      %1999 = vmatprep.mubr.bf16.mxu0 0
      %2000 = vmatmul.mubr.bf16.gmra.mrb[0].mxu0 %v1845
      %v2001 = vpop.f32.mrb[0].mxu0
      %v2002 = vadd.f32 0.0, %v2001
      %v2003 = vpop.f32.mrb[0].mxu0
      %v2004 = vpop.f32.mrb[0].mxu0
      %v2005 = vadd.f32 0.0, %v2004
      %v2006 = vpop.f32.mrb[0].mxu0
      %2007 = vdwg.mxu0
      %v2008 = vadd.f32 %v1686, %v1882
      %v2009 = vadd.f32 %v1687, %v1885
      %v2010 = vadd.f32 %v1688, %v1890
      %v2011 = vadd.f32 %v1689, %v1893
      %v2012 = vadd.f32 %v1690, %v1898
      %v2013 = vadd.f32 %v1691, %v1901
      %v2014 = vadd.f32 %v1692, %v1906
      %v2015 = vadd.f32 %v1693, %v1909
      %v2016 = vadd.f32 %v1694, %v1914
      %v2017 = vadd.f32 %v1695, %v1917
      %v2018 = vadd.f32 %v1696, %v1922
      %v2019 = vadd.f32 %v1697, %v1925
      %v2020 = vadd.f32 %v1698, %v1930
      %v2021 = vadd.f32 %v1699, %v1933
      %v2022 = vadd.f32 %v1700, %v1938
      %v2023 = vadd.f32 %v1701, %v1941
      %v2024 = vadd.f32 %v1702, %v1946
      %v2025 = vadd.f32 %v1703, %v1949
      %v2026 = vadd.f32 %v1704, %v1954
      %v2027 = vadd.f32 %v1705, %v1957
      %v2028 = vadd.f32 %v1706, %v1962
      %v2029 = vadd.f32 %v1707, %v1965
      %v2030 = vadd.f32 %v1708, %v1970
      %v2031 = vadd.f32 %v1709, %v1973
      %v2032 = vadd.f32 %v1710, %v1978
      %v2033 = vadd.f32 %v1711, %v1981
      %v2034 = vadd.f32 %v1712, %v1986
      %v2035 = vadd.f32 %v1713, %v1989
      %v2036 = vadd.f32 %v1714, %v1994
      %v2037 = vadd.f32 %v1715, %v1997
      %v2038 = vadd.f32 %v1716, %v2002
      %v2039 = vadd.f32 %v1717, %v2005
      %v2040 = vld [vmem:[%s165 + $0x22] sm:$0xff]
      %v2041 = vld [vmem:[%s165 + $0x2a] sm:$0xff]
      %v2042 = vld [vmem:[%s165 + $0x32] sm:$0xff]
      %v2043 = vld [vmem:[%s165 + $0x3a] sm:$0xff]
      %v2044 = vld [vmem:[%s165 + $0x42] sm:$0xff]
      %v2045 = vld [vmem:[%s165 + $0x4a] sm:$0xff]
      %v2046 = vld [vmem:[%s165 + $0x52] sm:$0xff]
      %v2047 = vld [vmem:[%s165 + $0x5a] sm:$0xff]
      %v2048 = vld [vmem:[%s165 + $0x62] sm:$0xff]
      %v2049 = vld [vmem:[%s165 + $0x6a] sm:$0xff]
      %v2050 = vld [vmem:[%s165 + $0x72] sm:$0xff]
      %v2051 = vld [vmem:[%s165 + $0x7a] sm:$0xff]
      %v2052 = vld [vmem:[%s165 + $0x82] sm:$0xff]
      %v2053 = vld [vmem:[%s165 + $0x8a] sm:$0xff]
      %v2054 = vld [vmem:[%s165 + $0x92] sm:$0xff]
      %v2055 = vld [vmem:[%s165 + $0x9a] sm:$0xff]
      %v2056 = vld [vmem:[%s165 + $0xa2] sm:$0xff]
      %v2057 = vld [vmem:[%s165 + $0xaa] sm:$0xff]
      %v2058 = vld [vmem:[%s165 + $0xb2] sm:$0xff]
      %v2059 = vld [vmem:[%s165 + $0xba] sm:$0xff]
      %v2060 = vld [vmem:[%s165 + $0xc2] sm:$0xff]
      %v2061 = vld [vmem:[%s165 + $0xca] sm:$0xff]
      %v2062 = vld [vmem:[%s165 + $0xd2] sm:$0xff]
      %v2063 = vld [vmem:[%s165 + $0xda] sm:$0xff]
      %v2064 = vld [vmem:[%s165 + $0xe2] sm:$0xff]
      %v2065 = vld [vmem:[%s165 + $0xea] sm:$0xff]
      %v2066 = vld [vmem:[%s165 + $0xf2] sm:$0xff]
      %v2067 = vld [vmem:[%s165 + $0xfa] sm:$0xff]
      %v2068 = vld [vmem:[%s165 + $0x102] sm:$0xff]
      %v2069 = vld [vmem:[%s165 + $0x10a] sm:$0xff]
      %v2070 = vld [vmem:[%s165 + $0x112] sm:$0xff]
      %v2071 = vld [vmem:[%s165 + $0x11a] sm:$0x1f]
      %v2072 = vpack.c.bf16 %v2041, %v2040
      %v2073 = vpack.c.bf16 %v2043, %v2042
      %v2074 = vpack.c.bf16 %v2045, %v2044
      %v2075 = vpack.c.bf16 %v2047, %v2046
      %v2076 = vpack.c.bf16 %v2049, %v2048
      %v2077 = vpack.c.bf16 %v2051, %v2050
      %v2078 = vpack.c.bf16 %v2053, %v2052
      %v2079 = vpack.c.bf16 %v2055, %v2054
      %v2080 = vpack.c.bf16 %v2057, %v2056
      %v2081 = vpack.c.bf16 %v2059, %v2058
      %v2082 = vpack.c.bf16 %v2061, %v2060
      %v2083 = vpack.c.bf16 %v2063, %v2062
      %v2084 = vpack.c.bf16 %v2065, %v2064
      %v2085 = vpack.c.bf16 %v2067, %v2066
      %v2086 = vpack.c.bf16 %v2069, %v2068
      %v2087 = vpack.c.bf16 %v2071, %v2070
      %s2088 = scalar_lea.vmem %s1, 192
      %v2089 = vld [vmem:[%s2088] sm:$0xf]
      %v2090 = vld [vmem:[%s2088 + $0x4] sm:$0xf]
      %v2091 = vld [vmem:[%s2088 + $0x8] sm:$0xf]
      %v2092 = vld [vmem:[%s2088 + $0xc] sm:$0xf]
      %v2093 = vld [vmem:[%s2088 + $0x10] sm:$0xf]
      %v2094 = vld [vmem:[%s2088 + $0x14] sm:$0xf]
      %v2095 = vld [vmem:[%s2088 + $0x18] sm:$0xf]
      %v2096 = vld [vmem:[%s2088 + $0x1c] sm:$0xf]
      %v2105 = vunpack.c.l.b16 %v2089
      %v2106 = vunpack.c.l.b16 %v2090
      %v2107 = vunpack.c.l.b16 %v2091
      %v2108 = vunpack.c.l.b16 %v2092
      %v2109 = vunpack.c.l.b16 %v2093
      %v2110 = vunpack.c.l.b16 %v2094
      %v2111 = vunpack.c.l.b16 %v2095
      %v2112 = vunpack.c.l.b16 %v2096
      %v2113 = vpack.c.b16 %v2106, %v2105
      %v2114 = vpack.c.b16 %v2108, %v2107
      %v2115 = vpack.c.b16 %v2110, %v2109
      %v2116 = vpack.c.b16 %v2112, %v2111
      %v2122 = vsel %vm309, %v2072, 0
      %v2125 = vsel %vm309, %v2073, 0
      %v2128 = vsel %vm309, %v2074, 0
      %v2131 = vsel %vm309, %v2075, 0
      %v2134 = vsel %vm309, %v2076, 0
      %v2137 = vsel %vm309, %v2077, 0
      %v2140 = vsel %vm309, %v2078, 0
      %v2143 = vsel %vm309, %v2079, 0
      %v2146 = vsel %vm309, %v2080, 0
      %v2149 = vsel %vm309, %v2081, 0
      %v2152 = vsel %vm309, %v2082, 0
      %v2155 = vsel %vm309, %v2083, 0
      %v2158 = vsel %vm309, %v2084, 0
      %v2161 = vsel %vm309, %v2085, 0
      %v2164 = vsel %vm309, %v2086, 0
      %v2167 = vsel %vm309, %v2087, 0
      %2169 = vmatprep.subr.bf16.mxu0 0
      %2170 = vmatpush1.bf16.msra.mxu0 %v2113
      %2171 = vmatprep.subr.bf16.mxu0 0
      %2172 = vmatpush1.bf16.msra.mxu0 %v2114
      %2173 = vmatprep.subr.bf16.mxu0 0
      %2174 = vmatpush1.bf16.msra.mxu0 %v2115
      %2175 = vmatprep.subr.bf16.mxu0 0
      %2176 = vmatpush1.bf16.msra.mxu0 %v2116
      %2177 = vmatprep.subr.bf16.mxu0 0
      %2178 = vmatpush1.bf16.msra.mxu0 0
      %2179 = vmatprep.subr.bf16.mxu0 0
      %2180 = vmatpush1.bf16.msra.mxu0 0
      %2181 = vmatprep.subr.bf16.mxu0 0
      %2182 = vmatpush1.bf16.msra.mxu0 0
      %2183 = vmatprep.subr.bf16.mxu0 0
      %2184 = vmatpush1.bf16.msra.mxu0 0
      %2185 = vmatprep.subr.bf16.mxu0 0
      %2186 = vmatpush1.bf16.msra.mxu0 0
      %2187 = vmatprep.subr.bf16.mxu0 0
      %2188 = vmatpush1.bf16.msra.mxu0 0
      %2189 = vmatprep.subr.bf16.mxu0 0
      %2190 = vmatpush1.bf16.msra.mxu0 0
      %2191 = vmatprep.subr.bf16.mxu0 0
      %2192 = vmatpush1.bf16.msra.mxu0 0
      %2193 = vmatprep.subr.bf16.mxu0 0
      %2194 = vmatpush1.bf16.msra.mxu0 0
      %2195 = vmatprep.subr.bf16.mxu0 0
      %2196 = vmatpush1.bf16.msra.mxu0 0
      %2197 = vmatprep.subr.bf16.mxu0 0
      %2198 = vmatpush1.bf16.msra.mxu0 0
      %2199 = vmatprep.subr.bf16.mxu0 0
      %2200 = vmatpush1.bf16.msra.mxu0 0
      %2201 = vmatprep.mubr.bf16.mxu0 0
      %2202 = vmatmul.mubr.bf16.gmra.mrb[0].mxu0 %v2122
      %v2203 = vpop.f32.mrb[0].mxu0
      %v2204 = vadd.f32 0.0, %v2203
      %v2205 = vpop.f32.mrb[0].mxu0
      %v2206 = vpop.f32.mrb[0].mxu0
      %v2207 = vadd.f32 0.0, %v2206
      %v2208 = vpop.f32.mrb[0].mxu0
      %2209 = vmatprep.mubr.bf16.mxu0 0
      %2210 = vmatmul.mubr.bf16.gmra.mrb[0].mxu0 %v2125
      %v2211 = vpop.f32.mrb[0].mxu0
      %v2212 = vadd.f32 0.0, %v2211
      %v2213 = vpop.f32.mrb[0].mxu0
      %v2214 = vpop.f32.mrb[0].mxu0
      %v2215 = vadd.f32 0.0, %v2214
      %v2216 = vpop.f32.mrb[0].mxu0
      %2217 = vmatprep.mubr.bf16.mxu0 0
      %2218 = vmatmul.mubr.bf16.gmra.mrb[0].mxu0 %v2128
      %v2219 = vpop.f32.mrb[0].mxu0
      %v2220 = vadd.f32 0.0, %v2219
      %v2221 = vpop.f32.mrb[0].mxu0
      %v2222 = vpop.f32.mrb[0].mxu0
      %v2223 = vadd.f32 0.0, %v2222
      %v2224 = vpop.f32.mrb[0].mxu0
      %2225 = vmatprep.mubr.bf16.mxu0 0
      %2226 = vmatmul.mubr.bf16.gmra.mrb[0].mxu0 %v2131
      %v2227 = vpop.f32.mrb[0].mxu0
      %v2228 = vadd.f32 0.0, %v2227
      %v2229 = vpop.f32.mrb[0].mxu0
      %v2230 = vpop.f32.mrb[0].mxu0
      %v2231 = vadd.f32 0.0, %v2230
      %v2232 = vpop.f32.mrb[0].mxu0
      %2233 = vmatprep.mubr.bf16.mxu0 0
      %2234 = vmatmul.mubr.bf16.gmra.mrb[0].mxu0 %v2134
      %v2235 = vpop.f32.mrb[0].mxu0
      %v2236 = vadd.f32 0.0, %v2235
      %v2237 = vpop.f32.mrb[0].mxu0
      %v2238 = vpop.f32.mrb[0].mxu0
      %v2239 = vadd.f32 0.0, %v2238
      %v2240 = vpop.f32.mrb[0].mxu0
      %2241 = vmatprep.mubr.bf16.mxu0 0
      %2242 = vmatmul.mubr.bf16.gmra.mrb[0].mxu0 %v2137
      %v2243 = vpop.f32.mrb[0].mxu0
      %v2244 = vadd.f32 0.0, %v2243
      %v2245 = vpop.f32.mrb[0].mxu0
      %v2246 = vpop.f32.mrb[0].mxu0
      %v2247 = vadd.f32 0.0, %v2246
      %v2248 = vpop.f32.mrb[0].mxu0
      %2249 = vmatprep.mubr.bf16.mxu0 0
      %2250 = vmatmul.mubr.bf16.gmra.mrb[0].mxu0 %v2140
      %v2251 = vpop.f32.mrb[0].mxu0
      %v2252 = vadd.f32 0.0, %v2251
      %v2253 = vpop.f32.mrb[0].mxu0
      %v2254 = vpop.f32.mrb[0].mxu0
      %v2255 = vadd.f32 0.0, %v2254
      %v2256 = vpop.f32.mrb[0].mxu0
      %2257 = vmatprep.mubr.bf16.mxu0 0
      %2258 = vmatmul.mubr.bf16.gmra.mrb[0].mxu0 %v2143
      %v2259 = vpop.f32.mrb[0].mxu0
      %v2260 = vadd.f32 0.0, %v2259
      %v2261 = vpop.f32.mrb[0].mxu0
      %v2262 = vpop.f32.mrb[0].mxu0
      %v2263 = vadd.f32 0.0, %v2262
      %v2264 = vpop.f32.mrb[0].mxu0
      %2265 = vmatprep.mubr.bf16.mxu0 0
      %2266 = vmatmul.mubr.bf16.gmra.mrb[0].mxu0 %v2146
      %v2267 = vpop.f32.mrb[0].mxu0
      %v2268 = vadd.f32 0.0, %v2267
      %v2269 = vpop.f32.mrb[0].mxu0
      %v2270 = vpop.f32.mrb[0].mxu0
      %v2271 = vadd.f32 0.0, %v2270
      %v2272 = vpop.f32.mrb[0].mxu0
      %2273 = vmatprep.mubr.bf16.mxu0 0
      %2274 = vmatmul.mubr.bf16.gmra.mrb[0].mxu0 %v2149
      %v2275 = vpop.f32.mrb[0].mxu0
      %v2276 = vadd.f32 0.0, %v2275
      %v2277 = vpop.f32.mrb[0].mxu0
      %v2278 = vpop.f32.mrb[0].mxu0
      %v2279 = vadd.f32 0.0, %v2278
      %v2280 = vpop.f32.mrb[0].mxu0
      %2281 = vmatprep.mubr.bf16.mxu0 0
      %2282 = vmatmul.mubr.bf16.gmra.mrb[0].mxu0 %v2152
      %v2283 = vpop.f32.mrb[0].mxu0
      %v2284 = vadd.f32 0.0, %v2283
      %v2285 = vpop.f32.mrb[0].mxu0
      %v2286 = vpop.f32.mrb[0].mxu0
      %v2287 = vadd.f32 0.0, %v2286
      %v2288 = vpop.f32.mrb[0].mxu0
      %2289 = vmatprep.mubr.bf16.mxu0 0
      %2290 = vmatmul.mubr.bf16.gmra.mrb[0].mxu0 %v2155
      %v2291 = vpop.f32.mrb[0].mxu0
      %v2292 = vadd.f32 0.0, %v2291
      %v2293 = vpop.f32.mrb[0].mxu0
      %v2294 = vpop.f32.mrb[0].mxu0
      %v2295 = vadd.f32 0.0, %v2294
      %v2296 = vpop.f32.mrb[0].mxu0
      %2297 = vmatprep.mubr.bf16.mxu0 0
      %2298 = vmatmul.mubr.bf16.gmra.mrb[0].mxu0 %v2158
      %v2299 = vpop.f32.mrb[0].mxu0
      %v2300 = vadd.f32 0.0, %v2299
      %v2301 = vpop.f32.mrb[0].mxu0
      %v2302 = vpop.f32.mrb[0].mxu0
      %v2303 = vadd.f32 0.0, %v2302
      %v2304 = vpop.f32.mrb[0].mxu0
      %2305 = vmatprep.mubr.bf16.mxu0 0
      %2306 = vmatmul.mubr.bf16.gmra.mrb[0].mxu0 %v2161
      %v2307 = vpop.f32.mrb[0].mxu0
      %v2308 = vadd.f32 0.0, %v2307
      %v2309 = vpop.f32.mrb[0].mxu0
      %v2310 = vpop.f32.mrb[0].mxu0
      %v2311 = vadd.f32 0.0, %v2310
      %v2312 = vpop.f32.mrb[0].mxu0
      %2313 = vmatprep.mubr.bf16.mxu0 0
      %2314 = vmatmul.mubr.bf16.gmra.mrb[0].mxu0 %v2164
      %v2315 = vpop.f32.mrb[0].mxu0
      %v2316 = vadd.f32 0.0, %v2315
      %v2317 = vpop.f32.mrb[0].mxu0
      %v2318 = vpop.f32.mrb[0].mxu0
      %v2319 = vadd.f32 0.0, %v2318
      %v2320 = vpop.f32.mrb[0].mxu0
      %2321 = vmatprep.mubr.bf16.mxu0 0
      %2322 = vmatmul.mubr.bf16.gmra.mrb[0].mxu0 %v2167
      %v2323 = vpop.f32.mrb[0].mxu0
      %v2324 = vadd.f32 0.0, %v2323
      %v2325 = vpop.f32.mrb[0].mxu0
      %v2326 = vpop.f32.mrb[0].mxu0
      %v2327 = vadd.f32 0.0, %v2326
      %v2328 = vpop.f32.mrb[0].mxu0
      %2329 = vdwg.mxu0
      %v2330 = vadd.f32 %v2008, %v2204
      %v2331 = vadd.f32 %v2009, %v2207
      %v2332 = vadd.f32 %v2010, %v2212
      %v2333 = vadd.f32 %v2011, %v2215
      %v2334 = vadd.f32 %v2012, %v2220
      %v2335 = vadd.f32 %v2013, %v2223
      %v2336 = vadd.f32 %v2014, %v2228
      %v2337 = vadd.f32 %v2015, %v2231
      %v2338 = vadd.f32 %v2016, %v2236
      %v2339 = vadd.f32 %v2017, %v2239
      %v2340 = vadd.f32 %v2018, %v2244
      %v2341 = vadd.f32 %v2019, %v2247
      %v2342 = vadd.f32 %v2020, %v2252
      %v2343 = vadd.f32 %v2021, %v2255
      %v2344 = vadd.f32 %v2022, %v2260
      %v2345 = vadd.f32 %v2023, %v2263
      %v2346 = vadd.f32 %v2024, %v2268
      %v2347 = vadd.f32 %v2025, %v2271
      %v2348 = vadd.f32 %v2026, %v2276
      %v2349 = vadd.f32 %v2027, %v2279
      %v2350 = vadd.f32 %v2028, %v2284
      %v2351 = vadd.f32 %v2029, %v2287
      %v2352 = vadd.f32 %v2030, %v2292
      %v2353 = vadd.f32 %v2031, %v2295
      %v2354 = vadd.f32 %v2032, %v2300
      %v2355 = vadd.f32 %v2033, %v2303
      %v2356 = vadd.f32 %v2034, %v2308
      %v2357 = vadd.f32 %v2035, %v2311
      %v2358 = vadd.f32 %v2036, %v2316
      %v2359 = vadd.f32 %v2037, %v2319
      %v2360 = vadd.f32 %v2038, %v2324
      %v2361 = vadd.f32 %v2039, %v2327
      %v2362 = vld [vmem:[%s165 + $0x23] sm:$0xff]
      %v2363 = vld [vmem:[%s165 + $0x2b] sm:$0xff]
      %v2364 = vld [vmem:[%s165 + $0x33] sm:$0xff]
      %v2365 = vld [vmem:[%s165 + $0x3b] sm:$0xff]
      %v2366 = vld [vmem:[%s165 + $0x43] sm:$0xff]
      %v2367 = vld [vmem:[%s165 + $0x4b] sm:$0xff]
      %v2368 = vld [vmem:[%s165 + $0x53] sm:$0xff]
      %v2369 = vld [vmem:[%s165 + $0x5b] sm:$0xff]
      %v2370 = vld [vmem:[%s165 + $0x63] sm:$0xff]
      %v2371 = vld [vmem:[%s165 + $0x6b] sm:$0xff]
      %v2372 = vld [vmem:[%s165 + $0x73] sm:$0xff]
      %v2373 = vld [vmem:[%s165 + $0x7b] sm:$0xff]
      %v2374 = vld [vmem:[%s165 + $0x83] sm:$0xff]
      %v2375 = vld [vmem:[%s165 + $0x8b] sm:$0xff]
      %v2376 = vld [vmem:[%s165 + $0x93] sm:$0xff]
      %v2377 = vld [vmem:[%s165 + $0x9b] sm:$0xff]
      %v2378 = vld [vmem:[%s165 + $0xa3] sm:$0xff]
      %v2379 = vld [vmem:[%s165 + $0xab] sm:$0xff]
      %v2380 = vld [vmem:[%s165 + $0xb3] sm:$0xff]
      %v2381 = vld [vmem:[%s165 + $0xbb] sm:$0xff]
      %v2382 = vld [vmem:[%s165 + $0xc3] sm:$0xff]
      %v2383 = vld [vmem:[%s165 + $0xcb] sm:$0xff]
      %v2384 = vld [vmem:[%s165 + $0xd3] sm:$0xff]
      %v2385 = vld [vmem:[%s165 + $0xdb] sm:$0xff]
      %v2386 = vld [vmem:[%s165 + $0xe3] sm:$0xff]
      %v2387 = vld [vmem:[%s165 + $0xeb] sm:$0xff]
      %v2388 = vld [vmem:[%s165 + $0xf3] sm:$0xff]
      %v2389 = vld [vmem:[%s165 + $0xfb] sm:$0xff]
      %v2390 = vld [vmem:[%s165 + $0x103] sm:$0xff]
      %v2391 = vld [vmem:[%s165 + $0x10b] sm:$0xff]
      %v2392 = vld [vmem:[%s165 + $0x113] sm:$0xff]
      %v2393 = vld [vmem:[%s165 + $0x11b] sm:$0x1f]
      %v2394 = vpack.c.bf16 %v2363, %v2362
      %v2395 = vpack.c.bf16 %v2365, %v2364
      %v2396 = vpack.c.bf16 %v2367, %v2366
      %v2397 = vpack.c.bf16 %v2369, %v2368
      %v2398 = vpack.c.bf16 %v2371, %v2370
      %v2399 = vpack.c.bf16 %v2373, %v2372
      %v2400 = vpack.c.bf16 %v2375, %v2374
      %v2401 = vpack.c.bf16 %v2377, %v2376
      %v2402 = vpack.c.bf16 %v2379, %v2378
      %v2403 = vpack.c.bf16 %v2381, %v2380
      %v2404 = vpack.c.bf16 %v2383, %v2382
      %v2405 = vpack.c.bf16 %v2385, %v2384
      %v2406 = vpack.c.bf16 %v2387, %v2386
      %v2407 = vpack.c.bf16 %v2389, %v2388
      %v2408 = vpack.c.bf16 %v2391, %v2390
      %v2409 = vpack.c.bf16 %v2393, %v2392
      %s2410 = scalar_lea.vmem %s1, 224
      %v2411 = vld [vmem:[%s2410] sm:$0xf]
      %v2412 = vld [vmem:[%s2410 + $0x4] sm:$0xf]
      %v2413 = vld [vmem:[%s2410 + $0x8] sm:$0xf]
      %v2414 = vld [vmem:[%s2410 + $0xc] sm:$0xf]
      %v2415 = vld [vmem:[%s2410 + $0x10] sm:$0xf]
      %v2416 = vld [vmem:[%s2410 + $0x14] sm:$0xf]
      %v2417 = vld [vmem:[%s2410 + $0x18] sm:$0xf]
      %v2418 = vld [vmem:[%s2410 + $0x1c] sm:$0xf]
      %v2427 = vunpack.c.l.b16 %v2411
      %v2428 = vunpack.c.l.b16 %v2412
      %v2429 = vunpack.c.l.b16 %v2413
      %v2430 = vunpack.c.l.b16 %v2414
      %v2431 = vunpack.c.l.b16 %v2415
      %v2432 = vunpack.c.l.b16 %v2416
      %v2433 = vunpack.c.l.b16 %v2417
      %v2434 = vunpack.c.l.b16 %v2418
      %v2435 = vpack.c.b16 %v2428, %v2427
      %v2436 = vpack.c.b16 %v2430, %v2429
      %v2437 = vpack.c.b16 %v2432, %v2431
      %v2438 = vpack.c.b16 %v2434, %v2433
      %v2444 = vsel %vm309, %v2394, 0
      %v2447 = vsel %vm309, %v2395, 0
      %v2450 = vsel %vm309, %v2396, 0
      %v2453 = vsel %vm309, %v2397, 0
      %v2456 = vsel %vm309, %v2398, 0
      %v2459 = vsel %vm309, %v2399, 0
      %v2462 = vsel %vm309, %v2400, 0
      %v2465 = vsel %vm309, %v2401, 0
      %v2468 = vsel %vm309, %v2402, 0
      %v2471 = vsel %vm309, %v2403, 0
      %v2474 = vsel %vm309, %v2404, 0
      %v2477 = vsel %vm309, %v2405, 0
      %v2480 = vsel %vm309, %v2406, 0
      %v2483 = vsel %vm309, %v2407, 0
      %v2486 = vsel %vm309, %v2408, 0
      %v2489 = vsel %vm309, %v2409, 0
      %2491 = vmatprep.subr.bf16.mxu0 0
      %2492 = vmatpush1.bf16.msra.mxu0 %v2435
      %2493 = vmatprep.subr.bf16.mxu0 0
      %2494 = vmatpush1.bf16.msra.mxu0 %v2436
      %2495 = vmatprep.subr.bf16.mxu0 0
      %2496 = vmatpush1.bf16.msra.mxu0 %v2437
      %2497 = vmatprep.subr.bf16.mxu0 0
      %2498 = vmatpush1.bf16.msra.mxu0 %v2438
      %2499 = vmatprep.subr.bf16.mxu0 0
      %2500 = vmatpush1.bf16.msra.mxu0 0
      %2501 = vmatprep.subr.bf16.mxu0 0
      %2502 = vmatpush1.bf16.msra.mxu0 0
      %2503 = vmatprep.subr.bf16.mxu0 0
      %2504 = vmatpush1.bf16.msra.mxu0 0
      %2505 = vmatprep.subr.bf16.mxu0 0
      %2506 = vmatpush1.bf16.msra.mxu0 0
      %2507 = vmatprep.subr.bf16.mxu0 0
      %2508 = vmatpush1.bf16.msra.mxu0 0
      %2509 = vmatprep.subr.bf16.mxu0 0
      %2510 = vmatpush1.bf16.msra.mxu0 0
      %2511 = vmatprep.subr.bf16.mxu0 0
      %2512 = vmatpush1.bf16.msra.mxu0 0
      %2513 = vmatprep.subr.bf16.mxu0 0
      %2514 = vmatpush1.bf16.msra.mxu0 0
      %2515 = vmatprep.subr.bf16.mxu0 0
      %2516 = vmatpush1.bf16.msra.mxu0 0
      %2517 = vmatprep.subr.bf16.mxu0 0
      %2518 = vmatpush1.bf16.msra.mxu0 0
      %2519 = vmatprep.subr.bf16.mxu0 0
      %2520 = vmatpush1.bf16.msra.mxu0 0
      %2521 = vmatprep.subr.bf16.mxu0 0
      %2522 = vmatpush1.bf16.msra.mxu0 0
      %2523 = vmatprep.mubr.bf16.mxu0 0
      %2524 = vmatmul.mubr.bf16.gmra.mrb[0].mxu0 %v2444
      %v2525 = vpop.f32.mrb[0].mxu0
      %v2526 = vadd.f32 0.0, %v2525
      %v2527 = vpop.f32.mrb[0].mxu0
      %v2528 = vpop.f32.mrb[0].mxu0
      %v2529 = vadd.f32 0.0, %v2528
      %v2530 = vpop.f32.mrb[0].mxu0
      %2531 = vmatprep.mubr.bf16.mxu0 0
      %2532 = vmatmul.mubr.bf16.gmra.mrb[0].mxu0 %v2447
      %v2533 = vpop.f32.mrb[0].mxu0
      %v2534 = vadd.f32 0.0, %v2533
      %v2535 = vpop.f32.mrb[0].mxu0
      %v2536 = vpop.f32.mrb[0].mxu0
      %v2537 = vadd.f32 0.0, %v2536
      %v2538 = vpop.f32.mrb[0].mxu0
      %2539 = vmatprep.mubr.bf16.mxu0 0
      %2540 = vmatmul.mubr.bf16.gmra.mrb[0].mxu0 %v2450
      %v2541 = vpop.f32.mrb[0].mxu0
      %v2542 = vadd.f32 0.0, %v2541
      %v2543 = vpop.f32.mrb[0].mxu0
      %v2544 = vpop.f32.mrb[0].mxu0
      %v2545 = vadd.f32 0.0, %v2544
      %v2546 = vpop.f32.mrb[0].mxu0
      %2547 = vmatprep.mubr.bf16.mxu0 0
      %2548 = vmatmul.mubr.bf16.gmra.mrb[0].mxu0 %v2453
      %v2549 = vpop.f32.mrb[0].mxu0
      %v2550 = vadd.f32 0.0, %v2549
      %v2551 = vpop.f32.mrb[0].mxu0
      %v2552 = vpop.f32.mrb[0].mxu0
      %v2553 = vadd.f32 0.0, %v2552
      %v2554 = vpop.f32.mrb[0].mxu0
      %2555 = vmatprep.mubr.bf16.mxu0 0
      %2556 = vmatmul.mubr.bf16.gmra.mrb[0].mxu0 %v2456
      %v2557 = vpop.f32.mrb[0].mxu0
      %v2558 = vadd.f32 0.0, %v2557
      %v2559 = vpop.f32.mrb[0].mxu0
      %v2560 = vpop.f32.mrb[0].mxu0
      %v2561 = vadd.f32 0.0, %v2560
      %v2562 = vpop.f32.mrb[0].mxu0
      %2563 = vmatprep.mubr.bf16.mxu0 0
      %2564 = vmatmul.mubr.bf16.gmra.mrb[0].mxu0 %v2459
      %v2565 = vpop.f32.mrb[0].mxu0
      %v2566 = vadd.f32 0.0, %v2565
      %v2567 = vpop.f32.mrb[0].mxu0
      %v2568 = vpop.f32.mrb[0].mxu0
      %v2569 = vadd.f32 0.0, %v2568
      %v2570 = vpop.f32.mrb[0].mxu0
      %2571 = vmatprep.mubr.bf16.mxu0 0
      %2572 = vmatmul.mubr.bf16.gmra.mrb[0].mxu0 %v2462
      %v2573 = vpop.f32.mrb[0].mxu0
      %v2574 = vadd.f32 0.0, %v2573
      %v2575 = vpop.f32.mrb[0].mxu0
      %v2576 = vpop.f32.mrb[0].mxu0
      %v2577 = vadd.f32 0.0, %v2576
      %v2578 = vpop.f32.mrb[0].mxu0
      %2579 = vmatprep.mubr.bf16.mxu0 0
      %2580 = vmatmul.mubr.bf16.gmra.mrb[0].mxu0 %v2465
      %v2581 = vpop.f32.mrb[0].mxu0
      %v2582 = vadd.f32 0.0, %v2581
      %v2583 = vpop.f32.mrb[0].mxu0
      %v2584 = vpop.f32.mrb[0].mxu0
      %v2585 = vadd.f32 0.0, %v2584
      %v2586 = vpop.f32.mrb[0].mxu0
      %2587 = vmatprep.mubr.bf16.mxu0 0
      %2588 = vmatmul.mubr.bf16.gmra.mrb[0].mxu0 %v2468
      %v2589 = vpop.f32.mrb[0].mxu0
      %v2590 = vadd.f32 0.0, %v2589
      %v2591 = vpop.f32.mrb[0].mxu0
      %v2592 = vpop.f32.mrb[0].mxu0
      %v2593 = vadd.f32 0.0, %v2592
      %v2594 = vpop.f32.mrb[0].mxu0
      %2595 = vmatprep.mubr.bf16.mxu0 0
      %2596 = vmatmul.mubr.bf16.gmra.mrb[0].mxu0 %v2471
      %v2597 = vpop.f32.mrb[0].mxu0
      %v2598 = vadd.f32 0.0, %v2597
      %v2599 = vpop.f32.mrb[0].mxu0
      %v2600 = vpop.f32.mrb[0].mxu0
      %v2601 = vadd.f32 0.0, %v2600
      %v2602 = vpop.f32.mrb[0].mxu0
      %2603 = vmatprep.mubr.bf16.mxu0 0
      %2604 = vmatmul.mubr.bf16.gmra.mrb[0].mxu0 %v2474
      %v2605 = vpop.f32.mrb[0].mxu0
      %v2606 = vadd.f32 0.0, %v2605
      %v2607 = vpop.f32.mrb[0].mxu0
      %v2608 = vpop.f32.mrb[0].mxu0
      %v2609 = vadd.f32 0.0, %v2608
      %v2610 = vpop.f32.mrb[0].mxu0
      %2611 = vmatprep.mubr.bf16.mxu0 0
      %2612 = vmatmul.mubr.bf16.gmra.mrb[0].mxu0 %v2477
      %v2613 = vpop.f32.mrb[0].mxu0
      %v2614 = vadd.f32 0.0, %v2613
      %v2615 = vpop.f32.mrb[0].mxu0
      %v2616 = vpop.f32.mrb[0].mxu0
      %v2617 = vadd.f32 0.0, %v2616
      %v2618 = vpop.f32.mrb[0].mxu0
      %2619 = vmatprep.mubr.bf16.mxu0 0
      %2620 = vmatmul.mubr.bf16.gmra.mrb[0].mxu0 %v2480
      %v2621 = vpop.f32.mrb[0].mxu0
      %v2622 = vadd.f32 0.0, %v2621
      %v2623 = vpop.f32.mrb[0].mxu0
      %v2624 = vpop.f32.mrb[0].mxu0
      %v2625 = vadd.f32 0.0, %v2624
      %v2626 = vpop.f32.mrb[0].mxu0
      %2627 = vmatprep.mubr.bf16.mxu0 0
      %2628 = vmatmul.mubr.bf16.gmra.mrb[0].mxu0 %v2483
      %v2629 = vpop.f32.mrb[0].mxu0
      %v2630 = vadd.f32 0.0, %v2629
      %v2631 = vpop.f32.mrb[0].mxu0
      %v2632 = vpop.f32.mrb[0].mxu0
      %v2633 = vadd.f32 0.0, %v2632
      %v2634 = vpop.f32.mrb[0].mxu0
      %2635 = vmatprep.mubr.bf16.mxu0 0
      %2636 = vmatmul.mubr.bf16.gmra.mrb[0].mxu0 %v2486
      %v2637 = vpop.f32.mrb[0].mxu0
      %v2638 = vadd.f32 0.0, %v2637
      %v2639 = vpop.f32.mrb[0].mxu0
      %v2640 = vpop.f32.mrb[0].mxu0
      %v2641 = vadd.f32 0.0, %v2640
      %v2642 = vpop.f32.mrb[0].mxu0
      %2643 = vmatprep.mubr.bf16.mxu0 0
      %2644 = vmatmul.mubr.bf16.gmra.mrb[0].mxu0 %v2489
      %v2645 = vpop.f32.mrb[0].mxu0
      %v2646 = vadd.f32 0.0, %v2645
      %v2647 = vpop.f32.mrb[0].mxu0
      %v2648 = vpop.f32.mrb[0].mxu0
      %v2649 = vadd.f32 0.0, %v2648
      %v2650 = vpop.f32.mrb[0].mxu0
      %2651 = vdwg.mxu0
      %v2652 = vadd.f32 %v2330, %v2526
      %v2653 = vadd.f32 %v2331, %v2529
      %v2654 = vadd.f32 %v2332, %v2534
      %v2655 = vadd.f32 %v2333, %v2537
      %v2656 = vadd.f32 %v2334, %v2542
      %v2657 = vadd.f32 %v2335, %v2545
      %v2658 = vadd.f32 %v2336, %v2550
      %v2659 = vadd.f32 %v2337, %v2553
      %v2660 = vadd.f32 %v2338, %v2558
      %v2661 = vadd.f32 %v2339, %v2561
      %v2662 = vadd.f32 %v2340, %v2566
      %v2663 = vadd.f32 %v2341, %v2569
      %v2664 = vadd.f32 %v2342, %v2574
      %v2665 = vadd.f32 %v2343, %v2577
      %v2666 = vadd.f32 %v2344, %v2582
      %v2667 = vadd.f32 %v2345, %v2585
      %v2668 = vadd.f32 %v2346, %v2590
      %v2669 = vadd.f32 %v2347, %v2593
      %v2670 = vadd.f32 %v2348, %v2598
      %v2671 = vadd.f32 %v2349, %v2601
      %v2672 = vadd.f32 %v2350, %v2606
      %v2673 = vadd.f32 %v2351, %v2609
      %v2674 = vadd.f32 %v2352, %v2614
      %v2675 = vadd.f32 %v2353, %v2617
      %v2676 = vadd.f32 %v2354, %v2622
      %v2677 = vadd.f32 %v2355, %v2625
      %v2678 = vadd.f32 %v2356, %v2630
      %v2679 = vadd.f32 %v2357, %v2633
      %v2680 = vadd.f32 %v2358, %v2638
      %v2681 = vadd.f32 %v2359, %v2641
      %v2682 = vadd.f32 %v2360, %v2646
      %v2683 = vadd.f32 %v2361, %v2649
      %v2684 = vld [vmem:[%s165 + $0x24] sm:$0xff]
      %v2685 = vld [vmem:[%s165 + $0x2c] sm:$0xff]
      %v2686 = vld [vmem:[%s165 + $0x34] sm:$0xff]
      %v2687 = vld [vmem:[%s165 + $0x3c] sm:$0xff]
      %v2688 = vld [vmem:[%s165 + $0x44] sm:$0xff]
      %v2689 = vld [vmem:[%s165 + $0x4c] sm:$0xff]
      %v2690 = vld [vmem:[%s165 + $0x54] sm:$0xff]
      %v2691 = vld [vmem:[%s165 + $0x5c] sm:$0xff]
      %v2692 = vld [vmem:[%s165 + $0x64] sm:$0xff]
      %v2693 = vld [vmem:[%s165 + $0x6c] sm:$0xff]
      %v2694 = vld [vmem:[%s165 + $0x74] sm:$0xff]
      %v2695 = vld [vmem:[%s165 + $0x7c] sm:$0xff]
      %v2696 = vld [vmem:[%s165 + $0x84] sm:$0xff]
      %v2697 = vld [vmem:[%s165 + $0x8c] sm:$0xff]
      %v2698 = vld [vmem:[%s165 + $0x94] sm:$0xff]
      %v2699 = vld [vmem:[%s165 + $0x9c] sm:$0xff]
      %v2700 = vld [vmem:[%s165 + $0xa4] sm:$0xff]
      %v2701 = vld [vmem:[%s165 + $0xac] sm:$0xff]
      %v2702 = vld [vmem:[%s165 + $0xb4] sm:$0xff]
      %v2703 = vld [vmem:[%s165 + $0xbc] sm:$0xff]
      %v2704 = vld [vmem:[%s165 + $0xc4] sm:$0xff]
      %v2705 = vld [vmem:[%s165 + $0xcc] sm:$0xff]
      %v2706 = vld [vmem:[%s165 + $0xd4] sm:$0xff]
      %v2707 = vld [vmem:[%s165 + $0xdc] sm:$0xff]
      %v2708 = vld [vmem:[%s165 + $0xe4] sm:$0xff]
      %v2709 = vld [vmem:[%s165 + $0xec] sm:$0xff]
      %v2710 = vld [vmem:[%s165 + $0xf4] sm:$0xff]
      %v2711 = vld [vmem:[%s165 + $0xfc] sm:$0xff]
      %v2712 = vld [vmem:[%s165 + $0x104] sm:$0xff]
      %v2713 = vld [vmem:[%s165 + $0x10c] sm:$0xff]
      %v2714 = vld [vmem:[%s165 + $0x114] sm:$0xff]
      %v2715 = vld [vmem:[%s165 + $0x11c] sm:$0x1f]
      %v2716 = vpack.c.bf16 %v2685, %v2684
      %v2717 = vpack.c.bf16 %v2687, %v2686
      %v2718 = vpack.c.bf16 %v2689, %v2688
      %v2719 = vpack.c.bf16 %v2691, %v2690
      %v2720 = vpack.c.bf16 %v2693, %v2692
      %v2721 = vpack.c.bf16 %v2695, %v2694
      %v2722 = vpack.c.bf16 %v2697, %v2696
      %v2723 = vpack.c.bf16 %v2699, %v2698
      %v2724 = vpack.c.bf16 %v2701, %v2700
      %v2725 = vpack.c.bf16 %v2703, %v2702
      %v2726 = vpack.c.bf16 %v2705, %v2704
      %v2727 = vpack.c.bf16 %v2707, %v2706
      %v2728 = vpack.c.bf16 %v2709, %v2708
      %v2729 = vpack.c.bf16 %v2711, %v2710
      %v2730 = vpack.c.bf16 %v2713, %v2712
      %v2731 = vpack.c.bf16 %v2715, %v2714
      %s2732 = scalar_lea.vmem %s1, 256
      %v2733 = vld [vmem:[%s2732] sm:$0xf]
      %v2734 = vld [vmem:[%s2732 + $0x4] sm:$0xf]
      %v2735 = vld [vmem:[%s2732 + $0x8] sm:$0xf]
      %v2736 = vld [vmem:[%s2732 + $0xc] sm:$0xf]
      %v2737 = vld [vmem:[%s2732 + $0x10] sm:$0xf]
      %v2738 = vld [vmem:[%s2732 + $0x14] sm:$0xf]
      %v2739 = vld [vmem:[%s2732 + $0x18] sm:$0xf]
      %v2740 = vld [vmem:[%s2732 + $0x1c] sm:$0xf]
      %v2749 = vunpack.c.l.b16 %v2733
      %v2750 = vunpack.c.l.b16 %v2734
      %v2751 = vunpack.c.l.b16 %v2735
      %v2752 = vunpack.c.l.b16 %v2736
      %v2753 = vunpack.c.l.b16 %v2737
      %v2754 = vunpack.c.l.b16 %v2738
      %v2755 = vunpack.c.l.b16 %v2739
      %v2756 = vunpack.c.l.b16 %v2740
      %v2757 = vpack.c.b16 %v2750, %v2749
      %v2758 = vpack.c.b16 %v2752, %v2751
      %v2759 = vpack.c.b16 %v2754, %v2753
      %v2760 = vpack.c.b16 %v2756, %v2755
      %v2766 = vsel %vm309, %v2716, 0
      %v2769 = vsel %vm309, %v2717, 0
      %v2772 = vsel %vm309, %v2718, 0
      %v2775 = vsel %vm309, %v2719, 0
      %v2778 = vsel %vm309, %v2720, 0
      %v2781 = vsel %vm309, %v2721, 0
      %v2784 = vsel %vm309, %v2722, 0
      %v2787 = vsel %vm309, %v2723, 0
      %v2790 = vsel %vm309, %v2724, 0
      %v2793 = vsel %vm309, %v2725, 0
      %v2796 = vsel %vm309, %v2726, 0
      %v2799 = vsel %vm309, %v2727, 0
      %v2802 = vsel %vm309, %v2728, 0
      %v2805 = vsel %vm309, %v2729, 0
      %v2808 = vsel %vm309, %v2730, 0
      %v2811 = vsel %vm309, %v2731, 0
      %2813 = vmatprep.subr.bf16.mxu0 0
      %2814 = vmatpush1.bf16.msra.mxu0 %v2757
      %2815 = vmatprep.subr.bf16.mxu0 0
      %2816 = vmatpush1.bf16.msra.mxu0 %v2758
      %2817 = vmatprep.subr.bf16.mxu0 0
      %2818 = vmatpush1.bf16.msra.mxu0 %v2759
      %2819 = vmatprep.subr.bf16.mxu0 0
      %2820 = vmatpush1.bf16.msra.mxu0 %v2760
      %2821 = vmatprep.subr.bf16.mxu0 0
      %2822 = vmatpush1.bf16.msra.mxu0 0
      %2823 = vmatprep.subr.bf16.mxu0 0
      %2824 = vmatpush1.bf16.msra.mxu0 0
      %2825 = vmatprep.subr.bf16.mxu0 0
      %2826 = vmatpush1.bf16.msra.mxu0 0
      %2827 = vmatprep.subr.bf16.mxu0 0
      %2828 = vmatpush1.bf16.msra.mxu0 0
      %2829 = vmatprep.subr.bf16.mxu0 0
      %2830 = vmatpush1.bf16.msra.mxu0 0
      %2831 = vmatprep.subr.bf16.mxu0 0
      %2832 = vmatpush1.bf16.msra.mxu0 0
      %2833 = vmatprep.subr.bf16.mxu0 0
      %2834 = vmatpush1.bf16.msra.mxu0 0
      %2835 = vmatprep.subr.bf16.mxu0 0
      %2836 = vmatpush1.bf16.msra.mxu0 0
      %2837 = vmatprep.subr.bf16.mxu0 0
      %2838 = vmatpush1.bf16.msra.mxu0 0
      %2839 = vmatprep.subr.bf16.mxu0 0
      %2840 = vmatpush1.bf16.msra.mxu0 0
      %2841 = vmatprep.subr.bf16.mxu0 0
      %2842 = vmatpush1.bf16.msra.mxu0 0
      %2843 = vmatprep.subr.bf16.mxu0 0
      %2844 = vmatpush1.bf16.msra.mxu0 0
      %2845 = vmatprep.mubr.bf16.mxu0 0
      %2846 = vmatmul.mubr.bf16.gmra.mrb[0].mxu0 %v2766
      %v2847 = vpop.f32.mrb[0].mxu0
      %v2848 = vadd.f32 0.0, %v2847
      %v2849 = vpop.f32.mrb[0].mxu0
      %v2850 = vpop.f32.mrb[0].mxu0
      %v2851 = vadd.f32 0.0, %v2850
      %v2852 = vpop.f32.mrb[0].mxu0
      %2853 = vmatprep.mubr.bf16.mxu0 0
      %2854 = vmatmul.mubr.bf16.gmra.mrb[0].mxu0 %v2769
      %v2855 = vpop.f32.mrb[0].mxu0
      %v2856 = vadd.f32 0.0, %v2855
      %v2857 = vpop.f32.mrb[0].mxu0
      %v2858 = vpop.f32.mrb[0].mxu0
      %v2859 = vadd.f32 0.0, %v2858
      %v2860 = vpop.f32.mrb[0].mxu0
      %2861 = vmatprep.mubr.bf16.mxu0 0
      %2862 = vmatmul.mubr.bf16.gmra.mrb[0].mxu0 %v2772
      %v2863 = vpop.f32.mrb[0].mxu0
      %v2864 = vadd.f32 0.0, %v2863
      %v2865 = vpop.f32.mrb[0].mxu0
      %v2866 = vpop.f32.mrb[0].mxu0
      %v2867 = vadd.f32 0.0, %v2866
      %v2868 = vpop.f32.mrb[0].mxu0
      %2869 = vmatprep.mubr.bf16.mxu0 0
      %2870 = vmatmul.mubr.bf16.gmra.mrb[0].mxu0 %v2775
      %v2871 = vpop.f32.mrb[0].mxu0
      %v2872 = vadd.f32 0.0, %v2871
      %v2873 = vpop.f32.mrb[0].mxu0
      %v2874 = vpop.f32.mrb[0].mxu0
      %v2875 = vadd.f32 0.0, %v2874
      %v2876 = vpop.f32.mrb[0].mxu0
      %2877 = vmatprep.mubr.bf16.mxu0 0
      %2878 = vmatmul.mubr.bf16.gmra.mrb[0].mxu0 %v2778
      %v2879 = vpop.f32.mrb[0].mxu0
      %v2880 = vadd.f32 0.0, %v2879
      %v2881 = vpop.f32.mrb[0].mxu0
      %v2882 = vpop.f32.mrb[0].mxu0
      %v2883 = vadd.f32 0.0, %v2882
      %v2884 = vpop.f32.mrb[0].mxu0
      %2885 = vmatprep.mubr.bf16.mxu0 0
      %2886 = vmatmul.mubr.bf16.gmra.mrb[0].mxu0 %v2781
      %v2887 = vpop.f32.mrb[0].mxu0
      %v2888 = vadd.f32 0.0, %v2887
      %v2889 = vpop.f32.mrb[0].mxu0
      %v2890 = vpop.f32.mrb[0].mxu0
      %v2891 = vadd.f32 0.0, %v2890
      %v2892 = vpop.f32.mrb[0].mxu0
      %2893 = vmatprep.mubr.bf16.mxu0 0
      %2894 = vmatmul.mubr.bf16.gmra.mrb[0].mxu0 %v2784
      %v2895 = vpop.f32.mrb[0].mxu0
      %v2896 = vadd.f32 0.0, %v2895
      %v2897 = vpop.f32.mrb[0].mxu0
      %v2898 = vpop.f32.mrb[0].mxu0
      %v2899 = vadd.f32 0.0, %v2898
      %v2900 = vpop.f32.mrb[0].mxu0
      %2901 = vmatprep.mubr.bf16.mxu0 0
      %2902 = vmatmul.mubr.bf16.gmra.mrb[0].mxu0 %v2787
      %v2903 = vpop.f32.mrb[0].mxu0
      %v2904 = vadd.f32 0.0, %v2903
      %v2905 = vpop.f32.mrb[0].mxu0
      %v2906 = vpop.f32.mrb[0].mxu0
      %v2907 = vadd.f32 0.0, %v2906
      %v2908 = vpop.f32.mrb[0].mxu0
      %2909 = vmatprep.mubr.bf16.mxu0 0
      %2910 = vmatmul.mubr.bf16.gmra.mrb[0].mxu0 %v2790
      %v2911 = vpop.f32.mrb[0].mxu0
      %v2912 = vadd.f32 0.0, %v2911
      %v2913 = vpop.f32.mrb[0].mxu0
      %v2914 = vpop.f32.mrb[0].mxu0
      %v2915 = vadd.f32 0.0, %v2914
      %v2916 = vpop.f32.mrb[0].mxu0
      %2917 = vmatprep.mubr.bf16.mxu0 0
      %2918 = vmatmul.mubr.bf16.gmra.mrb[0].mxu0 %v2793
      %v2919 = vpop.f32.mrb[0].mxu0
      %v2920 = vadd.f32 0.0, %v2919
      %v2921 = vpop.f32.mrb[0].mxu0
      %v2922 = vpop.f32.mrb[0].mxu0
      %v2923 = vadd.f32 0.0, %v2922
      %v2924 = vpop.f32.mrb[0].mxu0
      %2925 = vmatprep.mubr.bf16.mxu0 0
      %2926 = vmatmul.mubr.bf16.gmra.mrb[0].mxu0 %v2796
      %v2927 = vpop.f32.mrb[0].mxu0
      %v2928 = vadd.f32 0.0, %v2927
      %v2929 = vpop.f32.mrb[0].mxu0
      %v2930 = vpop.f32.mrb[0].mxu0
      %v2931 = vadd.f32 0.0, %v2930
      %v2932 = vpop.f32.mrb[0].mxu0
      %2933 = vmatprep.mubr.bf16.mxu0 0
      %2934 = vmatmul.mubr.bf16.gmra.mrb[0].mxu0 %v2799
      %v2935 = vpop.f32.mrb[0].mxu0
      %v2936 = vadd.f32 0.0, %v2935
      %v2937 = vpop.f32.mrb[0].mxu0
      %v2938 = vpop.f32.mrb[0].mxu0
      %v2939 = vadd.f32 0.0, %v2938
      %v2940 = vpop.f32.mrb[0].mxu0
      %2941 = vmatprep.mubr.bf16.mxu0 0
      %2942 = vmatmul.mubr.bf16.gmra.mrb[0].mxu0 %v2802
      %v2943 = vpop.f32.mrb[0].mxu0
      %v2944 = vadd.f32 0.0, %v2943
      %v2945 = vpop.f32.mrb[0].mxu0
      %v2946 = vpop.f32.mrb[0].mxu0
      %v2947 = vadd.f32 0.0, %v2946
      %v2948 = vpop.f32.mrb[0].mxu0
      %2949 = vmatprep.mubr.bf16.mxu0 0
      %2950 = vmatmul.mubr.bf16.gmra.mrb[0].mxu0 %v2805
      %v2951 = vpop.f32.mrb[0].mxu0
      %v2952 = vadd.f32 0.0, %v2951
      %v2953 = vpop.f32.mrb[0].mxu0
      %v2954 = vpop.f32.mrb[0].mxu0
      %v2955 = vadd.f32 0.0, %v2954
      %v2956 = vpop.f32.mrb[0].mxu0
      %2957 = vmatprep.mubr.bf16.mxu0 0
      %2958 = vmatmul.mubr.bf16.gmra.mrb[0].mxu0 %v2808
      %v2959 = vpop.f32.mrb[0].mxu0
      %v2960 = vadd.f32 0.0, %v2959
      %v2961 = vpop.f32.mrb[0].mxu0
      %v2962 = vpop.f32.mrb[0].mxu0
      %v2963 = vadd.f32 0.0, %v2962
      %v2964 = vpop.f32.mrb[0].mxu0
      %2965 = vmatprep.mubr.bf16.mxu0 0
      %2966 = vmatmul.mubr.bf16.gmra.mrb[0].mxu0 %v2811
      %v2967 = vpop.f32.mrb[0].mxu0
      %v2968 = vadd.f32 0.0, %v2967
      %v2969 = vpop.f32.mrb[0].mxu0
      %v2970 = vpop.f32.mrb[0].mxu0
      %v2971 = vadd.f32 0.0, %v2970
      %v2972 = vpop.f32.mrb[0].mxu0
      %2973 = vdwg.mxu0
      %v2974 = vadd.f32 %v2652, %v2848
      %v2975 = vadd.f32 %v2653, %v2851
      %v2976 = vadd.f32 %v2654, %v2856
      %v2977 = vadd.f32 %v2655, %v2859
      %v2978 = vadd.f32 %v2656, %v2864
      %v2979 = vadd.f32 %v2657, %v2867
      %v2980 = vadd.f32 %v2658, %v2872
      %v2981 = vadd.f32 %v2659, %v2875
      %v2982 = vadd.f32 %v2660, %v2880
      %v2983 = vadd.f32 %v2661, %v2883
      %v2984 = vadd.f32 %v2662, %v2888
      %v2985 = vadd.f32 %v2663, %v2891
      %v2986 = vadd.f32 %v2664, %v2896
      %v2987 = vadd.f32 %v2665, %v2899
      %v2988 = vadd.f32 %v2666, %v2904
      %v2989 = vadd.f32 %v2667, %v2907
      %v2990 = vadd.f32 %v2668, %v2912
      %v2991 = vadd.f32 %v2669, %v2915
      %v2992 = vadd.f32 %v2670, %v2920
      %v2993 = vadd.f32 %v2671, %v2923
      %v2994 = vadd.f32 %v2672, %v2928
      %v2995 = vadd.f32 %v2673, %v2931
      %v2996 = vadd.f32 %v2674, %v2936
      %v2997 = vadd.f32 %v2675, %v2939
      %v2998 = vadd.f32 %v2676, %v2944
      %v2999 = vadd.f32 %v2677, %v2947
      %v3000 = vadd.f32 %v2678, %v2952
      %v3001 = vadd.f32 %v2679, %v2955
      %v3002 = vadd.f32 %v2680, %v2960
      %v3003 = vadd.f32 %v2681, %v2963
      %v3004 = vadd.f32 %v2682, %v2968
      %v3005 = vadd.f32 %v2683, %v2971
      %v3006 = vld [vmem:[%s2] sm:$0x1]
      %v3008 = vlaneseq
      %v3009 = vshrl.u32 %v3008, 7
      %v3010 = vsub.s32 0, %v3009
      %v3011 = vrot.slane %v3006, %v3010
      %v3013 = vadd.f32 %v2974, %v3011
      %v3014 = vadd.f32 %v2975, %v3011
      %v3015 = vadd.f32 %v2976, %v3011
      %v3016 = vadd.f32 %v2977, %v3011
      %v3017 = vadd.f32 %v2978, %v3011
      %v3018 = vadd.f32 %v2979, %v3011
      %v3019 = vadd.f32 %v2980, %v3011
      %v3020 = vadd.f32 %v2981, %v3011
      %v3021 = vadd.f32 %v2982, %v3011
      %v3022 = vadd.f32 %v2983, %v3011
      %v3023 = vadd.f32 %v2984, %v3011
      %v3024 = vadd.f32 %v2985, %v3011
      %v3025 = vadd.f32 %v2986, %v3011
      %v3026 = vadd.f32 %v2987, %v3011
      %v3027 = vadd.f32 %v2988, %v3011
      %v3028 = vadd.f32 %v2989, %v3011
      %v3029 = vadd.f32 %v2990, %v3011
      %v3030 = vadd.f32 %v2991, %v3011
      %v3031 = vadd.f32 %v2992, %v3011
      %v3032 = vadd.f32 %v2993, %v3011
      %v3033 = vadd.f32 %v2994, %v3011
      %v3034 = vadd.f32 %v2995, %v3011
      %v3035 = vadd.f32 %v2996, %v3011
      %v3036 = vadd.f32 %v2997, %v3011
      %v3037 = vadd.f32 %v2998, %v3011
      %v3038 = vadd.f32 %v2999, %v3011
      %v3039 = vadd.f32 %v3000, %v3011
      %v3040 = vadd.f32 %v3001, %v3011
      %v3041 = vadd.f32 %v3002, %v3011
      %v3042 = vadd.f32 %v3003, %v3011
      %v3043 = vadd.f32 %v3004, %v3011
      %v3044 = vadd.f32 %v3005, %v3011
      %v3045 = vmax.f32 %v3013, 0.0
      %v3046 = vmax.f32 %v3014, 0.0
      %v3047 = vmax.f32 %v3015, 0.0
      %v3048 = vmax.f32 %v3016, 0.0
      %v3049 = vmax.f32 %v3017, 0.0
      %v3050 = vmax.f32 %v3018, 0.0
      %v3051 = vmax.f32 %v3019, 0.0
      %v3052 = vmax.f32 %v3020, 0.0
      %v3053 = vmax.f32 %v3021, 0.0
      %v3054 = vmax.f32 %v3022, 0.0
      %v3055 = vmax.f32 %v3023, 0.0
      %v3056 = vmax.f32 %v3024, 0.0
      %v3057 = vmax.f32 %v3025, 0.0
      %v3058 = vmax.f32 %v3026, 0.0
      %v3059 = vmax.f32 %v3027, 0.0
      %v3060 = vmax.f32 %v3028, 0.0
      %v3061 = vmax.f32 %v3029, 0.0
      %v3062 = vmax.f32 %v3030, 0.0
      %v3063 = vmax.f32 %v3031, 0.0
      %v3064 = vmax.f32 %v3032, 0.0
      %v3065 = vmax.f32 %v3033, 0.0
      %v3066 = vmax.f32 %v3034, 0.0
      %v3067 = vmax.f32 %v3035, 0.0
      %v3068 = vmax.f32 %v3036, 0.0
      %v3069 = vmax.f32 %v3037, 0.0
      %v3070 = vmax.f32 %v3038, 0.0
      %v3071 = vmax.f32 %v3039, 0.0
      %v3072 = vmax.f32 %v3040, 0.0
      %v3073 = vmax.f32 %v3041, 0.0
      %v3074 = vmax.f32 %v3042, 0.0
      %v3075 = vmax.f32 %v3043, 0.0
      %v3076 = vmax.f32 %v3044, 0.0
      %3077 = vst [vmem:[%s170] sm:$0xff] %v3045
      %3078 = vst [vmem:[%s170 + $0x8] sm:$0xff] %v3046
      %3079 = vst [vmem:[%s170 + $0x10] sm:$0xff] %v3047
      %3080 = vst [vmem:[%s170 + $0x18] sm:$0xff] %v3048
      %3081 = vst [vmem:[%s170 + $0x20] sm:$0xff] %v3049
      %3082 = vst [vmem:[%s170 + $0x28] sm:$0xff] %v3050
      %3083 = vst [vmem:[%s170 + $0x30] sm:$0xff] %v3051
      %3084 = vst [vmem:[%s170 + $0x38] sm:$0xff] %v3052
      %3085 = vst [vmem:[%s170 + $0x40] sm:$0xff] %v3053
      %3086 = vst [vmem:[%s170 + $0x48] sm:$0xff] %v3054
      %3087 = vst [vmem:[%s170 + $0x50] sm:$0xff] %v3055
      %3088 = vst [vmem:[%s170 + $0x58] sm:$0xff] %v3056
      %3089 = vst [vmem:[%s170 + $0x60] sm:$0xff] %v3057
      %3090 = vst [vmem:[%s170 + $0x68] sm:$0xff] %v3058
      %3091 = vst [vmem:[%s170 + $0x70] sm:$0xff] %v3059
      %3092 = vst [vmem:[%s170 + $0x78] sm:$0xff] %v3060
      %3093 = vst [vmem:[%s170 + $0x80] sm:$0xff] %v3061
      %3094 = vst [vmem:[%s170 + $0x88] sm:$0xff] %v3062
      %3095 = vst [vmem:[%s170 + $0x90] sm:$0xff] %v3063
      %3096 = vst [vmem:[%s170 + $0x98] sm:$0xff] %v3064
      %3097 = vst [vmem:[%s170 + $0xa0] sm:$0xff] %v3065
      %3098 = vst [vmem:[%s170 + $0xa8] sm:$0xff] %v3066
      %3099 = vst [vmem:[%s170 + $0xb0] sm:$0xff] %v3067
      %3100 = vst [vmem:[%s170 + $0xb8] sm:$0xff] %v3068
      %3101 = vst [vmem:[%s170 + $0xc0] sm:$0xff] %v3069
      %3102 = vst [vmem:[%s170 + $0xc8] sm:$0xff] %v3070
      %3103 = vst [vmem:[%s170 + $0xd0] sm:$0xff] %v3071
      %3104 = vst [vmem:[%s170 + $0xd8] sm:$0xff] %v3072
      %3105 = vst [vmem:[%s170 + $0xe0] sm:$0xff] %v3073
      %3106 = vst [vmem:[%s170 + $0xe8] sm:$0xff] %v3074
      %3107 = vst [vmem:[%s170 + $0xf0] sm:$0xff] %v3075
      %3108 = vst [vmem:[%s170 + $0xf8] sm:$0x1f] %v3076
      %p3109 = scmp.lt.s32.totalorder %s14, 1
      %s3110 = scalar_select %p3109, %s14, 1
      %s3111 = smul.addr %s3110, 32
      %s3112 = smul.addr %s3111, 8
      %s3113 = scalar_lea.vmem %s3, %s3112
      // Predicated region
      $region33: #{decoder_forward.6} parent=31 // pred_check
        %p3114 = pneg %p100
      $region34: #{decoder_forward.6} parent=31 // pred_check_branch
        %3116 = sbr.rel (%p3114) target = $region36
      $region35: #{decoder_forward.6} parent=31 // pred_region
        _
      $region36: #{decoder_forward.6} parent=31 // pred_fallthru
        _
    $region32: #{decoder_forward.6} parent=5 // pred_fallthru
      _
    %p3117 = scmp.le.s32.totalorder 2, %s9
    // Predicated region
    $region37: #{decoder_forward.6} parent=5 // pred_check
      %p3118 = pneg %p3117
    $region38: #{decoder_forward.6} parent=5 // pred_check_branch
      %3120 = sbr.rel (%p3118) target = $region40
    $region39: #{decoder_forward.6} parent=5 // pred_region
      %s3121 = ssub.s32 %s9, 2
      // Predicated region
      $region41: #{decoder_forward.6} parent=39 // pred_check
        %p3122 = pneg %p106
      $region42: #{decoder_forward.6} parent=39 // pred_check_branch
        %3124 = sbr.rel (%p3122) target = $region44
      $region43: #{decoder_forward.6} parent=39 // pred_region
        %p3125 = scmp.lt.s32.totalorder %s15, 1
        %s3126 = scalar_select %p3125, %s15, 1
        %s3127 = smul.addr %s3126, 32
        %s3128 = smul.addr %s3127, 8
        %s3129 = scalar_lea.vmem %s3, %s3128
      $region44: #{decoder_forward.6} parent=39 // pred_fallthru
        _
    $region40: #{decoder_forward.6} parent=5 // pred_fallthru
      _
  $region6: #{decoder_forward.6} parent=0 // loop_footer
    %s13 = sadd.s32 1, %s9
  $region7: #{decoder_forward.6} parent=0 // loop_footer_branch
    %8 = sbr.rel target = $region3
  $region8: #{decoder_forward.6} parent=0 // loop_exit
    _

// kernel: decoder_forward.7
$region0: #{decoder_forward.7}
  #allocation0 [shape = 'u32[]', space=smem, size = 0x4, offset = 0x4, fixed_abs, tag = 'smem constant byte address 0x4 - core index']
  #allocation1 [shape = 'u32[144,128]{1,0:T(1,128)}', space=vmem, size = 0x12000, scoped, tag = 'internal scratch']
  %s0 = inlined_call_operand.vmem [shape: f32[2,32,1156], index: 0, kind: input, shape index: {}]
  %s1 = inlined_call_operand.vmem [shape: bf16[9,12,32], index: 1, kind: input, shape index: {}]
  %s2 = inlined_call_operand.vmem [shape: f32[12,1], index: 2, kind: input, shape index: {}]
  %s3 = inlined_call_operand.vmem [shape: f32[2,12,1086], index: 3, kind: output, shape index: {}]
  %s4 = sld [smem:[#allocation0]]
  $region45: #{decoder_forward.7} parent=0
    _
  %s6 = ssub.s32 1, %s4
  %s7 = scalar_select 0, %s6, %s4
  loop: start=0, step=1, limit=4
  $region2: #{decoder_forward.7} parent=0 // loop_pre_header
    _
  $region3: #{decoder_forward.7} parent=0 // loop_header
    %s9 = sphi 0, %s13
    %p10 = scmp.ge.s32.totalorder %s9, 4
    %s19 = sphi 0, %s21
    %s22 = sphi 0, %s19
    %s23 = sphi 0, %s22
    %s39 = sphi 0, %s23
    %s43 = sphi 0, %s43
    %s45 = sphi 0, %s43
    %s46 = sphi 0, %s45
    %s60 = sphi 0, %s46
    %s64 = sphi 0, %s64
    %s66 = sphi 0, %s64
    %s67 = sphi 0, %s66
    %s81 = sphi 0, %s67
    %s87 = sphi 0, %s89
    %s90 = sphi 0, %s87
    %s91 = sphi 0, %s90
    %s107 = sphi 0, %s91
  $region4: #{decoder_forward.7} parent=0 // loop_header_branch
    %12 = sbr.rel (%p10) target = $region8
  $region5: #{decoder_forward.7} parent=0 // loop_body
    %s14 = ssub.s32 %s9, 1
    %s15 = ssub.s32 %s9, 2
    %s16 = sadd.s32 %s9, 1
    %s17 = ssub.s32 %s9, %s16
    %p18 = scmp.eq.s32.totalorder %s17, 0
    %s20 = sadd.s32 %s19, 1
    %s21 = scalar_select %p18, %s19, %s20
    %p24 = pneg %p18
    %p25 = scmp.eq.s32.totalorder %s9, 1
    %p26 = por %p24, %p25
    %p27 = scmp.ne.s32.totalorder %s19, %s22
    %p28 = scmp.eq.s32.totalorder %s9, 0
    %p29 = por %p27, %p28
    %p30 = scmp.ne.s32.totalorder %s19, %s22
    %p31 = scmp.eq.s32.totalorder %s14, 1
    %p32 = por %p30, %p31
    %p33 = scmp.ne.s32.totalorder %s22, %s23
    %p34 = scmp.eq.s32.totalorder %s14, 0
    %p35 = por %p33, %p34
    %p36 = scmp.ne.s32.totalorder %s22, %s23
    %p37 = scmp.eq.s32.totalorder %s15, 1
    %p38 = por %p36, %p37
    %p40 = scmp.ne.s32.totalorder %s23, %s39
    %p41 = scmp.eq.s32.totalorder %s15, 0
    %p42 = por %p40, %p41
    %s44 = sadd.s32 %s43, 1
    %p47 = scmp.eq.s32.totalorder %s9, 1
    %p48 = scmp.ne.s32.totalorder %s43, %s45
    %p49 = scmp.eq.s32.totalorder %s9, 0
    %p50 = por %p48, %p49
    %p51 = scmp.ne.s32.totalorder %s43, %s45
    %p52 = scmp.eq.s32.totalorder %s14, 1
    %p53 = por %p51, %p52
    %p54 = scmp.ne.s32.totalorder %s45, %s46
    %p55 = scmp.eq.s32.totalorder %s14, 0
    %p56 = por %p54, %p55
    %p57 = scmp.ne.s32.totalorder %s45, %s46
    %p58 = scmp.eq.s32.totalorder %s15, 1
    %p59 = por %p57, %p58
    %p61 = scmp.ne.s32.totalorder %s46, %s60
    %p62 = scmp.eq.s32.totalorder %s15, 0
    %p63 = por %p61, %p62
    %s65 = sadd.s32 %s64, 1
    %p68 = scmp.eq.s32.totalorder %s9, 1
    %p69 = scmp.ne.s32.totalorder %s64, %s66
    %p70 = scmp.eq.s32.totalorder %s9, 0
    %p71 = por %p69, %p70
    %p72 = scmp.ne.s32.totalorder %s64, %s66
    %p73 = scmp.eq.s32.totalorder %s14, 1
    %p74 = por %p72, %p73
    %p75 = scmp.ne.s32.totalorder %s66, %s67
    %p76 = scmp.eq.s32.totalorder %s14, 0
    %p77 = por %p75, %p76
    %p78 = scmp.ne.s32.totalorder %s66, %s67
    %p79 = scmp.eq.s32.totalorder %s15, 1
    %p80 = por %p78, %p79
    %p82 = scmp.ne.s32.totalorder %s67, %s81
    %p83 = scmp.eq.s32.totalorder %s15, 0
    %p84 = por %p82, %p83
    %s85 = ssub.s32 %s9, %s16
    %p86 = scmp.eq.s32.totalorder %s85, 0
    %s88 = sadd.s32 %s87, 1
    %s89 = scalar_select %p86, %s87, %s88
    %p92 = pneg %p86
    %p93 = scmp.eq.s32.totalorder %s9, 1
    %p94 = por %p92, %p93
    %p95 = scmp.ne.s32.totalorder %s87, %s90
    %p96 = scmp.eq.s32.totalorder %s9, 0
    %p97 = por %p95, %p96
    %p98 = scmp.ne.s32.totalorder %s87, %s90
    %p99 = scmp.eq.s32.totalorder %s14, 1
    %p100 = por %p98, %p99
    %p101 = scmp.ne.s32.totalorder %s90, %s91
    %p102 = scmp.eq.s32.totalorder %s14, 0
    %p103 = por %p101, %p102
    %p104 = scmp.ne.s32.totalorder %s90, %s91
    %p105 = scmp.eq.s32.totalorder %s15, 1
    %p106 = por %p104, %p105
    %p108 = scmp.ne.s32.totalorder %s91, %s107
    %p109 = scmp.eq.s32.totalorder %s15, 0
    %p110 = por %p108, %p109
    %p111 = scmp.le.s32.totalorder 1, %s9
    %p112 = scmp.lt.s32.totalorder %s9, 3
    %p113 = pnand %p111, %p112
    %p114 = pneg %p113
    // Predicated region
    $region9: #{decoder_forward.7} parent=5 // pred_check
      _
    $region10: #{decoder_forward.7} parent=5 // pred_check_branch
      %116 = sbr.rel (%p113) target = $region12
    $region11: #{decoder_forward.7} parent=5 // pred_region
      %s117 = ssub.s32 %s9, 1
      // Predicated region
      $region13: #{decoder_forward.7} parent=11 // pred_check
        %p118 = pneg %p56
      $region14: #{decoder_forward.7} parent=11 // pred_check_branch
        %120 = sbr.rel (%p118) target = $region16
      $region15: #{decoder_forward.7} parent=11 // pred_region
        _
      $region16: #{decoder_forward.7} parent=11 // pred_fallthru
        _
      // Predicated region
      $region17: #{decoder_forward.7} parent=11 // pred_check
        %p121 = pneg %p77
      $region18: #{decoder_forward.7} parent=11 // pred_check_branch
        %123 = sbr.rel (%p121) target = $region20
      $region19: #{decoder_forward.7} parent=11 // pred_region
        _
      $region20: #{decoder_forward.7} parent=11 // pred_fallthru
        _
    $region12: #{decoder_forward.7} parent=5 // pred_fallthru
      _
    %p124 = scmp.lt.s32.totalorder %s9, 2
    // Predicated region
    $region21: #{decoder_forward.7} parent=5 // pred_check
      %p125 = pneg %p124
    $region22: #{decoder_forward.7} parent=5 // pred_check_branch
      %127 = sbr.rel (%p125) target = $region24
    $region23: #{decoder_forward.7} parent=5 // pred_region
      // Predicated region
      $region25: #{decoder_forward.7} parent=23 // pred_check
        %p128 = pneg %p29
      $region26: #{decoder_forward.7} parent=23 // pred_check_branch
        %130 = sbr.rel (%p128) target = $region28
      $region27: #{decoder_forward.7} parent=23 // pred_region
        %p131 = scmp.lt.s32.totalorder %s9, 1
        %s132 = scalar_select %p131, %s9, 1
        %s133 = smul.addr %s132, 40
        %s134 = smul.addr %s133, 8
        %s135 = scalar_lea.vmem %s0, %s134
      $region28: #{decoder_forward.7} parent=23 // pred_fallthru
        _
    $region24: #{decoder_forward.7} parent=5 // pred_fallthru
      _
    %p136 = scmp.le.s32.totalorder 1, %s9
    %p137 = scmp.lt.s32.totalorder %s9, 3
    %p138 = pnand %p136, %p137
    %p139 = pneg %p138
    // Predicated region
    $region29: #{decoder_forward.7} parent=5 // pred_check
      _
    $region30: #{decoder_forward.7} parent=5 // pred_check_branch
      %141 = sbr.rel (%p138) target = $region32
    $region31: #{decoder_forward.7} parent=5 // pred_region
      %s142 = ssub.s32 %s9, 1
      %p143 = scmp.lt.s32.totalorder %s14, 1
      %s144 = scalar_select %p143, %s14, 1
      %s145 = smul.addr %s144, 40
      %s146 = smul.addr %s145, 8
      %s147 = scalar_lea.vmem %s0, %s146
      %p148 = pneg %p35
      %p149 = pneg %p32
      %p150 = pneg %p56
      %p151 = pneg %p53
      %p152 = pneg %p77
      %p153 = pneg %p74
      %p154 = pneg %p103
      %p155 = pneg %p100
      %p156 = scmp.lt.s32.totalorder %s14, 1
      %s157 = scalar_select %p156, %s14, 1
      %s158 = smul.addr %s157, 18
      %s159 = smul.addr %s158, 8
      %s160 = scalar_lea.vmem %s3, %s159
      %p161 = scmp.lt.s32.totalorder %s14, 1
      %s162 = scalar_select %p161, %s14, 1
      %s163 = smul.addr %s162, 40
      %s164 = smul.addr %s163, 8
      %s165 = scalar_lea.vmem %s0, %s164
      %p166 = scmp.lt.s32.totalorder %s14, 1
      %s167 = scalar_select %p166, %s14, 1
      %s168 = smul.addr %s167, 18
      %s169 = smul.addr %s168, 8
      %s170 = scalar_lea.vmem %s3, %s169
      %v172 = vld [vmem:[%s165] sm:$0xff]
      %v173 = vld [vmem:[%s165 + $0x8] sm:$0xff]
      %v174 = vld [vmem:[%s165 + $0x10] sm:$0xff]
      %v175 = vld [vmem:[%s165 + $0x18] sm:$0xff]
      %v176 = vld [vmem:[%s165 + $0x20] sm:$0xff]
      %v177 = vld [vmem:[%s165 + $0x28] sm:$0xff]
      %v178 = vld [vmem:[%s165 + $0x30] sm:$0xff]
      %v179 = vld [vmem:[%s165 + $0x38] sm:$0xff]
      %v180 = vld [vmem:[%s165 + $0x40] sm:$0xff]
      %v181 = vld [vmem:[%s165 + $0x50] sm:$0xff]
      %v182 = vld [vmem:[%s165 + $0x58] sm:$0xff]
      %v183 = vld [vmem:[%s165 + $0x60] sm:$0xff]
      %v184 = vld [vmem:[%s165 + $0x68] sm:$0xff]
      %v185 = vld [vmem:[%s165 + $0x70] sm:$0xff]
      %v186 = vld [vmem:[%s165 + $0x78] sm:$0xff]
      %v187 = vld [vmem:[%s165 + $0x80] sm:$0xff]
      %v188 = vld [vmem:[%s165 + $0x88] sm:$0xff]
      %v189 = vld [vmem:[%s165 + $0x90] sm:$0xff]
      %v190 = vld [vmem:[%s165 + $0xa0] sm:$0xff]
      %v191 = vld [vmem:[%s165 + $0xa8] sm:$0xff]
      %v192 = vld [vmem:[%s165 + $0xb0] sm:$0xff]
      %v193 = vld [vmem:[%s165 + $0xb8] sm:$0xff]
      %v194 = vld [vmem:[%s165 + $0xc0] sm:$0xff]
      %v195 = vld [vmem:[%s165 + $0xc8] sm:$0xff]
      %v196 = vld [vmem:[%s165 + $0xd0] sm:$0xff]
      %v197 = vld [vmem:[%s165 + $0xd8] sm:$0xff]
      %v198 = vld [vmem:[%s165 + $0xe0] sm:$0xff]
      %v199 = vld [vmem:[%s165 + $0xf0] sm:$0xff]
      %v200 = vld [vmem:[%s165 + $0xf8] sm:$0xff]
      %v201 = vld [vmem:[%s165 + $0x100] sm:$0xff]
      %v202 = vld [vmem:[%s165 + $0x108] sm:$0xff]
      %v203 = vld [vmem:[%s165 + $0x110] sm:$0xff]
      %v204 = vld [vmem:[%s165 + $0x118] sm:$0xff]
      %v205 = vld [vmem:[%s165 + $0x120] sm:$0xff]
      %v206 = vld [vmem:[%s165 + $0x128] sm:$0xff]
      %v207 = vld [vmem:[%s165 + $0x130] sm:$0xff]
      %v208 = vpack.c.bf16 %v181, %v172
      %v209 = vpack.c.bf16 %v182, %v173
      %v210 = vpack.c.bf16 %v183, %v174
      %v211 = vpack.c.bf16 %v184, %v175
      %v212 = vpack.c.bf16 %v185, %v176
      %v213 = vpack.c.bf16 %v186, %v177
      %v214 = vpack.c.bf16 %v187, %v178
      %v215 = vpack.c.bf16 %v188, %v179
      %v216 = vpack.c.bf16 %v189, %v180
      %v217 = vpack.c.bf16 %v199, %v190
      %v218 = vpack.c.bf16 %v200, %v191
      %v219 = vpack.c.bf16 %v201, %v192
      %v220 = vpack.c.bf16 %v202, %v193
      %v221 = vpack.c.bf16 %v203, %v194
      %v222 = vpack.c.bf16 %v204, %v195
      %v223 = vpack.c.bf16 %v205, %v196
      %v224 = vpack.c.bf16 %v206, %v197
      %v225 = vpack.c.bf16 %v207, %v198
      %v226 = vld [vmem:[%s1] sm:$0xf]
      %v227 = vld [vmem:[%s1 + $0x4] sm:$0x3]
      %s228 = scalar_lea.vmem %s1, 8
      %v229 = vld [vmem:[%s228] sm:$0xf]
      %v230 = vld [vmem:[%s228 + $0x4] sm:$0x3]
      %v233 = vunpack.c.l.b16 %v229
      %v234 = vunpack.c.l.b16 %v230
      %v235 = vpack.c.b16 %v234, %v233
      %254 = vrot.lane.b32.xlu0 %v208, 127
      %v255 = vpop.permute.xlu0 %254
      %256 = vrot.lane.b32.xlu0 %v209, 127
      %v257 = vpop.permute.xlu0 %256
      %258 = vrot.lane.b32.xlu0 %v210, 127
      %v259 = vpop.permute.xlu0 %258
      %260 = vrot.lane.b32.xlu0 %v211, 127
      %v261 = vpop.permute.xlu0 %260
      %262 = vrot.lane.b32.xlu0 %v212, 127
      %v263 = vpop.permute.xlu0 %262
      %264 = vrot.lane.b32.xlu0 %v213, 127
      %v265 = vpop.permute.xlu0 %264
      %266 = vrot.lane.b32.xlu0 %v214, 127
      %v267 = vpop.permute.xlu0 %266
      %268 = vrot.lane.b32.xlu0 %v215, 127
      %v269 = vpop.permute.xlu0 %268
      %270 = vrot.lane.b32.xlu0 %v216, 127
      %v271 = vpop.permute.xlu0 %270
      %272 = vrot.lane.b32.xlu0 %v217, 127
      %v273 = vpop.permute.xlu0 %272
      %274 = vrot.lane.b32.xlu0 %v218, 127
      %v275 = vpop.permute.xlu0 %274
      %276 = vrot.lane.b32.xlu0 %v219, 127
      %v277 = vpop.permute.xlu0 %276
      %278 = vrot.lane.b32.xlu0 %v220, 127
      %v279 = vpop.permute.xlu0 %278
      %280 = vrot.lane.b32.xlu0 %v221, 127
      %v281 = vpop.permute.xlu0 %280
      %282 = vrot.lane.b32.xlu0 %v222, 127
      %v283 = vpop.permute.xlu0 %282
      %284 = vrot.lane.b32.xlu0 %v223, 127
      %v285 = vpop.permute.xlu0 %284
      %286 = vrot.lane.b32.xlu0 %v224, 127
      %v287 = vpop.permute.xlu0 %286
      %288 = vrot.lane.b32.xlu0 %v225, 127
      %v289 = vpop.permute.xlu0 %288
      %vm290 = vcmask 1039360
      %v291 = vsel %vm290, %v255, %v257
      %v292 = vsel %vm290, %v257, %v259
      %v293 = vsel %vm290, %v259, %v261
      %v294 = vsel %vm290, %v261, %v263
      %v295 = vsel %vm290, %v263, %v265
      %v296 = vsel %vm290, %v265, %v267
      %v297 = vsel %vm290, %v267, %v269
      %v298 = vsel %vm290, %v269, %v271
      %v299 = vsel %vm290, %v273, %v275
      %v300 = vsel %vm290, %v275, %v277
      %v301 = vsel %vm290, %v277, %v279
      %v302 = vsel %vm290, %v279, %v281
      %v303 = vsel %vm290, %v281, %v283
      %v304 = vsel %vm290, %v283, %v285
      %v305 = vsel %vm290, %v285, %v287
      %v306 = vsel %vm290, %v287, %v289
      %vm325 = vcmask 261120
      %v327 = vsel %vm325, %v235, 0
      %329 = vmatprep.subr.bf16.mxu0 %v292
      %330 = vmatpush1.bf16.msra.mxu0 %v291
      %331 = vmatprep.subr.bf16.mxu0 %v300
      %332 = vmatpush1.bf16.msra.mxu0 %v299
      %333 = vmatprep.subr.bf16.mxu0 0
      %334 = vmatpush1.bf16.msra.mxu0 0
      %335 = vmatprep.subr.bf16.mxu0 0
      %336 = vmatpush1.bf16.msra.mxu0 0
      %337 = vmatprep.subr.bf16.mxu0 0
      %338 = vmatpush1.bf16.msra.mxu0 0
      %339 = vmatprep.subr.bf16.mxu0 0
      %340 = vmatpush1.bf16.msra.mxu0 0
      %341 = vmatprep.subr.bf16.mxu0 0
      %342 = vmatpush1.bf16.msra.mxu0 0
      %343 = vmatprep.subr.bf16.mxu0 0
      %344 = vmatpush1.bf16.msra.mxu0 0
      %345 = vmatprep.subr.bf16.mxu0 0
      %346 = vmatpush1.bf16.msra.mxu0 0
      %347 = vmatprep.subr.bf16.mxu0 0
      %348 = vmatpush1.bf16.msra.mxu0 0
      %349 = vmatprep.subr.bf16.mxu0 0
      %350 = vmatpush1.bf16.msra.mxu0 0
      %351 = vmatprep.subr.bf16.mxu0 0
      %352 = vmatpush1.bf16.msra.mxu0 0
      %353 = vmatprep.subr.bf16.mxu0 0
      %354 = vmatpush1.bf16.msra.mxu0 0
      %355 = vmatprep.subr.bf16.mxu0 0
      %356 = vmatpush1.bf16.msra.mxu0 0
      %357 = vmatprep.subr.bf16.mxu0 0
      %358 = vmatpush1.bf16.msra.mxu0 0
      %359 = vmatprep.subr.bf16.mxu0 0
      %360 = vmatpush1.bf16.msra.mxu0 0
      %361 = vmatprep.mubr.bf16.mxu0 0
      %362 = vmatmul.mubr.bf16.gmra.mrb[0].mxu0 %v327
      %v363 = vpop.f32.mrb[0].mxu0
      %v364 = vadd.f32 0.0, %v363
      %v365 = vpop.f32.mrb[0].mxu0
      %v366 = vadd.f32 0.0, %v365
      %v367 = vpop.f32.mrb[0].mxu0
      %v368 = vadd.f32 0.0, %v367
      %v369 = vpop.f32.mrb[0].mxu0
      %v370 = vadd.f32 0.0, %v369
      %371 = vdwg.mxu0
      %372 = vmatprep.subr.bf16.mxu0 %v294
      %373 = vmatpush1.bf16.msra.mxu0 %v293
      %374 = vmatprep.subr.bf16.mxu0 %v302
      %375 = vmatpush1.bf16.msra.mxu0 %v301
      %376 = vmatprep.subr.bf16.mxu0 0
      %377 = vmatpush1.bf16.msra.mxu0 0
      %378 = vmatprep.subr.bf16.mxu0 0
      %379 = vmatpush1.bf16.msra.mxu0 0
      %380 = vmatprep.subr.bf16.mxu0 0
      %381 = vmatpush1.bf16.msra.mxu0 0
      %382 = vmatprep.subr.bf16.mxu0 0
      %383 = vmatpush1.bf16.msra.mxu0 0
      %384 = vmatprep.subr.bf16.mxu0 0
      %385 = vmatpush1.bf16.msra.mxu0 0
      %386 = vmatprep.subr.bf16.mxu0 0
      %387 = vmatpush1.bf16.msra.mxu0 0
      %388 = vmatprep.subr.bf16.mxu0 0
      %389 = vmatpush1.bf16.msra.mxu0 0
      %390 = vmatprep.subr.bf16.mxu0 0
      %391 = vmatpush1.bf16.msra.mxu0 0
      %392 = vmatprep.subr.bf16.mxu0 0
      %393 = vmatpush1.bf16.msra.mxu0 0
      %394 = vmatprep.subr.bf16.mxu0 0
      %395 = vmatpush1.bf16.msra.mxu0 0
      %396 = vmatprep.subr.bf16.mxu0 0
      %397 = vmatpush1.bf16.msra.mxu0 0
      %398 = vmatprep.subr.bf16.mxu0 0
      %399 = vmatpush1.bf16.msra.mxu0 0
      %400 = vmatprep.subr.bf16.mxu0 0
      %401 = vmatpush1.bf16.msra.mxu0 0
      %402 = vmatprep.subr.bf16.mxu0 0
      %403 = vmatpush1.bf16.msra.mxu0 0
      %404 = vmatprep.mubr.bf16.mxu0 0
      %405 = vmatmul.mubr.bf16.gmra.mrb[0].mxu0 %v327
      %v406 = vpop.f32.mrb[0].mxu0
      %v407 = vadd.f32 0.0, %v406
      %v408 = vpop.f32.mrb[0].mxu0
      %v409 = vadd.f32 0.0, %v408
      %v410 = vpop.f32.mrb[0].mxu0
      %v411 = vadd.f32 0.0, %v410
      %v412 = vpop.f32.mrb[0].mxu0
      %v413 = vadd.f32 0.0, %v412
      %414 = vdwg.mxu0
      %415 = vmatprep.subr.bf16.mxu0 %v296
      %416 = vmatpush1.bf16.msra.mxu0 %v295
      %417 = vmatprep.subr.bf16.mxu0 %v304
      %418 = vmatpush1.bf16.msra.mxu0 %v303
      %419 = vmatprep.subr.bf16.mxu0 0
      %420 = vmatpush1.bf16.msra.mxu0 0
      %421 = vmatprep.subr.bf16.mxu0 0
      %422 = vmatpush1.bf16.msra.mxu0 0
      %423 = vmatprep.subr.bf16.mxu0 0
      %424 = vmatpush1.bf16.msra.mxu0 0
      %425 = vmatprep.subr.bf16.mxu0 0
      %426 = vmatpush1.bf16.msra.mxu0 0
      %427 = vmatprep.subr.bf16.mxu0 0
      %428 = vmatpush1.bf16.msra.mxu0 0
      %429 = vmatprep.subr.bf16.mxu0 0
      %430 = vmatpush1.bf16.msra.mxu0 0
      %431 = vmatprep.subr.bf16.mxu0 0
      %432 = vmatpush1.bf16.msra.mxu0 0
      %433 = vmatprep.subr.bf16.mxu0 0
      %434 = vmatpush1.bf16.msra.mxu0 0
      %435 = vmatprep.subr.bf16.mxu0 0
      %436 = vmatpush1.bf16.msra.mxu0 0
      %437 = vmatprep.subr.bf16.mxu0 0
      %438 = vmatpush1.bf16.msra.mxu0 0
      %439 = vmatprep.subr.bf16.mxu0 0
      %440 = vmatpush1.bf16.msra.mxu0 0
      %441 = vmatprep.subr.bf16.mxu0 0
      %442 = vmatpush1.bf16.msra.mxu0 0
      %443 = vmatprep.subr.bf16.mxu0 0
      %444 = vmatpush1.bf16.msra.mxu0 0
      %445 = vmatprep.subr.bf16.mxu0 0
      %446 = vmatpush1.bf16.msra.mxu0 0
      %447 = vmatprep.mubr.bf16.mxu0 0
      %448 = vmatmul.mubr.bf16.gmra.mrb[0].mxu0 %v327
      %v449 = vpop.f32.mrb[0].mxu0
      %v450 = vadd.f32 0.0, %v449
      %v451 = vpop.f32.mrb[0].mxu0
      %v452 = vadd.f32 0.0, %v451
      %v453 = vpop.f32.mrb[0].mxu0
      %v454 = vadd.f32 0.0, %v453
      %v455 = vpop.f32.mrb[0].mxu0
      %v456 = vadd.f32 0.0, %v455
      %457 = vdwg.mxu0
      %458 = vmatprep.subr.bf16.mxu0 %v298
      %459 = vmatpush1.bf16.msra.mxu0 %v297
      %460 = vmatprep.subr.bf16.mxu0 %v306
      %461 = vmatpush1.bf16.msra.mxu0 %v305
      %462 = vmatprep.subr.bf16.mxu0 0
      %463 = vmatpush1.bf16.msra.mxu0 0
      %464 = vmatprep.subr.bf16.mxu0 0
      %465 = vmatpush1.bf16.msra.mxu0 0
      %466 = vmatprep.subr.bf16.mxu0 0
      %467 = vmatpush1.bf16.msra.mxu0 0
      %468 = vmatprep.subr.bf16.mxu0 0
      %469 = vmatpush1.bf16.msra.mxu0 0
      %470 = vmatprep.subr.bf16.mxu0 0
      %471 = vmatpush1.bf16.msra.mxu0 0
      %472 = vmatprep.subr.bf16.mxu0 0
      %473 = vmatpush1.bf16.msra.mxu0 0
      %474 = vmatprep.subr.bf16.mxu0 0
      %475 = vmatpush1.bf16.msra.mxu0 0
      %476 = vmatprep.subr.bf16.mxu0 0
      %477 = vmatpush1.bf16.msra.mxu0 0
      %478 = vmatprep.subr.bf16.mxu0 0
      %479 = vmatpush1.bf16.msra.mxu0 0
      %480 = vmatprep.subr.bf16.mxu0 0
      %481 = vmatpush1.bf16.msra.mxu0 0
      %482 = vmatprep.subr.bf16.mxu0 0
      %483 = vmatpush1.bf16.msra.mxu0 0
      %484 = vmatprep.subr.bf16.mxu0 0
      %485 = vmatpush1.bf16.msra.mxu0 0
      %486 = vmatprep.subr.bf16.mxu0 0
      %487 = vmatpush1.bf16.msra.mxu0 0
      %488 = vmatprep.subr.bf16.mxu0 0
      %489 = vmatpush1.bf16.msra.mxu0 0
      %490 = vmatprep.mubr.bf16.mxu0 0
      %491 = vmatmul.mubr.bf16.gmra.mrb[0].mxu0 %v327
      %v492 = vpop.f32.mrb[0].mxu0
      %v493 = vadd.f32 0.0, %v492
      %v494 = vpop.f32.mrb[0].mxu0
      %v495 = vadd.f32 0.0, %v494
      %v496 = vpop.f32.mrb[0].mxu0
      %v497 = vadd.f32 0.0, %v496
      %v498 = vpop.f32.mrb[0].mxu0
      %v499 = vadd.f32 0.0, %v498
      %500 = vdwg.mxu0
      %501 = vmatprep.subr.bf16.mxu0 0
      %502 = vmatpush1.bf16.msra.mxu0 %v271
      %503 = vmatprep.subr.bf16.mxu0 0
      %504 = vmatpush1.bf16.msra.mxu0 %v289
      %505 = vmatprep.subr.bf16.mxu0 0
      %506 = vmatpush1.bf16.msra.mxu0 0
      %507 = vmatprep.subr.bf16.mxu0 0
      %508 = vmatpush1.bf16.msra.mxu0 0
      %509 = vmatprep.subr.bf16.mxu0 0
      %510 = vmatpush1.bf16.msra.mxu0 0
      %511 = vmatprep.subr.bf16.mxu0 0
      %512 = vmatpush1.bf16.msra.mxu0 0
      %513 = vmatprep.subr.bf16.mxu0 0
      %514 = vmatpush1.bf16.msra.mxu0 0
      %515 = vmatprep.subr.bf16.mxu0 0
      %516 = vmatpush1.bf16.msra.mxu0 0
      %517 = vmatprep.subr.bf16.mxu0 0
      %518 = vmatpush1.bf16.msra.mxu0 0
      %519 = vmatprep.subr.bf16.mxu0 0
      %520 = vmatpush1.bf16.msra.mxu0 0
      %521 = vmatprep.subr.bf16.mxu0 0
      %522 = vmatpush1.bf16.msra.mxu0 0
      %523 = vmatprep.subr.bf16.mxu0 0
      %524 = vmatpush1.bf16.msra.mxu0 0
      %525 = vmatprep.subr.bf16.mxu0 0
      %526 = vmatpush1.bf16.msra.mxu0 0
      %527 = vmatprep.subr.bf16.mxu0 0
      %528 = vmatpush1.bf16.msra.mxu0 0
      %529 = vmatprep.subr.bf16.mxu0 0
      %530 = vmatpush1.bf16.msra.mxu0 0
      %531 = vmatprep.subr.bf16.mxu0 0
      %532 = vmatpush1.bf16.msra.mxu0 0
      %533 = vmatprep.mubr.bf16.mxu0 0
      %534 = vmatmul.mubr.bf16.gmra.mrb[0].mxu0 %v327
      %v535 = vpop.f32.mrb[0].mxu0
      %v536 = vadd.f32 0.0, %v535
      %v537 = vpop.f32.mrb[0].mxu0
      %v538 = vpop.f32.mrb[0].mxu0
      %v539 = vadd.f32 0.0, %v538
      %v540 = vpop.f32.mrb[0].mxu0
      %541 = vdwg.mxu0
      %v544 = vunpack.c.l.b16 %v226
      %v545 = vunpack.c.l.b16 %v227
      %v546 = vpack.c.b16 %v545, %v544
      %v548 = vsel %vm325, %v546, 0
      %550 = vmatprep.subr.bf16.mxu0 %v209
      %551 = vmatpush1.bf16.msra.mxu0 %v208
      %552 = vmatprep.subr.bf16.mxu0 %v218
      %553 = vmatpush1.bf16.msra.mxu0 %v217
      %554 = vmatprep.subr.bf16.mxu0 0
      %555 = vmatpush1.bf16.msra.mxu0 0
      %556 = vmatprep.subr.bf16.mxu0 0
      %557 = vmatpush1.bf16.msra.mxu0 0
      %558 = vmatprep.subr.bf16.mxu0 0
      %559 = vmatpush1.bf16.msra.mxu0 0
      %560 = vmatprep.subr.bf16.mxu0 0
      %561 = vmatpush1.bf16.msra.mxu0 0
      %562 = vmatprep.subr.bf16.mxu0 0
      %563 = vmatpush1.bf16.msra.mxu0 0
      %564 = vmatprep.subr.bf16.mxu0 0
      %565 = vmatpush1.bf16.msra.mxu0 0
      %566 = vmatprep.subr.bf16.mxu0 0
      %567 = vmatpush1.bf16.msra.mxu0 0
      %568 = vmatprep.subr.bf16.mxu0 0
      %569 = vmatpush1.bf16.msra.mxu0 0
      %570 = vmatprep.subr.bf16.mxu0 0
      %571 = vmatpush1.bf16.msra.mxu0 0
      %572 = vmatprep.subr.bf16.mxu0 0
      %573 = vmatpush1.bf16.msra.mxu0 0
      %574 = vmatprep.subr.bf16.mxu0 0
      %575 = vmatpush1.bf16.msra.mxu0 0
      %576 = vmatprep.subr.bf16.mxu0 0
      %577 = vmatpush1.bf16.msra.mxu0 0
      %578 = vmatprep.subr.bf16.mxu0 0
      %579 = vmatpush1.bf16.msra.mxu0 0
      %580 = vmatprep.subr.bf16.mxu0 0
      %581 = vmatpush1.bf16.msra.mxu0 0
      %582 = vmatprep.mubr.bf16.mxu0 0
      %583 = vmatmul.mubr.bf16.gmra.mrb[0].mxu0 %v548
      %v584 = vpop.f32.mrb[0].mxu0
      %v585 = vadd.f32 %v364, %v584
      %v586 = vpop.f32.mrb[0].mxu0
      %v587 = vadd.f32 %v366, %v586
      %v588 = vpop.f32.mrb[0].mxu0
      %v589 = vadd.f32 %v368, %v588
      %v590 = vpop.f32.mrb[0].mxu0
      %v591 = vadd.f32 %v370, %v590
      %592 = vdwg.mxu0
      %593 = vmatprep.subr.bf16.mxu0 %v211
      %594 = vmatpush1.bf16.msra.mxu0 %v210
      %595 = vmatprep.subr.bf16.mxu0 %v220
      %596 = vmatpush1.bf16.msra.mxu0 %v219
      %597 = vmatprep.subr.bf16.mxu0 0
      %598 = vmatpush1.bf16.msra.mxu0 0
      %599 = vmatprep.subr.bf16.mxu0 0
      %600 = vmatpush1.bf16.msra.mxu0 0
      %601 = vmatprep.subr.bf16.mxu0 0
      %602 = vmatpush1.bf16.msra.mxu0 0
      %603 = vmatprep.subr.bf16.mxu0 0
      %604 = vmatpush1.bf16.msra.mxu0 0
      %605 = vmatprep.subr.bf16.mxu0 0
      %606 = vmatpush1.bf16.msra.mxu0 0
      %607 = vmatprep.subr.bf16.mxu0 0
      %608 = vmatpush1.bf16.msra.mxu0 0
      %609 = vmatprep.subr.bf16.mxu0 0
      %610 = vmatpush1.bf16.msra.mxu0 0
      %611 = vmatprep.subr.bf16.mxu0 0
      %612 = vmatpush1.bf16.msra.mxu0 0
      %613 = vmatprep.subr.bf16.mxu0 0
      %614 = vmatpush1.bf16.msra.mxu0 0
      %615 = vmatprep.subr.bf16.mxu0 0
      %616 = vmatpush1.bf16.msra.mxu0 0
      %617 = vmatprep.subr.bf16.mxu0 0
      %618 = vmatpush1.bf16.msra.mxu0 0
      %619 = vmatprep.subr.bf16.mxu0 0
      %620 = vmatpush1.bf16.msra.mxu0 0
      %621 = vmatprep.subr.bf16.mxu0 0
      %622 = vmatpush1.bf16.msra.mxu0 0
      %623 = vmatprep.subr.bf16.mxu0 0
      %624 = vmatpush1.bf16.msra.mxu0 0
      %625 = vmatprep.mubr.bf16.mxu0 0
      %626 = vmatmul.mubr.bf16.gmra.mrb[0].mxu0 %v548
      %v627 = vpop.f32.mrb[0].mxu0
      %v628 = vadd.f32 %v407, %v627
      %v629 = vpop.f32.mrb[0].mxu0
      %v630 = vadd.f32 %v409, %v629
      %v631 = vpop.f32.mrb[0].mxu0
      %v632 = vadd.f32 %v411, %v631
      %v633 = vpop.f32.mrb[0].mxu0
      %v634 = vadd.f32 %v413, %v633
      %635 = vdwg.mxu0
      %636 = vmatprep.subr.bf16.mxu0 %v213
      %637 = vmatpush1.bf16.msra.mxu0 %v212
      %638 = vmatprep.subr.bf16.mxu0 %v222
      %639 = vmatpush1.bf16.msra.mxu0 %v221
      %640 = vmatprep.subr.bf16.mxu0 0
      %641 = vmatpush1.bf16.msra.mxu0 0
      %642 = vmatprep.subr.bf16.mxu0 0
      %643 = vmatpush1.bf16.msra.mxu0 0
      %644 = vmatprep.subr.bf16.mxu0 0
      %645 = vmatpush1.bf16.msra.mxu0 0
      %646 = vmatprep.subr.bf16.mxu0 0
      %647 = vmatpush1.bf16.msra.mxu0 0
      %648 = vmatprep.subr.bf16.mxu0 0
      %649 = vmatpush1.bf16.msra.mxu0 0
      %650 = vmatprep.subr.bf16.mxu0 0
      %651 = vmatpush1.bf16.msra.mxu0 0
      %652 = vmatprep.subr.bf16.mxu0 0
      %653 = vmatpush1.bf16.msra.mxu0 0
      %654 = vmatprep.subr.bf16.mxu0 0
      %655 = vmatpush1.bf16.msra.mxu0 0
      %656 = vmatprep.subr.bf16.mxu0 0
      %657 = vmatpush1.bf16.msra.mxu0 0
      %658 = vmatprep.subr.bf16.mxu0 0
      %659 = vmatpush1.bf16.msra.mxu0 0
      %660 = vmatprep.subr.bf16.mxu0 0
      %661 = vmatpush1.bf16.msra.mxu0 0
      %662 = vmatprep.subr.bf16.mxu0 0
      %663 = vmatpush1.bf16.msra.mxu0 0
      %664 = vmatprep.subr.bf16.mxu0 0
      %665 = vmatpush1.bf16.msra.mxu0 0
      %666 = vmatprep.subr.bf16.mxu0 0
      %667 = vmatpush1.bf16.msra.mxu0 0
      %668 = vmatprep.mubr.bf16.mxu0 0
      %669 = vmatmul.mubr.bf16.gmra.mrb[0].mxu0 %v548
      %v670 = vpop.f32.mrb[0].mxu0
      %v671 = vadd.f32 %v450, %v670
      %v672 = vpop.f32.mrb[0].mxu0
      %v673 = vadd.f32 %v452, %v672
      %v674 = vpop.f32.mrb[0].mxu0
      %v675 = vadd.f32 %v454, %v674
      %v676 = vpop.f32.mrb[0].mxu0
      %v677 = vadd.f32 %v456, %v676
      %678 = vdwg.mxu0
      %679 = vmatprep.subr.bf16.mxu0 %v215
      %680 = vmatpush1.bf16.msra.mxu0 %v214
      %681 = vmatprep.subr.bf16.mxu0 %v224
      %682 = vmatpush1.bf16.msra.mxu0 %v223
      %683 = vmatprep.subr.bf16.mxu0 0
      %684 = vmatpush1.bf16.msra.mxu0 0
      %685 = vmatprep.subr.bf16.mxu0 0
      %686 = vmatpush1.bf16.msra.mxu0 0
      %687 = vmatprep.subr.bf16.mxu0 0
      %688 = vmatpush1.bf16.msra.mxu0 0
      %689 = vmatprep.subr.bf16.mxu0 0
      %690 = vmatpush1.bf16.msra.mxu0 0
      %691 = vmatprep.subr.bf16.mxu0 0
      %692 = vmatpush1.bf16.msra.mxu0 0
      %693 = vmatprep.subr.bf16.mxu0 0
      %694 = vmatpush1.bf16.msra.mxu0 0
      %695 = vmatprep.subr.bf16.mxu0 0
      %696 = vmatpush1.bf16.msra.mxu0 0
      %697 = vmatprep.subr.bf16.mxu0 0
      %698 = vmatpush1.bf16.msra.mxu0 0
      %699 = vmatprep.subr.bf16.mxu0 0
      %700 = vmatpush1.bf16.msra.mxu0 0
      %701 = vmatprep.subr.bf16.mxu0 0
      %702 = vmatpush1.bf16.msra.mxu0 0
      %703 = vmatprep.subr.bf16.mxu0 0
      %704 = vmatpush1.bf16.msra.mxu0 0
      %705 = vmatprep.subr.bf16.mxu0 0
      %706 = vmatpush1.bf16.msra.mxu0 0
      %707 = vmatprep.subr.bf16.mxu0 0
      %708 = vmatpush1.bf16.msra.mxu0 0
      %709 = vmatprep.subr.bf16.mxu0 0
      %710 = vmatpush1.bf16.msra.mxu0 0
      %711 = vmatprep.mubr.bf16.mxu0 0
      %712 = vmatmul.mubr.bf16.gmra.mrb[0].mxu0 %v548
      %v713 = vpop.f32.mrb[0].mxu0
      %v714 = vadd.f32 %v493, %v713
      %v715 = vpop.f32.mrb[0].mxu0
      %v716 = vadd.f32 %v495, %v715
      %v717 = vpop.f32.mrb[0].mxu0
      %v718 = vadd.f32 %v497, %v717
      %v719 = vpop.f32.mrb[0].mxu0
      %v720 = vadd.f32 %v499, %v719
      %721 = vdwg.mxu0
      %722 = vmatprep.subr.bf16.mxu0 0
      %723 = vmatpush1.bf16.msra.mxu0 %v216
      %724 = vmatprep.subr.bf16.mxu0 0
      %725 = vmatpush1.bf16.msra.mxu0 %v225
      %726 = vmatprep.subr.bf16.mxu0 0
      %727 = vmatpush1.bf16.msra.mxu0 0
      %728 = vmatprep.subr.bf16.mxu0 0
      %729 = vmatpush1.bf16.msra.mxu0 0
      %730 = vmatprep.subr.bf16.mxu0 0
      %731 = vmatpush1.bf16.msra.mxu0 0
      %732 = vmatprep.subr.bf16.mxu0 0
      %733 = vmatpush1.bf16.msra.mxu0 0
      %734 = vmatprep.subr.bf16.mxu0 0
      %735 = vmatpush1.bf16.msra.mxu0 0
      %736 = vmatprep.subr.bf16.mxu0 0
      %737 = vmatpush1.bf16.msra.mxu0 0
      %738 = vmatprep.subr.bf16.mxu0 0
      %739 = vmatpush1.bf16.msra.mxu0 0
      %740 = vmatprep.subr.bf16.mxu0 0
      %741 = vmatpush1.bf16.msra.mxu0 0
      %742 = vmatprep.subr.bf16.mxu0 0
      %743 = vmatpush1.bf16.msra.mxu0 0
      %744 = vmatprep.subr.bf16.mxu0 0
      %745 = vmatpush1.bf16.msra.mxu0 0
      %746 = vmatprep.subr.bf16.mxu0 0
      %747 = vmatpush1.bf16.msra.mxu0 0
      %748 = vmatprep.subr.bf16.mxu0 0
      %749 = vmatpush1.bf16.msra.mxu0 0
      %750 = vmatprep.subr.bf16.mxu0 0
      %751 = vmatpush1.bf16.msra.mxu0 0
      %752 = vmatprep.subr.bf16.mxu0 0
      %753 = vmatpush1.bf16.msra.mxu0 0
      %754 = vmatprep.mubr.bf16.mxu0 0
      %755 = vmatmul.mubr.bf16.gmra.mrb[0].mxu0 %v548
      %v756 = vpop.f32.mrb[0].mxu0
      %v757 = vadd.f32 %v536, %v756
      %v758 = vpop.f32.mrb[0].mxu0
      %v759 = vpop.f32.mrb[0].mxu0
      %v760 = vadd.f32 %v539, %v759
      %v761 = vpop.f32.mrb[0].mxu0
      %762 = vdwg.mxu0
      %s763 = scalar_lea.vmem %s1, 16
      %v764 = vld [vmem:[%s763] sm:$0xf]
      %v765 = vld [vmem:[%s763 + $0x4] sm:$0x3]
      %v768 = vunpack.c.l.b16 %v764
      %v769 = vunpack.c.l.b16 %v765
      %v770 = vpack.c.b16 %v769, %v768
      %771 = vrot.lane.b32.xlu0 %v208, 126
      %v772 = vpop.permute.xlu0 %771
      %773 = vrot.lane.b32.xlu0 %v209, 126
      %v774 = vpop.permute.xlu0 %773
      %775 = vrot.lane.b32.xlu0 %v210, 126
      %v776 = vpop.permute.xlu0 %775
      %777 = vrot.lane.b32.xlu0 %v211, 126
      %v778 = vpop.permute.xlu0 %777
      %779 = vrot.lane.b32.xlu0 %v212, 126
      %v780 = vpop.permute.xlu0 %779
      %781 = vrot.lane.b32.xlu0 %v213, 126
      %v782 = vpop.permute.xlu0 %781
      %783 = vrot.lane.b32.xlu0 %v214, 126
      %v784 = vpop.permute.xlu0 %783
      %785 = vrot.lane.b32.xlu0 %v215, 126
      %v786 = vpop.permute.xlu0 %785
      %787 = vrot.lane.b32.xlu0 %v216, 126
      %v788 = vpop.permute.xlu0 %787
      %789 = vrot.lane.b32.xlu0 %v217, 126
      %v790 = vpop.permute.xlu0 %789
      %791 = vrot.lane.b32.xlu0 %v218, 126
      %v792 = vpop.permute.xlu0 %791
      %793 = vrot.lane.b32.xlu0 %v219, 126
      %v794 = vpop.permute.xlu0 %793
      %795 = vrot.lane.b32.xlu0 %v220, 126
      %v796 = vpop.permute.xlu0 %795
      %797 = vrot.lane.b32.xlu0 %v221, 126
      %v798 = vpop.permute.xlu0 %797
      %799 = vrot.lane.b32.xlu0 %v222, 126
      %v800 = vpop.permute.xlu0 %799
      %801 = vrot.lane.b32.xlu0 %v223, 126
      %v802 = vpop.permute.xlu0 %801
      %803 = vrot.lane.b32.xlu0 %v224, 126
      %v804 = vpop.permute.xlu0 %803
      %805 = vrot.lane.b32.xlu0 %v225, 126
      %v806 = vpop.permute.xlu0 %805
      %vm807 = vcmask 1031168
      %v808 = vsel %vm807, %v772, %v774
      %v809 = vsel %vm807, %v774, %v776
      %v810 = vsel %vm807, %v776, %v778
      %v811 = vsel %vm807, %v778, %v780
      %v812 = vsel %vm807, %v780, %v782
      %v813 = vsel %vm807, %v782, %v784
      %v814 = vsel %vm807, %v784, %v786
      %v815 = vsel %vm807, %v786, %v788
      %v816 = vsel %vm807, %v790, %v792
      %v817 = vsel %vm807, %v792, %v794
      %v818 = vsel %vm807, %v794, %v796
      %v819 = vsel %vm807, %v796, %v798
      %v820 = vsel %vm807, %v798, %v800
      %v821 = vsel %vm807, %v800, %v802
      %v822 = vsel %vm807, %v802, %v804
      %v823 = vsel %vm807, %v804, %v806
      %v843 = vsel %vm325, %v770, 0
      %845 = vmatprep.subr.bf16.mxu0 %v809
      %846 = vmatpush1.bf16.msra.mxu0 %v808
      %847 = vmatprep.subr.bf16.mxu0 %v817
      %848 = vmatpush1.bf16.msra.mxu0 %v816
      %849 = vmatprep.subr.bf16.mxu0 0
      %850 = vmatpush1.bf16.msra.mxu0 0
      %851 = vmatprep.subr.bf16.mxu0 0
      %852 = vmatpush1.bf16.msra.mxu0 0
      %853 = vmatprep.subr.bf16.mxu0 0
      %854 = vmatpush1.bf16.msra.mxu0 0
      %855 = vmatprep.subr.bf16.mxu0 0
      %856 = vmatpush1.bf16.msra.mxu0 0
      %857 = vmatprep.subr.bf16.mxu0 0
      %858 = vmatpush1.bf16.msra.mxu0 0
      %859 = vmatprep.subr.bf16.mxu0 0
      %860 = vmatpush1.bf16.msra.mxu0 0
      %861 = vmatprep.subr.bf16.mxu0 0
      %862 = vmatpush1.bf16.msra.mxu0 0
      %863 = vmatprep.subr.bf16.mxu0 0
      %864 = vmatpush1.bf16.msra.mxu0 0
      %865 = vmatprep.subr.bf16.mxu0 0
      %866 = vmatpush1.bf16.msra.mxu0 0
      %867 = vmatprep.subr.bf16.mxu0 0
      %868 = vmatpush1.bf16.msra.mxu0 0
      %869 = vmatprep.subr.bf16.mxu0 0
      %870 = vmatpush1.bf16.msra.mxu0 0
      %871 = vmatprep.subr.bf16.mxu0 0
      %872 = vmatpush1.bf16.msra.mxu0 0
      %873 = vmatprep.subr.bf16.mxu0 0
      %874 = vmatpush1.bf16.msra.mxu0 0
      %875 = vmatprep.subr.bf16.mxu0 0
      %876 = vmatpush1.bf16.msra.mxu0 0
      %877 = vmatprep.mubr.bf16.mxu0 0
      %878 = vmatmul.mubr.bf16.gmra.mrb[0].mxu0 %v843
      %v879 = vpop.f32.mrb[0].mxu0
      %v880 = vadd.f32 0.0, %v879
      %v881 = vpop.f32.mrb[0].mxu0
      %v882 = vadd.f32 0.0, %v881
      %v883 = vpop.f32.mrb[0].mxu0
      %v884 = vadd.f32 0.0, %v883
      %v885 = vpop.f32.mrb[0].mxu0
      %v886 = vadd.f32 0.0, %v885
      %887 = vdwg.mxu0
      %888 = vmatprep.subr.bf16.mxu0 %v811
      %889 = vmatpush1.bf16.msra.mxu0 %v810
      %890 = vmatprep.subr.bf16.mxu0 %v819
      %891 = vmatpush1.bf16.msra.mxu0 %v818
      %892 = vmatprep.subr.bf16.mxu0 0
      %893 = vmatpush1.bf16.msra.mxu0 0
      %894 = vmatprep.subr.bf16.mxu0 0
      %895 = vmatpush1.bf16.msra.mxu0 0
      %896 = vmatprep.subr.bf16.mxu0 0
      %897 = vmatpush1.bf16.msra.mxu0 0
      %898 = vmatprep.subr.bf16.mxu0 0
      %899 = vmatpush1.bf16.msra.mxu0 0
      %900 = vmatprep.subr.bf16.mxu0 0
      %901 = vmatpush1.bf16.msra.mxu0 0
      %902 = vmatprep.subr.bf16.mxu0 0
      %903 = vmatpush1.bf16.msra.mxu0 0
      %904 = vmatprep.subr.bf16.mxu0 0
      %905 = vmatpush1.bf16.msra.mxu0 0
      %906 = vmatprep.subr.bf16.mxu0 0
      %907 = vmatpush1.bf16.msra.mxu0 0
      %908 = vmatprep.subr.bf16.mxu0 0
      %909 = vmatpush1.bf16.msra.mxu0 0
      %910 = vmatprep.subr.bf16.mxu0 0
      %911 = vmatpush1.bf16.msra.mxu0 0
      %912 = vmatprep.subr.bf16.mxu0 0
      %913 = vmatpush1.bf16.msra.mxu0 0
      %914 = vmatprep.subr.bf16.mxu0 0
      %915 = vmatpush1.bf16.msra.mxu0 0
      %916 = vmatprep.subr.bf16.mxu0 0
      %917 = vmatpush1.bf16.msra.mxu0 0
      %918 = vmatprep.subr.bf16.mxu0 0
      %919 = vmatpush1.bf16.msra.mxu0 0
      %920 = vmatprep.mubr.bf16.mxu0 0
      %921 = vmatmul.mubr.bf16.gmra.mrb[0].mxu0 %v843
      %v922 = vpop.f32.mrb[0].mxu0
      %v923 = vadd.f32 0.0, %v922
      %v924 = vpop.f32.mrb[0].mxu0
      %v925 = vadd.f32 0.0, %v924
      %v926 = vpop.f32.mrb[0].mxu0
      %v927 = vadd.f32 0.0, %v926
      %v928 = vpop.f32.mrb[0].mxu0
      %v929 = vadd.f32 0.0, %v928
      %930 = vdwg.mxu0
      %931 = vmatprep.subr.bf16.mxu0 %v813
      %932 = vmatpush1.bf16.msra.mxu0 %v812
      %933 = vmatprep.subr.bf16.mxu0 %v821
      %934 = vmatpush1.bf16.msra.mxu0 %v820
      %935 = vmatprep.subr.bf16.mxu0 0
      %936 = vmatpush1.bf16.msra.mxu0 0
      %937 = vmatprep.subr.bf16.mxu0 0
      %938 = vmatpush1.bf16.msra.mxu0 0
      %939 = vmatprep.subr.bf16.mxu0 0
      %940 = vmatpush1.bf16.msra.mxu0 0
      %941 = vmatprep.subr.bf16.mxu0 0
      %942 = vmatpush1.bf16.msra.mxu0 0
      %943 = vmatprep.subr.bf16.mxu0 0
      %944 = vmatpush1.bf16.msra.mxu0 0
      %945 = vmatprep.subr.bf16.mxu0 0
      %946 = vmatpush1.bf16.msra.mxu0 0
      %947 = vmatprep.subr.bf16.mxu0 0
      %948 = vmatpush1.bf16.msra.mxu0 0
      %949 = vmatprep.subr.bf16.mxu0 0
      %950 = vmatpush1.bf16.msra.mxu0 0
      %951 = vmatprep.subr.bf16.mxu0 0
      %952 = vmatpush1.bf16.msra.mxu0 0
      %953 = vmatprep.subr.bf16.mxu0 0
      %954 = vmatpush1.bf16.msra.mxu0 0
      %955 = vmatprep.subr.bf16.mxu0 0
      %956 = vmatpush1.bf16.msra.mxu0 0
      %957 = vmatprep.subr.bf16.mxu0 0
      %958 = vmatpush1.bf16.msra.mxu0 0
      %959 = vmatprep.subr.bf16.mxu0 0
      %960 = vmatpush1.bf16.msra.mxu0 0
      %961 = vmatprep.subr.bf16.mxu0 0
      %962 = vmatpush1.bf16.msra.mxu0 0
      %963 = vmatprep.mubr.bf16.mxu0 0
      %964 = vmatmul.mubr.bf16.gmra.mrb[0].mxu0 %v843
      %v965 = vpop.f32.mrb[0].mxu0
      %v966 = vadd.f32 0.0, %v965
      %v967 = vpop.f32.mrb[0].mxu0
      %v968 = vadd.f32 0.0, %v967
      %v969 = vpop.f32.mrb[0].mxu0
      %v970 = vadd.f32 0.0, %v969
      %v971 = vpop.f32.mrb[0].mxu0
      %v972 = vadd.f32 0.0, %v971
      %973 = vdwg.mxu0
      %974 = vmatprep.subr.bf16.mxu0 %v815
      %975 = vmatpush1.bf16.msra.mxu0 %v814
      %976 = vmatprep.subr.bf16.mxu0 %v823
      %977 = vmatpush1.bf16.msra.mxu0 %v822
      %978 = vmatprep.subr.bf16.mxu0 0
      %979 = vmatpush1.bf16.msra.mxu0 0
      %980 = vmatprep.subr.bf16.mxu0 0
      %981 = vmatpush1.bf16.msra.mxu0 0
      %982 = vmatprep.subr.bf16.mxu0 0
      %983 = vmatpush1.bf16.msra.mxu0 0
      %984 = vmatprep.subr.bf16.mxu0 0
      %985 = vmatpush1.bf16.msra.mxu0 0
      %986 = vmatprep.subr.bf16.mxu0 0
      %987 = vmatpush1.bf16.msra.mxu0 0
      %988 = vmatprep.subr.bf16.mxu0 0
      %989 = vmatpush1.bf16.msra.mxu0 0
      %990 = vmatprep.subr.bf16.mxu0 0
      %991 = vmatpush1.bf16.msra.mxu0 0
      %992 = vmatprep.subr.bf16.mxu0 0
      %993 = vmatpush1.bf16.msra.mxu0 0
      %994 = vmatprep.subr.bf16.mxu0 0
      %995 = vmatpush1.bf16.msra.mxu0 0
      %996 = vmatprep.subr.bf16.mxu0 0
      %997 = vmatpush1.bf16.msra.mxu0 0
      %998 = vmatprep.subr.bf16.mxu0 0
      %999 = vmatpush1.bf16.msra.mxu0 0
      %1000 = vmatprep.subr.bf16.mxu0 0
      %1001 = vmatpush1.bf16.msra.mxu0 0
      %1002 = vmatprep.subr.bf16.mxu0 0
      %1003 = vmatpush1.bf16.msra.mxu0 0
      %1004 = vmatprep.subr.bf16.mxu0 0
      %1005 = vmatpush1.bf16.msra.mxu0 0
      %1006 = vmatprep.mubr.bf16.mxu0 0
      %1007 = vmatmul.mubr.bf16.gmra.mrb[0].mxu0 %v843
      %v1008 = vpop.f32.mrb[0].mxu0
      %v1009 = vadd.f32 0.0, %v1008
      %v1010 = vpop.f32.mrb[0].mxu0
      %v1011 = vadd.f32 0.0, %v1010
      %v1012 = vpop.f32.mrb[0].mxu0
      %v1013 = vadd.f32 0.0, %v1012
      %v1014 = vpop.f32.mrb[0].mxu0
      %v1015 = vadd.f32 0.0, %v1014
      %1016 = vdwg.mxu0
      %1017 = vmatprep.subr.bf16.mxu0 0
      %1018 = vmatpush1.bf16.msra.mxu0 %v788
      %1019 = vmatprep.subr.bf16.mxu0 0
      %1020 = vmatpush1.bf16.msra.mxu0 %v806
      %1021 = vmatprep.subr.bf16.mxu0 0
      %1022 = vmatpush1.bf16.msra.mxu0 0
      %1023 = vmatprep.subr.bf16.mxu0 0
      %1024 = vmatpush1.bf16.msra.mxu0 0
      %1025 = vmatprep.subr.bf16.mxu0 0
      %1026 = vmatpush1.bf16.msra.mxu0 0
      %1027 = vmatprep.subr.bf16.mxu0 0
      %1028 = vmatpush1.bf16.msra.mxu0 0
      %1029 = vmatprep.subr.bf16.mxu0 0
      %1030 = vmatpush1.bf16.msra.mxu0 0
      %1031 = vmatprep.subr.bf16.mxu0 0
      %1032 = vmatpush1.bf16.msra.mxu0 0
      %1033 = vmatprep.subr.bf16.mxu0 0
      %1034 = vmatpush1.bf16.msra.mxu0 0
      %1035 = vmatprep.subr.bf16.mxu0 0
      %1036 = vmatpush1.bf16.msra.mxu0 0
      %1037 = vmatprep.subr.bf16.mxu0 0
      %1038 = vmatpush1.bf16.msra.mxu0 0
      %1039 = vmatprep.subr.bf16.mxu0 0
      %1040 = vmatpush1.bf16.msra.mxu0 0
      %1041 = vmatprep.subr.bf16.mxu0 0
      %1042 = vmatpush1.bf16.msra.mxu0 0
      %1043 = vmatprep.subr.bf16.mxu0 0
      %1044 = vmatpush1.bf16.msra.mxu0 0
      %1045 = vmatprep.subr.bf16.mxu0 0
      %1046 = vmatpush1.bf16.msra.mxu0 0
      %1047 = vmatprep.subr.bf16.mxu0 0
      %1048 = vmatpush1.bf16.msra.mxu0 0
      %1049 = vmatprep.mubr.bf16.mxu0 0
      %1050 = vmatmul.mubr.bf16.gmra.mrb[0].mxu0 %v843
      %v1051 = vpop.f32.mrb[0].mxu0
      %v1052 = vadd.f32 0.0, %v1051
      %v1053 = vpop.f32.mrb[0].mxu0
      %v1054 = vpop.f32.mrb[0].mxu0
      %v1055 = vadd.f32 0.0, %v1054
      %v1056 = vpop.f32.mrb[0].mxu0
      %1057 = vdwg.mxu0
      %v1058 = vadd.f32 %v585, %v880
      %v1059 = vadd.f32 %v587, %v882
      %v1060 = vadd.f32 %v628, %v923
      %v1061 = vadd.f32 %v630, %v925
      %v1062 = vadd.f32 %v671, %v966
      %v1063 = vadd.f32 %v673, %v968
      %v1064 = vadd.f32 %v714, %v1009
      %v1065 = vadd.f32 %v716, %v1011
      %v1066 = vadd.f32 %v757, %v1052
      %v1067 = vadd.f32 %v589, %v884
      %v1068 = vadd.f32 %v591, %v886
      %v1069 = vadd.f32 %v632, %v927
      %v1070 = vadd.f32 %v634, %v929
      %v1071 = vadd.f32 %v675, %v970
      %v1072 = vadd.f32 %v677, %v972
      %v1073 = vadd.f32 %v718, %v1013
      %v1074 = vadd.f32 %v720, %v1015
      %v1075 = vadd.f32 %v760, %v1055
      %s1076 = scalar_lea.vmem %s1, 24
      %v1077 = vld [vmem:[%s1076] sm:$0xf]
      %v1078 = vld [vmem:[%s1076 + $0x4] sm:$0x3]
      %v1081 = vunpack.c.l.b16 %v1077
      %v1082 = vunpack.c.l.b16 %v1078
      %v1083 = vpack.c.b16 %v1082, %v1081
      %1084 = vrot.lane.b32.xlu0 %v208, 94
      %v1085 = vpop.permute.xlu0 %1084
      %1086 = vrot.lane.b32.xlu0 %v209, 94
      %v1087 = vpop.permute.xlu0 %1086
      %1088 = vrot.lane.b32.xlu0 %v210, 94
      %v1089 = vpop.permute.xlu0 %1088
      %1090 = vrot.lane.b32.xlu0 %v211, 94
      %v1091 = vpop.permute.xlu0 %1090
      %1092 = vrot.lane.b32.xlu0 %v212, 94
      %v1093 = vpop.permute.xlu0 %1092
      %1094 = vrot.lane.b32.xlu0 %v213, 94
      %v1095 = vpop.permute.xlu0 %1094
      %1096 = vrot.lane.b32.xlu0 %v214, 94
      %v1097 = vpop.permute.xlu0 %1096
      %1098 = vrot.lane.b32.xlu0 %v215, 94
      %v1099 = vpop.permute.xlu0 %1098
      %1100 = vrot.lane.b32.xlu0 %v216, 94
      %v1101 = vpop.permute.xlu0 %1100
      %1102 = vrot.lane.b32.xlu0 %v217, 94
      %v1103 = vpop.permute.xlu0 %1102
      %1104 = vrot.lane.b32.xlu0 %v218, 94
      %v1105 = vpop.permute.xlu0 %1104
      %1106 = vrot.lane.b32.xlu0 %v219, 94
      %v1107 = vpop.permute.xlu0 %1106
      %1108 = vrot.lane.b32.xlu0 %v220, 94
      %v1109 = vpop.permute.xlu0 %1108
      %1110 = vrot.lane.b32.xlu0 %v221, 94
      %v1111 = vpop.permute.xlu0 %1110
      %1112 = vrot.lane.b32.xlu0 %v222, 94
      %v1113 = vpop.permute.xlu0 %1112
      %1114 = vrot.lane.b32.xlu0 %v223, 94
      %v1115 = vpop.permute.xlu0 %1114
      %1116 = vrot.lane.b32.xlu0 %v224, 94
      %v1117 = vpop.permute.xlu0 %1116
      %1118 = vrot.lane.b32.xlu0 %v225, 94
      %v1119 = vpop.permute.xlu0 %1118
      %vm1120 = vcmask 769024
      %v1121 = vsel %vm1120, %v1085, %v1087
      %v1122 = vsel %vm1120, %v1087, %v1089
      %v1123 = vsel %vm1120, %v1089, %v1091
      %v1124 = vsel %vm1120, %v1091, %v1093
      %v1125 = vsel %vm1120, %v1093, %v1095
      %v1126 = vsel %vm1120, %v1095, %v1097
      %v1127 = vsel %vm1120, %v1097, %v1099
      %v1128 = vsel %vm1120, %v1099, %v1101
      %v1129 = vsel %vm1120, %v1103, %v1105
      %v1130 = vsel %vm1120, %v1105, %v1107
      %v1131 = vsel %vm1120, %v1107, %v1109
      %v1132 = vsel %vm1120, %v1109, %v1111
      %v1133 = vsel %vm1120, %v1111, %v1113
      %v1134 = vsel %vm1120, %v1113, %v1115
      %v1135 = vsel %vm1120, %v1115, %v1117
      %v1136 = vsel %vm1120, %v1117, %v1119
      %v1156 = vsel %vm325, %v1083, 0
      %1158 = vmatprep.subr.bf16.mxu0 %v1122
      %1159 = vmatpush1.bf16.msra.mxu0 %v1121
      %1160 = vmatprep.subr.bf16.mxu0 %v1130
      %1161 = vmatpush1.bf16.msra.mxu0 %v1129
      %1162 = vmatprep.subr.bf16.mxu0 0
      %1163 = vmatpush1.bf16.msra.mxu0 0
      %1164 = vmatprep.subr.bf16.mxu0 0
      %1165 = vmatpush1.bf16.msra.mxu0 0
      %1166 = vmatprep.subr.bf16.mxu0 0
      %1167 = vmatpush1.bf16.msra.mxu0 0
      %1168 = vmatprep.subr.bf16.mxu0 0
      %1169 = vmatpush1.bf16.msra.mxu0 0
      %1170 = vmatprep.subr.bf16.mxu0 0
      %1171 = vmatpush1.bf16.msra.mxu0 0
      %1172 = vmatprep.subr.bf16.mxu0 0
      %1173 = vmatpush1.bf16.msra.mxu0 0
      %1174 = vmatprep.subr.bf16.mxu0 0
      %1175 = vmatpush1.bf16.msra.mxu0 0
      %1176 = vmatprep.subr.bf16.mxu0 0
      %1177 = vmatpush1.bf16.msra.mxu0 0
      %1178 = vmatprep.subr.bf16.mxu0 0
      %1179 = vmatpush1.bf16.msra.mxu0 0
      %1180 = vmatprep.subr.bf16.mxu0 0
      %1181 = vmatpush1.bf16.msra.mxu0 0
      %1182 = vmatprep.subr.bf16.mxu0 0
      %1183 = vmatpush1.bf16.msra.mxu0 0
      %1184 = vmatprep.subr.bf16.mxu0 0
      %1185 = vmatpush1.bf16.msra.mxu0 0
      %1186 = vmatprep.subr.bf16.mxu0 0
      %1187 = vmatpush1.bf16.msra.mxu0 0
      %1188 = vmatprep.subr.bf16.mxu0 0
      %1189 = vmatpush1.bf16.msra.mxu0 0
      %1190 = vmatprep.mubr.bf16.mxu0 0
      %1191 = vmatmul.mubr.bf16.gmra.mrb[0].mxu0 %v1156
      %v1192 = vpop.f32.mrb[0].mxu0
      %v1193 = vadd.f32 0.0, %v1192
      %v1194 = vpop.f32.mrb[0].mxu0
      %v1195 = vadd.f32 0.0, %v1194
      %v1196 = vpop.f32.mrb[0].mxu0
      %v1197 = vadd.f32 0.0, %v1196
      %v1198 = vpop.f32.mrb[0].mxu0
      %v1199 = vadd.f32 0.0, %v1198
      %1200 = vdwg.mxu0
      %1201 = vmatprep.subr.bf16.mxu0 %v1124
      %1202 = vmatpush1.bf16.msra.mxu0 %v1123
      %1203 = vmatprep.subr.bf16.mxu0 %v1132
      %1204 = vmatpush1.bf16.msra.mxu0 %v1131
      %1205 = vmatprep.subr.bf16.mxu0 0
      %1206 = vmatpush1.bf16.msra.mxu0 0
      %1207 = vmatprep.subr.bf16.mxu0 0
      %1208 = vmatpush1.bf16.msra.mxu0 0
      %1209 = vmatprep.subr.bf16.mxu0 0
      %1210 = vmatpush1.bf16.msra.mxu0 0
      %1211 = vmatprep.subr.bf16.mxu0 0
      %1212 = vmatpush1.bf16.msra.mxu0 0
      %1213 = vmatprep.subr.bf16.mxu0 0
      %1214 = vmatpush1.bf16.msra.mxu0 0
      %1215 = vmatprep.subr.bf16.mxu0 0
      %1216 = vmatpush1.bf16.msra.mxu0 0
      %1217 = vmatprep.subr.bf16.mxu0 0
      %1218 = vmatpush1.bf16.msra.mxu0 0
      %1219 = vmatprep.subr.bf16.mxu0 0
      %1220 = vmatpush1.bf16.msra.mxu0 0
      %1221 = vmatprep.subr.bf16.mxu0 0
      %1222 = vmatpush1.bf16.msra.mxu0 0
      %1223 = vmatprep.subr.bf16.mxu0 0
      %1224 = vmatpush1.bf16.msra.mxu0 0
      %1225 = vmatprep.subr.bf16.mxu0 0
      %1226 = vmatpush1.bf16.msra.mxu0 0
      %1227 = vmatprep.subr.bf16.mxu0 0
      %1228 = vmatpush1.bf16.msra.mxu0 0
      %1229 = vmatprep.subr.bf16.mxu0 0
      %1230 = vmatpush1.bf16.msra.mxu0 0
      %1231 = vmatprep.subr.bf16.mxu0 0
      %1232 = vmatpush1.bf16.msra.mxu0 0
      %1233 = vmatprep.mubr.bf16.mxu0 0
      %1234 = vmatmul.mubr.bf16.gmra.mrb[0].mxu0 %v1156
      %v1235 = vpop.f32.mrb[0].mxu0
      %v1236 = vadd.f32 0.0, %v1235
      %v1237 = vpop.f32.mrb[0].mxu0
      %v1238 = vadd.f32 0.0, %v1237
      %v1239 = vpop.f32.mrb[0].mxu0
      %v1240 = vadd.f32 0.0, %v1239
      %v1241 = vpop.f32.mrb[0].mxu0
      %v1242 = vadd.f32 0.0, %v1241
      %1243 = vdwg.mxu0
      %1244 = vmatprep.subr.bf16.mxu0 %v1126
      %1245 = vmatpush1.bf16.msra.mxu0 %v1125
      %1246 = vmatprep.subr.bf16.mxu0 %v1134
      %1247 = vmatpush1.bf16.msra.mxu0 %v1133
      %1248 = vmatprep.subr.bf16.mxu0 0
      %1249 = vmatpush1.bf16.msra.mxu0 0
      %1250 = vmatprep.subr.bf16.mxu0 0
      %1251 = vmatpush1.bf16.msra.mxu0 0
      %1252 = vmatprep.subr.bf16.mxu0 0
      %1253 = vmatpush1.bf16.msra.mxu0 0
      %1254 = vmatprep.subr.bf16.mxu0 0
      %1255 = vmatpush1.bf16.msra.mxu0 0
      %1256 = vmatprep.subr.bf16.mxu0 0
      %1257 = vmatpush1.bf16.msra.mxu0 0
      %1258 = vmatprep.subr.bf16.mxu0 0
      %1259 = vmatpush1.bf16.msra.mxu0 0
      %1260 = vmatprep.subr.bf16.mxu0 0
      %1261 = vmatpush1.bf16.msra.mxu0 0
      %1262 = vmatprep.subr.bf16.mxu0 0
      %1263 = vmatpush1.bf16.msra.mxu0 0
      %1264 = vmatprep.subr.bf16.mxu0 0
      %1265 = vmatpush1.bf16.msra.mxu0 0
      %1266 = vmatprep.subr.bf16.mxu0 0
      %1267 = vmatpush1.bf16.msra.mxu0 0
      %1268 = vmatprep.subr.bf16.mxu0 0
      %1269 = vmatpush1.bf16.msra.mxu0 0
      %1270 = vmatprep.subr.bf16.mxu0 0
      %1271 = vmatpush1.bf16.msra.mxu0 0
      %1272 = vmatprep.subr.bf16.mxu0 0
      %1273 = vmatpush1.bf16.msra.mxu0 0
      %1274 = vmatprep.subr.bf16.mxu0 0
      %1275 = vmatpush1.bf16.msra.mxu0 0
      %1276 = vmatprep.mubr.bf16.mxu0 0
      %1277 = vmatmul.mubr.bf16.gmra.mrb[0].mxu0 %v1156
      %v1278 = vpop.f32.mrb[0].mxu0
      %v1279 = vadd.f32 0.0, %v1278
      %v1280 = vpop.f32.mrb[0].mxu0
      %v1281 = vadd.f32 0.0, %v1280
      %v1282 = vpop.f32.mrb[0].mxu0
      %v1283 = vadd.f32 0.0, %v1282
      %v1284 = vpop.f32.mrb[0].mxu0
      %v1285 = vadd.f32 0.0, %v1284
      %1286 = vdwg.mxu0
      %1287 = vmatprep.subr.bf16.mxu0 %v1128
      %1288 = vmatpush1.bf16.msra.mxu0 %v1127
      %1289 = vmatprep.subr.bf16.mxu0 %v1136
      %1290 = vmatpush1.bf16.msra.mxu0 %v1135
      %1291 = vmatprep.subr.bf16.mxu0 0
      %1292 = vmatpush1.bf16.msra.mxu0 0
      %1293 = vmatprep.subr.bf16.mxu0 0
      %1294 = vmatpush1.bf16.msra.mxu0 0
      %1295 = vmatprep.subr.bf16.mxu0 0
      %1296 = vmatpush1.bf16.msra.mxu0 0
      %1297 = vmatprep.subr.bf16.mxu0 0
      %1298 = vmatpush1.bf16.msra.mxu0 0
      %1299 = vmatprep.subr.bf16.mxu0 0
      %1300 = vmatpush1.bf16.msra.mxu0 0
      %1301 = vmatprep.subr.bf16.mxu0 0
      %1302 = vmatpush1.bf16.msra.mxu0 0
      %1303 = vmatprep.subr.bf16.mxu0 0
      %1304 = vmatpush1.bf16.msra.mxu0 0
      %1305 = vmatprep.subr.bf16.mxu0 0
      %1306 = vmatpush1.bf16.msra.mxu0 0
      %1307 = vmatprep.subr.bf16.mxu0 0
      %1308 = vmatpush1.bf16.msra.mxu0 0
      %1309 = vmatprep.subr.bf16.mxu0 0
      %1310 = vmatpush1.bf16.msra.mxu0 0
      %1311 = vmatprep.subr.bf16.mxu0 0
      %1312 = vmatpush1.bf16.msra.mxu0 0
      %1313 = vmatprep.subr.bf16.mxu0 0
      %1314 = vmatpush1.bf16.msra.mxu0 0
      %1315 = vmatprep.subr.bf16.mxu0 0
      %1316 = vmatpush1.bf16.msra.mxu0 0
      %1317 = vmatprep.subr.bf16.mxu0 0
      %1318 = vmatpush1.bf16.msra.mxu0 0
      %1319 = vmatprep.mubr.bf16.mxu0 0
      %1320 = vmatmul.mubr.bf16.gmra.mrb[0].mxu0 %v1156
      %v1321 = vpop.f32.mrb[0].mxu0
      %v1322 = vadd.f32 0.0, %v1321
      %v1323 = vpop.f32.mrb[0].mxu0
      %v1324 = vadd.f32 0.0, %v1323
      %v1325 = vpop.f32.mrb[0].mxu0
      %v1326 = vadd.f32 0.0, %v1325
      %v1327 = vpop.f32.mrb[0].mxu0
      %v1328 = vadd.f32 0.0, %v1327
      %1329 = vdwg.mxu0
      %1330 = vmatprep.subr.bf16.mxu0 0
      %1331 = vmatpush1.bf16.msra.mxu0 %v1101
      %1332 = vmatprep.subr.bf16.mxu0 0
      %1333 = vmatpush1.bf16.msra.mxu0 %v1119
      %1334 = vmatprep.subr.bf16.mxu0 0
      %1335 = vmatpush1.bf16.msra.mxu0 0
      %1336 = vmatprep.subr.bf16.mxu0 0
      %1337 = vmatpush1.bf16.msra.mxu0 0
      %1338 = vmatprep.subr.bf16.mxu0 0
      %1339 = vmatpush1.bf16.msra.mxu0 0
      %1340 = vmatprep.subr.bf16.mxu0 0
      %1341 = vmatpush1.bf16.msra.mxu0 0
      %1342 = vmatprep.subr.bf16.mxu0 0
      %1343 = vmatpush1.bf16.msra.mxu0 0
      %1344 = vmatprep.subr.bf16.mxu0 0
      %1345 = vmatpush1.bf16.msra.mxu0 0
      %1346 = vmatprep.subr.bf16.mxu0 0
      %1347 = vmatpush1.bf16.msra.mxu0 0
      %1348 = vmatprep.subr.bf16.mxu0 0
      %1349 = vmatpush1.bf16.msra.mxu0 0
      %1350 = vmatprep.subr.bf16.mxu0 0
      %1351 = vmatpush1.bf16.msra.mxu0 0
      %1352 = vmatprep.subr.bf16.mxu0 0
      %1353 = vmatpush1.bf16.msra.mxu0 0
      %1354 = vmatprep.subr.bf16.mxu0 0
      %1355 = vmatpush1.bf16.msra.mxu0 0
      %1356 = vmatprep.subr.bf16.mxu0 0
      %1357 = vmatpush1.bf16.msra.mxu0 0
      %1358 = vmatprep.subr.bf16.mxu0 0
      %1359 = vmatpush1.bf16.msra.mxu0 0
      %1360 = vmatprep.subr.bf16.mxu0 0
      %1361 = vmatpush1.bf16.msra.mxu0 0
      %1362 = vmatprep.mubr.bf16.mxu0 0
      %1363 = vmatmul.mubr.bf16.gmra.mrb[0].mxu0 %v1156
      %v1364 = vpop.f32.mrb[0].mxu0
      %v1365 = vadd.f32 0.0, %v1364
      %v1366 = vpop.f32.mrb[0].mxu0
      %v1367 = vpop.f32.mrb[0].mxu0
      %v1368 = vadd.f32 0.0, %v1367
      %v1369 = vpop.f32.mrb[0].mxu0
      %1370 = vdwg.mxu0
      %v1371 = vadd.f32 %v1058, %v1193
      %v1372 = vadd.f32 %v1059, %v1195
      %v1373 = vadd.f32 %v1060, %v1236
      %v1374 = vadd.f32 %v1061, %v1238
      %v1375 = vadd.f32 %v1062, %v1279
      %v1376 = vadd.f32 %v1063, %v1281
      %v1377 = vadd.f32 %v1064, %v1322
      %v1378 = vadd.f32 %v1065, %v1324
      %v1379 = vadd.f32 %v1066, %v1365
      %v1380 = vadd.f32 %v1067, %v1197
      %v1381 = vadd.f32 %v1068, %v1199
      %v1382 = vadd.f32 %v1069, %v1240
      %v1383 = vadd.f32 %v1070, %v1242
      %v1384 = vadd.f32 %v1071, %v1283
      %v1385 = vadd.f32 %v1072, %v1285
      %v1386 = vadd.f32 %v1073, %v1326
      %v1387 = vadd.f32 %v1074, %v1328
      %v1388 = vadd.f32 %v1075, %v1368
      %s1389 = scalar_lea.vmem %s1, 32
      %v1390 = vld [vmem:[%s1389] sm:$0xf]
      %v1391 = vld [vmem:[%s1389 + $0x4] sm:$0x3]
      %v1394 = vunpack.c.l.b16 %v1390
      %v1395 = vunpack.c.l.b16 %v1391
      %v1396 = vpack.c.b16 %v1395, %v1394
      %1397 = vrot.lane.b32.xlu0 %v208, 93
      %v1398 = vpop.permute.xlu0 %1397
      %1399 = vrot.lane.b32.xlu0 %v209, 93
      %v1400 = vpop.permute.xlu0 %1399
      %1401 = vrot.lane.b32.xlu0 %v210, 93
      %v1402 = vpop.permute.xlu0 %1401
      %1403 = vrot.lane.b32.xlu0 %v211, 93
      %v1404 = vpop.permute.xlu0 %1403
      %1405 = vrot.lane.b32.xlu0 %v212, 93
      %v1406 = vpop.permute.xlu0 %1405
      %1407 = vrot.lane.b32.xlu0 %v213, 93
      %v1408 = vpop.permute.xlu0 %1407
      %1409 = vrot.lane.b32.xlu0 %v214, 93
      %v1410 = vpop.permute.xlu0 %1409
      %1411 = vrot.lane.b32.xlu0 %v215, 93
      %v1412 = vpop.permute.xlu0 %1411
      %1413 = vrot.lane.b32.xlu0 %v216, 93
      %v1414 = vpop.permute.xlu0 %1413
      %1415 = vrot.lane.b32.xlu0 %v217, 93
      %v1416 = vpop.permute.xlu0 %1415
      %1417 = vrot.lane.b32.xlu0 %v218, 93
      %v1418 = vpop.permute.xlu0 %1417
      %1419 = vrot.lane.b32.xlu0 %v219, 93
      %v1420 = vpop.permute.xlu0 %1419
      %1421 = vrot.lane.b32.xlu0 %v220, 93
      %v1422 = vpop.permute.xlu0 %1421
      %1423 = vrot.lane.b32.xlu0 %v221, 93
      %v1424 = vpop.permute.xlu0 %1423
      %1425 = vrot.lane.b32.xlu0 %v222, 93
      %v1426 = vpop.permute.xlu0 %1425
      %1427 = vrot.lane.b32.xlu0 %v223, 93
      %v1428 = vpop.permute.xlu0 %1427
      %1429 = vrot.lane.b32.xlu0 %v224, 93
      %v1430 = vpop.permute.xlu0 %1429
      %1431 = vrot.lane.b32.xlu0 %v225, 93
      %v1432 = vpop.permute.xlu0 %1431
      %vm1433 = vcmask 760832
      %v1434 = vsel %vm1433, %v1398, %v1400
      %v1435 = vsel %vm1433, %v1400, %v1402
      %v1436 = vsel %vm1433, %v1402, %v1404
      %v1437 = vsel %vm1433, %v1404, %v1406
      %v1438 = vsel %vm1433, %v1406, %v1408
      %v1439 = vsel %vm1433, %v1408, %v1410
      %v1440 = vsel %vm1433, %v1410, %v1412
      %v1441 = vsel %vm1433, %v1412, %v1414
      %v1442 = vsel %vm1433, %v1416, %v1418
      %v1443 = vsel %vm1433, %v1418, %v1420
      %v1444 = vsel %vm1433, %v1420, %v1422
      %v1445 = vsel %vm1433, %v1422, %v1424
      %v1446 = vsel %vm1433, %v1424, %v1426
      %v1447 = vsel %vm1433, %v1426, %v1428
      %v1448 = vsel %vm1433, %v1428, %v1430
      %v1449 = vsel %vm1433, %v1430, %v1432
      %v1469 = vsel %vm325, %v1396, 0
      %1471 = vmatprep.subr.bf16.mxu0 %v1435
      %1472 = vmatpush1.bf16.msra.mxu0 %v1434
      %1473 = vmatprep.subr.bf16.mxu0 %v1443
      %1474 = vmatpush1.bf16.msra.mxu0 %v1442
      %1475 = vmatprep.subr.bf16.mxu0 0
      %1476 = vmatpush1.bf16.msra.mxu0 0
      %1477 = vmatprep.subr.bf16.mxu0 0
      %1478 = vmatpush1.bf16.msra.mxu0 0
      %1479 = vmatprep.subr.bf16.mxu0 0
      %1480 = vmatpush1.bf16.msra.mxu0 0
      %1481 = vmatprep.subr.bf16.mxu0 0
      %1482 = vmatpush1.bf16.msra.mxu0 0
      %1483 = vmatprep.subr.bf16.mxu0 0
      %1484 = vmatpush1.bf16.msra.mxu0 0
      %1485 = vmatprep.subr.bf16.mxu0 0
      %1486 = vmatpush1.bf16.msra.mxu0 0
      %1487 = vmatprep.subr.bf16.mxu0 0
      %1488 = vmatpush1.bf16.msra.mxu0 0
      %1489 = vmatprep.subr.bf16.mxu0 0
      %1490 = vmatpush1.bf16.msra.mxu0 0
      %1491 = vmatprep.subr.bf16.mxu0 0
      %1492 = vmatpush1.bf16.msra.mxu0 0
      %1493 = vmatprep.subr.bf16.mxu0 0
      %1494 = vmatpush1.bf16.msra.mxu0 0
      %1495 = vmatprep.subr.bf16.mxu0 0
      %1496 = vmatpush1.bf16.msra.mxu0 0
      %1497 = vmatprep.subr.bf16.mxu0 0
      %1498 = vmatpush1.bf16.msra.mxu0 0
      %1499 = vmatprep.subr.bf16.mxu0 0
      %1500 = vmatpush1.bf16.msra.mxu0 0
      %1501 = vmatprep.subr.bf16.mxu0 0
      %1502 = vmatpush1.bf16.msra.mxu0 0
      %1503 = vmatprep.mubr.bf16.mxu0 0
      %1504 = vmatmul.mubr.bf16.gmra.mrb[0].mxu0 %v1469
      %v1505 = vpop.f32.mrb[0].mxu0
      %v1506 = vadd.f32 0.0, %v1505
      %v1507 = vpop.f32.mrb[0].mxu0
      %v1508 = vadd.f32 0.0, %v1507
      %v1509 = vpop.f32.mrb[0].mxu0
      %v1510 = vadd.f32 0.0, %v1509
      %v1511 = vpop.f32.mrb[0].mxu0
      %v1512 = vadd.f32 0.0, %v1511
      %1513 = vdwg.mxu0
      %1514 = vmatprep.subr.bf16.mxu0 %v1437
      %1515 = vmatpush1.bf16.msra.mxu0 %v1436
      %1516 = vmatprep.subr.bf16.mxu0 %v1445
      %1517 = vmatpush1.bf16.msra.mxu0 %v1444
      %1518 = vmatprep.subr.bf16.mxu0 0
      %1519 = vmatpush1.bf16.msra.mxu0 0
      %1520 = vmatprep.subr.bf16.mxu0 0
      %1521 = vmatpush1.bf16.msra.mxu0 0
      %1522 = vmatprep.subr.bf16.mxu0 0
      %1523 = vmatpush1.bf16.msra.mxu0 0
      %1524 = vmatprep.subr.bf16.mxu0 0
      %1525 = vmatpush1.bf16.msra.mxu0 0
      %1526 = vmatprep.subr.bf16.mxu0 0
      %1527 = vmatpush1.bf16.msra.mxu0 0
      %1528 = vmatprep.subr.bf16.mxu0 0
      %1529 = vmatpush1.bf16.msra.mxu0 0
      %1530 = vmatprep.subr.bf16.mxu0 0
      %1531 = vmatpush1.bf16.msra.mxu0 0
      %1532 = vmatprep.subr.bf16.mxu0 0
      %1533 = vmatpush1.bf16.msra.mxu0 0
      %1534 = vmatprep.subr.bf16.mxu0 0
      %1535 = vmatpush1.bf16.msra.mxu0 0
      %1536 = vmatprep.subr.bf16.mxu0 0
      %1537 = vmatpush1.bf16.msra.mxu0 0
      %1538 = vmatprep.subr.bf16.mxu0 0
      %1539 = vmatpush1.bf16.msra.mxu0 0
      %1540 = vmatprep.subr.bf16.mxu0 0
      %1541 = vmatpush1.bf16.msra.mxu0 0
      %1542 = vmatprep.subr.bf16.mxu0 0
      %1543 = vmatpush1.bf16.msra.mxu0 0
      %1544 = vmatprep.subr.bf16.mxu0 0
      %1545 = vmatpush1.bf16.msra.mxu0 0
      %1546 = vmatprep.mubr.bf16.mxu0 0
      %1547 = vmatmul.mubr.bf16.gmra.mrb[0].mxu0 %v1469
      %v1548 = vpop.f32.mrb[0].mxu0
      %v1549 = vadd.f32 0.0, %v1548
      %v1550 = vpop.f32.mrb[0].mxu0
      %v1551 = vadd.f32 0.0, %v1550
      %v1552 = vpop.f32.mrb[0].mxu0
      %v1553 = vadd.f32 0.0, %v1552
      %v1554 = vpop.f32.mrb[0].mxu0
      %v1555 = vadd.f32 0.0, %v1554
      %1556 = vdwg.mxu0
      %1557 = vmatprep.subr.bf16.mxu0 %v1439
      %1558 = vmatpush1.bf16.msra.mxu0 %v1438
      %1559 = vmatprep.subr.bf16.mxu0 %v1447
      %1560 = vmatpush1.bf16.msra.mxu0 %v1446
      %1561 = vmatprep.subr.bf16.mxu0 0
      %1562 = vmatpush1.bf16.msra.mxu0 0
      %1563 = vmatprep.subr.bf16.mxu0 0
      %1564 = vmatpush1.bf16.msra.mxu0 0
      %1565 = vmatprep.subr.bf16.mxu0 0
      %1566 = vmatpush1.bf16.msra.mxu0 0
      %1567 = vmatprep.subr.bf16.mxu0 0
      %1568 = vmatpush1.bf16.msra.mxu0 0
      %1569 = vmatprep.subr.bf16.mxu0 0
      %1570 = vmatpush1.bf16.msra.mxu0 0
      %1571 = vmatprep.subr.bf16.mxu0 0
      %1572 = vmatpush1.bf16.msra.mxu0 0
      %1573 = vmatprep.subr.bf16.mxu0 0
      %1574 = vmatpush1.bf16.msra.mxu0 0
      %1575 = vmatprep.subr.bf16.mxu0 0
      %1576 = vmatpush1.bf16.msra.mxu0 0
      %1577 = vmatprep.subr.bf16.mxu0 0
      %1578 = vmatpush1.bf16.msra.mxu0 0
      %1579 = vmatprep.subr.bf16.mxu0 0
      %1580 = vmatpush1.bf16.msra.mxu0 0
      %1581 = vmatprep.subr.bf16.mxu0 0
      %1582 = vmatpush1.bf16.msra.mxu0 0
      %1583 = vmatprep.subr.bf16.mxu0 0
      %1584 = vmatpush1.bf16.msra.mxu0 0
      %1585 = vmatprep.subr.bf16.mxu0 0
      %1586 = vmatpush1.bf16.msra.mxu0 0
      %1587 = vmatprep.subr.bf16.mxu0 0
      %1588 = vmatpush1.bf16.msra.mxu0 0
      %1589 = vmatprep.mubr.bf16.mxu0 0
      %1590 = vmatmul.mubr.bf16.gmra.mrb[0].mxu0 %v1469
      %v1591 = vpop.f32.mrb[0].mxu0
      %v1592 = vadd.f32 0.0, %v1591
      %v1593 = vpop.f32.mrb[0].mxu0
      %v1594 = vadd.f32 0.0, %v1593
      %v1595 = vpop.f32.mrb[0].mxu0
      %v1596 = vadd.f32 0.0, %v1595
      %v1597 = vpop.f32.mrb[0].mxu0
      %v1598 = vadd.f32 0.0, %v1597
      %1599 = vdwg.mxu0
      %1600 = vmatprep.subr.bf16.mxu0 %v1441
      %1601 = vmatpush1.bf16.msra.mxu0 %v1440
      %1602 = vmatprep.subr.bf16.mxu0 %v1449
      %1603 = vmatpush1.bf16.msra.mxu0 %v1448
      %1604 = vmatprep.subr.bf16.mxu0 0
      %1605 = vmatpush1.bf16.msra.mxu0 0
      %1606 = vmatprep.subr.bf16.mxu0 0
      %1607 = vmatpush1.bf16.msra.mxu0 0
      %1608 = vmatprep.subr.bf16.mxu0 0
      %1609 = vmatpush1.bf16.msra.mxu0 0
      %1610 = vmatprep.subr.bf16.mxu0 0
      %1611 = vmatpush1.bf16.msra.mxu0 0
      %1612 = vmatprep.subr.bf16.mxu0 0
      %1613 = vmatpush1.bf16.msra.mxu0 0
      %1614 = vmatprep.subr.bf16.mxu0 0
      %1615 = vmatpush1.bf16.msra.mxu0 0
      %1616 = vmatprep.subr.bf16.mxu0 0
      %1617 = vmatpush1.bf16.msra.mxu0 0
      %1618 = vmatprep.subr.bf16.mxu0 0
      %1619 = vmatpush1.bf16.msra.mxu0 0
      %1620 = vmatprep.subr.bf16.mxu0 0
      %1621 = vmatpush1.bf16.msra.mxu0 0
      %1622 = vmatprep.subr.bf16.mxu0 0
      %1623 = vmatpush1.bf16.msra.mxu0 0
      %1624 = vmatprep.subr.bf16.mxu0 0
      %1625 = vmatpush1.bf16.msra.mxu0 0
      %1626 = vmatprep.subr.bf16.mxu0 0
      %1627 = vmatpush1.bf16.msra.mxu0 0
      %1628 = vmatprep.subr.bf16.mxu0 0
      %1629 = vmatpush1.bf16.msra.mxu0 0
      %1630 = vmatprep.subr.bf16.mxu0 0
      %1631 = vmatpush1.bf16.msra.mxu0 0
      %1632 = vmatprep.mubr.bf16.mxu0 0
      %1633 = vmatmul.mubr.bf16.gmra.mrb[0].mxu0 %v1469
      %v1634 = vpop.f32.mrb[0].mxu0
      %v1635 = vadd.f32 0.0, %v1634
      %v1636 = vpop.f32.mrb[0].mxu0
      %v1637 = vadd.f32 0.0, %v1636
      %v1638 = vpop.f32.mrb[0].mxu0
      %v1639 = vadd.f32 0.0, %v1638
      %v1640 = vpop.f32.mrb[0].mxu0
      %v1641 = vadd.f32 0.0, %v1640
      %1642 = vdwg.mxu0
      %1643 = vmatprep.subr.bf16.mxu0 0
      %1644 = vmatpush1.bf16.msra.mxu0 %v1414
      %1645 = vmatprep.subr.bf16.mxu0 0
      %1646 = vmatpush1.bf16.msra.mxu0 %v1432
      %1647 = vmatprep.subr.bf16.mxu0 0
      %1648 = vmatpush1.bf16.msra.mxu0 0
      %1649 = vmatprep.subr.bf16.mxu0 0
      %1650 = vmatpush1.bf16.msra.mxu0 0
      %1651 = vmatprep.subr.bf16.mxu0 0
      %1652 = vmatpush1.bf16.msra.mxu0 0
      %1653 = vmatprep.subr.bf16.mxu0 0
      %1654 = vmatpush1.bf16.msra.mxu0 0
      %1655 = vmatprep.subr.bf16.mxu0 0
      %1656 = vmatpush1.bf16.msra.mxu0 0
      %1657 = vmatprep.subr.bf16.mxu0 0
      %1658 = vmatpush1.bf16.msra.mxu0 0
      %1659 = vmatprep.subr.bf16.mxu0 0
      %1660 = vmatpush1.bf16.msra.mxu0 0
      %1661 = vmatprep.subr.bf16.mxu0 0
      %1662 = vmatpush1.bf16.msra.mxu0 0
      %1663 = vmatprep.subr.bf16.mxu0 0
      %1664 = vmatpush1.bf16.msra.mxu0 0
      %1665 = vmatprep.subr.bf16.mxu0 0
      %1666 = vmatpush1.bf16.msra.mxu0 0
      %1667 = vmatprep.subr.bf16.mxu0 0
      %1668 = vmatpush1.bf16.msra.mxu0 0
      %1669 = vmatprep.subr.bf16.mxu0 0
      %1670 = vmatpush1.bf16.msra.mxu0 0
      %1671 = vmatprep.subr.bf16.mxu0 0
      %1672 = vmatpush1.bf16.msra.mxu0 0
      %1673 = vmatprep.subr.bf16.mxu0 0
      %1674 = vmatpush1.bf16.msra.mxu0 0
      %1675 = vmatprep.mubr.bf16.mxu0 0
      %1676 = vmatmul.mubr.bf16.gmra.mrb[0].mxu0 %v1469
      %v1677 = vpop.f32.mrb[0].mxu0
      %v1678 = vadd.f32 0.0, %v1677
      %v1679 = vpop.f32.mrb[0].mxu0
      %v1680 = vpop.f32.mrb[0].mxu0
      %v1681 = vadd.f32 0.0, %v1680
      %v1682 = vpop.f32.mrb[0].mxu0
      %1683 = vdwg.mxu0
      %v1684 = vadd.f32 %v1371, %v1506
      %v1685 = vadd.f32 %v1372, %v1508
      %v1686 = vadd.f32 %v1373, %v1549
      %v1687 = vadd.f32 %v1374, %v1551
      %v1688 = vadd.f32 %v1375, %v1592
      %v1689 = vadd.f32 %v1376, %v1594
      %v1690 = vadd.f32 %v1377, %v1635
      %v1691 = vadd.f32 %v1378, %v1637
      %v1692 = vadd.f32 %v1379, %v1678
      %v1693 = vadd.f32 %v1380, %v1510
      %v1694 = vadd.f32 %v1381, %v1512
      %v1695 = vadd.f32 %v1382, %v1553
      %v1696 = vadd.f32 %v1383, %v1555
      %v1697 = vadd.f32 %v1384, %v1596
      %v1698 = vadd.f32 %v1385, %v1598
      %v1699 = vadd.f32 %v1386, %v1639
      %v1700 = vadd.f32 %v1387, %v1641
      %v1701 = vadd.f32 %v1388, %v1681
      %s1702 = scalar_lea.vmem %s1, 40
      %v1703 = vld [vmem:[%s1702] sm:$0xf]
      %v1704 = vld [vmem:[%s1702 + $0x4] sm:$0x3]
      %v1707 = vunpack.c.l.b16 %v1703
      %v1708 = vunpack.c.l.b16 %v1704
      %v1709 = vpack.c.b16 %v1708, %v1707
      %1710 = vrot.lane.b32.xlu0 %v208, 92
      %v1711 = vpop.permute.xlu0 %1710
      %1712 = vrot.lane.b32.xlu0 %v209, 92
      %v1713 = vpop.permute.xlu0 %1712
      %1714 = vrot.lane.b32.xlu0 %v210, 92
      %v1715 = vpop.permute.xlu0 %1714
      %1716 = vrot.lane.b32.xlu0 %v211, 92
      %v1717 = vpop.permute.xlu0 %1716
      %1718 = vrot.lane.b32.xlu0 %v212, 92
      %v1719 = vpop.permute.xlu0 %1718
      %1720 = vrot.lane.b32.xlu0 %v213, 92
      %v1721 = vpop.permute.xlu0 %1720
      %1722 = vrot.lane.b32.xlu0 %v214, 92
      %v1723 = vpop.permute.xlu0 %1722
      %1724 = vrot.lane.b32.xlu0 %v215, 92
      %v1725 = vpop.permute.xlu0 %1724
      %1726 = vrot.lane.b32.xlu0 %v216, 92
      %v1727 = vpop.permute.xlu0 %1726
      %1728 = vrot.lane.b32.xlu0 %v217, 92
      %v1729 = vpop.permute.xlu0 %1728
      %1730 = vrot.lane.b32.xlu0 %v218, 92
      %v1731 = vpop.permute.xlu0 %1730
      %1732 = vrot.lane.b32.xlu0 %v219, 92
      %v1733 = vpop.permute.xlu0 %1732
      %1734 = vrot.lane.b32.xlu0 %v220, 92
      %v1735 = vpop.permute.xlu0 %1734
      %1736 = vrot.lane.b32.xlu0 %v221, 92
      %v1737 = vpop.permute.xlu0 %1736
      %1738 = vrot.lane.b32.xlu0 %v222, 92
      %v1739 = vpop.permute.xlu0 %1738
      %1740 = vrot.lane.b32.xlu0 %v223, 92
      %v1741 = vpop.permute.xlu0 %1740
      %1742 = vrot.lane.b32.xlu0 %v224, 92
      %v1743 = vpop.permute.xlu0 %1742
      %1744 = vrot.lane.b32.xlu0 %v225, 92
      %v1745 = vpop.permute.xlu0 %1744
      %vm1746 = vcmask 752640
      %v1747 = vsel %vm1746, %v1711, %v1713
      %v1748 = vsel %vm1746, %v1713, %v1715
      %v1749 = vsel %vm1746, %v1715, %v1717
      %v1750 = vsel %vm1746, %v1717, %v1719
      %v1751 = vsel %vm1746, %v1719, %v1721
      %v1752 = vsel %vm1746, %v1721, %v1723
      %v1753 = vsel %vm1746, %v1723, %v1725
      %v1754 = vsel %vm1746, %v1725, %v1727
      %v1755 = vsel %vm1746, %v1729, %v1731
      %v1756 = vsel %vm1746, %v1731, %v1733
      %v1757 = vsel %vm1746, %v1733, %v1735
      %v1758 = vsel %vm1746, %v1735, %v1737
      %v1759 = vsel %vm1746, %v1737, %v1739
      %v1760 = vsel %vm1746, %v1739, %v1741
      %v1761 = vsel %vm1746, %v1741, %v1743
      %v1762 = vsel %vm1746, %v1743, %v1745
      %v1782 = vsel %vm325, %v1709, 0
      %1784 = vmatprep.subr.bf16.mxu0 %v1748
      %1785 = vmatpush1.bf16.msra.mxu0 %v1747
      %1786 = vmatprep.subr.bf16.mxu0 %v1756
      %1787 = vmatpush1.bf16.msra.mxu0 %v1755
      %1788 = vmatprep.subr.bf16.mxu0 0
      %1789 = vmatpush1.bf16.msra.mxu0 0
      %1790 = vmatprep.subr.bf16.mxu0 0
      %1791 = vmatpush1.bf16.msra.mxu0 0
      %1792 = vmatprep.subr.bf16.mxu0 0
      %1793 = vmatpush1.bf16.msra.mxu0 0
      %1794 = vmatprep.subr.bf16.mxu0 0
      %1795 = vmatpush1.bf16.msra.mxu0 0
      %1796 = vmatprep.subr.bf16.mxu0 0
      %1797 = vmatpush1.bf16.msra.mxu0 0
      %1798 = vmatprep.subr.bf16.mxu0 0
      %1799 = vmatpush1.bf16.msra.mxu0 0
      %1800 = vmatprep.subr.bf16.mxu0 0
      %1801 = vmatpush1.bf16.msra.mxu0 0
      %1802 = vmatprep.subr.bf16.mxu0 0
      %1803 = vmatpush1.bf16.msra.mxu0 0
      %1804 = vmatprep.subr.bf16.mxu0 0
      %1805 = vmatpush1.bf16.msra.mxu0 0
      %1806 = vmatprep.subr.bf16.mxu0 0
      %1807 = vmatpush1.bf16.msra.mxu0 0
      %1808 = vmatprep.subr.bf16.mxu0 0
      %1809 = vmatpush1.bf16.msra.mxu0 0
      %1810 = vmatprep.subr.bf16.mxu0 0
      %1811 = vmatpush1.bf16.msra.mxu0 0
      %1812 = vmatprep.subr.bf16.mxu0 0
      %1813 = vmatpush1.bf16.msra.mxu0 0
      %1814 = vmatprep.subr.bf16.mxu0 0
      %1815 = vmatpush1.bf16.msra.mxu0 0
      %1816 = vmatprep.mubr.bf16.mxu0 0
      %1817 = vmatmul.mubr.bf16.gmra.mrb[0].mxu0 %v1782
      %v1818 = vpop.f32.mrb[0].mxu0
      %v1819 = vadd.f32 0.0, %v1818
      %v1820 = vpop.f32.mrb[0].mxu0
      %v1821 = vadd.f32 0.0, %v1820
      %v1822 = vpop.f32.mrb[0].mxu0
      %v1823 = vadd.f32 0.0, %v1822
      %v1824 = vpop.f32.mrb[0].mxu0
      %v1825 = vadd.f32 0.0, %v1824
      %1826 = vdwg.mxu0
      %1827 = vmatprep.subr.bf16.mxu0 %v1750
      %1828 = vmatpush1.bf16.msra.mxu0 %v1749
      %1829 = vmatprep.subr.bf16.mxu0 %v1758
      %1830 = vmatpush1.bf16.msra.mxu0 %v1757
      %1831 = vmatprep.subr.bf16.mxu0 0
      %1832 = vmatpush1.bf16.msra.mxu0 0
      %1833 = vmatprep.subr.bf16.mxu0 0
      %1834 = vmatpush1.bf16.msra.mxu0 0
      %1835 = vmatprep.subr.bf16.mxu0 0
      %1836 = vmatpush1.bf16.msra.mxu0 0
      %1837 = vmatprep.subr.bf16.mxu0 0
      %1838 = vmatpush1.bf16.msra.mxu0 0
      %1839 = vmatprep.subr.bf16.mxu0 0
      %1840 = vmatpush1.bf16.msra.mxu0 0
      %1841 = vmatprep.subr.bf16.mxu0 0
      %1842 = vmatpush1.bf16.msra.mxu0 0
      %1843 = vmatprep.subr.bf16.mxu0 0
      %1844 = vmatpush1.bf16.msra.mxu0 0
      %1845 = vmatprep.subr.bf16.mxu0 0
      %1846 = vmatpush1.bf16.msra.mxu0 0
      %1847 = vmatprep.subr.bf16.mxu0 0
      %1848 = vmatpush1.bf16.msra.mxu0 0
      %1849 = vmatprep.subr.bf16.mxu0 0
      %1850 = vmatpush1.bf16.msra.mxu0 0
      %1851 = vmatprep.subr.bf16.mxu0 0
      %1852 = vmatpush1.bf16.msra.mxu0 0
      %1853 = vmatprep.subr.bf16.mxu0 0
      %1854 = vmatpush1.bf16.msra.mxu0 0
      %1855 = vmatprep.subr.bf16.mxu0 0
      %1856 = vmatpush1.bf16.msra.mxu0 0
      %1857 = vmatprep.subr.bf16.mxu0 0
      %1858 = vmatpush1.bf16.msra.mxu0 0
      %1859 = vmatprep.mubr.bf16.mxu0 0
      %1860 = vmatmul.mubr.bf16.gmra.mrb[0].mxu0 %v1782
      %v1861 = vpop.f32.mrb[0].mxu0
      %v1862 = vadd.f32 0.0, %v1861
      %v1863 = vpop.f32.mrb[0].mxu0
      %v1864 = vadd.f32 0.0, %v1863
      %v1865 = vpop.f32.mrb[0].mxu0
      %v1866 = vadd.f32 0.0, %v1865
      %v1867 = vpop.f32.mrb[0].mxu0
      %v1868 = vadd.f32 0.0, %v1867
      %1869 = vdwg.mxu0
      %1870 = vmatprep.subr.bf16.mxu0 %v1752
      %1871 = vmatpush1.bf16.msra.mxu0 %v1751
      %1872 = vmatprep.subr.bf16.mxu0 %v1760
      %1873 = vmatpush1.bf16.msra.mxu0 %v1759
      %1874 = vmatprep.subr.bf16.mxu0 0
      %1875 = vmatpush1.bf16.msra.mxu0 0
      %1876 = vmatprep.subr.bf16.mxu0 0
      %1877 = vmatpush1.bf16.msra.mxu0 0
      %1878 = vmatprep.subr.bf16.mxu0 0
      %1879 = vmatpush1.bf16.msra.mxu0 0
      %1880 = vmatprep.subr.bf16.mxu0 0
      %1881 = vmatpush1.bf16.msra.mxu0 0
      %1882 = vmatprep.subr.bf16.mxu0 0
      %1883 = vmatpush1.bf16.msra.mxu0 0
      %1884 = vmatprep.subr.bf16.mxu0 0
      %1885 = vmatpush1.bf16.msra.mxu0 0
      %1886 = vmatprep.subr.bf16.mxu0 0
      %1887 = vmatpush1.bf16.msra.mxu0 0
      %1888 = vmatprep.subr.bf16.mxu0 0
      %1889 = vmatpush1.bf16.msra.mxu0 0
      %1890 = vmatprep.subr.bf16.mxu0 0
      %1891 = vmatpush1.bf16.msra.mxu0 0
      %1892 = vmatprep.subr.bf16.mxu0 0
      %1893 = vmatpush1.bf16.msra.mxu0 0
      %1894 = vmatprep.subr.bf16.mxu0 0
      %1895 = vmatpush1.bf16.msra.mxu0 0
      %1896 = vmatprep.subr.bf16.mxu0 0
      %1897 = vmatpush1.bf16.msra.mxu0 0
      %1898 = vmatprep.subr.bf16.mxu0 0
      %1899 = vmatpush1.bf16.msra.mxu0 0
      %1900 = vmatprep.subr.bf16.mxu0 0
      %1901 = vmatpush1.bf16.msra.mxu0 0
      %1902 = vmatprep.mubr.bf16.mxu0 0
      %1903 = vmatmul.mubr.bf16.gmra.mrb[0].mxu0 %v1782
      %v1904 = vpop.f32.mrb[0].mxu0
      %v1905 = vadd.f32 0.0, %v1904
      %v1906 = vpop.f32.mrb[0].mxu0
      %v1907 = vadd.f32 0.0, %v1906
      %v1908 = vpop.f32.mrb[0].mxu0
      %v1909 = vadd.f32 0.0, %v1908
      %v1910 = vpop.f32.mrb[0].mxu0
      %v1911 = vadd.f32 0.0, %v1910
      %1912 = vdwg.mxu0
      %1913 = vmatprep.subr.bf16.mxu0 %v1754
      %1914 = vmatpush1.bf16.msra.mxu0 %v1753
      %1915 = vmatprep.subr.bf16.mxu0 %v1762
      %1916 = vmatpush1.bf16.msra.mxu0 %v1761
      %1917 = vmatprep.subr.bf16.mxu0 0
      %1918 = vmatpush1.bf16.msra.mxu0 0
      %1919 = vmatprep.subr.bf16.mxu0 0
      %1920 = vmatpush1.bf16.msra.mxu0 0
      %1921 = vmatprep.subr.bf16.mxu0 0
      %1922 = vmatpush1.bf16.msra.mxu0 0
      %1923 = vmatprep.subr.bf16.mxu0 0
      %1924 = vmatpush1.bf16.msra.mxu0 0
      %1925 = vmatprep.subr.bf16.mxu0 0
      %1926 = vmatpush1.bf16.msra.mxu0 0
      %1927 = vmatprep.subr.bf16.mxu0 0
      %1928 = vmatpush1.bf16.msra.mxu0 0
      %1929 = vmatprep.subr.bf16.mxu0 0
      %1930 = vmatpush1.bf16.msra.mxu0 0
      %1931 = vmatprep.subr.bf16.mxu0 0
      %1932 = vmatpush1.bf16.msra.mxu0 0
      %1933 = vmatprep.subr.bf16.mxu0 0
      %1934 = vmatpush1.bf16.msra.mxu0 0
      %1935 = vmatprep.subr.bf16.mxu0 0
      %1936 = vmatpush1.bf16.msra.mxu0 0
      %1937 = vmatprep.subr.bf16.mxu0 0
      %1938 = vmatpush1.bf16.msra.mxu0 0
      %1939 = vmatprep.subr.bf16.mxu0 0
      %1940 = vmatpush1.bf16.msra.mxu0 0
      %1941 = vmatprep.subr.bf16.mxu0 0
      %1942 = vmatpush1.bf16.msra.mxu0 0
      %1943 = vmatprep.subr.bf16.mxu0 0
      %1944 = vmatpush1.bf16.msra.mxu0 0
      %1945 = vmatprep.mubr.bf16.mxu0 0
      %1946 = vmatmul.mubr.bf16.gmra.mrb[0].mxu0 %v1782
      %v1947 = vpop.f32.mrb[0].mxu0
      %v1948 = vadd.f32 0.0, %v1947
      %v1949 = vpop.f32.mrb[0].mxu0
      %v1950 = vadd.f32 0.0, %v1949
      %v1951 = vpop.f32.mrb[0].mxu0
      %v1952 = vadd.f32 0.0, %v1951
      %v1953 = vpop.f32.mrb[0].mxu0
      %v1954 = vadd.f32 0.0, %v1953
      %1955 = vdwg.mxu0
      %1956 = vmatprep.subr.bf16.mxu0 0
      %1957 = vmatpush1.bf16.msra.mxu0 %v1727
      %1958 = vmatprep.subr.bf16.mxu0 0
      %1959 = vmatpush1.bf16.msra.mxu0 %v1745
      %1960 = vmatprep.subr.bf16.mxu0 0
      %1961 = vmatpush1.bf16.msra.mxu0 0
      %1962 = vmatprep.subr.bf16.mxu0 0
      %1963 = vmatpush1.bf16.msra.mxu0 0
      %1964 = vmatprep.subr.bf16.mxu0 0
      %1965 = vmatpush1.bf16.msra.mxu0 0
      %1966 = vmatprep.subr.bf16.mxu0 0
      %1967 = vmatpush1.bf16.msra.mxu0 0
      %1968 = vmatprep.subr.bf16.mxu0 0
      %1969 = vmatpush1.bf16.msra.mxu0 0
      %1970 = vmatprep.subr.bf16.mxu0 0
      %1971 = vmatpush1.bf16.msra.mxu0 0
      %1972 = vmatprep.subr.bf16.mxu0 0
      %1973 = vmatpush1.bf16.msra.mxu0 0
      %1974 = vmatprep.subr.bf16.mxu0 0
      %1975 = vmatpush1.bf16.msra.mxu0 0
      %1976 = vmatprep.subr.bf16.mxu0 0
      %1977 = vmatpush1.bf16.msra.mxu0 0
      %1978 = vmatprep.subr.bf16.mxu0 0
      %1979 = vmatpush1.bf16.msra.mxu0 0
      %1980 = vmatprep.subr.bf16.mxu0 0
      %1981 = vmatpush1.bf16.msra.mxu0 0
      %1982 = vmatprep.subr.bf16.mxu0 0
      %1983 = vmatpush1.bf16.msra.mxu0 0
      %1984 = vmatprep.subr.bf16.mxu0 0
      %1985 = vmatpush1.bf16.msra.mxu0 0
      %1986 = vmatprep.subr.bf16.mxu0 0
      %1987 = vmatpush1.bf16.msra.mxu0 0
      %1988 = vmatprep.mubr.bf16.mxu0 0
      %1989 = vmatmul.mubr.bf16.gmra.mrb[0].mxu0 %v1782
      %v1990 = vpop.f32.mrb[0].mxu0
      %v1991 = vadd.f32 0.0, %v1990
      %v1992 = vpop.f32.mrb[0].mxu0
      %v1993 = vpop.f32.mrb[0].mxu0
      %v1994 = vadd.f32 0.0, %v1993
      %v1995 = vpop.f32.mrb[0].mxu0
      %1996 = vdwg.mxu0
      %v1997 = vadd.f32 %v1684, %v1819
      %v1998 = vadd.f32 %v1685, %v1821
      %v1999 = vadd.f32 %v1686, %v1862
      %v2000 = vadd.f32 %v1687, %v1864
      %v2001 = vadd.f32 %v1688, %v1905
      %v2002 = vadd.f32 %v1689, %v1907
      %v2003 = vadd.f32 %v1690, %v1948
      %v2004 = vadd.f32 %v1691, %v1950
      %v2005 = vadd.f32 %v1692, %v1991
      %v2006 = vadd.f32 %v1693, %v1823
      %v2007 = vadd.f32 %v1694, %v1825
      %v2008 = vadd.f32 %v1695, %v1866
      %v2009 = vadd.f32 %v1696, %v1868
      %v2010 = vadd.f32 %v1697, %v1909
      %v2011 = vadd.f32 %v1698, %v1911
      %v2012 = vadd.f32 %v1699, %v1952
      %v2013 = vadd.f32 %v1700, %v1954
      %v2014 = vadd.f32 %v1701, %v1994
      %v2015 = vld [vmem:[%s165] sm:$0xff]
      %v2016 = vld [vmem:[%s165 + $0x8] sm:$0xff]
      %v2017 = vld [vmem:[%s165 + $0x10] sm:$0xff]
      %v2018 = vld [vmem:[%s165 + $0x18] sm:$0xff]
      %v2019 = vld [vmem:[%s165 + $0x20] sm:$0xff]
      %v2020 = vld [vmem:[%s165 + $0x28] sm:$0xff]
      %v2021 = vld [vmem:[%s165 + $0x30] sm:$0xff]
      %v2022 = vld [vmem:[%s165 + $0x38] sm:$0xff]
      %v2023 = vld [vmem:[%s165 + $0x40] sm:$0xff]
      %v2024 = vld [vmem:[%s165 + $0x48] sm:$0xff]
      %v2025 = vld [vmem:[%s165 + $0x50] sm:$0xff]
      %v2026 = vld [vmem:[%s165 + $0x58] sm:$0xff]
      %v2027 = vld [vmem:[%s165 + $0x60] sm:$0xff]
      %v2028 = vld [vmem:[%s165 + $0x68] sm:$0xff]
      %v2029 = vld [vmem:[%s165 + $0x70] sm:$0xff]
      %v2030 = vld [vmem:[%s165 + $0x78] sm:$0xff]
      %v2031 = vld [vmem:[%s165 + $0x80] sm:$0xff]
      %v2032 = vld [vmem:[%s165 + $0x88] sm:$0xff]
      %v2033 = vld [vmem:[%s165 + $0x90] sm:$0xff]
      %v2034 = vld [vmem:[%s165 + $0x98] sm:$0xff]
      %v2035 = vld [vmem:[%s165 + $0xa0] sm:$0xff]
      %v2036 = vld [vmem:[%s165 + $0xa8] sm:$0xff]
      %v2037 = vld [vmem:[%s165 + $0xb0] sm:$0xff]
      %v2038 = vld [vmem:[%s165 + $0xb8] sm:$0xff]
      %v2039 = vld [vmem:[%s165 + $0xc0] sm:$0xff]
      %v2040 = vld [vmem:[%s165 + $0xc8] sm:$0xff]
      %v2041 = vld [vmem:[%s165 + $0xd0] sm:$0xff]
      %v2042 = vld [vmem:[%s165 + $0xd8] sm:$0xff]
      %v2043 = vld [vmem:[%s165 + $0xe0] sm:$0xff]
      %v2044 = vld [vmem:[%s165 + $0xe8] sm:$0xff]
      %v2045 = vld [vmem:[%s165 + $0xf0] sm:$0xff]
      %v2046 = vld [vmem:[%s165 + $0xf8] sm:$0xff]
      %v2047 = vld [vmem:[%s165 + $0x100] sm:$0xff]
      %v2048 = vld [vmem:[%s165 + $0x108] sm:$0xff]
      %v2049 = vld [vmem:[%s165 + $0x110] sm:$0xff]
      %v2050 = vld [vmem:[%s165 + $0x118] sm:$0xff]
      %v2051 = vld [vmem:[%s165 + $0x120] sm:$0xff]
      %v2052 = vld [vmem:[%s165 + $0x128] sm:$0xff]
      %v2053 = vld [vmem:[%s165 + $0x130] sm:$0xff]
      %v2054 = vld [vmem:[%s165 + $0x138] sm:$0xff]
      %v2055 = vpack.c.bf16 %v2025, %v2015
      %v2056 = vpack.c.bf16 %v2026, %v2016
      %v2057 = vpack.c.bf16 %v2027, %v2017
      %v2058 = vpack.c.bf16 %v2028, %v2018
      %v2059 = vpack.c.bf16 %v2029, %v2019
      %v2060 = vpack.c.bf16 %v2030, %v2020
      %v2061 = vpack.c.bf16 %v2031, %v2021
      %v2062 = vpack.c.bf16 %v2032, %v2022
      %v2063 = vpack.c.bf16 %v2033, %v2023
      %v2064 = vpack.c.bf16 %v2034, %v2024
      %v2065 = vpack.c.bf16 %v2045, %v2035
      %v2066 = vpack.c.bf16 %v2046, %v2036
      %v2067 = vpack.c.bf16 %v2047, %v2037
      %v2068 = vpack.c.bf16 %v2048, %v2038
      %v2069 = vpack.c.bf16 %v2049, %v2039
      %v2070 = vpack.c.bf16 %v2050, %v2040
      %v2071 = vpack.c.bf16 %v2051, %v2041
      %v2072 = vpack.c.bf16 %v2052, %v2042
      %v2073 = vpack.c.bf16 %v2053, %v2043
      %v2074 = vpack.c.bf16 %v2054, %v2044
      %s2075 = scalar_lea.vmem %s1, 48
      %v2076 = vld [vmem:[%s2075] sm:$0xf]
      %v2077 = vld [vmem:[%s2075 + $0x4] sm:$0x3]
      %v2080 = vunpack.c.l.b16 %v2076
      %v2081 = vunpack.c.l.b16 %v2077
      %v2082 = vpack.c.b16 %v2081, %v2080
      %2103 = vrot.lane.b32.xlu0 %v2055, 60
      %v2104 = vpop.permute.xlu0 %2103
      %2105 = vrot.lane.b32.xlu0 %v2056, 60
      %v2106 = vpop.permute.xlu0 %2105
      %2107 = vrot.lane.b32.xlu0 %v2057, 60
      %v2108 = vpop.permute.xlu0 %2107
      %2109 = vrot.lane.b32.xlu0 %v2058, 60
      %v2110 = vpop.permute.xlu0 %2109
      %2111 = vrot.lane.b32.xlu0 %v2059, 60
      %v2112 = vpop.permute.xlu0 %2111
      %2113 = vrot.lane.b32.xlu0 %v2060, 60
      %v2114 = vpop.permute.xlu0 %2113
      %2115 = vrot.lane.b32.xlu0 %v2061, 60
      %v2116 = vpop.permute.xlu0 %2115
      %2117 = vrot.lane.b32.xlu0 %v2062, 60
      %v2118 = vpop.permute.xlu0 %2117
      %2119 = vrot.lane.b32.xlu0 %v2063, 60
      %v2120 = vpop.permute.xlu0 %2119
      %2121 = vrot.lane.b32.xlu0 %v2064, 60
      %v2122 = vpop.permute.xlu0 %2121
      %2123 = vrot.lane.b32.xlu0 %v2065, 60
      %v2124 = vpop.permute.xlu0 %2123
      %2125 = vrot.lane.b32.xlu0 %v2066, 60
      %v2126 = vpop.permute.xlu0 %2125
      %2127 = vrot.lane.b32.xlu0 %v2067, 60
      %v2128 = vpop.permute.xlu0 %2127
      %2129 = vrot.lane.b32.xlu0 %v2068, 60
      %v2130 = vpop.permute.xlu0 %2129
      %2131 = vrot.lane.b32.xlu0 %v2069, 60
      %v2132 = vpop.permute.xlu0 %2131
      %2133 = vrot.lane.b32.xlu0 %v2070, 60
      %v2134 = vpop.permute.xlu0 %2133
      %2135 = vrot.lane.b32.xlu0 %v2071, 60
      %v2136 = vpop.permute.xlu0 %2135
      %2137 = vrot.lane.b32.xlu0 %v2072, 60
      %v2138 = vpop.permute.xlu0 %2137
      %2139 = vrot.lane.b32.xlu0 %v2073, 60
      %v2140 = vpop.permute.xlu0 %2139
      %2141 = vrot.lane.b32.xlu0 %v2074, 60
      %v2142 = vpop.permute.xlu0 %2141
      %vm2143 = vcmask 490496
      %v2144 = vsel %vm2143, %v2104, %v2106
      %v2145 = vsel %vm2143, %v2106, %v2108
      %v2146 = vsel %vm2143, %v2108, %v2110
      %v2147 = vsel %vm2143, %v2110, %v2112
      %v2148 = vsel %vm2143, %v2112, %v2114
      %v2149 = vsel %vm2143, %v2114, %v2116
      %v2150 = vsel %vm2143, %v2116, %v2118
      %v2151 = vsel %vm2143, %v2118, %v2120
      %v2152 = vsel %vm2143, %v2120, %v2122
      %v2153 = vsel %vm2143, %v2124, %v2126
      %v2154 = vsel %vm2143, %v2126, %v2128
      %v2155 = vsel %vm2143, %v2128, %v2130
      %v2156 = vsel %vm2143, %v2130, %v2132
      %v2157 = vsel %vm2143, %v2132, %v2134
      %v2158 = vsel %vm2143, %v2134, %v2136
      %v2159 = vsel %vm2143, %v2136, %v2138
      %v2160 = vsel %vm2143, %v2138, %v2140
      %v2161 = vsel %vm2143, %v2140, %v2142
      %v2181 = vsel %vm325, %v2082, 0
      %2183 = vmatprep.subr.bf16.mxu0 %v2145
      %2184 = vmatpush1.bf16.msra.mxu0 %v2144
      %2185 = vmatprep.subr.bf16.mxu0 %v2154
      %2186 = vmatpush1.bf16.msra.mxu0 %v2153
      %2187 = vmatprep.subr.bf16.mxu0 0
      %2188 = vmatpush1.bf16.msra.mxu0 0
      %2189 = vmatprep.subr.bf16.mxu0 0
      %2190 = vmatpush1.bf16.msra.mxu0 0
      %2191 = vmatprep.subr.bf16.mxu0 0
      %2192 = vmatpush1.bf16.msra.mxu0 0
      %2193 = vmatprep.subr.bf16.mxu0 0
      %2194 = vmatpush1.bf16.msra.mxu0 0
      %2195 = vmatprep.subr.bf16.mxu0 0
      %2196 = vmatpush1.bf16.msra.mxu0 0
      %2197 = vmatprep.subr.bf16.mxu0 0
      %2198 = vmatpush1.bf16.msra.mxu0 0
      %2199 = vmatprep.subr.bf16.mxu0 0
      %2200 = vmatpush1.bf16.msra.mxu0 0
      %2201 = vmatprep.subr.bf16.mxu0 0
      %2202 = vmatpush1.bf16.msra.mxu0 0
      %2203 = vmatprep.subr.bf16.mxu0 0
      %2204 = vmatpush1.bf16.msra.mxu0 0
      %2205 = vmatprep.subr.bf16.mxu0 0
      %2206 = vmatpush1.bf16.msra.mxu0 0
      %2207 = vmatprep.subr.bf16.mxu0 0
      %2208 = vmatpush1.bf16.msra.mxu0 0
      %2209 = vmatprep.subr.bf16.mxu0 0
      %2210 = vmatpush1.bf16.msra.mxu0 0
      %2211 = vmatprep.subr.bf16.mxu0 0
      %2212 = vmatpush1.bf16.msra.mxu0 0
      %2213 = vmatprep.subr.bf16.mxu0 0
      %2214 = vmatpush1.bf16.msra.mxu0 0
      %2215 = vmatprep.mubr.bf16.mxu0 0
      %2216 = vmatmul.mubr.bf16.gmra.mrb[0].mxu0 %v2181
      %v2217 = vpop.f32.mrb[0].mxu0
      %v2218 = vadd.f32 0.0, %v2217
      %v2219 = vpop.f32.mrb[0].mxu0
      %v2220 = vadd.f32 0.0, %v2219
      %v2221 = vpop.f32.mrb[0].mxu0
      %v2222 = vadd.f32 0.0, %v2221
      %v2223 = vpop.f32.mrb[0].mxu0
      %v2224 = vadd.f32 0.0, %v2223
      %2225 = vdwg.mxu0
      %2226 = vmatprep.subr.bf16.mxu0 %v2147
      %2227 = vmatpush1.bf16.msra.mxu0 %v2146
      %2228 = vmatprep.subr.bf16.mxu0 %v2156
      %2229 = vmatpush1.bf16.msra.mxu0 %v2155
      %2230 = vmatprep.subr.bf16.mxu0 0
      %2231 = vmatpush1.bf16.msra.mxu0 0
      %2232 = vmatprep.subr.bf16.mxu0 0
      %2233 = vmatpush1.bf16.msra.mxu0 0
      %2234 = vmatprep.subr.bf16.mxu0 0
      %2235 = vmatpush1.bf16.msra.mxu0 0
      %2236 = vmatprep.subr.bf16.mxu0 0
      %2237 = vmatpush1.bf16.msra.mxu0 0
      %2238 = vmatprep.subr.bf16.mxu0 0
      %2239 = vmatpush1.bf16.msra.mxu0 0
      %2240 = vmatprep.subr.bf16.mxu0 0
      %2241 = vmatpush1.bf16.msra.mxu0 0
      %2242 = vmatprep.subr.bf16.mxu0 0
      %2243 = vmatpush1.bf16.msra.mxu0 0
      %2244 = vmatprep.subr.bf16.mxu0 0
      %2245 = vmatpush1.bf16.msra.mxu0 0
      %2246 = vmatprep.subr.bf16.mxu0 0
      %2247 = vmatpush1.bf16.msra.mxu0 0
      %2248 = vmatprep.subr.bf16.mxu0 0
      %2249 = vmatpush1.bf16.msra.mxu0 0
      %2250 = vmatprep.subr.bf16.mxu0 0
      %2251 = vmatpush1.bf16.msra.mxu0 0
      %2252 = vmatprep.subr.bf16.mxu0 0
      %2253 = vmatpush1.bf16.msra.mxu0 0
      %2254 = vmatprep.subr.bf16.mxu0 0
      %2255 = vmatpush1.bf16.msra.mxu0 0
      %2256 = vmatprep.subr.bf16.mxu0 0
      %2257 = vmatpush1.bf16.msra.mxu0 0
      %2258 = vmatprep.mubr.bf16.mxu0 0
      %2259 = vmatmul.mubr.bf16.gmra.mrb[0].mxu0 %v2181
      %v2260 = vpop.f32.mrb[0].mxu0
      %v2261 = vadd.f32 0.0, %v2260
      %v2262 = vpop.f32.mrb[0].mxu0
      %v2263 = vadd.f32 0.0, %v2262
      %v2264 = vpop.f32.mrb[0].mxu0
      %v2265 = vadd.f32 0.0, %v2264
      %v2266 = vpop.f32.mrb[0].mxu0
      %v2267 = vadd.f32 0.0, %v2266
      %2268 = vdwg.mxu0
      %2269 = vmatprep.subr.bf16.mxu0 %v2149
      %2270 = vmatpush1.bf16.msra.mxu0 %v2148
      %2271 = vmatprep.subr.bf16.mxu0 %v2158
      %2272 = vmatpush1.bf16.msra.mxu0 %v2157
      %2273 = vmatprep.subr.bf16.mxu0 0
      %2274 = vmatpush1.bf16.msra.mxu0 0
      %2275 = vmatprep.subr.bf16.mxu0 0
      %2276 = vmatpush1.bf16.msra.mxu0 0
      %2277 = vmatprep.subr.bf16.mxu0 0
      %2278 = vmatpush1.bf16.msra.mxu0 0
      %2279 = vmatprep.subr.bf16.mxu0 0
      %2280 = vmatpush1.bf16.msra.mxu0 0
      %2281 = vmatprep.subr.bf16.mxu0 0
      %2282 = vmatpush1.bf16.msra.mxu0 0
      %2283 = vmatprep.subr.bf16.mxu0 0
      %2284 = vmatpush1.bf16.msra.mxu0 0
      %2285 = vmatprep.subr.bf16.mxu0 0
      %2286 = vmatpush1.bf16.msra.mxu0 0
      %2287 = vmatprep.subr.bf16.mxu0 0
      %2288 = vmatpush1.bf16.msra.mxu0 0
      %2289 = vmatprep.subr.bf16.mxu0 0
      %2290 = vmatpush1.bf16.msra.mxu0 0
      %2291 = vmatprep.subr.bf16.mxu0 0
      %2292 = vmatpush1.bf16.msra.mxu0 0
      %2293 = vmatprep.subr.bf16.mxu0 0
      %2294 = vmatpush1.bf16.msra.mxu0 0
      %2295 = vmatprep.subr.bf16.mxu0 0
      %2296 = vmatpush1.bf16.msra.mxu0 0
      %2297 = vmatprep.subr.bf16.mxu0 0
      %2298 = vmatpush1.bf16.msra.mxu0 0
      %2299 = vmatprep.subr.bf16.mxu0 0
      %2300 = vmatpush1.bf16.msra.mxu0 0
      %2301 = vmatprep.mubr.bf16.mxu0 0
      %2302 = vmatmul.mubr.bf16.gmra.mrb[0].mxu0 %v2181
      %v2303 = vpop.f32.mrb[0].mxu0
      %v2304 = vadd.f32 0.0, %v2303
      %v2305 = vpop.f32.mrb[0].mxu0
      %v2306 = vadd.f32 0.0, %v2305
      %v2307 = vpop.f32.mrb[0].mxu0
      %v2308 = vadd.f32 0.0, %v2307
      %v2309 = vpop.f32.mrb[0].mxu0
      %v2310 = vadd.f32 0.0, %v2309
      %2311 = vdwg.mxu0
      %2312 = vmatprep.subr.bf16.mxu0 %v2151
      %2313 = vmatpush1.bf16.msra.mxu0 %v2150
      %2314 = vmatprep.subr.bf16.mxu0 %v2160
      %2315 = vmatpush1.bf16.msra.mxu0 %v2159
      %2316 = vmatprep.subr.bf16.mxu0 0
      %2317 = vmatpush1.bf16.msra.mxu0 0
      %2318 = vmatprep.subr.bf16.mxu0 0
      %2319 = vmatpush1.bf16.msra.mxu0 0
      %2320 = vmatprep.subr.bf16.mxu0 0
      %2321 = vmatpush1.bf16.msra.mxu0 0
      %2322 = vmatprep.subr.bf16.mxu0 0
      %2323 = vmatpush1.bf16.msra.mxu0 0
      %2324 = vmatprep.subr.bf16.mxu0 0
      %2325 = vmatpush1.bf16.msra.mxu0 0
      %2326 = vmatprep.subr.bf16.mxu0 0
      %2327 = vmatpush1.bf16.msra.mxu0 0
      %2328 = vmatprep.subr.bf16.mxu0 0
      %2329 = vmatpush1.bf16.msra.mxu0 0
      %2330 = vmatprep.subr.bf16.mxu0 0
      %2331 = vmatpush1.bf16.msra.mxu0 0
      %2332 = vmatprep.subr.bf16.mxu0 0
      %2333 = vmatpush1.bf16.msra.mxu0 0
      %2334 = vmatprep.subr.bf16.mxu0 0
      %2335 = vmatpush1.bf16.msra.mxu0 0
      %2336 = vmatprep.subr.bf16.mxu0 0
      %2337 = vmatpush1.bf16.msra.mxu0 0
      %2338 = vmatprep.subr.bf16.mxu0 0
      %2339 = vmatpush1.bf16.msra.mxu0 0
      %2340 = vmatprep.subr.bf16.mxu0 0
      %2341 = vmatpush1.bf16.msra.mxu0 0
      %2342 = vmatprep.subr.bf16.mxu0 0
      %2343 = vmatpush1.bf16.msra.mxu0 0
      %2344 = vmatprep.mubr.bf16.mxu0 0
      %2345 = vmatmul.mubr.bf16.gmra.mrb[0].mxu0 %v2181
      %v2346 = vpop.f32.mrb[0].mxu0
      %v2347 = vadd.f32 0.0, %v2346
      %v2348 = vpop.f32.mrb[0].mxu0
      %v2349 = vadd.f32 0.0, %v2348
      %v2350 = vpop.f32.mrb[0].mxu0
      %v2351 = vadd.f32 0.0, %v2350
      %v2352 = vpop.f32.mrb[0].mxu0
      %v2353 = vadd.f32 0.0, %v2352
      %2354 = vdwg.mxu0
      %2355 = vmatprep.subr.bf16.mxu0 0
      %2356 = vmatpush1.bf16.msra.mxu0 %v2152
      %2357 = vmatprep.subr.bf16.mxu0 0
      %2358 = vmatpush1.bf16.msra.mxu0 %v2161
      %2359 = vmatprep.subr.bf16.mxu0 0
      %2360 = vmatpush1.bf16.msra.mxu0 0
      %2361 = vmatprep.subr.bf16.mxu0 0
      %2362 = vmatpush1.bf16.msra.mxu0 0
      %2363 = vmatprep.subr.bf16.mxu0 0
      %2364 = vmatpush1.bf16.msra.mxu0 0
      %2365 = vmatprep.subr.bf16.mxu0 0
      %2366 = vmatpush1.bf16.msra.mxu0 0
      %2367 = vmatprep.subr.bf16.mxu0 0
      %2368 = vmatpush1.bf16.msra.mxu0 0
      %2369 = vmatprep.subr.bf16.mxu0 0
      %2370 = vmatpush1.bf16.msra.mxu0 0
      %2371 = vmatprep.subr.bf16.mxu0 0
      %2372 = vmatpush1.bf16.msra.mxu0 0
      %2373 = vmatprep.subr.bf16.mxu0 0
      %2374 = vmatpush1.bf16.msra.mxu0 0
      %2375 = vmatprep.subr.bf16.mxu0 0
      %2376 = vmatpush1.bf16.msra.mxu0 0
      %2377 = vmatprep.subr.bf16.mxu0 0
      %2378 = vmatpush1.bf16.msra.mxu0 0
      %2379 = vmatprep.subr.bf16.mxu0 0
      %2380 = vmatpush1.bf16.msra.mxu0 0
      %2381 = vmatprep.subr.bf16.mxu0 0
      %2382 = vmatpush1.bf16.msra.mxu0 0
      %2383 = vmatprep.subr.bf16.mxu0 0
      %2384 = vmatpush1.bf16.msra.mxu0 0
      %2385 = vmatprep.subr.bf16.mxu0 0
      %2386 = vmatpush1.bf16.msra.mxu0 0
      %2387 = vmatprep.mubr.bf16.mxu0 0
      %2388 = vmatmul.mubr.bf16.gmra.mrb[0].mxu0 %v2181
      %v2389 = vpop.f32.mrb[0].mxu0
      %v2390 = vadd.f32 0.0, %v2389
      %v2391 = vpop.f32.mrb[0].mxu0
      %v2392 = vpop.f32.mrb[0].mxu0
      %v2393 = vadd.f32 0.0, %v2392
      %v2394 = vpop.f32.mrb[0].mxu0
      %2395 = vdwg.mxu0
      %v2396 = vadd.f32 %v1997, %v2218
      %v2397 = vadd.f32 %v1998, %v2220
      %v2398 = vadd.f32 %v1999, %v2261
      %v2399 = vadd.f32 %v2000, %v2263
      %v2400 = vadd.f32 %v2001, %v2304
      %v2401 = vadd.f32 %v2002, %v2306
      %v2402 = vadd.f32 %v2003, %v2347
      %v2403 = vadd.f32 %v2004, %v2349
      %v2404 = vadd.f32 %v2005, %v2390
      %v2405 = vadd.f32 %v2006, %v2222
      %v2406 = vadd.f32 %v2007, %v2224
      %v2407 = vadd.f32 %v2008, %v2265
      %v2408 = vadd.f32 %v2009, %v2267
      %v2409 = vadd.f32 %v2010, %v2308
      %v2410 = vadd.f32 %v2011, %v2310
      %v2411 = vadd.f32 %v2012, %v2351
      %v2412 = vadd.f32 %v2013, %v2353
      %v2413 = vadd.f32 %v2014, %v2393
      %s2414 = scalar_lea.vmem %s1, 56
      %v2415 = vld [vmem:[%s2414] sm:$0xf]
      %v2416 = vld [vmem:[%s2414 + $0x4] sm:$0x3]
      %v2419 = vunpack.c.l.b16 %v2415
      %v2420 = vunpack.c.l.b16 %v2416
      %v2421 = vpack.c.b16 %v2420, %v2419
      %2422 = vrot.lane.b32.xlu0 %v2055, 59
      %v2423 = vpop.permute.xlu0 %2422
      %2424 = vrot.lane.b32.xlu0 %v2056, 59
      %v2425 = vpop.permute.xlu0 %2424
      %2426 = vrot.lane.b32.xlu0 %v2057, 59
      %v2427 = vpop.permute.xlu0 %2426
      %2428 = vrot.lane.b32.xlu0 %v2058, 59
      %v2429 = vpop.permute.xlu0 %2428
      %2430 = vrot.lane.b32.xlu0 %v2059, 59
      %v2431 = vpop.permute.xlu0 %2430
      %2432 = vrot.lane.b32.xlu0 %v2060, 59
      %v2433 = vpop.permute.xlu0 %2432
      %2434 = vrot.lane.b32.xlu0 %v2061, 59
      %v2435 = vpop.permute.xlu0 %2434
      %2436 = vrot.lane.b32.xlu0 %v2062, 59
      %v2437 = vpop.permute.xlu0 %2436
      %2438 = vrot.lane.b32.xlu0 %v2063, 59
      %v2439 = vpop.permute.xlu0 %2438
      %2440 = vrot.lane.b32.xlu0 %v2064, 59
      %v2441 = vpop.permute.xlu0 %2440
      %2442 = vrot.lane.b32.xlu0 %v2065, 59
      %v2443 = vpop.permute.xlu0 %2442
      %2444 = vrot.lane.b32.xlu0 %v2066, 59
      %v2445 = vpop.permute.xlu0 %2444
      %2446 = vrot.lane.b32.xlu0 %v2067, 59
      %v2447 = vpop.permute.xlu0 %2446
      %2448 = vrot.lane.b32.xlu0 %v2068, 59
      %v2449 = vpop.permute.xlu0 %2448
      %2450 = vrot.lane.b32.xlu0 %v2069, 59
      %v2451 = vpop.permute.xlu0 %2450
      %2452 = vrot.lane.b32.xlu0 %v2070, 59
      %v2453 = vpop.permute.xlu0 %2452
      %2454 = vrot.lane.b32.xlu0 %v2071, 59
      %v2455 = vpop.permute.xlu0 %2454
      %2456 = vrot.lane.b32.xlu0 %v2072, 59
      %v2457 = vpop.permute.xlu0 %2456
      %2458 = vrot.lane.b32.xlu0 %v2073, 59
      %v2459 = vpop.permute.xlu0 %2458
      %2460 = vrot.lane.b32.xlu0 %v2074, 59
      %v2461 = vpop.permute.xlu0 %2460
      %vm2462 = vcmask 482304
      %v2463 = vsel %vm2462, %v2423, %v2425
      %v2464 = vsel %vm2462, %v2425, %v2427
      %v2465 = vsel %vm2462, %v2427, %v2429
      %v2466 = vsel %vm2462, %v2429, %v2431
      %v2467 = vsel %vm2462, %v2431, %v2433
      %v2468 = vsel %vm2462, %v2433, %v2435
      %v2469 = vsel %vm2462, %v2435, %v2437
      %v2470 = vsel %vm2462, %v2437, %v2439
      %v2471 = vsel %vm2462, %v2439, %v2441
      %v2472 = vsel %vm2462, %v2443, %v2445
      %v2473 = vsel %vm2462, %v2445, %v2447
      %v2474 = vsel %vm2462, %v2447, %v2449
      %v2475 = vsel %vm2462, %v2449, %v2451
      %v2476 = vsel %vm2462, %v2451, %v2453
      %v2477 = vsel %vm2462, %v2453, %v2455
      %v2478 = vsel %vm2462, %v2455, %v2457
      %v2479 = vsel %vm2462, %v2457, %v2459
      %v2480 = vsel %vm2462, %v2459, %v2461
      %v2500 = vsel %vm325, %v2421, 0
      %2502 = vmatprep.subr.bf16.mxu0 %v2464
      %2503 = vmatpush1.bf16.msra.mxu0 %v2463
      %2504 = vmatprep.subr.bf16.mxu0 %v2473
      %2505 = vmatpush1.bf16.msra.mxu0 %v2472
      %2506 = vmatprep.subr.bf16.mxu0 0
      %2507 = vmatpush1.bf16.msra.mxu0 0
      %2508 = vmatprep.subr.bf16.mxu0 0
      %2509 = vmatpush1.bf16.msra.mxu0 0
      %2510 = vmatprep.subr.bf16.mxu0 0
      %2511 = vmatpush1.bf16.msra.mxu0 0
      %2512 = vmatprep.subr.bf16.mxu0 0
      %2513 = vmatpush1.bf16.msra.mxu0 0
      %2514 = vmatprep.subr.bf16.mxu0 0
      %2515 = vmatpush1.bf16.msra.mxu0 0
      %2516 = vmatprep.subr.bf16.mxu0 0
      %2517 = vmatpush1.bf16.msra.mxu0 0
      %2518 = vmatprep.subr.bf16.mxu0 0
      %2519 = vmatpush1.bf16.msra.mxu0 0
      %2520 = vmatprep.subr.bf16.mxu0 0
      %2521 = vmatpush1.bf16.msra.mxu0 0
      %2522 = vmatprep.subr.bf16.mxu0 0
      %2523 = vmatpush1.bf16.msra.mxu0 0
      %2524 = vmatprep.subr.bf16.mxu0 0
      %2525 = vmatpush1.bf16.msra.mxu0 0
      %2526 = vmatprep.subr.bf16.mxu0 0
      %2527 = vmatpush1.bf16.msra.mxu0 0
      %2528 = vmatprep.subr.bf16.mxu0 0
      %2529 = vmatpush1.bf16.msra.mxu0 0
      %2530 = vmatprep.subr.bf16.mxu0 0
      %2531 = vmatpush1.bf16.msra.mxu0 0
      %2532 = vmatprep.subr.bf16.mxu0 0
      %2533 = vmatpush1.bf16.msra.mxu0 0
      %2534 = vmatprep.mubr.bf16.mxu0 0
      %2535 = vmatmul.mubr.bf16.gmra.mrb[0].mxu0 %v2500
      %v2536 = vpop.f32.mrb[0].mxu0
      %v2537 = vadd.f32 0.0, %v2536
      %v2538 = vpop.f32.mrb[0].mxu0
      %v2539 = vadd.f32 0.0, %v2538
      %v2540 = vpop.f32.mrb[0].mxu0
      %v2541 = vadd.f32 0.0, %v2540
      %v2542 = vpop.f32.mrb[0].mxu0
      %v2543 = vadd.f32 0.0, %v2542
      %2544 = vdwg.mxu0
      %2545 = vmatprep.subr.bf16.mxu0 %v2466
      %2546 = vmatpush1.bf16.msra.mxu0 %v2465
      %2547 = vmatprep.subr.bf16.mxu0 %v2475
      %2548 = vmatpush1.bf16.msra.mxu0 %v2474
      %2549 = vmatprep.subr.bf16.mxu0 0
      %2550 = vmatpush1.bf16.msra.mxu0 0
      %2551 = vmatprep.subr.bf16.mxu0 0
      %2552 = vmatpush1.bf16.msra.mxu0 0
      %2553 = vmatprep.subr.bf16.mxu0 0
      %2554 = vmatpush1.bf16.msra.mxu0 0
      %2555 = vmatprep.subr.bf16.mxu0 0
      %2556 = vmatpush1.bf16.msra.mxu0 0
      %2557 = vmatprep.subr.bf16.mxu0 0
      %2558 = vmatpush1.bf16.msra.mxu0 0
      %2559 = vmatprep.subr.bf16.mxu0 0
      %2560 = vmatpush1.bf16.msra.mxu0 0
      %2561 = vmatprep.subr.bf16.mxu0 0
      %2562 = vmatpush1.bf16.msra.mxu0 0
      %2563 = vmatprep.subr.bf16.mxu0 0
      %2564 = vmatpush1.bf16.msra.mxu0 0
      %2565 = vmatprep.subr.bf16.mxu0 0
      %2566 = vmatpush1.bf16.msra.mxu0 0
      %2567 = vmatprep.subr.bf16.mxu0 0
      %2568 = vmatpush1.bf16.msra.mxu0 0
      %2569 = vmatprep.subr.bf16.mxu0 0
      %2570 = vmatpush1.bf16.msra.mxu0 0
      %2571 = vmatprep.subr.bf16.mxu0 0
      %2572 = vmatpush1.bf16.msra.mxu0 0
      %2573 = vmatprep.subr.bf16.mxu0 0
      %2574 = vmatpush1.bf16.msra.mxu0 0
      %2575 = vmatprep.subr.bf16.mxu0 0
      %2576 = vmatpush1.bf16.msra.mxu0 0
      %2577 = vmatprep.mubr.bf16.mxu0 0
      %2578 = vmatmul.mubr.bf16.gmra.mrb[0].mxu0 %v2500
      %v2579 = vpop.f32.mrb[0].mxu0
      %v2580 = vadd.f32 0.0, %v2579
      %v2581 = vpop.f32.mrb[0].mxu0
      %v2582 = vadd.f32 0.0, %v2581
      %v2583 = vpop.f32.mrb[0].mxu0
      %v2584 = vadd.f32 0.0, %v2583
      %v2585 = vpop.f32.mrb[0].mxu0
      %v2586 = vadd.f32 0.0, %v2585
      %2587 = vdwg.mxu0
      %2588 = vmatprep.subr.bf16.mxu0 %v2468
      %2589 = vmatpush1.bf16.msra.mxu0 %v2467
      %2590 = vmatprep.subr.bf16.mxu0 %v2477
      %2591 = vmatpush1.bf16.msra.mxu0 %v2476
      %2592 = vmatprep.subr.bf16.mxu0 0
      %2593 = vmatpush1.bf16.msra.mxu0 0
      %2594 = vmatprep.subr.bf16.mxu0 0
      %2595 = vmatpush1.bf16.msra.mxu0 0
      %2596 = vmatprep.subr.bf16.mxu0 0
      %2597 = vmatpush1.bf16.msra.mxu0 0
      %2598 = vmatprep.subr.bf16.mxu0 0
      %2599 = vmatpush1.bf16.msra.mxu0 0
      %2600 = vmatprep.subr.bf16.mxu0 0
      %2601 = vmatpush1.bf16.msra.mxu0 0
      %2602 = vmatprep.subr.bf16.mxu0 0
      %2603 = vmatpush1.bf16.msra.mxu0 0
      %2604 = vmatprep.subr.bf16.mxu0 0
      %2605 = vmatpush1.bf16.msra.mxu0 0
      %2606 = vmatprep.subr.bf16.mxu0 0
      %2607 = vmatpush1.bf16.msra.mxu0 0
      %2608 = vmatprep.subr.bf16.mxu0 0
      %2609 = vmatpush1.bf16.msra.mxu0 0
      %2610 = vmatprep.subr.bf16.mxu0 0
      %2611 = vmatpush1.bf16.msra.mxu0 0
      %2612 = vmatprep.subr.bf16.mxu0 0
      %2613 = vmatpush1.bf16.msra.mxu0 0
      %2614 = vmatprep.subr.bf16.mxu0 0
      %2615 = vmatpush1.bf16.msra.mxu0 0
      %2616 = vmatprep.subr.bf16.mxu0 0
      %2617 = vmatpush1.bf16.msra.mxu0 0
      %2618 = vmatprep.subr.bf16.mxu0 0
      %2619 = vmatpush1.bf16.msra.mxu0 0
      %2620 = vmatprep.mubr.bf16.mxu0 0
      %2621 = vmatmul.mubr.bf16.gmra.mrb[0].mxu0 %v2500
      %v2622 = vpop.f32.mrb[0].mxu0
      %v2623 = vadd.f32 0.0, %v2622
      %v2624 = vpop.f32.mrb[0].mxu0
      %v2625 = vadd.f32 0.0, %v2624
      %v2626 = vpop.f32.mrb[0].mxu0
      %v2627 = vadd.f32 0.0, %v2626
      %v2628 = vpop.f32.mrb[0].mxu0
      %v2629 = vadd.f32 0.0, %v2628
      %2630 = vdwg.mxu0
      %2631 = vmatprep.subr.bf16.mxu0 %v2470
      %2632 = vmatpush1.bf16.msra.mxu0 %v2469
      %2633 = vmatprep.subr.bf16.mxu0 %v2479
      %2634 = vmatpush1.bf16.msra.mxu0 %v2478
      %2635 = vmatprep.subr.bf16.mxu0 0
      %2636 = vmatpush1.bf16.msra.mxu0 0
      %2637 = vmatprep.subr.bf16.mxu0 0
      %2638 = vmatpush1.bf16.msra.mxu0 0
      %2639 = vmatprep.subr.bf16.mxu0 0
      %2640 = vmatpush1.bf16.msra.mxu0 0
      %2641 = vmatprep.subr.bf16.mxu0 0
      %2642 = vmatpush1.bf16.msra.mxu0 0
      %2643 = vmatprep.subr.bf16.mxu0 0
      %2644 = vmatpush1.bf16.msra.mxu0 0
      %2645 = vmatprep.subr.bf16.mxu0 0
      %2646 = vmatpush1.bf16.msra.mxu0 0
      %2647 = vmatprep.subr.bf16.mxu0 0
      %2648 = vmatpush1.bf16.msra.mxu0 0
      %2649 = vmatprep.subr.bf16.mxu0 0
      %2650 = vmatpush1.bf16.msra.mxu0 0
      %2651 = vmatprep.subr.bf16.mxu0 0
      %2652 = vmatpush1.bf16.msra.mxu0 0
      %2653 = vmatprep.subr.bf16.mxu0 0
      %2654 = vmatpush1.bf16.msra.mxu0 0
      %2655 = vmatprep.subr.bf16.mxu0 0
      %2656 = vmatpush1.bf16.msra.mxu0 0
      %2657 = vmatprep.subr.bf16.mxu0 0
      %2658 = vmatpush1.bf16.msra.mxu0 0
      %2659 = vmatprep.subr.bf16.mxu0 0
      %2660 = vmatpush1.bf16.msra.mxu0 0
      %2661 = vmatprep.subr.bf16.mxu0 0
      %2662 = vmatpush1.bf16.msra.mxu0 0
      %2663 = vmatprep.mubr.bf16.mxu0 0
      %2664 = vmatmul.mubr.bf16.gmra.mrb[0].mxu0 %v2500
      %v2665 = vpop.f32.mrb[0].mxu0
      %v2666 = vadd.f32 0.0, %v2665
      %v2667 = vpop.f32.mrb[0].mxu0
      %v2668 = vadd.f32 0.0, %v2667
      %v2669 = vpop.f32.mrb[0].mxu0
      %v2670 = vadd.f32 0.0, %v2669
      %v2671 = vpop.f32.mrb[0].mxu0
      %v2672 = vadd.f32 0.0, %v2671
      %2673 = vdwg.mxu0
      %2674 = vmatprep.subr.bf16.mxu0 0
      %2675 = vmatpush1.bf16.msra.mxu0 %v2471
      %2676 = vmatprep.subr.bf16.mxu0 0
      %2677 = vmatpush1.bf16.msra.mxu0 %v2480
      %2678 = vmatprep.subr.bf16.mxu0 0
      %2679 = vmatpush1.bf16.msra.mxu0 0
      %2680 = vmatprep.subr.bf16.mxu0 0
      %2681 = vmatpush1.bf16.msra.mxu0 0
      %2682 = vmatprep.subr.bf16.mxu0 0
      %2683 = vmatpush1.bf16.msra.mxu0 0
      %2684 = vmatprep.subr.bf16.mxu0 0
      %2685 = vmatpush1.bf16.msra.mxu0 0
      %2686 = vmatprep.subr.bf16.mxu0 0
      %2687 = vmatpush1.bf16.msra.mxu0 0
      %2688 = vmatprep.subr.bf16.mxu0 0
      %2689 = vmatpush1.bf16.msra.mxu0 0
      %2690 = vmatprep.subr.bf16.mxu0 0
      %2691 = vmatpush1.bf16.msra.mxu0 0
      %2692 = vmatprep.subr.bf16.mxu0 0
      %2693 = vmatpush1.bf16.msra.mxu0 0
      %2694 = vmatprep.subr.bf16.mxu0 0
      %2695 = vmatpush1.bf16.msra.mxu0 0
      %2696 = vmatprep.subr.bf16.mxu0 0
      %2697 = vmatpush1.bf16.msra.mxu0 0
      %2698 = vmatprep.subr.bf16.mxu0 0
      %2699 = vmatpush1.bf16.msra.mxu0 0
      %2700 = vmatprep.subr.bf16.mxu0 0
      %2701 = vmatpush1.bf16.msra.mxu0 0
      %2702 = vmatprep.subr.bf16.mxu0 0
      %2703 = vmatpush1.bf16.msra.mxu0 0
      %2704 = vmatprep.subr.bf16.mxu0 0
      %2705 = vmatpush1.bf16.msra.mxu0 0
      %2706 = vmatprep.mubr.bf16.mxu0 0
      %2707 = vmatmul.mubr.bf16.gmra.mrb[0].mxu0 %v2500
      %v2708 = vpop.f32.mrb[0].mxu0
      %v2709 = vadd.f32 0.0, %v2708
      %v2710 = vpop.f32.mrb[0].mxu0
      %v2711 = vpop.f32.mrb[0].mxu0
      %v2712 = vadd.f32 0.0, %v2711
      %v2713 = vpop.f32.mrb[0].mxu0
      %2714 = vdwg.mxu0
      %v2715 = vadd.f32 %v2396, %v2537
      %v2716 = vadd.f32 %v2397, %v2539
      %v2717 = vadd.f32 %v2398, %v2580
      %v2718 = vadd.f32 %v2399, %v2582
      %v2719 = vadd.f32 %v2400, %v2623
      %v2720 = vadd.f32 %v2401, %v2625
      %v2721 = vadd.f32 %v2402, %v2666
      %v2722 = vadd.f32 %v2403, %v2668
      %v2723 = vadd.f32 %v2404, %v2709
      %v2724 = vadd.f32 %v2405, %v2541
      %v2725 = vadd.f32 %v2406, %v2543
      %v2726 = vadd.f32 %v2407, %v2584
      %v2727 = vadd.f32 %v2408, %v2586
      %v2728 = vadd.f32 %v2409, %v2627
      %v2729 = vadd.f32 %v2410, %v2629
      %v2730 = vadd.f32 %v2411, %v2670
      %v2731 = vadd.f32 %v2412, %v2672
      %v2732 = vadd.f32 %v2413, %v2712
      %s2733 = scalar_lea.vmem %s1, 64
      %v2734 = vld [vmem:[%s2733] sm:$0xf]
      %v2735 = vld [vmem:[%s2733 + $0x4] sm:$0x3]
      %v2738 = vunpack.c.l.b16 %v2734
      %v2739 = vunpack.c.l.b16 %v2735
      %v2740 = vpack.c.b16 %v2739, %v2738
      %2741 = vrot.lane.b32.xlu0 %v2055, 58
      %v2742 = vpop.permute.xlu0 %2741
      %2743 = vrot.lane.b32.xlu0 %v2056, 58
      %v2744 = vpop.permute.xlu0 %2743
      %2745 = vrot.lane.b32.xlu0 %v2057, 58
      %v2746 = vpop.permute.xlu0 %2745
      %2747 = vrot.lane.b32.xlu0 %v2058, 58
      %v2748 = vpop.permute.xlu0 %2747
      %2749 = vrot.lane.b32.xlu0 %v2059, 58
      %v2750 = vpop.permute.xlu0 %2749
      %2751 = vrot.lane.b32.xlu0 %v2060, 58
      %v2752 = vpop.permute.xlu0 %2751
      %2753 = vrot.lane.b32.xlu0 %v2061, 58
      %v2754 = vpop.permute.xlu0 %2753
      %2755 = vrot.lane.b32.xlu0 %v2062, 58
      %v2756 = vpop.permute.xlu0 %2755
      %2757 = vrot.lane.b32.xlu0 %v2063, 58
      %v2758 = vpop.permute.xlu0 %2757
      %2759 = vrot.lane.b32.xlu0 %v2064, 58
      %v2760 = vpop.permute.xlu0 %2759
      %2761 = vrot.lane.b32.xlu0 %v2065, 58
      %v2762 = vpop.permute.xlu0 %2761
      %2763 = vrot.lane.b32.xlu0 %v2066, 58
      %v2764 = vpop.permute.xlu0 %2763
      %2765 = vrot.lane.b32.xlu0 %v2067, 58
      %v2766 = vpop.permute.xlu0 %2765
      %2767 = vrot.lane.b32.xlu0 %v2068, 58
      %v2768 = vpop.permute.xlu0 %2767
      %2769 = vrot.lane.b32.xlu0 %v2069, 58
      %v2770 = vpop.permute.xlu0 %2769
      %2771 = vrot.lane.b32.xlu0 %v2070, 58
      %v2772 = vpop.permute.xlu0 %2771
      %2773 = vrot.lane.b32.xlu0 %v2071, 58
      %v2774 = vpop.permute.xlu0 %2773
      %2775 = vrot.lane.b32.xlu0 %v2072, 58
      %v2776 = vpop.permute.xlu0 %2775
      %2777 = vrot.lane.b32.xlu0 %v2073, 58
      %v2778 = vpop.permute.xlu0 %2777
      %2779 = vrot.lane.b32.xlu0 %v2074, 58
      %v2780 = vpop.permute.xlu0 %2779
      %vm2781 = vcmask 474112
      %v2782 = vsel %vm2781, %v2742, %v2744
      %v2783 = vsel %vm2781, %v2744, %v2746
      %v2784 = vsel %vm2781, %v2746, %v2748
      %v2785 = vsel %vm2781, %v2748, %v2750
      %v2786 = vsel %vm2781, %v2750, %v2752
      %v2787 = vsel %vm2781, %v2752, %v2754
      %v2788 = vsel %vm2781, %v2754, %v2756
      %v2789 = vsel %vm2781, %v2756, %v2758
      %v2790 = vsel %vm2781, %v2758, %v2760
      %v2791 = vsel %vm2781, %v2762, %v2764
      %v2792 = vsel %vm2781, %v2764, %v2766
      %v2793 = vsel %vm2781, %v2766, %v2768
      %v2794 = vsel %vm2781, %v2768, %v2770
      %v2795 = vsel %vm2781, %v2770, %v2772
      %v2796 = vsel %vm2781, %v2772, %v2774
      %v2797 = vsel %vm2781, %v2774, %v2776
      %v2798 = vsel %vm2781, %v2776, %v2778
      %v2799 = vsel %vm2781, %v2778, %v2780
      %v2819 = vsel %vm325, %v2740, 0
      %2821 = vmatprep.subr.bf16.mxu0 %v2783
      %2822 = vmatpush1.bf16.msra.mxu0 %v2782
      %2823 = vmatprep.subr.bf16.mxu0 %v2792
      %2824 = vmatpush1.bf16.msra.mxu0 %v2791
      %2825 = vmatprep.subr.bf16.mxu0 0
      %2826 = vmatpush1.bf16.msra.mxu0 0
      %2827 = vmatprep.subr.bf16.mxu0 0
      %2828 = vmatpush1.bf16.msra.mxu0 0
      %2829 = vmatprep.subr.bf16.mxu0 0
      %2830 = vmatpush1.bf16.msra.mxu0 0
      %2831 = vmatprep.subr.bf16.mxu0 0
      %2832 = vmatpush1.bf16.msra.mxu0 0
      %2833 = vmatprep.subr.bf16.mxu0 0
      %2834 = vmatpush1.bf16.msra.mxu0 0
      %2835 = vmatprep.subr.bf16.mxu0 0
      %2836 = vmatpush1.bf16.msra.mxu0 0
      %2837 = vmatprep.subr.bf16.mxu0 0
      %2838 = vmatpush1.bf16.msra.mxu0 0
      %2839 = vmatprep.subr.bf16.mxu0 0
      %2840 = vmatpush1.bf16.msra.mxu0 0
      %2841 = vmatprep.subr.bf16.mxu0 0
      %2842 = vmatpush1.bf16.msra.mxu0 0
      %2843 = vmatprep.subr.bf16.mxu0 0
      %2844 = vmatpush1.bf16.msra.mxu0 0
      %2845 = vmatprep.subr.bf16.mxu0 0
      %2846 = vmatpush1.bf16.msra.mxu0 0
      %2847 = vmatprep.subr.bf16.mxu0 0
      %2848 = vmatpush1.bf16.msra.mxu0 0
      %2849 = vmatprep.subr.bf16.mxu0 0
      %2850 = vmatpush1.bf16.msra.mxu0 0
      %2851 = vmatprep.subr.bf16.mxu0 0
      %2852 = vmatpush1.bf16.msra.mxu0 0
      %2853 = vmatprep.mubr.bf16.mxu0 0
      %2854 = vmatmul.mubr.bf16.gmra.mrb[0].mxu0 %v2819
      %v2855 = vpop.f32.mrb[0].mxu0
      %v2856 = vadd.f32 0.0, %v2855
      %v2857 = vpop.f32.mrb[0].mxu0
      %v2858 = vadd.f32 0.0, %v2857
      %v2859 = vpop.f32.mrb[0].mxu0
      %v2860 = vadd.f32 0.0, %v2859
      %v2861 = vpop.f32.mrb[0].mxu0
      %v2862 = vadd.f32 0.0, %v2861
      %2863 = vdwg.mxu0
      %2864 = vmatprep.subr.bf16.mxu0 %v2785
      %2865 = vmatpush1.bf16.msra.mxu0 %v2784
      %2866 = vmatprep.subr.bf16.mxu0 %v2794
      %2867 = vmatpush1.bf16.msra.mxu0 %v2793
      %2868 = vmatprep.subr.bf16.mxu0 0
      %2869 = vmatpush1.bf16.msra.mxu0 0
      %2870 = vmatprep.subr.bf16.mxu0 0
      %2871 = vmatpush1.bf16.msra.mxu0 0
      %2872 = vmatprep.subr.bf16.mxu0 0
      %2873 = vmatpush1.bf16.msra.mxu0 0
      %2874 = vmatprep.subr.bf16.mxu0 0
      %2875 = vmatpush1.bf16.msra.mxu0 0
      %2876 = vmatprep.subr.bf16.mxu0 0
      %2877 = vmatpush1.bf16.msra.mxu0 0
      %2878 = vmatprep.subr.bf16.mxu0 0
      %2879 = vmatpush1.bf16.msra.mxu0 0
      %2880 = vmatprep.subr.bf16.mxu0 0
      %2881 = vmatpush1.bf16.msra.mxu0 0
      %2882 = vmatprep.subr.bf16.mxu0 0
      %2883 = vmatpush1.bf16.msra.mxu0 0
      %2884 = vmatprep.subr.bf16.mxu0 0
      %2885 = vmatpush1.bf16.msra.mxu0 0
      %2886 = vmatprep.subr.bf16.mxu0 0
      %2887 = vmatpush1.bf16.msra.mxu0 0
      %2888 = vmatprep.subr.bf16.mxu0 0
      %2889 = vmatpush1.bf16.msra.mxu0 0
      %2890 = vmatprep.subr.bf16.mxu0 0
      %2891 = vmatpush1.bf16.msra.mxu0 0
      %2892 = vmatprep.subr.bf16.mxu0 0
      %2893 = vmatpush1.bf16.msra.mxu0 0
      %2894 = vmatprep.subr.bf16.mxu0 0
      %2895 = vmatpush1.bf16.msra.mxu0 0
      %2896 = vmatprep.mubr.bf16.mxu0 0
      %2897 = vmatmul.mubr.bf16.gmra.mrb[0].mxu0 %v2819
      %v2898 = vpop.f32.mrb[0].mxu0
      %v2899 = vadd.f32 0.0, %v2898
      %v2900 = vpop.f32.mrb[0].mxu0
      %v2901 = vadd.f32 0.0, %v2900
      %v2902 = vpop.f32.mrb[0].mxu0
      %v2903 = vadd.f32 0.0, %v2902
      %v2904 = vpop.f32.mrb[0].mxu0
      %v2905 = vadd.f32 0.0, %v2904
      %2906 = vdwg.mxu0
      %2907 = vmatprep.subr.bf16.mxu0 %v2787
      %2908 = vmatpush1.bf16.msra.mxu0 %v2786
      %2909 = vmatprep.subr.bf16.mxu0 %v2796
      %2910 = vmatpush1.bf16.msra.mxu0 %v2795
      %2911 = vmatprep.subr.bf16.mxu0 0
      %2912 = vmatpush1.bf16.msra.mxu0 0
      %2913 = vmatprep.subr.bf16.mxu0 0
      %2914 = vmatpush1.bf16.msra.mxu0 0
      %2915 = vmatprep.subr.bf16.mxu0 0
      %2916 = vmatpush1.bf16.msra.mxu0 0
      %2917 = vmatprep.subr.bf16.mxu0 0
      %2918 = vmatpush1.bf16.msra.mxu0 0
      %2919 = vmatprep.subr.bf16.mxu0 0
      %2920 = vmatpush1.bf16.msra.mxu0 0
      %2921 = vmatprep.subr.bf16.mxu0 0
      %2922 = vmatpush1.bf16.msra.mxu0 0
      %2923 = vmatprep.subr.bf16.mxu0 0
      %2924 = vmatpush1.bf16.msra.mxu0 0
      %2925 = vmatprep.subr.bf16.mxu0 0
      %2926 = vmatpush1.bf16.msra.mxu0 0
      %2927 = vmatprep.subr.bf16.mxu0 0
      %2928 = vmatpush1.bf16.msra.mxu0 0
      %2929 = vmatprep.subr.bf16.mxu0 0
      %2930 = vmatpush1.bf16.msra.mxu0 0
      %2931 = vmatprep.subr.bf16.mxu0 0
      %2932 = vmatpush1.bf16.msra.mxu0 0
      %2933 = vmatprep.subr.bf16.mxu0 0
      %2934 = vmatpush1.bf16.msra.mxu0 0
      %2935 = vmatprep.subr.bf16.mxu0 0
      %2936 = vmatpush1.bf16.msra.mxu0 0
      %2937 = vmatprep.subr.bf16.mxu0 0
      %2938 = vmatpush1.bf16.msra.mxu0 0
      %2939 = vmatprep.mubr.bf16.mxu0 0
      %2940 = vmatmul.mubr.bf16.gmra.mrb[0].mxu0 %v2819
      %v2941 = vpop.f32.mrb[0].mxu0
      %v2942 = vadd.f32 0.0, %v2941
      %v2943 = vpop.f32.mrb[0].mxu0
      %v2944 = vadd.f32 0.0, %v2943
      %v2945 = vpop.f32.mrb[0].mxu0
      %v2946 = vadd.f32 0.0, %v2945
      %v2947 = vpop.f32.mrb[0].mxu0
      %v2948 = vadd.f32 0.0, %v2947
      %2949 = vdwg.mxu0
      %2950 = vmatprep.subr.bf16.mxu0 %v2789
      %2951 = vmatpush1.bf16.msra.mxu0 %v2788
      %2952 = vmatprep.subr.bf16.mxu0 %v2798
      %2953 = vmatpush1.bf16.msra.mxu0 %v2797
      %2954 = vmatprep.subr.bf16.mxu0 0
      %2955 = vmatpush1.bf16.msra.mxu0 0
      %2956 = vmatprep.subr.bf16.mxu0 0
      %2957 = vmatpush1.bf16.msra.mxu0 0
      %2958 = vmatprep.subr.bf16.mxu0 0
      %2959 = vmatpush1.bf16.msra.mxu0 0
      %2960 = vmatprep.subr.bf16.mxu0 0
      %2961 = vmatpush1.bf16.msra.mxu0 0
      %2962 = vmatprep.subr.bf16.mxu0 0
      %2963 = vmatpush1.bf16.msra.mxu0 0
      %2964 = vmatprep.subr.bf16.mxu0 0
      %2965 = vmatpush1.bf16.msra.mxu0 0
      %2966 = vmatprep.subr.bf16.mxu0 0
      %2967 = vmatpush1.bf16.msra.mxu0 0
      %2968 = vmatprep.subr.bf16.mxu0 0
      %2969 = vmatpush1.bf16.msra.mxu0 0
      %2970 = vmatprep.subr.bf16.mxu0 0
      %2971 = vmatpush1.bf16.msra.mxu0 0
      %2972 = vmatprep.subr.bf16.mxu0 0
      %2973 = vmatpush1.bf16.msra.mxu0 0
      %2974 = vmatprep.subr.bf16.mxu0 0
      %2975 = vmatpush1.bf16.msra.mxu0 0
      %2976 = vmatprep.subr.bf16.mxu0 0
      %2977 = vmatpush1.bf16.msra.mxu0 0
      %2978 = vmatprep.subr.bf16.mxu0 0
      %2979 = vmatpush1.bf16.msra.mxu0 0
      %2980 = vmatprep.subr.bf16.mxu0 0
      %2981 = vmatpush1.bf16.msra.mxu0 0
      %2982 = vmatprep.mubr.bf16.mxu0 0
      %2983 = vmatmul.mubr.bf16.gmra.mrb[0].mxu0 %v2819
      %v2984 = vpop.f32.mrb[0].mxu0
      %v2985 = vadd.f32 0.0, %v2984
      %v2986 = vpop.f32.mrb[0].mxu0
      %v2987 = vadd.f32 0.0, %v2986
      %v2988 = vpop.f32.mrb[0].mxu0
      %v2989 = vadd.f32 0.0, %v2988
      %v2990 = vpop.f32.mrb[0].mxu0
      %v2991 = vadd.f32 0.0, %v2990
      %2992 = vdwg.mxu0
      %2993 = vmatprep.subr.bf16.mxu0 0
      %2994 = vmatpush1.bf16.msra.mxu0 %v2790
      %2995 = vmatprep.subr.bf16.mxu0 0
      %2996 = vmatpush1.bf16.msra.mxu0 %v2799
      %2997 = vmatprep.subr.bf16.mxu0 0
      %2998 = vmatpush1.bf16.msra.mxu0 0
      %2999 = vmatprep.subr.bf16.mxu0 0
      %3000 = vmatpush1.bf16.msra.mxu0 0
      %3001 = vmatprep.subr.bf16.mxu0 0
      %3002 = vmatpush1.bf16.msra.mxu0 0
      %3003 = vmatprep.subr.bf16.mxu0 0
      %3004 = vmatpush1.bf16.msra.mxu0 0
      %3005 = vmatprep.subr.bf16.mxu0 0
      %3006 = vmatpush1.bf16.msra.mxu0 0
      %3007 = vmatprep.subr.bf16.mxu0 0
      %3008 = vmatpush1.bf16.msra.mxu0 0
      %3009 = vmatprep.subr.bf16.mxu0 0
      %3010 = vmatpush1.bf16.msra.mxu0 0
      %3011 = vmatprep.subr.bf16.mxu0 0
      %3012 = vmatpush1.bf16.msra.mxu0 0
      %3013 = vmatprep.subr.bf16.mxu0 0
      %3014 = vmatpush1.bf16.msra.mxu0 0
      %3015 = vmatprep.subr.bf16.mxu0 0
      %3016 = vmatpush1.bf16.msra.mxu0 0
      %3017 = vmatprep.subr.bf16.mxu0 0
      %3018 = vmatpush1.bf16.msra.mxu0 0
      %3019 = vmatprep.subr.bf16.mxu0 0
      %3020 = vmatpush1.bf16.msra.mxu0 0
      %3021 = vmatprep.subr.bf16.mxu0 0
      %3022 = vmatpush1.bf16.msra.mxu0 0
      %3023 = vmatprep.subr.bf16.mxu0 0
      %3024 = vmatpush1.bf16.msra.mxu0 0
      %3025 = vmatprep.mubr.bf16.mxu0 0
      %3026 = vmatmul.mubr.bf16.gmra.mrb[0].mxu0 %v2819
      %v3027 = vpop.f32.mrb[0].mxu0
      %v3028 = vadd.f32 0.0, %v3027
      %v3029 = vpop.f32.mrb[0].mxu0
      %v3030 = vpop.f32.mrb[0].mxu0
      %v3031 = vadd.f32 0.0, %v3030
      %v3032 = vpop.f32.mrb[0].mxu0
      %3033 = vdwg.mxu0
      %v3034 = vadd.f32 %v2715, %v2856
      %v3035 = vadd.f32 %v2716, %v2858
      %v3036 = vadd.f32 %v2717, %v2899
      %v3037 = vadd.f32 %v2718, %v2901
      %v3038 = vadd.f32 %v2719, %v2942
      %v3039 = vadd.f32 %v2720, %v2944
      %v3040 = vadd.f32 %v2721, %v2985
      %v3041 = vadd.f32 %v2722, %v2987
      %v3042 = vadd.f32 %v2723, %v3028
      %v3043 = vadd.f32 %v2724, %v2860
      %v3044 = vadd.f32 %v2725, %v2862
      %v3045 = vadd.f32 %v2726, %v2903
      %v3046 = vadd.f32 %v2727, %v2905
      %v3047 = vadd.f32 %v2728, %v2946
      %v3048 = vadd.f32 %v2729, %v2948
      %v3049 = vadd.f32 %v2730, %v2989
      %v3050 = vadd.f32 %v2731, %v2991
      %v3051 = vadd.f32 %v2732, %v3031
      %v3052 = vld [vmem:[%s2] sm:$0xff]
      %v3053 = vld [vmem:[%s2 + $0x8] sm:$0xf]
      %3055 = vset.pattern.permute.xlu0 0
      %3056 = vperm.xlu0 %3055, %v3052
      %v3057 = vpop.permute.xlu0 %3056
      %3060 = vset.pattern.permute.xlu0 0
      %3061 = vperm.xlu0 %3060, %v3053
      %v3062 = vpop.permute.xlu0 %3061
      %v3064 = vadd.f32 %v3034, %v3057
      %v3065 = vadd.f32 %v3035, %v3057
      %v3066 = vadd.f32 %v3036, %v3057
      %v3067 = vadd.f32 %v3037, %v3057
      %v3068 = vadd.f32 %v3038, %v3057
      %v3069 = vadd.f32 %v3039, %v3057
      %v3070 = vadd.f32 %v3040, %v3057
      %v3071 = vadd.f32 %v3041, %v3057
      %v3072 = vadd.f32 %v3042, %v3057
      %v3073 = vadd.f32 %v3043, %v3062
      %v3074 = vadd.f32 %v3044, %v3062
      %v3075 = vadd.f32 %v3045, %v3062
      %v3076 = vadd.f32 %v3046, %v3062
      %v3077 = vadd.f32 %v3047, %v3062
      %v3078 = vadd.f32 %v3048, %v3062
      %v3079 = vadd.f32 %v3049, %v3062
      %v3080 = vadd.f32 %v3050, %v3062
      %v3081 = vadd.f32 %v3051, %v3062
      %v3082 = vxor.u32 %v3064, 2147483648
      %v3083 = vxor.u32 %v3065, 2147483648
      %v3084 = vxor.u32 %v3066, 2147483648
      %v3085 = vxor.u32 %v3067, 2147483648
      %v3086 = vxor.u32 %v3068, 2147483648
      %v3087 = vxor.u32 %v3069, 2147483648
      %v3088 = vxor.u32 %v3070, 2147483648
      %v3089 = vxor.u32 %v3071, 2147483648
      %v3090 = vxor.u32 %v3072, 2147483648
      %v3091 = vxor.u32 %v3073, 2147483648
      %v3092 = vxor.u32 %v3074, 2147483648
      %v3093 = vxor.u32 %v3075, 2147483648
      %v3094 = vxor.u32 %v3076, 2147483648
      %v3095 = vxor.u32 %v3077, 2147483648
      %v3096 = vxor.u32 %v3078, 2147483648
      %v3097 = vxor.u32 %v3079, 2147483648
      %v3098 = vxor.u32 %v3080, 2147483648
      %v3099 = vxor.u32 %v3081, 2147483648
      %v3100 = vmul.f32 %v3082, 1.442695
      %v3101 = vpow.pop %v3100
      %v3102 = vmul.f32 %v3083, 1.442695
      %v3103 = vpow.pop %v3102
      %v3104 = vmul.f32 %v3084, 1.442695
      %v3105 = vpow.pop %v3104
      %v3106 = vmul.f32 %v3085, 1.442695
      %v3107 = vpow.pop %v3106
      %v3108 = vmul.f32 %v3086, 1.442695
      %v3109 = vpow.pop %v3108
      %v3110 = vmul.f32 %v3087, 1.442695
      %v3111 = vpow.pop %v3110
      %v3112 = vmul.f32 %v3088, 1.442695
      %v3113 = vpow.pop %v3112
      %v3114 = vmul.f32 %v3089, 1.442695
      %v3115 = vpow.pop %v3114
      %v3116 = vmul.f32 %v3090, 1.442695
      %v3117 = vpow.pop %v3116
      %v3118 = vmul.f32 %v3091, 1.442695
      %v3119 = vpow.pop %v3118
      %v3120 = vmul.f32 %v3092, 1.442695
      %v3121 = vpow.pop %v3120
      %v3122 = vmul.f32 %v3093, 1.442695
      %v3123 = vpow.pop %v3122
      %v3124 = vmul.f32 %v3094, 1.442695
      %v3125 = vpow.pop %v3124
      %v3126 = vmul.f32 %v3095, 1.442695
      %v3127 = vpow.pop %v3126
      %v3128 = vmul.f32 %v3096, 1.442695
      %v3129 = vpow.pop %v3128
      %v3130 = vmul.f32 %v3097, 1.442695
      %v3131 = vpow.pop %v3130
      %v3132 = vmul.f32 %v3098, 1.442695
      %v3133 = vpow.pop %v3132
      %v3134 = vmul.f32 %v3099, 1.442695
      %v3135 = vpow.pop %v3134
      %v3136 = vadd.f32 %v3101, 1.0
      %v3137 = vadd.f32 %v3103, 1.0
      %v3138 = vadd.f32 %v3105, 1.0
      %v3139 = vadd.f32 %v3107, 1.0
      %v3140 = vadd.f32 %v3109, 1.0
      %v3141 = vadd.f32 %v3111, 1.0
      %v3142 = vadd.f32 %v3113, 1.0
      %v3143 = vadd.f32 %v3115, 1.0
      %v3144 = vadd.f32 %v3117, 1.0
      %v3145 = vadd.f32 %v3119, 1.0
      %v3146 = vadd.f32 %v3121, 1.0
      %v3147 = vadd.f32 %v3123, 1.0
      %v3148 = vadd.f32 %v3125, 1.0
      %v3149 = vadd.f32 %v3127, 1.0
      %v3150 = vadd.f32 %v3129, 1.0
      %v3151 = vadd.f32 %v3131, 1.0
      %v3152 = vadd.f32 %v3133, 1.0
      %v3153 = vadd.f32 %v3135, 1.0
      %v3154 = vrcp.pop %v3136
      %v3155 = vmul.f32 1.0, %v3154
      %v3156 = vrcp.pop %v3137
      %v3157 = vmul.f32 1.0, %v3156
      %v3158 = vrcp.pop %v3138
      %v3159 = vmul.f32 1.0, %v3158
      %v3160 = vrcp.pop %v3139
      %v3161 = vmul.f32 1.0, %v3160
      %v3162 = vrcp.pop %v3140
      %v3163 = vmul.f32 1.0, %v3162
      %v3164 = vrcp.pop %v3141
      %v3165 = vmul.f32 1.0, %v3164
      %v3166 = vrcp.pop %v3142
      %v3167 = vmul.f32 1.0, %v3166
      %v3168 = vrcp.pop %v3143
      %v3169 = vmul.f32 1.0, %v3168
      %v3170 = vrcp.pop %v3144
      %v3171 = vmul.f32 1.0, %v3170
      %v3172 = vrcp.pop %v3145
      %v3173 = vmul.f32 1.0, %v3172
      %v3174 = vrcp.pop %v3146
      %v3175 = vmul.f32 1.0, %v3174
      %v3176 = vrcp.pop %v3147
      %v3177 = vmul.f32 1.0, %v3176
      %v3178 = vrcp.pop %v3148
      %v3179 = vmul.f32 1.0, %v3178
      %v3180 = vrcp.pop %v3149
      %v3181 = vmul.f32 1.0, %v3180
      %v3182 = vrcp.pop %v3150
      %v3183 = vmul.f32 1.0, %v3182
      %v3184 = vrcp.pop %v3151
      %v3185 = vmul.f32 1.0, %v3184
      %v3186 = vrcp.pop %v3152
      %v3187 = vmul.f32 1.0, %v3186
      %v3188 = vrcp.pop %v3153
      %v3189 = vmul.f32 1.0, %v3188
      %3190 = vst [vmem:[%s170] sm:$0xff] %v3155
      %3191 = vst [vmem:[%s170 + $0x8] sm:$0xff] %v3157
      %3192 = vst [vmem:[%s170 + $0x10] sm:$0xff] %v3159
      %3193 = vst [vmem:[%s170 + $0x18] sm:$0xff] %v3161
      %3194 = vst [vmem:[%s170 + $0x20] sm:$0xff] %v3163
      %3195 = vst [vmem:[%s170 + $0x28] sm:$0xff] %v3165
      %3196 = vst [vmem:[%s170 + $0x30] sm:$0xff] %v3167
      %3197 = vst [vmem:[%s170 + $0x38] sm:$0xff] %v3169
      %vm3198 = vcmask 506880
      %3199 = vst.msk [vmem:[%s170 + $0x40] sm:$0xff] %vm3198, %v3171
      %3200 = vst [vmem:[%s170 + $0x48] sm:$0xf] %v3173
      %3201 = vst [vmem:[%s170 + $0x50] sm:$0xf] %v3175
      %3202 = vst [vmem:[%s170 + $0x58] sm:$0xf] %v3177
      %3203 = vst [vmem:[%s170 + $0x60] sm:$0xf] %v3179
      %3204 = vst [vmem:[%s170 + $0x68] sm:$0xf] %v3181
      %3205 = vst [vmem:[%s170 + $0x70] sm:$0xf] %v3183
      %3206 = vst [vmem:[%s170 + $0x78] sm:$0xf] %v3185
      %3207 = vst [vmem:[%s170 + $0x80] sm:$0xf] %v3187
      %vm3208 = vcmask 502784
      %3209 = vst.msk [vmem:[%s170 + $0x88] sm:$0xf] %vm3208, %v3189
      %p3210 = scmp.lt.s32.totalorder %s14, 1
      %s3211 = scalar_select %p3210, %s14, 1
      %s3212 = smul.addr %s3211, 18
      %s3213 = smul.addr %s3212, 8
      %s3214 = scalar_lea.vmem %s3, %s3213
      // Predicated region
      $region33: #{decoder_forward.7} parent=31 // pred_check
        %p3215 = pneg %p100
      $region34: #{decoder_forward.7} parent=31 // pred_check_branch
        %3217 = sbr.rel (%p3215) target = $region36
      $region35: #{decoder_forward.7} parent=31 // pred_region
        _
      $region36: #{decoder_forward.7} parent=31 // pred_fallthru
        _
    $region32: #{decoder_forward.7} parent=5 // pred_fallthru
      _
    %p3218 = scmp.le.s32.totalorder 2, %s9
    // Predicated region
    $region37: #{decoder_forward.7} parent=5 // pred_check
      %p3219 = pneg %p3218
    $region38: #{decoder_forward.7} parent=5 // pred_check_branch
      %3221 = sbr.rel (%p3219) target = $region40
    $region39: #{decoder_forward.7} parent=5 // pred_region
      %s3222 = ssub.s32 %s9, 2
      // Predicated region
      $region41: #{decoder_forward.7} parent=39 // pred_check
        %p3223 = pneg %p106
      $region42: #{decoder_forward.7} parent=39 // pred_check_branch
        %3225 = sbr.rel (%p3223) target = $region44
      $region43: #{decoder_forward.7} parent=39 // pred_region
        %p3226 = scmp.lt.s32.totalorder %s15, 1
        %s3227 = scalar_select %p3226, %s15, 1
        %s3228 = smul.addr %s3227, 18
        %s3229 = smul.addr %s3228, 8
        %s3230 = scalar_lea.vmem %s3, %s3229
      $region44: #{decoder_forward.7} parent=39 // pred_fallthru
        _
    $region40: #{decoder_forward.7} parent=5 // pred_fallthru
      _
  $region6: #{decoder_forward.7} parent=0 // loop_footer
    %s13 = sadd.s32 1, %s9
  $region7: #{decoder_forward.7} parent=0 // loop_footer_branch
    %8 = sbr.rel target = $region3
  $region8: #{decoder_forward.7} parent=0 // loop_exit
    _

</llo_original>
